<compile_context>
chip_gen: v6e
topology: v6e:2x2x1
jax: 0.10.0
libtpu: 0.0.40
codegen_flags: <defaults>
</compile_context>

<pallas_src>
import numpy as np
import jax
import jax.numpy as jnp
from jax.experimental import pallas as pl
from jax.experimental.pallas import tpu as pltpu

H1 = 512
H2 = 256


def _round_up(x, m):
    return (x + m - 1) // m * m


def _cdiv(a, b):
    return -(-a // b)


def _discriminator_kernel(x_ref, w1_ref, b1_ref, w2_ref, b2_ref, w3_ref, b3_ref,
                          o_ref):
    """One (tile_b, F) batch tile through all three layers.

    x_ref : (tile_b, F) f32 (streamed)   w1_ref: (F, 512) bf16   b1_ref: (1, 512) f32
    w2_ref: (512, 256) bf16              b2_ref: (1, 256) f32
    w3_ref: (1, 256)  f32 (row vec)      b3_ref: (1, 1)   f32
    o_ref : (1, tile_b) f32 (lane-dense row of sigmoid outputs)
    """
    # Cast the streamed f32 tile to bf16 in-kernel (VPU is idle; halves the
    # HBM traffic that the old wrapper-side cast pass cost).
    x = x_ref[...].astype(jnp.bfloat16)

    # Layer 1: bf16 MXU matmul, f32 accumulation, f32 epilogue.
    h1 = jnp.dot(x, w1_ref[...], preferred_element_type=jnp.float32) + b1_ref[...]
    h1 = jnp.maximum(h1, 0.2 * h1)                       # LeakyReLU(0.2): mul + max

    # Layer 2.
    h2 = jnp.dot(h1.astype(jnp.bfloat16), w2_ref[...],
                 preferred_element_type=jnp.float32) + b2_ref[...]
    h2 = jnp.maximum(h2, 0.2 * h2)

    # Layer 3 (256 -> 1), computed in transposed orientation so the final
    # store is lane-dense: (1, 256) . (tile_b, 256)^T -> (1, tile_b).
    logits = jax.lax.dot_general(
        w3_ref[...], h2,
        dimension_numbers=(((1,), (1,)), ((), ())),
        preferred_element_type=jnp.float32) + b3_ref[...]

    # Sigmoid: exp + approx reciprocal both ride the EUP slot; clip so exp
    # can never overflow to inf (no NaN risk for extreme logits).
    logits = jnp.clip(logits, -30.0, 30.0)
    o_ref[...] = pl.reciprocal(1.0 + jnp.exp(-logits), approx=True)


def init_discriminator_params(key, img_size):
    """PyTorch-style init: U(-1/sqrt(fan_in), 1/sqrt(fan_in)).

    The two big weight matrices are stored in bf16 (halves HBM traffic and
    VMEM footprint); biases and the tiny 256x1 head stay f32.
    """
    f_in = int(np.prod(img_size))
    dims = [(f_in, H1), (H1, H2), (H2, 1)]
    params = []
    for li, (din, dout) in enumerate(dims):
        key, kw, kb = jax.random.split(key, 3)
        bound = 1.0 / np.sqrt(din)
        w = jax.random.uniform(kw, (din, dout), jnp.float32, -bound, bound)
        b = jax.random.uniform(kb, (1, dout), jnp.float32, -bound, bound)
        if li < 2:
            w = w.astype(jnp.bfloat16)
        params += [w, b]
    return tuple(params)  # (w1, b1, w2, b2, w3, b3)


def _pick_tile_b(B, f_in):
    """Batch-tile size: multiple of 128, >=2 grid steps when B allows (v7x
    megacore), capped at 1024 and by a ~16 MiB budget for the double-buffered
    f32 x tile."""
    want = _round_up(max(1, _cdiv(B, 2)), 128)
    cap = max(128, ((16 << 20) // max(1, 2 * f_in * 4)) // 128 * 128)
    return int(min(want, 1024, cap))


def _vmem_cap_bytes():
    """75% of physical VMEM if queryable, else 48 MiB (safe on v7x's 64 MiB)."""
    try:
        return int(pltpu.get_tpu_info().vmem_capacity_bytes * 3 // 4)
    except Exception:
        return 48 << 20


def _vmem_request_bytes(tile_b, f_in, w_bufs):
    bytes_x = 2 * tile_b * f_in * 4                               # dbl-buffered f32 x tile
    bytes_w = w_bufs * ((f_in * H1 + H1 * H2) * 2                 # bf16 W1, W2
                        + (H1 + 2 * H2 + 1) * 4)                  # f32 b1, b2, w3, b3
    bytes_out = 2 * tile_b * 4                                    # dbl-buffered out row
    bytes_act = tile_b * (f_in * 2 + (H1 + H2) * 6)               # bf16 x copy + h1/h2
    return bytes_x + bytes_w + bytes_out + bytes_act + (4 << 20)  # + headroom


def discriminator_forward(x, params, *, tile_b=None):
    """x: (B, C, H, W) float32 (NCHW, same as PyTorch). Returns (B, 1) float32."""
    w1, b1, w2, b2, w3, b3 = params
    B = x.shape[0]
    f_in = int(np.prod(x.shape[1:]))
    assert w1.shape[0] == f_in, (w1.shape, f_in)

    # Flatten (metadata-only reshape; no HBM pass).
    x_flat = x.reshape(B, f_in)
    if x_flat.dtype != jnp.float32:
        x_flat = x_flat.astype(jnp.float32)

    if tile_b is None:
        tile_b = _pick_tile_b(B, f_in)
    b_pad = _round_up(B, tile_b)
    if b_pad != B:
        x_flat = jnp.pad(x_flat, ((0, b_pad - B), (0, 0)))
    n_tiles = b_pad // tile_b

    w1 = w1.astype(jnp.bfloat16)
    w2 = w2.astype(jnp.bfloat16)
    b1 = b1.reshape(1, H1).astype(jnp.float32)
    b2 = b2.reshape(1, H2).astype(jnp.float32)
    w3_row = w3.reshape(1, H2).astype(jnp.float32)
    b3 = b3.reshape(1, 1).astype(jnp.float32)

    def run(single_buffer_weights):
        # Weights/biases use a constant index map -> VMEM-resident across the
        # whole grid; single-buffer them (the default 2nd buffer is waste).
        w_kwargs = ({"pipeline_mode": pl.Buffered(1)}
                    if single_buffer_weights else {})
        w_bufs = 1 if single_buffer_weights else 2

        def const_map(i):
            return (0, 0)

        in_specs = [
            pl.BlockSpec((tile_b, f_in), lambda i: (i, 0)),        # x: streamed f32 tiles
            pl.BlockSpec((f_in, H1), const_map, **w_kwargs),       # W1
            pl.BlockSpec((1, H1), const_map, **w_kwargs),          # b1
            pl.BlockSpec((H1, H2), const_map, **w_kwargs),         # W2
            pl.BlockSpec((1, H2), const_map, **w_kwargs),          # b2
            pl.BlockSpec((1, H2), const_map, **w_kwargs),          # W3 row
            pl.BlockSpec((1, 1), const_map, **w_kwargs),           # b3
        ]
        # Lane-dense output: one (1, tile_b) row per grid step.
        out_specs = pl.BlockSpec((1, tile_b), lambda i: (0, i))

        vmem_limit = int(min(max(_vmem_request_bytes(tile_b, f_in, w_bufs),
                                 32 << 20),
                             _vmem_cap_bytes()))

        flops = 2 * b_pad * (f_in * H1 + H1 * H2 + H2)
        bytes_accessed = (b_pad * f_in * 4                         # x (f32, read once)
                          + (f_in * H1 + H1 * H2) * 2              # bf16 weights
                          + (H1 + 2 * H2 + 1) * 4                  # f32 biases + w3
                          + b_pad * 4)                             # output
        cost = pl.CostEstimate(flops=int(flops), transcendentals=int(b_pad),
                               bytes_accessed=int(bytes_accessed))

        return pl.pallas_call(
            _discriminator_kernel,
            out_shape=jax.ShapeDtypeStruct((1, b_pad), jnp.float32),
            grid=(n_tiles,),
            in_specs=in_specs,
            out_specs=out_specs,
            compiler_params=pltpu.CompilerParams(
                dimension_semantics=("parallel",),
                vmem_limit_bytes=vmem_limit,
            ),
            cost_estimate=cost,
        )(x_flat, w1, b1, w2, b2, w3_row, b3)

    try:
        out = run(single_buffer_weights=True)
    except Exception:
        # If this JAX build rejects Buffered(1) on a top-level pallas_call,
        # fall back to default double-buffering (identical semantics).
        out = run(single_buffer_weights=False)

    return out[0, :B].reshape(B, 1)


def _reference_forward(x, params):
    """Pure-JAX f32 reference (same bf16-quantized weight values)."""
    w1, b1, w2, b2, w3, b3 = params
    h = x.reshape(x.shape[0], -1).astype(jnp.float32)
    h = h @ w1.astype(jnp.float32) + b1
    h = jnp.where(h >= 0, h, 0.2 * h)
    h = h @ w2.astype(jnp.float32) + b2
    h = jnp.where(h >= 0, h, 0.2 * h)
    h = h @ w3.astype(jnp.float32) + b3
    return jax.nn.sigmoid(h)


if __name__ == "__main__":
    key = jax.random.PRNGKey(0)
    img_size = (4, 16, 16)          # params['img_size']; prod = 1024 input features
    batch = 2

    k_x, k_p = jax.random.split(key)
    x = jax.random.normal(k_x, (batch,) + img_size, dtype=jnp.float32)
    params = init_discriminator_params(k_p, img_size)

    out = jax.block_until_ready(discriminator_forward(x, params))
    ref = jax.block_until_ready(_reference_forward(x, params))

    assert out.shape == (batch, 1), out.shape
    # bf16 matmul path (f32 accumulation) + approx-reciprocal sigmoid vs the
    # f32 reference -> loosened tolerance.
    assert np.allclose(np.asarray(out), np.asarray(ref), atol=2e-2, rtol=2e-2), (
        np.asarray(out), np.asarray(ref))

    print("KERNEL_OK")
</pallas_src>

<mosaic_0001>
module attributes {stable_mosaic.version = 11 : i64} {
  func.func @_discriminator_kernel(%arg0: i32, %arg1: memref<128x1024xf32, #tpu.memory_space<vmem>>, %arg2: memref<1024x512xbf16, #tpu.memory_space<vmem>>, %arg3: memref<1x512xf32, #tpu.memory_space<vmem>>, %arg4: memref<512x256xbf16, #tpu.memory_space<vmem>>, %arg5: memref<1x256xf32, #tpu.memory_space<vmem>>, %arg6: memref<1x256xf32, #tpu.memory_space<vmem>>, %arg7: memref<1x1xf32, #tpu.memory_space<vmem>>, %arg8: memref<1x128xf32, #tpu.memory_space<vmem>>) attributes {dimension_semantics = [#tpu.dimension_semantics<parallel>], iteration_bounds = array<i64: 1>, scalar_prefetch = 0 : i64, scratch_operands = 0 : i64, tpu.core_type = #tpu.core_type<tc>, window_params = [{transform_indices = @transform_0, window_bounds = array<i64: 128, 1024>}, {pipeline_mode = #tpu.pipeline_mode<synchronous>, transform_indices = @transform_1, window_bounds = array<i64: 1024, 512>}, {pipeline_mode = #tpu.pipeline_mode<synchronous>, transform_indices = @transform_2, window_bounds = array<i64: 1, 512>}, {pipeline_mode = #tpu.pipeline_mode<synchronous>, transform_indices = @transform_3, window_bounds = array<i64: 512, 256>}, {pipeline_mode = #tpu.pipeline_mode<synchronous>, transform_indices = @transform_4, window_bounds = array<i64: 1, 256>}, {pipeline_mode = #tpu.pipeline_mode<synchronous>, transform_indices = @transform_5, window_bounds = array<i64: 1, 256>}, {pipeline_mode = #tpu.pipeline_mode<synchronous>, transform_indices = @transform_6, window_bounds = array<i64: 1, 1>}, {transform_indices = @transform_7, window_bounds = array<i64: 1, 128>}]} {
    %c0 = arith.constant 0 : index
    %c0_0 = arith.constant 0 : index
    %0 = vector.load %arg1[%c0, %c0_0] : memref<128x1024xf32, #tpu.memory_space<vmem>>, vector<128x1024xf32>
    %1 = arith.truncf %0 : vector<128x1024xf32> to vector<128x1024xbf16>
    %c0_1 = arith.constant 0 : index
    %c0_2 = arith.constant 0 : index
    %2 = vector.load %arg2[%c0_1, %c0_2] : memref<1024x512xbf16, #tpu.memory_space<vmem>>, vector<1024x512xbf16>
    %cst = arith.constant dense<0.000000e+00> : vector<128x512xf32>
    %3 = tpu.matmul %1, %2, %cst {dimension_numbers = #tpu.dot_dimension_numbers<[1], [0], [0], [1], [0, 0, 1, 1], [], []>} : vector<128x1024xbf16>, vector<1024x512xbf16>, vector<128x512xf32> -> vector<128x512xf32>
    %c0_3 = arith.constant 0 : index
    %c0_4 = arith.constant 0 : index
    %4 = vector.load %arg3[%c0_3, %c0_4] : memref<1x512xf32, #tpu.memory_space<vmem>>, vector<1x512xf32>
    %5 = vector.broadcast %4 : vector<1x512xf32> to vector<128x512xf32>
    %6 = arith.addf %3, %5 : vector<128x512xf32>
    %cst_5 = arith.constant 2.000000e-01 : f32
    %7 = vector.broadcast %cst_5 : f32 to vector<128x512xf32>
    %8 = arith.mulf %7, %6 : vector<128x512xf32>
    %9 = arith.maximumf %6, %8 : vector<128x512xf32>
    %10 = arith.truncf %9 : vector<128x512xf32> to vector<128x512xbf16>
    %c0_6 = arith.constant 0 : index
    %c0_7 = arith.constant 0 : index
    %11 = vector.load %arg4[%c0_6, %c0_7] : memref<512x256xbf16, #tpu.memory_space<vmem>>, vector<512x256xbf16>
    %cst_8 = arith.constant dense<0.000000e+00> : vector<128x256xf32>
    %12 = tpu.matmul %10, %11, %cst_8 {dimension_numbers = #tpu.dot_dimension_numbers<[1], [0], [0], [1], [0, 0, 1, 1], [], []>} : vector<128x512xbf16>, vector<512x256xbf16>, vector<128x256xf32> -> vector<128x256xf32>
    %c0_9 = arith.constant 0 : index
    %c0_10 = arith.constant 0 : index
    %13 = vector.load %arg5[%c0_9, %c0_10] : memref<1x256xf32, #tpu.memory_space<vmem>>, vector<1x256xf32>
    %14 = vector.broadcast %13 : vector<1x256xf32> to vector<128x256xf32>
    %15 = arith.addf %12, %14 : vector<128x256xf32>
    %cst_11 = arith.constant 2.000000e-01 : f32
    %16 = vector.broadcast %cst_11 : f32 to vector<128x256xf32>
    %17 = arith.mulf %16, %15 : vector<128x256xf32>
    %18 = arith.maximumf %15, %17 : vector<128x256xf32>
    %c0_12 = arith.constant 0 : index
    %c0_13 = arith.constant 0 : index
    %19 = vector.load %arg6[%c0_12, %c0_13] : memref<1x256xf32, #tpu.memory_space<vmem>>, vector<1x256xf32>
    %cst_14 = arith.constant dense<0.000000e+00> : vector<1x128xf32>
    %20 = tpu.matmul %19, %18, %cst_14 {dimension_numbers = #tpu.dot_dimension_numbers<[1], [1], [0], [0], [0, 0, 1, 0], [], []>} : vector<1x256xf32>, vector<128x256xf32>, vector<1x128xf32> -> vector<1x128xf32>
    %c0_15 = arith.constant 0 : index
    %c0_16 = arith.constant 0 : index
    %21 = vector.load %arg7[%c0_15, %c0_16] : memref<1x1xf32, #tpu.memory_space<vmem>>, vector<1x1xf32>
    %22 = vector.broadcast %21 : vector<1x1xf32> to vector<1x128xf32>
    %23 = arith.addf %20, %22 : vector<1x128xf32>
    %cst_17 = arith.constant -3.000000e+01 : f32
    %cst_18 = arith.constant 3.000000e+01 : f32
    %24 = vector.broadcast %cst_17 : f32 to vector<1x128xf32>
    %25 = arith.maximumf %24, %23 : vector<1x128xf32>
    %26 = vector.broadcast %cst_18 : f32 to vector<1x128xf32>
    %27 = arith.minimumf %26, %25 : vector<1x128xf32>
    %cst_19 = arith.constant 0.000000e+00 : f32
    %28 = vector.broadcast %cst_19 : f32 to vector<1x128xf32>
    %29 = arith.subf %28, %27 : vector<1x128xf32>
    %30 = math.exp %29 : vector<1x128xf32>
    %cst_20 = arith.constant 1.000000e+00 : f32
    %31 = vector.broadcast %cst_20 : f32 to vector<1x128xf32>
    %32 = arith.addf %31, %30 : vector<1x128xf32>
    %33 = tpu.reciprocal %32 {approx = true} : vector<1x128xf32> -> vector<1x128xf32>
    %c0_21 = arith.constant 0 : index
    %c0_22 = arith.constant 0 : index
    %34 = vector.load %arg8[%c0_21, %c0_22] : memref<1x128xf32, #tpu.memory_space<vmem>>, vector<1x128xf32>
    tpu.vector_store %arg8[%c0_21, %c0_22], %33 {strides = array<i32>} : memref<1x128xf32, #tpu.memory_space<vmem>>, vector<1x128xf32>,
    return
  }
  func.func @transform_0(%arg0: i32) -> (i32, i32) {
    %c0_i32 = arith.constant 0 : i32
    %c0_i32_0 = arith.constant 0 : i32
    return %arg0, %c0_i32 : i32, i32
  }
  func.func @transform_1(%arg0: i32) -> (i32, i32) {
    %c0_i32 = arith.constant 0 : i32
    %c0_i32_0 = arith.constant 0 : i32
    %c0_i32_1 = arith.constant 0 : i32
    return %c0_i32, %c0_i32_0 : i32, i32
  }
  func.func @transform_2(%arg0: i32) -> (i32, i32) {
    %c0_i32 = arith.constant 0 : i32
    %c0_i32_0 = arith.constant 0 : i32
    %c0_i32_1 = arith.constant 0 : i32
    return %c0_i32, %c0_i32_0 : i32, i32
  }
  func.func @transform_3(%arg0: i32) -> (i32, i32) {
    %c0_i32 = arith.constant 0 : i32
    %c0_i32_0 = arith.constant 0 : i32
    %c0_i32_1 = arith.constant 0 : i32
    return %c0_i32, %c0_i32_0 : i32, i32
  }
  func.func @transform_4(%arg0: i32) -> (i32, i32) {
    %c0_i32 = arith.constant 0 : i32
    %c0_i32_0 = arith.constant 0 : i32
    %c0_i32_1 = arith.constant 0 : i32
    return %c0_i32, %c0_i32_0 : i32, i32
  }
  func.func @transform_5(%arg0: i32) -> (i32, i32) {
    %c0_i32 = arith.constant 0 : i32
    %c0_i32_0 = arith.constant 0 : i32
    %c0_i32_1 = arith.constant 0 : i32
    return %c0_i32, %c0_i32_0 : i32, i32
  }
  func.func @transform_6(%arg0: i32) -> (i32, i32) {
    %c0_i32 = arith.constant 0 : i32
    %c0_i32_0 = arith.constant 0 : i32
    %c0_i32_1 = arith.constant 0 : i32
    return %c0_i32, %c0_i32_0 : i32, i32
  }
  func.func @transform_7(%arg0: i32) -> (i32, i32) {
    %c0_i32 = arith.constant 0 : i32
    %c0_i32_0 = arith.constant 0 : i32
    return %c0_i32, %arg0 : i32, i32
  }
}

module attributes {stable_mosaic.version = 11 : i64} {
  func.func @_discriminator_kernel(%arg0: i32, %arg1: memref<128x1024xf32, #tpu.memory_space<vmem>>, %arg2: memref<1024x512xbf16, #tpu.memory_space<vmem>>, %arg3: memref<1x512xf32, #tpu.memory_space<vmem>>, %arg4: memref<512x256xbf16, #tpu.memory_space<vmem>>, %arg5: memref<1x256xf32, #tpu.memory_space<vmem>>, %arg6: memref<1x256xf32, #tpu.memory_space<vmem>>, %arg7: memref<1x1xf32, #tpu.memory_space<vmem>>, %arg8: memref<1x128xf32, #tpu.memory_space<vmem>>) attributes {dimension_semantics = [#tpu.dimension_semantics<parallel>], iteration_bounds = array<i64: 1>, scalar_prefetch = 0 : i64, scratch_operands = 0 : i64, tpu.core_type = #tpu.core_type<tc>, window_params = [{transform_indices = @transform_0, window_bounds = array<i64: 128, 1024>}, {pipeline_mode = #tpu.pipeline_mode<synchronous>, transform_indices = @transform_1, window_bounds = array<i64: 1024, 512>}, {pipeline_mode = #tpu.pipeline_mode<synchronous>, transform_indices = @transform_2, window_bounds = array<i64: 1, 512>}, {pipeline_mode = #tpu.pipeline_mode<synchronous>, transform_indices = @transform_3, window_bounds = array<i64: 512, 256>}, {pipeline_mode = #tpu.pipeline_mode<synchronous>, transform_indices = @transform_4, window_bounds = array<i64: 1, 256>}, {pipeline_mode = #tpu.pipeline_mode<synchronous>, transform_indices = @transform_5, window_bounds = array<i64: 1, 256>}, {pipeline_mode = #tpu.pipeline_mode<synchronous>, transform_indices = @transform_6, window_bounds = array<i64: 1, 1>}, {transform_indices = @transform_7, window_bounds = array<i64: 1, 128>}]} {
    %c0 = arith.constant 0 : index
    %c0_0 = arith.constant 0 : index
    %0 = vector.load %arg1[%c0, %c0_0] : memref<128x1024xf32, #tpu.memory_space<vmem>>, vector<128x1024xf32>
    %1 = arith.truncf %0 : vector<128x1024xf32> to vector<128x1024xbf16>
    %c0_1 = arith.constant 0 : index
    %c0_2 = arith.constant 0 : index
    %2 = vector.load %arg2[%c0_1, %c0_2] : memref<1024x512xbf16, #tpu.memory_space<vmem>>, vector<1024x512xbf16>
    %cst = arith.constant dense<0.000000e+00> : vector<128x512xf32>
    %3 = tpu.matmul %1, %2, %cst {dimension_numbers = #tpu.dot_dimension_numbers<[1], [0], [0], [1], [0, 0, 1, 1], [], []>} : vector<128x1024xbf16>, vector<1024x512xbf16>, vector<128x512xf32> -> vector<128x512xf32>
    %c0_3 = arith.constant 0 : index
    %c0_4 = arith.constant 0 : index
    %4 = vector.load %arg3[%c0_3, %c0_4] : memref<1x512xf32, #tpu.memory_space<vmem>>, vector<1x512xf32>
    %5 = vector.broadcast %4 : vector<1x512xf32> to vector<128x512xf32>
    %6 = arith.addf %3, %5 : vector<128x512xf32>
    %cst_5 = arith.constant 2.000000e-01 : f32
    %7 = vector.broadcast %cst_5 : f32 to vector<128x512xf32>
    %8 = arith.mulf %7, %6 : vector<128x512xf32>
    %9 = arith.maximumf %6, %8 : vector<128x512xf32>
    %10 = arith.truncf %9 : vector<128x512xf32> to vector<128x512xbf16>
    %c0_6 = arith.constant 0 : index
    %c0_7 = arith.constant 0 : index
    %11 = vector.load %arg4[%c0_6, %c0_7] : memref<512x256xbf16, #tpu.memory_space<vmem>>, vector<512x256xbf16>
    %cst_8 = arith.constant dense<0.000000e+00> : vector<128x256xf32>
    %12 = tpu.matmul %10, %11, %cst_8 {dimension_numbers = #tpu.dot_dimension_numbers<[1], [0], [0], [1], [0, 0, 1, 1], [], []>} : vector<128x512xbf16>, vector<512x256xbf16>, vector<128x256xf32> -> vector<128x256xf32>
    %c0_9 = arith.constant 0 : index
    %c0_10 = arith.constant 0 : index
    %13 = vector.load %arg5[%c0_9, %c0_10] : memref<1x256xf32, #tpu.memory_space<vmem>>, vector<1x256xf32>
    %14 = vector.broadcast %13 : vector<1x256xf32> to vector<128x256xf32>
    %15 = arith.addf %12, %14 : vector<128x256xf32>
    %cst_11 = arith.constant 2.000000e-01 : f32
    %16 = vector.broadcast %cst_11 : f32 to vector<128x256xf32>
    %17 = arith.mulf %16, %15 : vector<128x256xf32>
    %18 = arith.maximumf %15, %17 : vector<128x256xf32>
    %c0_12 = arith.constant 0 : index
    %c0_13 = arith.constant 0 : index
    %19 = vector.load %arg6[%c0_12, %c0_13] : memref<1x256xf32, #tpu.memory_space<vmem>>, vector<1x256xf32>
    %cst_14 = arith.constant dense<0.000000e+00> : vector<1x128xf32>
    %20 = tpu.matmul %19, %18, %cst_14 {dimension_numbers = #tpu.dot_dimension_numbers<[1], [1], [0], [0], [0, 0, 1, 0], [], []>} : vector<1x256xf32>, vector<128x256xf32>, vector<1x128xf32> -> vector<1x128xf32>
    %c0_15 = arith.constant 0 : index
    %c0_16 = arith.constant 0 : index
    %21 = vector.load %arg7[%c0_15, %c0_16] : memref<1x1xf32, #tpu.memory_space<vmem>>, vector<1x1xf32>
    %22 = vector.broadcast %21 : vector<1x1xf32> to vector<1x128xf32>
    %23 = arith.addf %20, %22 : vector<1x128xf32>
    %cst_17 = arith.constant -3.000000e+01 : f32
    %cst_18 = arith.constant 3.000000e+01 : f32
    %24 = vector.broadcast %cst_17 : f32 to vector<1x128xf32>
    %25 = arith.maximumf %24, %23 : vector<1x128xf32>
    %26 = vector.broadcast %cst_18 : f32 to vector<1x128xf32>
    %27 = arith.minimumf %26, %25 : vector<1x128xf32>
    %cst_19 = arith.constant 0.000000e+00 : f32
    %28 = vector.broadcast %cst_19 : f32 to vector<1x128xf32>
    %29 = arith.subf %28, %27 : vector<1x128xf32>
    %30 = math.exp %29 : vector<1x128xf32>
    %cst_20 = arith.constant 1.000000e+00 : f32
    %31 = vector.broadcast %cst_20 : f32 to vector<1x128xf32>
    %32 = arith.addf %31, %30 : vector<1x128xf32>
    %33 = tpu.reciprocal %32 {approx = true} : vector<1x128xf32> -> vector<1x128xf32>
    %c0_21 = arith.constant 0 : index
    %c0_22 = arith.constant 0 : index
    %34 = vector.load %arg8[%c0_21, %c0_22] : memref<1x128xf32, #tpu.memory_space<vmem>>, vector<1x128xf32>
    tpu.vector_store %arg8[%c0_21, %c0_22], %33 {strides = array<i32>} : memref<1x128xf32, #tpu.memory_space<vmem>>, vector<1x128xf32>,
    return
  }
  func.func @transform_0(%arg0: i32) -> (i32, i32) {
    %c0_i32 = arith.constant 0 : i32
    %c0_i32_0 = arith.constant 0 : i32
    return %arg0, %c0_i32 : i32, i32
  }
  func.func @transform_1(%arg0: i32) -> (i32, i32) {
    %c0_i32 = arith.constant 0 : i32
    %c0_i32_0 = arith.constant 0 : i32
    %c0_i32_1 = arith.constant 0 : i32
    return %c0_i32, %c0_i32_0 : i32, i32
  }
  func.func @transform_2(%arg0: i32) -> (i32, i32) {
    %c0_i32 = arith.constant 0 : i32
    %c0_i32_0 = arith.constant 0 : i32
    %c0_i32_1 = arith.constant 0 : i32
    return %c0_i32, %c0_i32_0 : i32, i32
  }
  func.func @transform_3(%arg0: i32) -> (i32, i32) {
    %c0_i32 = arith.constant 0 : i32
    %c0_i32_0 = arith.constant 0 : i32
    %c0_i32_1 = arith.constant 0 : i32
    return %c0_i32, %c0_i32_0 : i32, i32
  }
  func.func @transform_4(%arg0: i32) -> (i32, i32) {
    %c0_i32 = arith.constant 0 : i32
    %c0_i32_0 = arith.constant 0 : i32
    %c0_i32_1 = arith.constant 0 : i32
    return %c0_i32, %c0_i32_0 : i32, i32
  }
  func.func @transform_5(%arg0: i32) -> (i32, i32) {
    %c0_i32 = arith.constant 0 : i32
    %c0_i32_0 = arith.constant 0 : i32
    %c0_i32_1 = arith.constant 0 : i32
    return %c0_i32, %c0_i32_0 : i32, i32
  }
  func.func @transform_6(%arg0: i32) -> (i32, i32) {
    %c0_i32 = arith.constant 0 : i32
    %c0_i32_0 = arith.constant 0 : i32
    %c0_i32_1 = arith.constant 0 : i32
    return %c0_i32, %c0_i32_0 : i32, i32
  }
  func.func @transform_7(%arg0: i32) -> (i32, i32) {
    %c0_i32 = arith.constant 0 : i32
    %c0_i32_0 = arith.constant 0 : i32
    return %c0_i32, %arg0 : i32, i32
  }
}

</mosaic_0001>

<llo_original>
// kernel: tpu_custom_call.1
$region0: #{tpu_custom_call.1}
  #allocation0 [shape = 'u32[]', space=smem, size = 0x4, offset = 0x4, fixed_abs, tag = 'smem constant byte address 0x4 - core index']
  #allocation1 [shape = 'u32[144,128]{1,0:T(1,128)}', space=vmem, size = 0x12000, scoped, tag = 'internal scratch']
  #allocation2 [shape = 'f32[1,1]{1,0:T(1,128)S(1)}', space=vmem, size = 0x200, scoped, tag = 'scoped memory for tpu_custom_call.1']
  %s0 = inlined_call_operand.hbm [shape: f32[128,1024], index: 0, kind: input, shape index: {}]
  %s1 = inlined_call_operand.hbm [shape: bf16[1024,512], index: 1, kind: input, shape index: {}]
  %s2 = inlined_call_operand.vmem [shape: f32[1,512], index: 2, kind: input, shape index: {}]
  %s3 = inlined_call_operand.hbm [shape: bf16[512,256], index: 3, kind: input, shape index: {}]
  %s4 = inlined_call_operand.vmem [shape: f32[1,256], index: 4, kind: input, shape index: {}]
  %s5 = inlined_call_operand.vmem [shape: f32[1,256], index: 5, kind: input, shape index: {}]
  %s6 = inlined_call_operand.<no memory space> [shape: f32[1,1], index: 6, kind: input, shape index: {}]
  %s7 = inlined_call_operand.hbm [shape: f32[1,128], index: 7, kind: output, shape index: {}]
  %s8 = sld [smem:[#allocation0]]
  $region50: #{tpu_custom_call.1} parent=0
    _
  %s10 = ssub.s32 1, %s8
  %s11 = scalar_select 0, %s10, %s8
  %v12 = vstv %s6
  %13 = vst [vmem:[#allocation2] sm:$0x1] %v12
  $region1: #{tpu_custom_call.1} parent=0
    #allocation3 [shape = 'u8[524288]{0}', space=vmem, size = 0x80000, scoped, tag = 'input window, operand 0, single buffered']
    #allocation4 [shape = 's32[1]{0}', space=sflag, size = 0x4, scoped, tag = 'scoped memory for tpu_custom_call.1']
    #allocation5 [shape = 's32[1]{0}', space=sflag, size = 0x4, scoped, tag = 'scoped memory for tpu_custom_call.1']
    #allocation6 [shape = 'u8[1048576]{0}', space=vmem, size = 0x100000, scoped, tag = 'input window, operand 1, single buffered']
    #allocation7 [shape = 's32[1]{0}', space=sflag, size = 0x4, scoped, tag = 'scoped memory for tpu_custom_call.1']
    #allocation8 [shape = 'u8[262144]{0}', space=vmem, size = 0x40000, scoped, tag = 'input window, operand 3, single buffered']
    #allocation9 [shape = 'u8[512]{0}', space=vmem, size = 0x400, scoped, tag = 'output window, operand 0, single buffered']
    %14 = vsyncpa [#allocation4], 0
    %15 = vsyncpa [#allocation7], 0
    %16 = vsyncpa [#allocation5], 0
    // Predicated region
    $region2: #{tpu_custom_call.1} parent=1 // pred_check
      _
    $region3: #{tpu_custom_call.1} parent=1 // pred_check_branch
      %18 = sbr.rel (0) target = $region5
    $region4: #{tpu_custom_call.1} parent=1 // pred_region
      %s20 = ssub.s32 16384, 16384
      %21 = vsyncadd [#allocation4], %s20
      %s22 = sshll.u32 [#allocation3], 4
      %s23 = int_to_ptr.vmem [resolvable:$true] %s22
      %28 = dma.hbm_to_vmem [thread:$0]  %s0, 16384, %s23, [#allocation4], 1024, 1024, 64
    $region5: #{tpu_custom_call.1} parent=1 // pred_fallthru
      _
    // Predicated region
    $region6: #{tpu_custom_call.1} parent=1 // pred_check
      _
    $region7: #{tpu_custom_call.1} parent=1 // pred_check_branch
      %30 = sbr.rel (0) target = $region9
    $region8: #{tpu_custom_call.1} parent=1 // pred_region
      %s32 = ssub.s32 32768, 32768
      %33 = vsyncadd [#allocation7], %s32
      %s34 = sshll.u32 [#allocation6], 4
      %s35 = int_to_ptr.vmem [resolvable:$true] %s34
      %40 = dma.hbm_to_vmem [thread:$0]  %s1, 32768, %s35, [#allocation7], 256, 256, 16
    $region9: #{tpu_custom_call.1} parent=1 // pred_fallthru
      _
    // Predicated region
    $region10: #{tpu_custom_call.1} parent=1 // pred_check
      _
    $region11: #{tpu_custom_call.1} parent=1 // pred_check_branch
      %42 = sbr.rel (0) target = $region13
    $region12: #{tpu_custom_call.1} parent=1 // pred_region
      _
    $region13: #{tpu_custom_call.1} parent=1 // pred_fallthru
      _
    // Predicated region
    $region14: #{tpu_custom_call.1} parent=1 // pred_check
      _
    $region15: #{tpu_custom_call.1} parent=1 // pred_check_branch
      %44 = sbr.rel (0) target = $region17
    $region16: #{tpu_custom_call.1} parent=1 // pred_region
      %s46 = ssub.s32 8192, 8192
      %47 = vsyncadd [#allocation7], %s46
      %s48 = sshll.u32 [#allocation8], 4
      %s49 = int_to_ptr.vmem [resolvable:$true] %s48
      %54 = dma.hbm_to_vmem [thread:$0]  %s3, 8192, %s49, [#allocation7], 128, 128, 8
    $region17: #{tpu_custom_call.1} parent=1 // pred_fallthru
      _
    // Predicated region
    $region18: #{tpu_custom_call.1} parent=1 // pred_check
      _
    $region19: #{tpu_custom_call.1} parent=1 // pred_check_branch
      %56 = sbr.rel (0) target = $region21
    $region20: #{tpu_custom_call.1} parent=1 // pred_region
      _
    $region21: #{tpu_custom_call.1} parent=1 // pred_fallthru
      _
    // Predicated region
    $region22: #{tpu_custom_call.1} parent=1 // pred_check
      _
    $region23: #{tpu_custom_call.1} parent=1 // pred_check_branch
      %58 = sbr.rel (0) target = $region25
    $region24: #{tpu_custom_call.1} parent=1 // pred_region
      _
    $region25: #{tpu_custom_call.1} parent=1 // pred_fallthru
      _
    // Predicated region
    $region26: #{tpu_custom_call.1} parent=1 // pred_check
      _
    $region27: #{tpu_custom_call.1} parent=1 // pred_check_branch
      %60 = sbr.rel (0) target = $region29
    $region28: #{tpu_custom_call.1} parent=1 // pred_region
      _
    $region29: #{tpu_custom_call.1} parent=1 // pred_fallthru
      _
    // Predicated region
    $region30: #{tpu_custom_call.1} parent=1 // pred_check
      _
    $region31: #{tpu_custom_call.1} parent=1 // pred_check_branch
      %62 = sbr.rel (0) target = $region33
    $region32: #{tpu_custom_call.1} parent=1 // pred_region
      %63 = dma.done [#allocation4], 16384
    $region33: #{tpu_custom_call.1} parent=1 // pred_fallthru
      _
    // Predicated region
    $region34: #{tpu_custom_call.1} parent=1 // pred_check
      _
    $region35: #{tpu_custom_call.1} parent=1 // pred_check_branch
      %65 = sbr.rel (0) target = $region37
    $region36: #{tpu_custom_call.1} parent=1 // pred_region
      %66 = dma.done [#allocation7], 32768
    $region37: #{tpu_custom_call.1} parent=1 // pred_fallthru
      _
    // Predicated region
    $region38: #{tpu_custom_call.1} parent=1 // pred_check
      _
    $region39: #{tpu_custom_call.1} parent=1 // pred_check_branch
      %68 = sbr.rel (0) target = $region41
    $region40: #{tpu_custom_call.1} parent=1 // pred_region
      %69 = dma.done [#allocation7], 8192
    $region41: #{tpu_custom_call.1} parent=1 // pred_fallthru
      _
    %v70 = vld [vmem:[#allocation3] sm:$0xff]
    %v71 = vld [vmem:[#allocation3 + $0x8] sm:$0xff]
    %v72 = vld [vmem:[#allocation3 + $0x10] sm:$0xff]
    %v73 = vld [vmem:[#allocation3 + $0x18] sm:$0xff]
    %v74 = vld [vmem:[#allocation3 + $0x20] sm:$0xff]
    %v75 = vld [vmem:[#allocation3 + $0x28] sm:$0xff]
    %v76 = vld [vmem:[#allocation3 + $0x30] sm:$0xff]
    %v77 = vld [vmem:[#allocation3 + $0x38] sm:$0xff]
    %v78 = vld [vmem:[#allocation3 + $0x40] sm:$0xff]
    %v79 = vld [vmem:[#allocation3 + $0x48] sm:$0xff]
    %v80 = vld [vmem:[#allocation3 + $0x50] sm:$0xff]
    %v81 = vld [vmem:[#allocation3 + $0x58] sm:$0xff]
    %v82 = vld [vmem:[#allocation3 + $0x60] sm:$0xff]
    %v83 = vld [vmem:[#allocation3 + $0x68] sm:$0xff]
    %v84 = vld [vmem:[#allocation3 + $0x70] sm:$0xff]
    %v85 = vld [vmem:[#allocation3 + $0x78] sm:$0xff]
    %v86 = vld [vmem:[#allocation3 + $0x80] sm:$0xff]
    %v87 = vld [vmem:[#allocation3 + $0x88] sm:$0xff]
    %v88 = vld [vmem:[#allocation3 + $0x90] sm:$0xff]
    %v89 = vld [vmem:[#allocation3 + $0x98] sm:$0xff]
    %v90 = vld [vmem:[#allocation3 + $0xa0] sm:$0xff]
    %v91 = vld [vmem:[#allocation3 + $0xa8] sm:$0xff]
    %v92 = vld [vmem:[#allocation3 + $0xb0] sm:$0xff]
    %v93 = vld [vmem:[#allocation3 + $0xb8] sm:$0xff]
    %v94 = vld [vmem:[#allocation3 + $0xc0] sm:$0xff]
    %v95 = vld [vmem:[#allocation3 + $0xc8] sm:$0xff]
    %v96 = vld [vmem:[#allocation3 + $0xd0] sm:$0xff]
    %v97 = vld [vmem:[#allocation3 + $0xd8] sm:$0xff]
    %v98 = vld [vmem:[#allocation3 + $0xe0] sm:$0xff]
    %v99 = vld [vmem:[#allocation3 + $0xe8] sm:$0xff]
    %v100 = vld [vmem:[#allocation3 + $0xf0] sm:$0xff]
    %v101 = vld [vmem:[#allocation3 + $0xf8] sm:$0xff]
    %v102 = vld [vmem:[#allocation3 + $0x100] sm:$0xff]
    %v103 = vld [vmem:[#allocation3 + $0x108] sm:$0xff]
    %v104 = vld [vmem:[#allocation3 + $0x110] sm:$0xff]
    %v105 = vld [vmem:[#allocation3 + $0x118] sm:$0xff]
    %v106 = vld [vmem:[#allocation3 + $0x120] sm:$0xff]
    %v107 = vld [vmem:[#allocation3 + $0x128] sm:$0xff]
    %v108 = vld [vmem:[#allocation3 + $0x130] sm:$0xff]
    %v109 = vld [vmem:[#allocation3 + $0x138] sm:$0xff]
    %v110 = vld [vmem:[#allocation3 + $0x140] sm:$0xff]
    %v111 = vld [vmem:[#allocation3 + $0x148] sm:$0xff]
    %v112 = vld [vmem:[#allocation3 + $0x150] sm:$0xff]
    %v113 = vld [vmem:[#allocation3 + $0x158] sm:$0xff]
    %v114 = vld [vmem:[#allocation3 + $0x160] sm:$0xff]
    %v115 = vld [vmem:[#allocation3 + $0x168] sm:$0xff]
    %v116 = vld [vmem:[#allocation3 + $0x170] sm:$0xff]
    %v117 = vld [vmem:[#allocation3 + $0x178] sm:$0xff]
    %v118 = vld [vmem:[#allocation3 + $0x180] sm:$0xff]
    %v119 = vld [vmem:[#allocation3 + $0x188] sm:$0xff]
    %v120 = vld [vmem:[#allocation3 + $0x190] sm:$0xff]
    %v121 = vld [vmem:[#allocation3 + $0x198] sm:$0xff]
    %v122 = vld [vmem:[#allocation3 + $0x1a0] sm:$0xff]
    %v123 = vld [vmem:[#allocation3 + $0x1a8] sm:$0xff]
    %v124 = vld [vmem:[#allocation3 + $0x1b0] sm:$0xff]
    %v125 = vld [vmem:[#allocation3 + $0x1b8] sm:$0xff]
    %v126 = vld [vmem:[#allocation3 + $0x1c0] sm:$0xff]
    %v127 = vld [vmem:[#allocation3 + $0x1c8] sm:$0xff]
    %v128 = vld [vmem:[#allocation3 + $0x1d0] sm:$0xff]
    %v129 = vld [vmem:[#allocation3 + $0x1d8] sm:$0xff]
    %v130 = vld [vmem:[#allocation3 + $0x1e0] sm:$0xff]
    %v131 = vld [vmem:[#allocation3 + $0x1e8] sm:$0xff]
    %v132 = vld [vmem:[#allocation3 + $0x1f0] sm:$0xff]
    %v133 = vld [vmem:[#allocation3 + $0x1f8] sm:$0xff]
    %v134 = vld [vmem:[#allocation3 + $0x200] sm:$0xff]
    %v135 = vld [vmem:[#allocation3 + $0x208] sm:$0xff]
    %v136 = vld [vmem:[#allocation3 + $0x210] sm:$0xff]
    %v137 = vld [vmem:[#allocation3 + $0x218] sm:$0xff]
    %v138 = vld [vmem:[#allocation3 + $0x220] sm:$0xff]
    %v139 = vld [vmem:[#allocation3 + $0x228] sm:$0xff]
    %v140 = vld [vmem:[#allocation3 + $0x230] sm:$0xff]
    %v141 = vld [vmem:[#allocation3 + $0x238] sm:$0xff]
    %v142 = vld [vmem:[#allocation3 + $0x240] sm:$0xff]
    %v143 = vld [vmem:[#allocation3 + $0x248] sm:$0xff]
    %v144 = vld [vmem:[#allocation3 + $0x250] sm:$0xff]
    %v145 = vld [vmem:[#allocation3 + $0x258] sm:$0xff]
    %v146 = vld [vmem:[#allocation3 + $0x260] sm:$0xff]
    %v147 = vld [vmem:[#allocation3 + $0x268] sm:$0xff]
    %v148 = vld [vmem:[#allocation3 + $0x270] sm:$0xff]
    %v149 = vld [vmem:[#allocation3 + $0x278] sm:$0xff]
    %v150 = vld [vmem:[#allocation3 + $0x280] sm:$0xff]
    %v151 = vld [vmem:[#allocation3 + $0x288] sm:$0xff]
    %v152 = vld [vmem:[#allocation3 + $0x290] sm:$0xff]
    %v153 = vld [vmem:[#allocation3 + $0x298] sm:$0xff]
    %v154 = vld [vmem:[#allocation3 + $0x2a0] sm:$0xff]
    %v155 = vld [vmem:[#allocation3 + $0x2a8] sm:$0xff]
    %v156 = vld [vmem:[#allocation3 + $0x2b0] sm:$0xff]
    %v157 = vld [vmem:[#allocation3 + $0x2b8] sm:$0xff]
    %v158 = vld [vmem:[#allocation3 + $0x2c0] sm:$0xff]
    %v159 = vld [vmem:[#allocation3 + $0x2c8] sm:$0xff]
    %v160 = vld [vmem:[#allocation3 + $0x2d0] sm:$0xff]
    %v161 = vld [vmem:[#allocation3 + $0x2d8] sm:$0xff]
    %v162 = vld [vmem:[#allocation3 + $0x2e0] sm:$0xff]
    %v163 = vld [vmem:[#allocation3 + $0x2e8] sm:$0xff]
    %v164 = vld [vmem:[#allocation3 + $0x2f0] sm:$0xff]
    %v165 = vld [vmem:[#allocation3 + $0x2f8] sm:$0xff]
    %v166 = vld [vmem:[#allocation3 + $0x300] sm:$0xff]
    %v167 = vld [vmem:[#allocation3 + $0x308] sm:$0xff]
    %v168 = vld [vmem:[#allocation3 + $0x310] sm:$0xff]
    %v169 = vld [vmem:[#allocation3 + $0x318] sm:$0xff]
    %v170 = vld [vmem:[#allocation3 + $0x320] sm:$0xff]
    %v171 = vld [vmem:[#allocation3 + $0x328] sm:$0xff]
    %v172 = vld [vmem:[#allocation3 + $0x330] sm:$0xff]
    %v173 = vld [vmem:[#allocation3 + $0x338] sm:$0xff]
    %v174 = vld [vmem:[#allocation3 + $0x340] sm:$0xff]
    %v175 = vld [vmem:[#allocation3 + $0x348] sm:$0xff]
    %v176 = vld [vmem:[#allocation3 + $0x350] sm:$0xff]
    %v177 = vld [vmem:[#allocation3 + $0x358] sm:$0xff]
    %v178 = vld [vmem:[#allocation3 + $0x360] sm:$0xff]
    %v179 = vld [vmem:[#allocation3 + $0x368] sm:$0xff]
    %v180 = vld [vmem:[#allocation3 + $0x370] sm:$0xff]
    %v181 = vld [vmem:[#allocation3 + $0x378] sm:$0xff]
    %v182 = vld [vmem:[#allocation3 + $0x380] sm:$0xff]
    %v183 = vld [vmem:[#allocation3 + $0x388] sm:$0xff]
    %v184 = vld [vmem:[#allocation3 + $0x390] sm:$0xff]
    %v185 = vld [vmem:[#allocation3 + $0x398] sm:$0xff]
    %v186 = vld [vmem:[#allocation3 + $0x3a0] sm:$0xff]
    %v187 = vld [vmem:[#allocation3 + $0x3a8] sm:$0xff]
    %v188 = vld [vmem:[#allocation3 + $0x3b0] sm:$0xff]
    %v189 = vld [vmem:[#allocation3 + $0x3b8] sm:$0xff]
    %v190 = vld [vmem:[#allocation3 + $0x3c0] sm:$0xff]
    %v191 = vld [vmem:[#allocation3 + $0x3c8] sm:$0xff]
    %v192 = vld [vmem:[#allocation3 + $0x3d0] sm:$0xff]
    %v193 = vld [vmem:[#allocation3 + $0x3d8] sm:$0xff]
    %v194 = vld [vmem:[#allocation3 + $0x3e0] sm:$0xff]
    %v195 = vld [vmem:[#allocation3 + $0x3e8] sm:$0xff]
    %v196 = vld [vmem:[#allocation3 + $0x3f0] sm:$0xff]
    %v197 = vld [vmem:[#allocation3 + $0x3f8] sm:$0xff]
    %v198 = vpack.c.bf16 %v78, %v70
    %v199 = vpack.c.bf16 %v79, %v71
    %v200 = vpack.c.bf16 %v80, %v72
    %v201 = vpack.c.bf16 %v81, %v73
    %v202 = vpack.c.bf16 %v82, %v74
    %v203 = vpack.c.bf16 %v83, %v75
    %v204 = vpack.c.bf16 %v84, %v76
    %v205 = vpack.c.bf16 %v85, %v77
    %v206 = vpack.c.bf16 %v94, %v86
    %v207 = vpack.c.bf16 %v95, %v87
    %v208 = vpack.c.bf16 %v96, %v88
    %v209 = vpack.c.bf16 %v97, %v89
    %v210 = vpack.c.bf16 %v98, %v90
    %v211 = vpack.c.bf16 %v99, %v91
    %v212 = vpack.c.bf16 %v100, %v92
    %v213 = vpack.c.bf16 %v101, %v93
    %v214 = vpack.c.bf16 %v110, %v102
    %v215 = vpack.c.bf16 %v111, %v103
    %v216 = vpack.c.bf16 %v112, %v104
    %v217 = vpack.c.bf16 %v113, %v105
    %v218 = vpack.c.bf16 %v114, %v106
    %v219 = vpack.c.bf16 %v115, %v107
    %v220 = vpack.c.bf16 %v116, %v108
    %v221 = vpack.c.bf16 %v117, %v109
    %v222 = vpack.c.bf16 %v126, %v118
    %v223 = vpack.c.bf16 %v127, %v119
    %v224 = vpack.c.bf16 %v128, %v120
    %v225 = vpack.c.bf16 %v129, %v121
    %v226 = vpack.c.bf16 %v130, %v122
    %v227 = vpack.c.bf16 %v131, %v123
    %v228 = vpack.c.bf16 %v132, %v124
    %v229 = vpack.c.bf16 %v133, %v125
    %v230 = vpack.c.bf16 %v142, %v134
    %v231 = vpack.c.bf16 %v143, %v135
    %v232 = vpack.c.bf16 %v144, %v136
    %v233 = vpack.c.bf16 %v145, %v137
    %v234 = vpack.c.bf16 %v146, %v138
    %v235 = vpack.c.bf16 %v147, %v139
    %v236 = vpack.c.bf16 %v148, %v140
    %v237 = vpack.c.bf16 %v149, %v141
    %v238 = vpack.c.bf16 %v158, %v150
    %v239 = vpack.c.bf16 %v159, %v151
    %v240 = vpack.c.bf16 %v160, %v152
    %v241 = vpack.c.bf16 %v161, %v153
    %v242 = vpack.c.bf16 %v162, %v154
    %v243 = vpack.c.bf16 %v163, %v155
    %v244 = vpack.c.bf16 %v164, %v156
    %v245 = vpack.c.bf16 %v165, %v157
    %v246 = vpack.c.bf16 %v174, %v166
    %v247 = vpack.c.bf16 %v175, %v167
    %v248 = vpack.c.bf16 %v176, %v168
    %v249 = vpack.c.bf16 %v177, %v169
    %v250 = vpack.c.bf16 %v178, %v170
    %v251 = vpack.c.bf16 %v179, %v171
    %v252 = vpack.c.bf16 %v180, %v172
    %v253 = vpack.c.bf16 %v181, %v173
    %v254 = vpack.c.bf16 %v190, %v182
    %v255 = vpack.c.bf16 %v191, %v183
    %v256 = vpack.c.bf16 %v192, %v184
    %v257 = vpack.c.bf16 %v193, %v185
    %v258 = vpack.c.bf16 %v194, %v186
    %v259 = vpack.c.bf16 %v195, %v187
    %v260 = vpack.c.bf16 %v196, %v188
    %v261 = vpack.c.bf16 %v197, %v189
    %v262 = vld [vmem:[#allocation6] sm:$0xff]
    %v263 = vld [vmem:[#allocation6 + $0x8] sm:$0xff]
    %v264 = vld [vmem:[#allocation6 + $0x10] sm:$0xff]
    %v265 = vld [vmem:[#allocation6 + $0x18] sm:$0xff]
    %v266 = vld [vmem:[#allocation6 + $0x20] sm:$0xff]
    %v267 = vld [vmem:[#allocation6 + $0x28] sm:$0xff]
    %v268 = vld [vmem:[#allocation6 + $0x30] sm:$0xff]
    %v269 = vld [vmem:[#allocation6 + $0x38] sm:$0xff]
    %v270 = vld [vmem:[#allocation6 + $0x40] sm:$0xff]
    %v271 = vld [vmem:[#allocation6 + $0x48] sm:$0xff]
    %v272 = vld [vmem:[#allocation6 + $0x50] sm:$0xff]
    %v273 = vld [vmem:[#allocation6 + $0x58] sm:$0xff]
    %v274 = vld [vmem:[#allocation6 + $0x60] sm:$0xff]
    %v275 = vld [vmem:[#allocation6 + $0x68] sm:$0xff]
    %v276 = vld [vmem:[#allocation6 + $0x70] sm:$0xff]
    %v277 = vld [vmem:[#allocation6 + $0x78] sm:$0xff]
    %v278 = vld [vmem:[#allocation6 + $0x80] sm:$0xff]
    %v279 = vld [vmem:[#allocation6 + $0x88] sm:$0xff]
    %v280 = vld [vmem:[#allocation6 + $0x90] sm:$0xff]
    %v281 = vld [vmem:[#allocation6 + $0x98] sm:$0xff]
    %v282 = vld [vmem:[#allocation6 + $0xa0] sm:$0xff]
    %v283 = vld [vmem:[#allocation6 + $0xa8] sm:$0xff]
    %v284 = vld [vmem:[#allocation6 + $0xb0] sm:$0xff]
    %v285 = vld [vmem:[#allocation6 + $0xb8] sm:$0xff]
    %v286 = vld [vmem:[#allocation6 + $0xc0] sm:$0xff]
    %v287 = vld [vmem:[#allocation6 + $0xc8] sm:$0xff]
    %v288 = vld [vmem:[#allocation6 + $0xd0] sm:$0xff]
    %v289 = vld [vmem:[#allocation6 + $0xd8] sm:$0xff]
    %v290 = vld [vmem:[#allocation6 + $0xe0] sm:$0xff]
    %v291 = vld [vmem:[#allocation6 + $0xe8] sm:$0xff]
    %v292 = vld [vmem:[#allocation6 + $0xf0] sm:$0xff]
    %v293 = vld [vmem:[#allocation6 + $0xf8] sm:$0xff]
    %v294 = vld [vmem:[#allocation6 + $0x100] sm:$0xff]
    %v295 = vld [vmem:[#allocation6 + $0x108] sm:$0xff]
    %v296 = vld [vmem:[#allocation6 + $0x110] sm:$0xff]
    %v297 = vld [vmem:[#allocation6 + $0x118] sm:$0xff]
    %v298 = vld [vmem:[#allocation6 + $0x120] sm:$0xff]
    %v299 = vld [vmem:[#allocation6 + $0x128] sm:$0xff]
    %v300 = vld [vmem:[#allocation6 + $0x130] sm:$0xff]
    %v301 = vld [vmem:[#allocation6 + $0x138] sm:$0xff]
    %v302 = vld [vmem:[#allocation6 + $0x140] sm:$0xff]
    %v303 = vld [vmem:[#allocation6 + $0x148] sm:$0xff]
    %v304 = vld [vmem:[#allocation6 + $0x150] sm:$0xff]
    %v305 = vld [vmem:[#allocation6 + $0x158] sm:$0xff]
    %v306 = vld [vmem:[#allocation6 + $0x160] sm:$0xff]
    %v307 = vld [vmem:[#allocation6 + $0x168] sm:$0xff]
    %v308 = vld [vmem:[#allocation6 + $0x170] sm:$0xff]
    %v309 = vld [vmem:[#allocation6 + $0x178] sm:$0xff]
    %v310 = vld [vmem:[#allocation6 + $0x180] sm:$0xff]
    %v311 = vld [vmem:[#allocation6 + $0x188] sm:$0xff]
    %v312 = vld [vmem:[#allocation6 + $0x190] sm:$0xff]
    %v313 = vld [vmem:[#allocation6 + $0x198] sm:$0xff]
    %v314 = vld [vmem:[#allocation6 + $0x1a0] sm:$0xff]
    %v315 = vld [vmem:[#allocation6 + $0x1a8] sm:$0xff]
    %v316 = vld [vmem:[#allocation6 + $0x1b0] sm:$0xff]
    %v317 = vld [vmem:[#allocation6 + $0x1b8] sm:$0xff]
    %v318 = vld [vmem:[#allocation6 + $0x1c0] sm:$0xff]
    %v319 = vld [vmem:[#allocation6 + $0x1c8] sm:$0xff]
    %v320 = vld [vmem:[#allocation6 + $0x1d0] sm:$0xff]
    %v321 = vld [vmem:[#allocation6 + $0x1d8] sm:$0xff]
    %v322 = vld [vmem:[#allocation6 + $0x1e0] sm:$0xff]
    %v323 = vld [vmem:[#allocation6 + $0x1e8] sm:$0xff]
    %v324 = vld [vmem:[#allocation6 + $0x1f0] sm:$0xff]
    %v325 = vld [vmem:[#allocation6 + $0x1f8] sm:$0xff]
    %v326 = vld [vmem:[#allocation6 + $0x200] sm:$0xff]
    %v327 = vld [vmem:[#allocation6 + $0x208] sm:$0xff]
    %v328 = vld [vmem:[#allocation6 + $0x210] sm:$0xff]
    %v329 = vld [vmem:[#allocation6 + $0x218] sm:$0xff]
    %v330 = vld [vmem:[#allocation6 + $0x220] sm:$0xff]
    %v331 = vld [vmem:[#allocation6 + $0x228] sm:$0xff]
    %v332 = vld [vmem:[#allocation6 + $0x230] sm:$0xff]
    %v333 = vld [vmem:[#allocation6 + $0x238] sm:$0xff]
    %v334 = vld [vmem:[#allocation6 + $0x240] sm:$0xff]
    %v335 = vld [vmem:[#allocation6 + $0x248] sm:$0xff]
    %v336 = vld [vmem:[#allocation6 + $0x250] sm:$0xff]
    %v337 = vld [vmem:[#allocation6 + $0x258] sm:$0xff]
    %v338 = vld [vmem:[#allocation6 + $0x260] sm:$0xff]
    %v339 = vld [vmem:[#allocation6 + $0x268] sm:$0xff]
    %v340 = vld [vmem:[#allocation6 + $0x270] sm:$0xff]
    %v341 = vld [vmem:[#allocation6 + $0x278] sm:$0xff]
    %v342 = vld [vmem:[#allocation6 + $0x280] sm:$0xff]
    %v343 = vld [vmem:[#allocation6 + $0x288] sm:$0xff]
    %v344 = vld [vmem:[#allocation6 + $0x290] sm:$0xff]
    %v345 = vld [vmem:[#allocation6 + $0x298] sm:$0xff]
    %v346 = vld [vmem:[#allocation6 + $0x2a0] sm:$0xff]
    %v347 = vld [vmem:[#allocation6 + $0x2a8] sm:$0xff]
    %v348 = vld [vmem:[#allocation6 + $0x2b0] sm:$0xff]
    %v349 = vld [vmem:[#allocation6 + $0x2b8] sm:$0xff]
    %v350 = vld [vmem:[#allocation6 + $0x2c0] sm:$0xff]
    %v351 = vld [vmem:[#allocation6 + $0x2c8] sm:$0xff]
    %v352 = vld [vmem:[#allocation6 + $0x2d0] sm:$0xff]
    %v353 = vld [vmem:[#allocation6 + $0x2d8] sm:$0xff]
    %v354 = vld [vmem:[#allocation6 + $0x2e0] sm:$0xff]
    %v355 = vld [vmem:[#allocation6 + $0x2e8] sm:$0xff]
    %v356 = vld [vmem:[#allocation6 + $0x2f0] sm:$0xff]
    %v357 = vld [vmem:[#allocation6 + $0x2f8] sm:$0xff]
    %v358 = vld [vmem:[#allocation6 + $0x300] sm:$0xff]
    %v359 = vld [vmem:[#allocation6 + $0x308] sm:$0xff]
    %v360 = vld [vmem:[#allocation6 + $0x310] sm:$0xff]
    %v361 = vld [vmem:[#allocation6 + $0x318] sm:$0xff]
    %v362 = vld [vmem:[#allocation6 + $0x320] sm:$0xff]
    %v363 = vld [vmem:[#allocation6 + $0x328] sm:$0xff]
    %v364 = vld [vmem:[#allocation6 + $0x330] sm:$0xff]
    %v365 = vld [vmem:[#allocation6 + $0x338] sm:$0xff]
    %v366 = vld [vmem:[#allocation6 + $0x340] sm:$0xff]
    %v367 = vld [vmem:[#allocation6 + $0x348] sm:$0xff]
    %v368 = vld [vmem:[#allocation6 + $0x350] sm:$0xff]
    %v369 = vld [vmem:[#allocation6 + $0x358] sm:$0xff]
    %v370 = vld [vmem:[#allocation6 + $0x360] sm:$0xff]
    %v371 = vld [vmem:[#allocation6 + $0x368] sm:$0xff]
    %v372 = vld [vmem:[#allocation6 + $0x370] sm:$0xff]
    %v373 = vld [vmem:[#allocation6 + $0x378] sm:$0xff]
    %v374 = vld [vmem:[#allocation6 + $0x380] sm:$0xff]
    %v375 = vld [vmem:[#allocation6 + $0x388] sm:$0xff]
    %v376 = vld [vmem:[#allocation6 + $0x390] sm:$0xff]
    %v377 = vld [vmem:[#allocation6 + $0x398] sm:$0xff]
    %v378 = vld [vmem:[#allocation6 + $0x3a0] sm:$0xff]
    %v379 = vld [vmem:[#allocation6 + $0x3a8] sm:$0xff]
    %v380 = vld [vmem:[#allocation6 + $0x3b0] sm:$0xff]
    %v381 = vld [vmem:[#allocation6 + $0x3b8] sm:$0xff]
    %v382 = vld [vmem:[#allocation6 + $0x3c0] sm:$0xff]
    %v383 = vld [vmem:[#allocation6 + $0x3c8] sm:$0xff]
    %v384 = vld [vmem:[#allocation6 + $0x3d0] sm:$0xff]
    %v385 = vld [vmem:[#allocation6 + $0x3d8] sm:$0xff]
    %v386 = vld [vmem:[#allocation6 + $0x3e0] sm:$0xff]
    %v387 = vld [vmem:[#allocation6 + $0x3e8] sm:$0xff]
    %v388 = vld [vmem:[#allocation6 + $0x3f0] sm:$0xff]
    %v389 = vld [vmem:[#allocation6 + $0x3f8] sm:$0xff]
    %v390 = vld [vmem:[#allocation6 + $0x400] sm:$0xff]
    %v391 = vld [vmem:[#allocation6 + $0x408] sm:$0xff]
    %v392 = vld [vmem:[#allocation6 + $0x410] sm:$0xff]
    %v393 = vld [vmem:[#allocation6 + $0x418] sm:$0xff]
    %v394 = vld [vmem:[#allocation6 + $0x420] sm:$0xff]
    %v395 = vld [vmem:[#allocation6 + $0x428] sm:$0xff]
    %v396 = vld [vmem:[#allocation6 + $0x430] sm:$0xff]
    %v397 = vld [vmem:[#allocation6 + $0x438] sm:$0xff]
    %v398 = vld [vmem:[#allocation6 + $0x440] sm:$0xff]
    %v399 = vld [vmem:[#allocation6 + $0x448] sm:$0xff]
    %v400 = vld [vmem:[#allocation6 + $0x450] sm:$0xff]
    %v401 = vld [vmem:[#allocation6 + $0x458] sm:$0xff]
    %v402 = vld [vmem:[#allocation6 + $0x460] sm:$0xff]
    %v403 = vld [vmem:[#allocation6 + $0x468] sm:$0xff]
    %v404 = vld [vmem:[#allocation6 + $0x470] sm:$0xff]
    %v405 = vld [vmem:[#allocation6 + $0x478] sm:$0xff]
    %v406 = vld [vmem:[#allocation6 + $0x480] sm:$0xff]
    %v407 = vld [vmem:[#allocation6 + $0x488] sm:$0xff]
    %v408 = vld [vmem:[#allocation6 + $0x490] sm:$0xff]
    %v409 = vld [vmem:[#allocation6 + $0x498] sm:$0xff]
    %v410 = vld [vmem:[#allocation6 + $0x4a0] sm:$0xff]
    %v411 = vld [vmem:[#allocation6 + $0x4a8] sm:$0xff]
    %v412 = vld [vmem:[#allocation6 + $0x4b0] sm:$0xff]
    %v413 = vld [vmem:[#allocation6 + $0x4b8] sm:$0xff]
    %v414 = vld [vmem:[#allocation6 + $0x4c0] sm:$0xff]
    %v415 = vld [vmem:[#allocation6 + $0x4c8] sm:$0xff]
    %v416 = vld [vmem:[#allocation6 + $0x4d0] sm:$0xff]
    %v417 = vld [vmem:[#allocation6 + $0x4d8] sm:$0xff]
    %v418 = vld [vmem:[#allocation6 + $0x4e0] sm:$0xff]
    %v419 = vld [vmem:[#allocation6 + $0x4e8] sm:$0xff]
    %v420 = vld [vmem:[#allocation6 + $0x4f0] sm:$0xff]
    %v421 = vld [vmem:[#allocation6 + $0x4f8] sm:$0xff]
    %v422 = vld [vmem:[#allocation6 + $0x500] sm:$0xff]
    %v423 = vld [vmem:[#allocation6 + $0x508] sm:$0xff]
    %v424 = vld [vmem:[#allocation6 + $0x510] sm:$0xff]
    %v425 = vld [vmem:[#allocation6 + $0x518] sm:$0xff]
    %v426 = vld [vmem:[#allocation6 + $0x520] sm:$0xff]
    %v427 = vld [vmem:[#allocation6 + $0x528] sm:$0xff]
    %v428 = vld [vmem:[#allocation6 + $0x530] sm:$0xff]
    %v429 = vld [vmem:[#allocation6 + $0x538] sm:$0xff]
    %v430 = vld [vmem:[#allocation6 + $0x540] sm:$0xff]
    %v431 = vld [vmem:[#allocation6 + $0x548] sm:$0xff]
    %v432 = vld [vmem:[#allocation6 + $0x550] sm:$0xff]
    %v433 = vld [vmem:[#allocation6 + $0x558] sm:$0xff]
    %v434 = vld [vmem:[#allocation6 + $0x560] sm:$0xff]
    %v435 = vld [vmem:[#allocation6 + $0x568] sm:$0xff]
    %v436 = vld [vmem:[#allocation6 + $0x570] sm:$0xff]
    %v437 = vld [vmem:[#allocation6 + $0x578] sm:$0xff]
    %v438 = vld [vmem:[#allocation6 + $0x580] sm:$0xff]
    %v439 = vld [vmem:[#allocation6 + $0x588] sm:$0xff]
    %v440 = vld [vmem:[#allocation6 + $0x590] sm:$0xff]
    %v441 = vld [vmem:[#allocation6 + $0x598] sm:$0xff]
    %v442 = vld [vmem:[#allocation6 + $0x5a0] sm:$0xff]
    %v443 = vld [vmem:[#allocation6 + $0x5a8] sm:$0xff]
    %v444 = vld [vmem:[#allocation6 + $0x5b0] sm:$0xff]
    %v445 = vld [vmem:[#allocation6 + $0x5b8] sm:$0xff]
    %v446 = vld [vmem:[#allocation6 + $0x5c0] sm:$0xff]
    %v447 = vld [vmem:[#allocation6 + $0x5c8] sm:$0xff]
    %v448 = vld [vmem:[#allocation6 + $0x5d0] sm:$0xff]
    %v449 = vld [vmem:[#allocation6 + $0x5d8] sm:$0xff]
    %v450 = vld [vmem:[#allocation6 + $0x5e0] sm:$0xff]
    %v451 = vld [vmem:[#allocation6 + $0x5e8] sm:$0xff]
    %v452 = vld [vmem:[#allocation6 + $0x5f0] sm:$0xff]
    %v453 = vld [vmem:[#allocation6 + $0x5f8] sm:$0xff]
    %v454 = vld [vmem:[#allocation6 + $0x600] sm:$0xff]
    %v455 = vld [vmem:[#allocation6 + $0x608] sm:$0xff]
    %v456 = vld [vmem:[#allocation6 + $0x610] sm:$0xff]
    %v457 = vld [vmem:[#allocation6 + $0x618] sm:$0xff]
    %v458 = vld [vmem:[#allocation6 + $0x620] sm:$0xff]
    %v459 = vld [vmem:[#allocation6 + $0x628] sm:$0xff]
    %v460 = vld [vmem:[#allocation6 + $0x630] sm:$0xff]
    %v461 = vld [vmem:[#allocation6 + $0x638] sm:$0xff]
    %v462 = vld [vmem:[#allocation6 + $0x640] sm:$0xff]
    %v463 = vld [vmem:[#allocation6 + $0x648] sm:$0xff]
    %v464 = vld [vmem:[#allocation6 + $0x650] sm:$0xff]
    %v465 = vld [vmem:[#allocation6 + $0x658] sm:$0xff]
    %v466 = vld [vmem:[#allocation6 + $0x660] sm:$0xff]
    %v467 = vld [vmem:[#allocation6 + $0x668] sm:$0xff]
    %v468 = vld [vmem:[#allocation6 + $0x670] sm:$0xff]
    %v469 = vld [vmem:[#allocation6 + $0x678] sm:$0xff]
    %v470 = vld [vmem:[#allocation6 + $0x680] sm:$0xff]
    %v471 = vld [vmem:[#allocation6 + $0x688] sm:$0xff]
    %v472 = vld [vmem:[#allocation6 + $0x690] sm:$0xff]
    %v473 = vld [vmem:[#allocation6 + $0x698] sm:$0xff]
    %v474 = vld [vmem:[#allocation6 + $0x6a0] sm:$0xff]
    %v475 = vld [vmem:[#allocation6 + $0x6a8] sm:$0xff]
    %v476 = vld [vmem:[#allocation6 + $0x6b0] sm:$0xff]
    %v477 = vld [vmem:[#allocation6 + $0x6b8] sm:$0xff]
    %v478 = vld [vmem:[#allocation6 + $0x6c0] sm:$0xff]
    %v479 = vld [vmem:[#allocation6 + $0x6c8] sm:$0xff]
    %v480 = vld [vmem:[#allocation6 + $0x6d0] sm:$0xff]
    %v481 = vld [vmem:[#allocation6 + $0x6d8] sm:$0xff]
    %v482 = vld [vmem:[#allocation6 + $0x6e0] sm:$0xff]
    %v483 = vld [vmem:[#allocation6 + $0x6e8] sm:$0xff]
    %v484 = vld [vmem:[#allocation6 + $0x6f0] sm:$0xff]
    %v485 = vld [vmem:[#allocation6 + $0x6f8] sm:$0xff]
    %v486 = vld [vmem:[#allocation6 + $0x700] sm:$0xff]
    %v487 = vld [vmem:[#allocation6 + $0x708] sm:$0xff]
    %v488 = vld [vmem:[#allocation6 + $0x710] sm:$0xff]
    %v489 = vld [vmem:[#allocation6 + $0x718] sm:$0xff]
    %v490 = vld [vmem:[#allocation6 + $0x720] sm:$0xff]
    %v491 = vld [vmem:[#allocation6 + $0x728] sm:$0xff]
    %v492 = vld [vmem:[#allocation6 + $0x730] sm:$0xff]
    %v493 = vld [vmem:[#allocation6 + $0x738] sm:$0xff]
    %v494 = vld [vmem:[#allocation6 + $0x740] sm:$0xff]
    %v495 = vld [vmem:[#allocation6 + $0x748] sm:$0xff]
    %v496 = vld [vmem:[#allocation6 + $0x750] sm:$0xff]
    %v497 = vld [vmem:[#allocation6 + $0x758] sm:$0xff]
    %v498 = vld [vmem:[#allocation6 + $0x760] sm:$0xff]
    %v499 = vld [vmem:[#allocation6 + $0x768] sm:$0xff]
    %v500 = vld [vmem:[#allocation6 + $0x770] sm:$0xff]
    %v501 = vld [vmem:[#allocation6 + $0x778] sm:$0xff]
    %v502 = vld [vmem:[#allocation6 + $0x780] sm:$0xff]
    %v503 = vld [vmem:[#allocation6 + $0x788] sm:$0xff]
    %v504 = vld [vmem:[#allocation6 + $0x790] sm:$0xff]
    %v505 = vld [vmem:[#allocation6 + $0x798] sm:$0xff]
    %v506 = vld [vmem:[#allocation6 + $0x7a0] sm:$0xff]
    %v507 = vld [vmem:[#allocation6 + $0x7a8] sm:$0xff]
    %v508 = vld [vmem:[#allocation6 + $0x7b0] sm:$0xff]
    %v509 = vld [vmem:[#allocation6 + $0x7b8] sm:$0xff]
    %v510 = vld [vmem:[#allocation6 + $0x7c0] sm:$0xff]
    %v511 = vld [vmem:[#allocation6 + $0x7c8] sm:$0xff]
    %v512 = vld [vmem:[#allocation6 + $0x7d0] sm:$0xff]
    %v513 = vld [vmem:[#allocation6 + $0x7d8] sm:$0xff]
    %v514 = vld [vmem:[#allocation6 + $0x7e0] sm:$0xff]
    %v515 = vld [vmem:[#allocation6 + $0x7e8] sm:$0xff]
    %v516 = vld [vmem:[#allocation6 + $0x7f0] sm:$0xff]
    %v517 = vld [vmem:[#allocation6 + $0x7f8] sm:$0xff]
    %v518 = vld [vmem:[%s2] sm:$0xf]
    %v520 = vlaneseq
    %v521 = vshrl.u32 %v520, 7
    %v522 = vsub.s32 0, %v521
    %v523 = vrot.slane %v518, %v522
    %v524 = vlaneseq
    %v525 = vshrl.u32 %v524, 7
    %v526 = vsub.s32 1, %v525
    %v527 = vrot.slane %v518, %v526
    %v528 = vlaneseq
    %v529 = vshrl.u32 %v528, 7
    %v530 = vsub.s32 2, %v529
    %v531 = vrot.slane %v518, %v530
    %v532 = vlaneseq
    %v533 = vshrl.u32 %v532, 7
    %v534 = vsub.s32 3, %v533
    %v535 = vrot.slane %v518, %v534
    %v796 = vunpack.c.l.b16 %v262
    %v797 = vunpack.c.h.b16 %v262
    %v798 = vunpack.c.l.b16 %v263
    %v799 = vunpack.c.h.b16 %v263
    %v800 = vunpack.c.l.b16 %v264
    %v801 = vunpack.c.h.b16 %v264
    %v802 = vunpack.c.l.b16 %v265
    %v803 = vunpack.c.h.b16 %v265
    %v804 = vunpack.c.l.b16 %v266
    %v805 = vunpack.c.h.b16 %v266
    %v806 = vunpack.c.l.b16 %v267
    %v807 = vunpack.c.h.b16 %v267
    %v808 = vunpack.c.l.b16 %v268
    %v809 = vunpack.c.h.b16 %v268
    %v810 = vunpack.c.l.b16 %v269
    %v811 = vunpack.c.h.b16 %v269
    %v812 = vunpack.c.l.b16 %v270
    %v813 = vunpack.c.h.b16 %v270
    %v814 = vunpack.c.l.b16 %v271
    %v815 = vunpack.c.h.b16 %v271
    %v816 = vunpack.c.l.b16 %v272
    %v817 = vunpack.c.h.b16 %v272
    %v818 = vunpack.c.l.b16 %v273
    %v819 = vunpack.c.h.b16 %v273
    %v820 = vunpack.c.l.b16 %v274
    %v821 = vunpack.c.h.b16 %v274
    %v822 = vunpack.c.l.b16 %v275
    %v823 = vunpack.c.h.b16 %v275
    %v824 = vunpack.c.l.b16 %v276
    %v825 = vunpack.c.h.b16 %v276
    %v826 = vunpack.c.l.b16 %v277
    %v827 = vunpack.c.h.b16 %v277
    %v828 = vunpack.c.l.b16 %v278
    %v829 = vunpack.c.h.b16 %v278
    %v830 = vunpack.c.l.b16 %v279
    %v831 = vunpack.c.h.b16 %v279
    %v832 = vunpack.c.l.b16 %v280
    %v833 = vunpack.c.h.b16 %v280
    %v834 = vunpack.c.l.b16 %v281
    %v835 = vunpack.c.h.b16 %v281
    %v836 = vunpack.c.l.b16 %v282
    %v837 = vunpack.c.h.b16 %v282
    %v838 = vunpack.c.l.b16 %v283
    %v839 = vunpack.c.h.b16 %v283
    %v840 = vunpack.c.l.b16 %v284
    %v841 = vunpack.c.h.b16 %v284
    %v842 = vunpack.c.l.b16 %v285
    %v843 = vunpack.c.h.b16 %v285
    %v844 = vunpack.c.l.b16 %v286
    %v845 = vunpack.c.h.b16 %v286
    %v846 = vunpack.c.l.b16 %v287
    %v847 = vunpack.c.h.b16 %v287
    %v848 = vunpack.c.l.b16 %v288
    %v849 = vunpack.c.h.b16 %v288
    %v850 = vunpack.c.l.b16 %v289
    %v851 = vunpack.c.h.b16 %v289
    %v852 = vunpack.c.l.b16 %v290
    %v853 = vunpack.c.h.b16 %v290
    %v854 = vunpack.c.l.b16 %v291
    %v855 = vunpack.c.h.b16 %v291
    %v856 = vunpack.c.l.b16 %v292
    %v857 = vunpack.c.h.b16 %v292
    %v858 = vunpack.c.l.b16 %v293
    %v859 = vunpack.c.h.b16 %v293
    %v860 = vunpack.c.l.b16 %v294
    %v861 = vunpack.c.h.b16 %v294
    %v862 = vunpack.c.l.b16 %v295
    %v863 = vunpack.c.h.b16 %v295
    %v864 = vunpack.c.l.b16 %v296
    %v865 = vunpack.c.h.b16 %v296
    %v866 = vunpack.c.l.b16 %v297
    %v867 = vunpack.c.h.b16 %v297
    %v868 = vunpack.c.l.b16 %v298
    %v869 = vunpack.c.h.b16 %v298
    %v870 = vunpack.c.l.b16 %v299
    %v871 = vunpack.c.h.b16 %v299
    %v872 = vunpack.c.l.b16 %v300
    %v873 = vunpack.c.h.b16 %v300
    %v874 = vunpack.c.l.b16 %v301
    %v875 = vunpack.c.h.b16 %v301
    %v876 = vunpack.c.l.b16 %v302
    %v877 = vunpack.c.h.b16 %v302
    %v878 = vunpack.c.l.b16 %v303
    %v879 = vunpack.c.h.b16 %v303
    %v880 = vunpack.c.l.b16 %v304
    %v881 = vunpack.c.h.b16 %v304
    %v882 = vunpack.c.l.b16 %v305
    %v883 = vunpack.c.h.b16 %v305
    %v884 = vunpack.c.l.b16 %v306
    %v885 = vunpack.c.h.b16 %v306
    %v886 = vunpack.c.l.b16 %v307
    %v887 = vunpack.c.h.b16 %v307
    %v888 = vunpack.c.l.b16 %v308
    %v889 = vunpack.c.h.b16 %v308
    %v890 = vunpack.c.l.b16 %v309
    %v891 = vunpack.c.h.b16 %v309
    %v892 = vunpack.c.l.b16 %v310
    %v893 = vunpack.c.h.b16 %v310
    %v894 = vunpack.c.l.b16 %v311
    %v895 = vunpack.c.h.b16 %v311
    %v896 = vunpack.c.l.b16 %v312
    %v897 = vunpack.c.h.b16 %v312
    %v898 = vunpack.c.l.b16 %v313
    %v899 = vunpack.c.h.b16 %v313
    %v900 = vunpack.c.l.b16 %v314
    %v901 = vunpack.c.h.b16 %v314
    %v902 = vunpack.c.l.b16 %v315
    %v903 = vunpack.c.h.b16 %v315
    %v904 = vunpack.c.l.b16 %v316
    %v905 = vunpack.c.h.b16 %v316
    %v906 = vunpack.c.l.b16 %v317
    %v907 = vunpack.c.h.b16 %v317
    %v908 = vunpack.c.l.b16 %v318
    %v909 = vunpack.c.h.b16 %v318
    %v910 = vunpack.c.l.b16 %v319
    %v911 = vunpack.c.h.b16 %v319
    %v912 = vunpack.c.l.b16 %v320
    %v913 = vunpack.c.h.b16 %v320
    %v914 = vunpack.c.l.b16 %v321
    %v915 = vunpack.c.h.b16 %v321
    %v916 = vunpack.c.l.b16 %v322
    %v917 = vunpack.c.h.b16 %v322
    %v918 = vunpack.c.l.b16 %v323
    %v919 = vunpack.c.h.b16 %v323
    %v920 = vunpack.c.l.b16 %v324
    %v921 = vunpack.c.h.b16 %v324
    %v922 = vunpack.c.l.b16 %v325
    %v923 = vunpack.c.h.b16 %v325
    %v924 = vunpack.c.l.b16 %v326
    %v925 = vunpack.c.h.b16 %v326
    %v926 = vunpack.c.l.b16 %v327
    %v927 = vunpack.c.h.b16 %v327
    %v928 = vunpack.c.l.b16 %v328
    %v929 = vunpack.c.h.b16 %v328
    %v930 = vunpack.c.l.b16 %v329
    %v931 = vunpack.c.h.b16 %v329
    %v932 = vunpack.c.l.b16 %v330
    %v933 = vunpack.c.h.b16 %v330
    %v934 = vunpack.c.l.b16 %v331
    %v935 = vunpack.c.h.b16 %v331
    %v936 = vunpack.c.l.b16 %v332
    %v937 = vunpack.c.h.b16 %v332
    %v938 = vunpack.c.l.b16 %v333
    %v939 = vunpack.c.h.b16 %v333
    %v940 = vunpack.c.l.b16 %v334
    %v941 = vunpack.c.h.b16 %v334
    %v942 = vunpack.c.l.b16 %v335
    %v943 = vunpack.c.h.b16 %v335
    %v944 = vunpack.c.l.b16 %v336
    %v945 = vunpack.c.h.b16 %v336
    %v946 = vunpack.c.l.b16 %v337
    %v947 = vunpack.c.h.b16 %v337
    %v948 = vunpack.c.l.b16 %v338
    %v949 = vunpack.c.h.b16 %v338
    %v950 = vunpack.c.l.b16 %v339
    %v951 = vunpack.c.h.b16 %v339
    %v952 = vunpack.c.l.b16 %v340
    %v953 = vunpack.c.h.b16 %v340
    %v954 = vunpack.c.l.b16 %v341
    %v955 = vunpack.c.h.b16 %v341
    %v956 = vunpack.c.l.b16 %v342
    %v957 = vunpack.c.h.b16 %v342
    %v958 = vunpack.c.l.b16 %v343
    %v959 = vunpack.c.h.b16 %v343
    %v960 = vunpack.c.l.b16 %v344
    %v961 = vunpack.c.h.b16 %v344
    %v962 = vunpack.c.l.b16 %v345
    %v963 = vunpack.c.h.b16 %v345
    %v964 = vunpack.c.l.b16 %v346
    %v965 = vunpack.c.h.b16 %v346
    %v966 = vunpack.c.l.b16 %v347
    %v967 = vunpack.c.h.b16 %v347
    %v968 = vunpack.c.l.b16 %v348
    %v969 = vunpack.c.h.b16 %v348
    %v970 = vunpack.c.l.b16 %v349
    %v971 = vunpack.c.h.b16 %v349
    %v972 = vunpack.c.l.b16 %v350
    %v973 = vunpack.c.h.b16 %v350
    %v974 = vunpack.c.l.b16 %v351
    %v975 = vunpack.c.h.b16 %v351
    %v976 = vunpack.c.l.b16 %v352
    %v977 = vunpack.c.h.b16 %v352
    %v978 = vunpack.c.l.b16 %v353
    %v979 = vunpack.c.h.b16 %v353
    %v980 = vunpack.c.l.b16 %v354
    %v981 = vunpack.c.h.b16 %v354
    %v982 = vunpack.c.l.b16 %v355
    %v983 = vunpack.c.h.b16 %v355
    %v984 = vunpack.c.l.b16 %v356
    %v985 = vunpack.c.h.b16 %v356
    %v986 = vunpack.c.l.b16 %v357
    %v987 = vunpack.c.h.b16 %v357
    %v988 = vunpack.c.l.b16 %v358
    %v989 = vunpack.c.h.b16 %v358
    %v990 = vunpack.c.l.b16 %v359
    %v991 = vunpack.c.h.b16 %v359
    %v992 = vunpack.c.l.b16 %v360
    %v993 = vunpack.c.h.b16 %v360
    %v994 = vunpack.c.l.b16 %v361
    %v995 = vunpack.c.h.b16 %v361
    %v996 = vunpack.c.l.b16 %v362
    %v997 = vunpack.c.h.b16 %v362
    %v998 = vunpack.c.l.b16 %v363
    %v999 = vunpack.c.h.b16 %v363
    %v1000 = vunpack.c.l.b16 %v364
    %v1001 = vunpack.c.h.b16 %v364
    %v1002 = vunpack.c.l.b16 %v365
    %v1003 = vunpack.c.h.b16 %v365
    %v1004 = vunpack.c.l.b16 %v366
    %v1005 = vunpack.c.h.b16 %v366
    %v1006 = vunpack.c.l.b16 %v367
    %v1007 = vunpack.c.h.b16 %v367
    %v1008 = vunpack.c.l.b16 %v368
    %v1009 = vunpack.c.h.b16 %v368
    %v1010 = vunpack.c.l.b16 %v369
    %v1011 = vunpack.c.h.b16 %v369
    %v1012 = vunpack.c.l.b16 %v370
    %v1013 = vunpack.c.h.b16 %v370
    %v1014 = vunpack.c.l.b16 %v371
    %v1015 = vunpack.c.h.b16 %v371
    %v1016 = vunpack.c.l.b16 %v372
    %v1017 = vunpack.c.h.b16 %v372
    %v1018 = vunpack.c.l.b16 %v373
    %v1019 = vunpack.c.h.b16 %v373
    %v1020 = vunpack.c.l.b16 %v374
    %v1021 = vunpack.c.h.b16 %v374
    %v1022 = vunpack.c.l.b16 %v375
    %v1023 = vunpack.c.h.b16 %v375
    %v1024 = vunpack.c.l.b16 %v376
    %v1025 = vunpack.c.h.b16 %v376
    %v1026 = vunpack.c.l.b16 %v377
    %v1027 = vunpack.c.h.b16 %v377
    %v1028 = vunpack.c.l.b16 %v378
    %v1029 = vunpack.c.h.b16 %v378
    %v1030 = vunpack.c.l.b16 %v379
    %v1031 = vunpack.c.h.b16 %v379
    %v1032 = vunpack.c.l.b16 %v380
    %v1033 = vunpack.c.h.b16 %v380
    %v1034 = vunpack.c.l.b16 %v381
    %v1035 = vunpack.c.h.b16 %v381
    %v1036 = vunpack.c.l.b16 %v382
    %v1037 = vunpack.c.h.b16 %v382
    %v1038 = vunpack.c.l.b16 %v383
    %v1039 = vunpack.c.h.b16 %v383
    %v1040 = vunpack.c.l.b16 %v384
    %v1041 = vunpack.c.h.b16 %v384
    %v1042 = vunpack.c.l.b16 %v385
    %v1043 = vunpack.c.h.b16 %v385
    %v1044 = vunpack.c.l.b16 %v386
    %v1045 = vunpack.c.h.b16 %v386
    %v1046 = vunpack.c.l.b16 %v387
    %v1047 = vunpack.c.h.b16 %v387
    %v1048 = vunpack.c.l.b16 %v388
    %v1049 = vunpack.c.h.b16 %v388
    %v1050 = vunpack.c.l.b16 %v389
    %v1051 = vunpack.c.h.b16 %v389
    %v1052 = vunpack.c.l.b16 %v390
    %v1053 = vunpack.c.h.b16 %v390
    %v1054 = vunpack.c.l.b16 %v391
    %v1055 = vunpack.c.h.b16 %v391
    %v1056 = vunpack.c.l.b16 %v392
    %v1057 = vunpack.c.h.b16 %v392
    %v1058 = vunpack.c.l.b16 %v393
    %v1059 = vunpack.c.h.b16 %v393
    %v1060 = vunpack.c.l.b16 %v394
    %v1061 = vunpack.c.h.b16 %v394
    %v1062 = vunpack.c.l.b16 %v395
    %v1063 = vunpack.c.h.b16 %v395
    %v1064 = vunpack.c.l.b16 %v396
    %v1065 = vunpack.c.h.b16 %v396
    %v1066 = vunpack.c.l.b16 %v397
    %v1067 = vunpack.c.h.b16 %v397
    %v1068 = vunpack.c.l.b16 %v398
    %v1069 = vunpack.c.h.b16 %v398
    %v1070 = vunpack.c.l.b16 %v399
    %v1071 = vunpack.c.h.b16 %v399
    %v1072 = vunpack.c.l.b16 %v400
    %v1073 = vunpack.c.h.b16 %v400
    %v1074 = vunpack.c.l.b16 %v401
    %v1075 = vunpack.c.h.b16 %v401
    %v1076 = vunpack.c.l.b16 %v402
    %v1077 = vunpack.c.h.b16 %v402
    %v1078 = vunpack.c.l.b16 %v403
    %v1079 = vunpack.c.h.b16 %v403
    %v1080 = vunpack.c.l.b16 %v404
    %v1081 = vunpack.c.h.b16 %v404
    %v1082 = vunpack.c.l.b16 %v405
    %v1083 = vunpack.c.h.b16 %v405
    %v1084 = vunpack.c.l.b16 %v406
    %v1085 = vunpack.c.h.b16 %v406
    %v1086 = vunpack.c.l.b16 %v407
    %v1087 = vunpack.c.h.b16 %v407
    %v1088 = vunpack.c.l.b16 %v408
    %v1089 = vunpack.c.h.b16 %v408
    %v1090 = vunpack.c.l.b16 %v409
    %v1091 = vunpack.c.h.b16 %v409
    %v1092 = vunpack.c.l.b16 %v410
    %v1093 = vunpack.c.h.b16 %v410
    %v1094 = vunpack.c.l.b16 %v411
    %v1095 = vunpack.c.h.b16 %v411
    %v1096 = vunpack.c.l.b16 %v412
    %v1097 = vunpack.c.h.b16 %v412
    %v1098 = vunpack.c.l.b16 %v413
    %v1099 = vunpack.c.h.b16 %v413
    %v1100 = vunpack.c.l.b16 %v414
    %v1101 = vunpack.c.h.b16 %v414
    %v1102 = vunpack.c.l.b16 %v415
    %v1103 = vunpack.c.h.b16 %v415
    %v1104 = vunpack.c.l.b16 %v416
    %v1105 = vunpack.c.h.b16 %v416
    %v1106 = vunpack.c.l.b16 %v417
    %v1107 = vunpack.c.h.b16 %v417
    %v1108 = vunpack.c.l.b16 %v418
    %v1109 = vunpack.c.h.b16 %v418
    %v1110 = vunpack.c.l.b16 %v419
    %v1111 = vunpack.c.h.b16 %v419
    %v1112 = vunpack.c.l.b16 %v420
    %v1113 = vunpack.c.h.b16 %v420
    %v1114 = vunpack.c.l.b16 %v421
    %v1115 = vunpack.c.h.b16 %v421
    %v1116 = vunpack.c.l.b16 %v422
    %v1117 = vunpack.c.h.b16 %v422
    %v1118 = vunpack.c.l.b16 %v423
    %v1119 = vunpack.c.h.b16 %v423
    %v1120 = vunpack.c.l.b16 %v424
    %v1121 = vunpack.c.h.b16 %v424
    %v1122 = vunpack.c.l.b16 %v425
    %v1123 = vunpack.c.h.b16 %v425
    %v1124 = vunpack.c.l.b16 %v426
    %v1125 = vunpack.c.h.b16 %v426
    %v1126 = vunpack.c.l.b16 %v427
    %v1127 = vunpack.c.h.b16 %v427
    %v1128 = vunpack.c.l.b16 %v428
    %v1129 = vunpack.c.h.b16 %v428
    %v1130 = vunpack.c.l.b16 %v429
    %v1131 = vunpack.c.h.b16 %v429
    %v1132 = vunpack.c.l.b16 %v430
    %v1133 = vunpack.c.h.b16 %v430
    %v1134 = vunpack.c.l.b16 %v431
    %v1135 = vunpack.c.h.b16 %v431
    %v1136 = vunpack.c.l.b16 %v432
    %v1137 = vunpack.c.h.b16 %v432
    %v1138 = vunpack.c.l.b16 %v433
    %v1139 = vunpack.c.h.b16 %v433
    %v1140 = vunpack.c.l.b16 %v434
    %v1141 = vunpack.c.h.b16 %v434
    %v1142 = vunpack.c.l.b16 %v435
    %v1143 = vunpack.c.h.b16 %v435
    %v1144 = vunpack.c.l.b16 %v436
    %v1145 = vunpack.c.h.b16 %v436
    %v1146 = vunpack.c.l.b16 %v437
    %v1147 = vunpack.c.h.b16 %v437
    %v1148 = vunpack.c.l.b16 %v438
    %v1149 = vunpack.c.h.b16 %v438
    %v1150 = vunpack.c.l.b16 %v439
    %v1151 = vunpack.c.h.b16 %v439
    %v1152 = vunpack.c.l.b16 %v440
    %v1153 = vunpack.c.h.b16 %v440
    %v1154 = vunpack.c.l.b16 %v441
    %v1155 = vunpack.c.h.b16 %v441
    %v1156 = vunpack.c.l.b16 %v442
    %v1157 = vunpack.c.h.b16 %v442
    %v1158 = vunpack.c.l.b16 %v443
    %v1159 = vunpack.c.h.b16 %v443
    %v1160 = vunpack.c.l.b16 %v444
    %v1161 = vunpack.c.h.b16 %v444
    %v1162 = vunpack.c.l.b16 %v445
    %v1163 = vunpack.c.h.b16 %v445
    %v1164 = vunpack.c.l.b16 %v446
    %v1165 = vunpack.c.h.b16 %v446
    %v1166 = vunpack.c.l.b16 %v447
    %v1167 = vunpack.c.h.b16 %v447
    %v1168 = vunpack.c.l.b16 %v448
    %v1169 = vunpack.c.h.b16 %v448
    %v1170 = vunpack.c.l.b16 %v449
    %v1171 = vunpack.c.h.b16 %v449
    %v1172 = vunpack.c.l.b16 %v450
    %v1173 = vunpack.c.h.b16 %v450
    %v1174 = vunpack.c.l.b16 %v451
    %v1175 = vunpack.c.h.b16 %v451
    %v1176 = vunpack.c.l.b16 %v452
    %v1177 = vunpack.c.h.b16 %v452
    %v1178 = vunpack.c.l.b16 %v453
    %v1179 = vunpack.c.h.b16 %v453
    %v1180 = vunpack.c.l.b16 %v454
    %v1181 = vunpack.c.h.b16 %v454
    %v1182 = vunpack.c.l.b16 %v455
    %v1183 = vunpack.c.h.b16 %v455
    %v1184 = vunpack.c.l.b16 %v456
    %v1185 = vunpack.c.h.b16 %v456
    %v1186 = vunpack.c.l.b16 %v457
    %v1187 = vunpack.c.h.b16 %v457
    %v1188 = vunpack.c.l.b16 %v458
    %v1189 = vunpack.c.h.b16 %v458
    %v1190 = vunpack.c.l.b16 %v459
    %v1191 = vunpack.c.h.b16 %v459
    %v1192 = vunpack.c.l.b16 %v460
    %v1193 = vunpack.c.h.b16 %v460
    %v1194 = vunpack.c.l.b16 %v461
    %v1195 = vunpack.c.h.b16 %v461
    %v1196 = vunpack.c.l.b16 %v462
    %v1197 = vunpack.c.h.b16 %v462
    %v1198 = vunpack.c.l.b16 %v463
    %v1199 = vunpack.c.h.b16 %v463
    %v1200 = vunpack.c.l.b16 %v464
    %v1201 = vunpack.c.h.b16 %v464
    %v1202 = vunpack.c.l.b16 %v465
    %v1203 = vunpack.c.h.b16 %v465
    %v1204 = vunpack.c.l.b16 %v466
    %v1205 = vunpack.c.h.b16 %v466
    %v1206 = vunpack.c.l.b16 %v467
    %v1207 = vunpack.c.h.b16 %v467
    %v1208 = vunpack.c.l.b16 %v468
    %v1209 = vunpack.c.h.b16 %v468
    %v1210 = vunpack.c.l.b16 %v469
    %v1211 = vunpack.c.h.b16 %v469
    %v1212 = vunpack.c.l.b16 %v470
    %v1213 = vunpack.c.h.b16 %v470
    %v1214 = vunpack.c.l.b16 %v471
    %v1215 = vunpack.c.h.b16 %v471
    %v1216 = vunpack.c.l.b16 %v472
    %v1217 = vunpack.c.h.b16 %v472
    %v1218 = vunpack.c.l.b16 %v473
    %v1219 = vunpack.c.h.b16 %v473
    %v1220 = vunpack.c.l.b16 %v474
    %v1221 = vunpack.c.h.b16 %v474
    %v1222 = vunpack.c.l.b16 %v475
    %v1223 = vunpack.c.h.b16 %v475
    %v1224 = vunpack.c.l.b16 %v476
    %v1225 = vunpack.c.h.b16 %v476
    %v1226 = vunpack.c.l.b16 %v477
    %v1227 = vunpack.c.h.b16 %v477
    %v1228 = vunpack.c.l.b16 %v478
    %v1229 = vunpack.c.h.b16 %v478
    %v1230 = vunpack.c.l.b16 %v479
    %v1231 = vunpack.c.h.b16 %v479
    %v1232 = vunpack.c.l.b16 %v480
    %v1233 = vunpack.c.h.b16 %v480
    %v1234 = vunpack.c.l.b16 %v481
    %v1235 = vunpack.c.h.b16 %v481
    %v1236 = vunpack.c.l.b16 %v482
    %v1237 = vunpack.c.h.b16 %v482
    %v1238 = vunpack.c.l.b16 %v483
    %v1239 = vunpack.c.h.b16 %v483
    %v1240 = vunpack.c.l.b16 %v484
    %v1241 = vunpack.c.h.b16 %v484
    %v1242 = vunpack.c.l.b16 %v485
    %v1243 = vunpack.c.h.b16 %v485
    %v1244 = vunpack.c.l.b16 %v486
    %v1245 = vunpack.c.h.b16 %v486
    %v1246 = vunpack.c.l.b16 %v487
    %v1247 = vunpack.c.h.b16 %v487
    %v1248 = vunpack.c.l.b16 %v488
    %v1249 = vunpack.c.h.b16 %v488
    %v1250 = vunpack.c.l.b16 %v489
    %v1251 = vunpack.c.h.b16 %v489
    %v1252 = vunpack.c.l.b16 %v490
    %v1253 = vunpack.c.h.b16 %v490
    %v1254 = vunpack.c.l.b16 %v491
    %v1255 = vunpack.c.h.b16 %v491
    %v1256 = vunpack.c.l.b16 %v492
    %v1257 = vunpack.c.h.b16 %v492
    %v1258 = vunpack.c.l.b16 %v493
    %v1259 = vunpack.c.h.b16 %v493
    %v1260 = vunpack.c.l.b16 %v494
    %v1261 = vunpack.c.h.b16 %v494
    %v1262 = vunpack.c.l.b16 %v495
    %v1263 = vunpack.c.h.b16 %v495
    %v1264 = vunpack.c.l.b16 %v496
    %v1265 = vunpack.c.h.b16 %v496
    %v1266 = vunpack.c.l.b16 %v497
    %v1267 = vunpack.c.h.b16 %v497
    %v1268 = vunpack.c.l.b16 %v498
    %v1269 = vunpack.c.h.b16 %v498
    %v1270 = vunpack.c.l.b16 %v499
    %v1271 = vunpack.c.h.b16 %v499
    %v1272 = vunpack.c.l.b16 %v500
    %v1273 = vunpack.c.h.b16 %v500
    %v1274 = vunpack.c.l.b16 %v501
    %v1275 = vunpack.c.h.b16 %v501
    %v1276 = vunpack.c.l.b16 %v502
    %v1277 = vunpack.c.h.b16 %v502
    %v1278 = vunpack.c.l.b16 %v503
    %v1279 = vunpack.c.h.b16 %v503
    %v1280 = vunpack.c.l.b16 %v504
    %v1281 = vunpack.c.h.b16 %v504
    %v1282 = vunpack.c.l.b16 %v505
    %v1283 = vunpack.c.h.b16 %v505
    %v1284 = vunpack.c.l.b16 %v506
    %v1285 = vunpack.c.h.b16 %v506
    %v1286 = vunpack.c.l.b16 %v507
    %v1287 = vunpack.c.h.b16 %v507
    %v1288 = vunpack.c.l.b16 %v508
    %v1289 = vunpack.c.h.b16 %v508
    %v1290 = vunpack.c.l.b16 %v509
    %v1291 = vunpack.c.h.b16 %v509
    %v1292 = vunpack.c.l.b16 %v510
    %v1293 = vunpack.c.h.b16 %v510
    %v1294 = vunpack.c.l.b16 %v511
    %v1295 = vunpack.c.h.b16 %v511
    %v1296 = vunpack.c.l.b16 %v512
    %v1297 = vunpack.c.h.b16 %v512
    %v1298 = vunpack.c.l.b16 %v513
    %v1299 = vunpack.c.h.b16 %v513
    %v1300 = vunpack.c.l.b16 %v514
    %v1301 = vunpack.c.h.b16 %v514
    %v1302 = vunpack.c.l.b16 %v515
    %v1303 = vunpack.c.h.b16 %v515
    %v1304 = vunpack.c.l.b16 %v516
    %v1305 = vunpack.c.h.b16 %v516
    %v1306 = vunpack.c.l.b16 %v517
    %v1307 = vunpack.c.h.b16 %v517
    %v1308 = vpack.c.b16 %v800, %v796
    %v1309 = vpack.c.b16 %v801, %v797
    %v1310 = vpack.c.b16 %v802, %v798
    %v1311 = vpack.c.b16 %v803, %v799
    %v1312 = vpack.c.b16 %v808, %v804
    %v1313 = vpack.c.b16 %v809, %v805
    %v1314 = vpack.c.b16 %v810, %v806
    %v1315 = vpack.c.b16 %v811, %v807
    %v1316 = vpack.c.b16 %v816, %v812
    %v1317 = vpack.c.b16 %v817, %v813
    %v1318 = vpack.c.b16 %v818, %v814
    %v1319 = vpack.c.b16 %v819, %v815
    %v1320 = vpack.c.b16 %v824, %v820
    %v1321 = vpack.c.b16 %v825, %v821
    %v1322 = vpack.c.b16 %v826, %v822
    %v1323 = vpack.c.b16 %v827, %v823
    %v1324 = vpack.c.b16 %v832, %v828
    %v1325 = vpack.c.b16 %v833, %v829
    %v1326 = vpack.c.b16 %v834, %v830
    %v1327 = vpack.c.b16 %v835, %v831
    %v1328 = vpack.c.b16 %v840, %v836
    %v1329 = vpack.c.b16 %v841, %v837
    %v1330 = vpack.c.b16 %v842, %v838
    %v1331 = vpack.c.b16 %v843, %v839
    %v1332 = vpack.c.b16 %v848, %v844
    %v1333 = vpack.c.b16 %v849, %v845
    %v1334 = vpack.c.b16 %v850, %v846
    %v1335 = vpack.c.b16 %v851, %v847
    %v1336 = vpack.c.b16 %v856, %v852
    %v1337 = vpack.c.b16 %v857, %v853
    %v1338 = vpack.c.b16 %v858, %v854
    %v1339 = vpack.c.b16 %v859, %v855
    %v1340 = vpack.c.b16 %v864, %v860
    %v1341 = vpack.c.b16 %v865, %v861
    %v1342 = vpack.c.b16 %v866, %v862
    %v1343 = vpack.c.b16 %v867, %v863
    %v1344 = vpack.c.b16 %v872, %v868
    %v1345 = vpack.c.b16 %v873, %v869
    %v1346 = vpack.c.b16 %v874, %v870
    %v1347 = vpack.c.b16 %v875, %v871
    %v1348 = vpack.c.b16 %v880, %v876
    %v1349 = vpack.c.b16 %v881, %v877
    %v1350 = vpack.c.b16 %v882, %v878
    %v1351 = vpack.c.b16 %v883, %v879
    %v1352 = vpack.c.b16 %v888, %v884
    %v1353 = vpack.c.b16 %v889, %v885
    %v1354 = vpack.c.b16 %v890, %v886
    %v1355 = vpack.c.b16 %v891, %v887
    %v1356 = vpack.c.b16 %v896, %v892
    %v1357 = vpack.c.b16 %v897, %v893
    %v1358 = vpack.c.b16 %v898, %v894
    %v1359 = vpack.c.b16 %v899, %v895
    %v1360 = vpack.c.b16 %v904, %v900
    %v1361 = vpack.c.b16 %v905, %v901
    %v1362 = vpack.c.b16 %v906, %v902
    %v1363 = vpack.c.b16 %v907, %v903
    %v1364 = vpack.c.b16 %v912, %v908
    %v1365 = vpack.c.b16 %v913, %v909
    %v1366 = vpack.c.b16 %v914, %v910
    %v1367 = vpack.c.b16 %v915, %v911
    %v1368 = vpack.c.b16 %v920, %v916
    %v1369 = vpack.c.b16 %v921, %v917
    %v1370 = vpack.c.b16 %v922, %v918
    %v1371 = vpack.c.b16 %v923, %v919
    %v1372 = vpack.c.b16 %v928, %v924
    %v1373 = vpack.c.b16 %v929, %v925
    %v1374 = vpack.c.b16 %v930, %v926
    %v1375 = vpack.c.b16 %v931, %v927
    %v1376 = vpack.c.b16 %v936, %v932
    %v1377 = vpack.c.b16 %v937, %v933
    %v1378 = vpack.c.b16 %v938, %v934
    %v1379 = vpack.c.b16 %v939, %v935
    %v1380 = vpack.c.b16 %v944, %v940
    %v1381 = vpack.c.b16 %v945, %v941
    %v1382 = vpack.c.b16 %v946, %v942
    %v1383 = vpack.c.b16 %v947, %v943
    %v1384 = vpack.c.b16 %v952, %v948
    %v1385 = vpack.c.b16 %v953, %v949
    %v1386 = vpack.c.b16 %v954, %v950
    %v1387 = vpack.c.b16 %v955, %v951
    %v1388 = vpack.c.b16 %v960, %v956
    %v1389 = vpack.c.b16 %v961, %v957
    %v1390 = vpack.c.b16 %v962, %v958
    %v1391 = vpack.c.b16 %v963, %v959
    %v1392 = vpack.c.b16 %v968, %v964
    %v1393 = vpack.c.b16 %v969, %v965
    %v1394 = vpack.c.b16 %v970, %v966
    %v1395 = vpack.c.b16 %v971, %v967
    %v1396 = vpack.c.b16 %v976, %v972
    %v1397 = vpack.c.b16 %v977, %v973
    %v1398 = vpack.c.b16 %v978, %v974
    %v1399 = vpack.c.b16 %v979, %v975
    %v1400 = vpack.c.b16 %v984, %v980
    %v1401 = vpack.c.b16 %v985, %v981
    %v1402 = vpack.c.b16 %v986, %v982
    %v1403 = vpack.c.b16 %v987, %v983
    %v1404 = vpack.c.b16 %v992, %v988
    %v1405 = vpack.c.b16 %v993, %v989
    %v1406 = vpack.c.b16 %v994, %v990
    %v1407 = vpack.c.b16 %v995, %v991
    %v1408 = vpack.c.b16 %v1000, %v996
    %v1409 = vpack.c.b16 %v1001, %v997
    %v1410 = vpack.c.b16 %v1002, %v998
    %v1411 = vpack.c.b16 %v1003, %v999
    %v1412 = vpack.c.b16 %v1008, %v1004
    %v1413 = vpack.c.b16 %v1009, %v1005
    %v1414 = vpack.c.b16 %v1010, %v1006
    %v1415 = vpack.c.b16 %v1011, %v1007
    %v1416 = vpack.c.b16 %v1016, %v1012
    %v1417 = vpack.c.b16 %v1017, %v1013
    %v1418 = vpack.c.b16 %v1018, %v1014
    %v1419 = vpack.c.b16 %v1019, %v1015
    %v1420 = vpack.c.b16 %v1024, %v1020
    %v1421 = vpack.c.b16 %v1025, %v1021
    %v1422 = vpack.c.b16 %v1026, %v1022
    %v1423 = vpack.c.b16 %v1027, %v1023
    %v1424 = vpack.c.b16 %v1032, %v1028
    %v1425 = vpack.c.b16 %v1033, %v1029
    %v1426 = vpack.c.b16 %v1034, %v1030
    %v1427 = vpack.c.b16 %v1035, %v1031
    %v1428 = vpack.c.b16 %v1040, %v1036
    %v1429 = vpack.c.b16 %v1041, %v1037
    %v1430 = vpack.c.b16 %v1042, %v1038
    %v1431 = vpack.c.b16 %v1043, %v1039
    %v1432 = vpack.c.b16 %v1048, %v1044
    %v1433 = vpack.c.b16 %v1049, %v1045
    %v1434 = vpack.c.b16 %v1050, %v1046
    %v1435 = vpack.c.b16 %v1051, %v1047
    %v1436 = vpack.c.b16 %v1056, %v1052
    %v1437 = vpack.c.b16 %v1057, %v1053
    %v1438 = vpack.c.b16 %v1058, %v1054
    %v1439 = vpack.c.b16 %v1059, %v1055
    %v1440 = vpack.c.b16 %v1064, %v1060
    %v1441 = vpack.c.b16 %v1065, %v1061
    %v1442 = vpack.c.b16 %v1066, %v1062
    %v1443 = vpack.c.b16 %v1067, %v1063
    %v1444 = vpack.c.b16 %v1072, %v1068
    %v1445 = vpack.c.b16 %v1073, %v1069
    %v1446 = vpack.c.b16 %v1074, %v1070
    %v1447 = vpack.c.b16 %v1075, %v1071
    %v1448 = vpack.c.b16 %v1080, %v1076
    %v1449 = vpack.c.b16 %v1081, %v1077
    %v1450 = vpack.c.b16 %v1082, %v1078
    %v1451 = vpack.c.b16 %v1083, %v1079
    %v1452 = vpack.c.b16 %v1088, %v1084
    %v1453 = vpack.c.b16 %v1089, %v1085
    %v1454 = vpack.c.b16 %v1090, %v1086
    %v1455 = vpack.c.b16 %v1091, %v1087
    %v1456 = vpack.c.b16 %v1096, %v1092
    %v1457 = vpack.c.b16 %v1097, %v1093
    %v1458 = vpack.c.b16 %v1098, %v1094
    %v1459 = vpack.c.b16 %v1099, %v1095
    %v1460 = vpack.c.b16 %v1104, %v1100
    %v1461 = vpack.c.b16 %v1105, %v1101
    %v1462 = vpack.c.b16 %v1106, %v1102
    %v1463 = vpack.c.b16 %v1107, %v1103
    %v1464 = vpack.c.b16 %v1112, %v1108
    %v1465 = vpack.c.b16 %v1113, %v1109
    %v1466 = vpack.c.b16 %v1114, %v1110
    %v1467 = vpack.c.b16 %v1115, %v1111
    %v1468 = vpack.c.b16 %v1120, %v1116
    %v1469 = vpack.c.b16 %v1121, %v1117
    %v1470 = vpack.c.b16 %v1122, %v1118
    %v1471 = vpack.c.b16 %v1123, %v1119
    %v1472 = vpack.c.b16 %v1128, %v1124
    %v1473 = vpack.c.b16 %v1129, %v1125
    %v1474 = vpack.c.b16 %v1130, %v1126
    %v1475 = vpack.c.b16 %v1131, %v1127
    %v1476 = vpack.c.b16 %v1136, %v1132
    %v1477 = vpack.c.b16 %v1137, %v1133
    %v1478 = vpack.c.b16 %v1138, %v1134
    %v1479 = vpack.c.b16 %v1139, %v1135
    %v1480 = vpack.c.b16 %v1144, %v1140
    %v1481 = vpack.c.b16 %v1145, %v1141
    %v1482 = vpack.c.b16 %v1146, %v1142
    %v1483 = vpack.c.b16 %v1147, %v1143
    %v1484 = vpack.c.b16 %v1152, %v1148
    %v1485 = vpack.c.b16 %v1153, %v1149
    %v1486 = vpack.c.b16 %v1154, %v1150
    %v1487 = vpack.c.b16 %v1155, %v1151
    %v1488 = vpack.c.b16 %v1160, %v1156
    %v1489 = vpack.c.b16 %v1161, %v1157
    %v1490 = vpack.c.b16 %v1162, %v1158
    %v1491 = vpack.c.b16 %v1163, %v1159
    %v1492 = vpack.c.b16 %v1168, %v1164
    %v1493 = vpack.c.b16 %v1169, %v1165
    %v1494 = vpack.c.b16 %v1170, %v1166
    %v1495 = vpack.c.b16 %v1171, %v1167
    %v1496 = vpack.c.b16 %v1176, %v1172
    %v1497 = vpack.c.b16 %v1177, %v1173
    %v1498 = vpack.c.b16 %v1178, %v1174
    %v1499 = vpack.c.b16 %v1179, %v1175
    %v1500 = vpack.c.b16 %v1184, %v1180
    %v1501 = vpack.c.b16 %v1185, %v1181
    %v1502 = vpack.c.b16 %v1186, %v1182
    %v1503 = vpack.c.b16 %v1187, %v1183
    %v1504 = vpack.c.b16 %v1192, %v1188
    %v1505 = vpack.c.b16 %v1193, %v1189
    %v1506 = vpack.c.b16 %v1194, %v1190
    %v1507 = vpack.c.b16 %v1195, %v1191
    %v1508 = vpack.c.b16 %v1200, %v1196
    %v1509 = vpack.c.b16 %v1201, %v1197
    %v1510 = vpack.c.b16 %v1202, %v1198
    %v1511 = vpack.c.b16 %v1203, %v1199
    %v1512 = vpack.c.b16 %v1208, %v1204
    %v1513 = vpack.c.b16 %v1209, %v1205
    %v1514 = vpack.c.b16 %v1210, %v1206
    %v1515 = vpack.c.b16 %v1211, %v1207
    %v1516 = vpack.c.b16 %v1216, %v1212
    %v1517 = vpack.c.b16 %v1217, %v1213
    %v1518 = vpack.c.b16 %v1218, %v1214
    %v1519 = vpack.c.b16 %v1219, %v1215
    %v1520 = vpack.c.b16 %v1224, %v1220
    %v1521 = vpack.c.b16 %v1225, %v1221
    %v1522 = vpack.c.b16 %v1226, %v1222
    %v1523 = vpack.c.b16 %v1227, %v1223
    %v1524 = vpack.c.b16 %v1232, %v1228
    %v1525 = vpack.c.b16 %v1233, %v1229
    %v1526 = vpack.c.b16 %v1234, %v1230
    %v1527 = vpack.c.b16 %v1235, %v1231
    %v1528 = vpack.c.b16 %v1240, %v1236
    %v1529 = vpack.c.b16 %v1241, %v1237
    %v1530 = vpack.c.b16 %v1242, %v1238
    %v1531 = vpack.c.b16 %v1243, %v1239
    %v1532 = vpack.c.b16 %v1248, %v1244
    %v1533 = vpack.c.b16 %v1249, %v1245
    %v1534 = vpack.c.b16 %v1250, %v1246
    %v1535 = vpack.c.b16 %v1251, %v1247
    %v1536 = vpack.c.b16 %v1256, %v1252
    %v1537 = vpack.c.b16 %v1257, %v1253
    %v1538 = vpack.c.b16 %v1258, %v1254
    %v1539 = vpack.c.b16 %v1259, %v1255
    %v1540 = vpack.c.b16 %v1264, %v1260
    %v1541 = vpack.c.b16 %v1265, %v1261
    %v1542 = vpack.c.b16 %v1266, %v1262
    %v1543 = vpack.c.b16 %v1267, %v1263
    %v1544 = vpack.c.b16 %v1272, %v1268
    %v1545 = vpack.c.b16 %v1273, %v1269
    %v1546 = vpack.c.b16 %v1274, %v1270
    %v1547 = vpack.c.b16 %v1275, %v1271
    %v1548 = vpack.c.b16 %v1280, %v1276
    %v1549 = vpack.c.b16 %v1281, %v1277
    %v1550 = vpack.c.b16 %v1282, %v1278
    %v1551 = vpack.c.b16 %v1283, %v1279
    %v1552 = vpack.c.b16 %v1288, %v1284
    %v1553 = vpack.c.b16 %v1289, %v1285
    %v1554 = vpack.c.b16 %v1290, %v1286
    %v1555 = vpack.c.b16 %v1291, %v1287
    %v1556 = vpack.c.b16 %v1296, %v1292
    %v1557 = vpack.c.b16 %v1297, %v1293
    %v1558 = vpack.c.b16 %v1298, %v1294
    %v1559 = vpack.c.b16 %v1299, %v1295
    %v1560 = vpack.c.b16 %v1304, %v1300
    %v1561 = vpack.c.b16 %v1305, %v1301
    %v1562 = vpack.c.b16 %v1306, %v1302
    %v1563 = vpack.c.b16 %v1307, %v1303
    %1820 = vmatprep.subr.bf16.mxu0 %v1337
    %1821 = vmatpush1.bf16.msra.mxu0 %v1336
    %1822 = vmatprep.subr.bf16.mxu0 %v1333
    %1823 = vmatpush1.bf16.msra.mxu0 %v1332
    %1824 = vmatprep.subr.bf16.mxu0 %v1329
    %1825 = vmatpush1.bf16.msra.mxu0 %v1328
    %1826 = vmatprep.subr.bf16.mxu0 %v1325
    %1827 = vmatpush1.bf16.msra.mxu0 %v1324
    %1828 = vmatprep.subr.bf16.mxu0 %v1321
    %1829 = vmatpush1.bf16.msra.mxu0 %v1320
    %1830 = vmatprep.subr.bf16.mxu0 %v1317
    %1831 = vmatpush1.bf16.msra.mxu0 %v1316
    %1832 = vmatprep.subr.bf16.mxu0 %v1313
    %1833 = vmatpush1.bf16.msra.mxu0 %v1312
    %1834 = vmatprep.subr.bf16.mxu0 %v1309
    %1835 = vmatpush1.bf16.msra.mxu0 %v1308
    %1836 = vmatprep.subr.bf16.mxu0 %v1369
    %1837 = vmatpush2.bf16.msra.mxu0 %v1368
    %1838 = vmatprep.subr.bf16.mxu0 %v1365
    %1839 = vmatpush2.bf16.msra.mxu0 %v1364
    %1840 = vmatprep.subr.bf16.mxu0 %v1361
    %1841 = vmatpush2.bf16.msra.mxu0 %v1360
    %1842 = vmatprep.subr.bf16.mxu0 %v1357
    %1843 = vmatpush2.bf16.msra.mxu0 %v1356
    %1844 = vmatprep.subr.bf16.mxu0 %v1353
    %1845 = vmatpush2.bf16.msra.mxu0 %v1352
    %1846 = vmatprep.subr.bf16.mxu0 %v1349
    %1847 = vmatpush2.bf16.msra.mxu0 %v1348
    %1848 = vmatprep.subr.bf16.mxu0 %v1345
    %1849 = vmatpush2.bf16.msra.mxu0 %v1344
    %1850 = vmatprep.subr.bf16.mxu0 %v1341
    %1851 = vmatpush2.bf16.msra.mxu0 %v1340
    %1852 = vmatprep.mubr.bf16.mxu0 %v199
    %1853 = vmatmul.mubr.bf16.gmra.mxu0 %v198
    %v1854 = vpop.f32.mrf.mxu0
    %v1855 = vadd.f32 %v523, %v1854
    %v1856 = vpop.f32.mrf.mxu0
    %v1857 = vadd.f32 %v527, %v1856
    %v1858 = vpop.f32.mrf.mxu0
    %v1859 = vadd.f32 %v523, %v1858
    %v1860 = vpop.f32.mrf.mxu0
    %v1861 = vadd.f32 %v527, %v1860
    %1862 = vmatprep.mubr.bf16.mxu0 %v207
    %1863 = vmatmul.mubr.bf16.gmra.mxu0 %v206
    %v1864 = vpop.f32.mrf.mxu0
    %v1865 = vadd.f32 %v523, %v1864
    %v1866 = vpop.f32.mrf.mxu0
    %v1867 = vadd.f32 %v527, %v1866
    %v1868 = vpop.f32.mrf.mxu0
    %v1869 = vadd.f32 %v523, %v1868
    %v1870 = vpop.f32.mrf.mxu0
    %v1871 = vadd.f32 %v527, %v1870
    %1872 = vmatprep.mubr.bf16.mxu0 %v215
    %1873 = vmatmul.mubr.bf16.gmra.mxu0 %v214
    %v1874 = vpop.f32.mrf.mxu0
    %v1875 = vadd.f32 %v523, %v1874
    %v1876 = vpop.f32.mrf.mxu0
    %v1877 = vadd.f32 %v527, %v1876
    %v1878 = vpop.f32.mrf.mxu0
    %v1879 = vadd.f32 %v523, %v1878
    %v1880 = vpop.f32.mrf.mxu0
    %v1881 = vadd.f32 %v527, %v1880
    %1882 = vmatprep.mubr.bf16.mxu0 %v223
    %1883 = vmatmul.mubr.bf16.gmra.mxu0 %v222
    %v1884 = vpop.f32.mrf.mxu0
    %v1885 = vadd.f32 %v523, %v1884
    %v1886 = vpop.f32.mrf.mxu0
    %v1887 = vadd.f32 %v527, %v1886
    %v1888 = vpop.f32.mrf.mxu0
    %v1889 = vadd.f32 %v523, %v1888
    %v1890 = vpop.f32.mrf.mxu0
    %v1891 = vadd.f32 %v527, %v1890
    %1892 = vmatprep.mubr.bf16.mxu0 %v231
    %1893 = vmatmul.mubr.bf16.gmra.mxu0 %v230
    %v1894 = vpop.f32.mrf.mxu0
    %v1895 = vadd.f32 %v523, %v1894
    %v1896 = vpop.f32.mrf.mxu0
    %v1897 = vadd.f32 %v527, %v1896
    %v1898 = vpop.f32.mrf.mxu0
    %v1899 = vadd.f32 %v523, %v1898
    %v1900 = vpop.f32.mrf.mxu0
    %v1901 = vadd.f32 %v527, %v1900
    %1902 = vmatprep.mubr.bf16.mxu0 %v239
    %1903 = vmatmul.mubr.bf16.gmra.mxu0 %v238
    %v1904 = vpop.f32.mrf.mxu0
    %v1905 = vadd.f32 %v523, %v1904
    %v1906 = vpop.f32.mrf.mxu0
    %v1907 = vadd.f32 %v527, %v1906
    %v1908 = vpop.f32.mrf.mxu0
    %v1909 = vadd.f32 %v523, %v1908
    %v1910 = vpop.f32.mrf.mxu0
    %v1911 = vadd.f32 %v527, %v1910
    %1912 = vmatprep.mubr.bf16.mxu0 %v247
    %1913 = vmatmul.mubr.bf16.gmra.mxu0 %v246
    %v1914 = vpop.f32.mrf.mxu0
    %v1915 = vadd.f32 %v523, %v1914
    %v1916 = vpop.f32.mrf.mxu0
    %v1917 = vadd.f32 %v527, %v1916
    %v1918 = vpop.f32.mrf.mxu0
    %v1919 = vadd.f32 %v523, %v1918
    %v1920 = vpop.f32.mrf.mxu0
    %v1921 = vadd.f32 %v527, %v1920
    %1922 = vmatprep.mubr.bf16.mxu0 %v255
    %1923 = vmatmul.mubr.bf16.gmra.mxu0 %v254
    %v1924 = vpop.f32.mrf.mxu0
    %v1925 = vadd.f32 %v523, %v1924
    %v1926 = vpop.f32.mrf.mxu0
    %v1927 = vadd.f32 %v527, %v1926
    %v1928 = vpop.f32.mrf.mxu0
    %v1929 = vadd.f32 %v523, %v1928
    %v1930 = vpop.f32.mrf.mxu0
    %v1931 = vadd.f32 %v527, %v1930
    %1932 = vdwg.mxu0
    %1933 = vmatprep.subr.bf16.mxu0 %v1401
    %1934 = vmatpush1.bf16.msra.mxu0 %v1400
    %1935 = vmatprep.subr.bf16.mxu0 %v1397
    %1936 = vmatpush1.bf16.msra.mxu0 %v1396
    %1937 = vmatprep.subr.bf16.mxu0 %v1393
    %1938 = vmatpush1.bf16.msra.mxu0 %v1392
    %1939 = vmatprep.subr.bf16.mxu0 %v1389
    %1940 = vmatpush1.bf16.msra.mxu0 %v1388
    %1941 = vmatprep.subr.bf16.mxu0 %v1385
    %1942 = vmatpush1.bf16.msra.mxu0 %v1384
    %1943 = vmatprep.subr.bf16.mxu0 %v1381
    %1944 = vmatpush1.bf16.msra.mxu0 %v1380
    %1945 = vmatprep.subr.bf16.mxu0 %v1377
    %1946 = vmatpush1.bf16.msra.mxu0 %v1376
    %1947 = vmatprep.subr.bf16.mxu0 %v1373
    %1948 = vmatpush1.bf16.msra.mxu0 %v1372
    %1949 = vmatprep.subr.bf16.mxu0 %v1433
    %1950 = vmatpush2.bf16.msra.mxu0 %v1432
    %1951 = vmatprep.subr.bf16.mxu0 %v1429
    %1952 = vmatpush2.bf16.msra.mxu0 %v1428
    %1953 = vmatprep.subr.bf16.mxu0 %v1425
    %1954 = vmatpush2.bf16.msra.mxu0 %v1424
    %1955 = vmatprep.subr.bf16.mxu0 %v1421
    %1956 = vmatpush2.bf16.msra.mxu0 %v1420
    %1957 = vmatprep.subr.bf16.mxu0 %v1417
    %1958 = vmatpush2.bf16.msra.mxu0 %v1416
    %1959 = vmatprep.subr.bf16.mxu0 %v1413
    %1960 = vmatpush2.bf16.msra.mxu0 %v1412
    %1961 = vmatprep.subr.bf16.mxu0 %v1409
    %1962 = vmatpush2.bf16.msra.mxu0 %v1408
    %1963 = vmatprep.subr.bf16.mxu0 %v1405
    %1964 = vmatpush2.bf16.msra.mxu0 %v1404
    %1965 = vmatprep.mubr.bf16.mxu0 %v201
    %1966 = vmatmul.mubr.bf16.gmra.mxu0 %v200
    %v1967 = vpop.f32.mrf.mxu0
    %v1968 = vadd.f32 %v1855, %v1967
    %v1969 = vpop.f32.mrf.mxu0
    %v1970 = vadd.f32 %v1857, %v1969
    %v1971 = vpop.f32.mrf.mxu0
    %v1972 = vadd.f32 %v1859, %v1971
    %v1973 = vpop.f32.mrf.mxu0
    %v1974 = vadd.f32 %v1861, %v1973
    %1975 = vmatprep.mubr.bf16.mxu0 %v209
    %1976 = vmatmul.mubr.bf16.gmra.mxu0 %v208
    %v1977 = vpop.f32.mrf.mxu0
    %v1978 = vadd.f32 %v1865, %v1977
    %v1979 = vpop.f32.mrf.mxu0
    %v1980 = vadd.f32 %v1867, %v1979
    %v1981 = vpop.f32.mrf.mxu0
    %v1982 = vadd.f32 %v1869, %v1981
    %v1983 = vpop.f32.mrf.mxu0
    %v1984 = vadd.f32 %v1871, %v1983
    %1985 = vmatprep.mubr.bf16.mxu0 %v217
    %1986 = vmatmul.mubr.bf16.gmra.mxu0 %v216
    %v1987 = vpop.f32.mrf.mxu0
    %v1988 = vadd.f32 %v1875, %v1987
    %v1989 = vpop.f32.mrf.mxu0
    %v1990 = vadd.f32 %v1877, %v1989
    %v1991 = vpop.f32.mrf.mxu0
    %v1992 = vadd.f32 %v1879, %v1991
    %v1993 = vpop.f32.mrf.mxu0
    %v1994 = vadd.f32 %v1881, %v1993
    %1995 = vmatprep.mubr.bf16.mxu0 %v225
    %1996 = vmatmul.mubr.bf16.gmra.mxu0 %v224
    %v1997 = vpop.f32.mrf.mxu0
    %v1998 = vadd.f32 %v1885, %v1997
    %v1999 = vpop.f32.mrf.mxu0
    %v2000 = vadd.f32 %v1887, %v1999
    %v2001 = vpop.f32.mrf.mxu0
    %v2002 = vadd.f32 %v1889, %v2001
    %v2003 = vpop.f32.mrf.mxu0
    %v2004 = vadd.f32 %v1891, %v2003
    %2005 = vmatprep.mubr.bf16.mxu0 %v233
    %2006 = vmatmul.mubr.bf16.gmra.mxu0 %v232
    %v2007 = vpop.f32.mrf.mxu0
    %v2008 = vadd.f32 %v1895, %v2007
    %v2009 = vpop.f32.mrf.mxu0
    %v2010 = vadd.f32 %v1897, %v2009
    %v2011 = vpop.f32.mrf.mxu0
    %v2012 = vadd.f32 %v1899, %v2011
    %v2013 = vpop.f32.mrf.mxu0
    %v2014 = vadd.f32 %v1901, %v2013
    %2015 = vmatprep.mubr.bf16.mxu0 %v241
    %2016 = vmatmul.mubr.bf16.gmra.mxu0 %v240
    %v2017 = vpop.f32.mrf.mxu0
    %v2018 = vadd.f32 %v1905, %v2017
    %v2019 = vpop.f32.mrf.mxu0
    %v2020 = vadd.f32 %v1907, %v2019
    %v2021 = vpop.f32.mrf.mxu0
    %v2022 = vadd.f32 %v1909, %v2021
    %v2023 = vpop.f32.mrf.mxu0
    %v2024 = vadd.f32 %v1911, %v2023
    %2025 = vmatprep.mubr.bf16.mxu0 %v249
    %2026 = vmatmul.mubr.bf16.gmra.mxu0 %v248
    %v2027 = vpop.f32.mrf.mxu0
    %v2028 = vadd.f32 %v1915, %v2027
    %v2029 = vpop.f32.mrf.mxu0
    %v2030 = vadd.f32 %v1917, %v2029
    %v2031 = vpop.f32.mrf.mxu0
    %v2032 = vadd.f32 %v1919, %v2031
    %v2033 = vpop.f32.mrf.mxu0
    %v2034 = vadd.f32 %v1921, %v2033
    %2035 = vmatprep.mubr.bf16.mxu0 %v257
    %2036 = vmatmul.mubr.bf16.gmra.mxu0 %v256
    %v2037 = vpop.f32.mrf.mxu0
    %v2038 = vadd.f32 %v1925, %v2037
    %v2039 = vpop.f32.mrf.mxu0
    %v2040 = vadd.f32 %v1927, %v2039
    %v2041 = vpop.f32.mrf.mxu0
    %v2042 = vadd.f32 %v1929, %v2041
    %v2043 = vpop.f32.mrf.mxu0
    %v2044 = vadd.f32 %v1931, %v2043
    %2045 = vdwg.mxu0
    %2046 = vmatprep.subr.bf16.mxu0 %v1465
    %2047 = vmatpush1.bf16.msra.mxu0 %v1464
    %2048 = vmatprep.subr.bf16.mxu0 %v1461
    %2049 = vmatpush1.bf16.msra.mxu0 %v1460
    %2050 = vmatprep.subr.bf16.mxu0 %v1457
    %2051 = vmatpush1.bf16.msra.mxu0 %v1456
    %2052 = vmatprep.subr.bf16.mxu0 %v1453
    %2053 = vmatpush1.bf16.msra.mxu0 %v1452
    %2054 = vmatprep.subr.bf16.mxu0 %v1449
    %2055 = vmatpush1.bf16.msra.mxu0 %v1448
    %2056 = vmatprep.subr.bf16.mxu0 %v1445
    %2057 = vmatpush1.bf16.msra.mxu0 %v1444
    %2058 = vmatprep.subr.bf16.mxu0 %v1441
    %2059 = vmatpush1.bf16.msra.mxu0 %v1440
    %2060 = vmatprep.subr.bf16.mxu0 %v1437
    %2061 = vmatpush1.bf16.msra.mxu0 %v1436
    %2062 = vmatprep.subr.bf16.mxu0 %v1497
    %2063 = vmatpush2.bf16.msra.mxu0 %v1496
    %2064 = vmatprep.subr.bf16.mxu0 %v1493
    %2065 = vmatpush2.bf16.msra.mxu0 %v1492
    %2066 = vmatprep.subr.bf16.mxu0 %v1489
    %2067 = vmatpush2.bf16.msra.mxu0 %v1488
    %2068 = vmatprep.subr.bf16.mxu0 %v1485
    %2069 = vmatpush2.bf16.msra.mxu0 %v1484
    %2070 = vmatprep.subr.bf16.mxu0 %v1481
    %2071 = vmatpush2.bf16.msra.mxu0 %v1480
    %2072 = vmatprep.subr.bf16.mxu0 %v1477
    %2073 = vmatpush2.bf16.msra.mxu0 %v1476
    %2074 = vmatprep.subr.bf16.mxu0 %v1473
    %2075 = vmatpush2.bf16.msra.mxu0 %v1472
    %2076 = vmatprep.subr.bf16.mxu0 %v1469
    %2077 = vmatpush2.bf16.msra.mxu0 %v1468
    %2078 = vmatprep.mubr.bf16.mxu0 %v203
    %2079 = vmatmul.mubr.bf16.gmra.mxu0 %v202
    %v2080 = vpop.f32.mrf.mxu0
    %v2081 = vadd.f32 %v1968, %v2080
    %v2082 = vpop.f32.mrf.mxu0
    %v2083 = vadd.f32 %v1970, %v2082
    %v2084 = vpop.f32.mrf.mxu0
    %v2085 = vadd.f32 %v1972, %v2084
    %v2086 = vpop.f32.mrf.mxu0
    %v2087 = vadd.f32 %v1974, %v2086
    %2088 = vmatprep.mubr.bf16.mxu0 %v211
    %2089 = vmatmul.mubr.bf16.gmra.mxu0 %v210
    %v2090 = vpop.f32.mrf.mxu0
    %v2091 = vadd.f32 %v1978, %v2090
    %v2092 = vpop.f32.mrf.mxu0
    %v2093 = vadd.f32 %v1980, %v2092
    %v2094 = vpop.f32.mrf.mxu0
    %v2095 = vadd.f32 %v1982, %v2094
    %v2096 = vpop.f32.mrf.mxu0
    %v2097 = vadd.f32 %v1984, %v2096
    %2098 = vmatprep.mubr.bf16.mxu0 %v219
    %2099 = vmatmul.mubr.bf16.gmra.mxu0 %v218
    %v2100 = vpop.f32.mrf.mxu0
    %v2101 = vadd.f32 %v1988, %v2100
    %v2102 = vpop.f32.mrf.mxu0
    %v2103 = vadd.f32 %v1990, %v2102
    %v2104 = vpop.f32.mrf.mxu0
    %v2105 = vadd.f32 %v1992, %v2104
    %v2106 = vpop.f32.mrf.mxu0
    %v2107 = vadd.f32 %v1994, %v2106
    %2108 = vmatprep.mubr.bf16.mxu0 %v227
    %2109 = vmatmul.mubr.bf16.gmra.mxu0 %v226
    %v2110 = vpop.f32.mrf.mxu0
    %v2111 = vadd.f32 %v1998, %v2110
    %v2112 = vpop.f32.mrf.mxu0
    %v2113 = vadd.f32 %v2000, %v2112
    %v2114 = vpop.f32.mrf.mxu0
    %v2115 = vadd.f32 %v2002, %v2114
    %v2116 = vpop.f32.mrf.mxu0
    %v2117 = vadd.f32 %v2004, %v2116
    %2118 = vmatprep.mubr.bf16.mxu0 %v235
    %2119 = vmatmul.mubr.bf16.gmra.mxu0 %v234
    %v2120 = vpop.f32.mrf.mxu0
    %v2121 = vadd.f32 %v2008, %v2120
    %v2122 = vpop.f32.mrf.mxu0
    %v2123 = vadd.f32 %v2010, %v2122
    %v2124 = vpop.f32.mrf.mxu0
    %v2125 = vadd.f32 %v2012, %v2124
    %v2126 = vpop.f32.mrf.mxu0
    %v2127 = vadd.f32 %v2014, %v2126
    %2128 = vmatprep.mubr.bf16.mxu0 %v243
    %2129 = vmatmul.mubr.bf16.gmra.mxu0 %v242
    %v2130 = vpop.f32.mrf.mxu0
    %v2131 = vadd.f32 %v2018, %v2130
    %v2132 = vpop.f32.mrf.mxu0
    %v2133 = vadd.f32 %v2020, %v2132
    %v2134 = vpop.f32.mrf.mxu0
    %v2135 = vadd.f32 %v2022, %v2134
    %v2136 = vpop.f32.mrf.mxu0
    %v2137 = vadd.f32 %v2024, %v2136
    %2138 = vmatprep.mubr.bf16.mxu0 %v251
    %2139 = vmatmul.mubr.bf16.gmra.mxu0 %v250
    %v2140 = vpop.f32.mrf.mxu0
    %v2141 = vadd.f32 %v2028, %v2140
    %v2142 = vpop.f32.mrf.mxu0
    %v2143 = vadd.f32 %v2030, %v2142
    %v2144 = vpop.f32.mrf.mxu0
    %v2145 = vadd.f32 %v2032, %v2144
    %v2146 = vpop.f32.mrf.mxu0
    %v2147 = vadd.f32 %v2034, %v2146
    %2148 = vmatprep.mubr.bf16.mxu0 %v259
    %2149 = vmatmul.mubr.bf16.gmra.mxu0 %v258
    %v2150 = vpop.f32.mrf.mxu0
    %v2151 = vadd.f32 %v2038, %v2150
    %v2152 = vpop.f32.mrf.mxu0
    %v2153 = vadd.f32 %v2040, %v2152
    %v2154 = vpop.f32.mrf.mxu0
    %v2155 = vadd.f32 %v2042, %v2154
    %v2156 = vpop.f32.mrf.mxu0
    %v2157 = vadd.f32 %v2044, %v2156
    %2158 = vdwg.mxu0
    %2159 = vmatprep.subr.bf16.mxu0 %v1529
    %2160 = vmatpush1.bf16.msra.mxu0 %v1528
    %2161 = vmatprep.subr.bf16.mxu0 %v1525
    %2162 = vmatpush1.bf16.msra.mxu0 %v1524
    %2163 = vmatprep.subr.bf16.mxu0 %v1521
    %2164 = vmatpush1.bf16.msra.mxu0 %v1520
    %2165 = vmatprep.subr.bf16.mxu0 %v1517
    %2166 = vmatpush1.bf16.msra.mxu0 %v1516
    %2167 = vmatprep.subr.bf16.mxu0 %v1513
    %2168 = vmatpush1.bf16.msra.mxu0 %v1512
    %2169 = vmatprep.subr.bf16.mxu0 %v1509
    %2170 = vmatpush1.bf16.msra.mxu0 %v1508
    %2171 = vmatprep.subr.bf16.mxu0 %v1505
    %2172 = vmatpush1.bf16.msra.mxu0 %v1504
    %2173 = vmatprep.subr.bf16.mxu0 %v1501
    %2174 = vmatpush1.bf16.msra.mxu0 %v1500
    %2175 = vmatprep.subr.bf16.mxu0 %v1561
    %2176 = vmatpush2.bf16.msra.mxu0 %v1560
    %2177 = vmatprep.subr.bf16.mxu0 %v1557
    %2178 = vmatpush2.bf16.msra.mxu0 %v1556
    %2179 = vmatprep.subr.bf16.mxu0 %v1553
    %2180 = vmatpush2.bf16.msra.mxu0 %v1552
    %2181 = vmatprep.subr.bf16.mxu0 %v1549
    %2182 = vmatpush2.bf16.msra.mxu0 %v1548
    %2183 = vmatprep.subr.bf16.mxu0 %v1545
    %2184 = vmatpush2.bf16.msra.mxu0 %v1544
    %2185 = vmatprep.subr.bf16.mxu0 %v1541
    %2186 = vmatpush2.bf16.msra.mxu0 %v1540
    %2187 = vmatprep.subr.bf16.mxu0 %v1537
    %2188 = vmatpush2.bf16.msra.mxu0 %v1536
    %2189 = vmatprep.subr.bf16.mxu0 %v1533
    %2190 = vmatpush2.bf16.msra.mxu0 %v1532
    %2191 = vmatprep.mubr.bf16.mxu0 %v205
    %2192 = vmatmul.mubr.bf16.gmra.mxu0 %v204
    %v2193 = vpop.f32.mrf.mxu0
    %v2194 = vadd.f32 %v2081, %v2193
    %v2195 = vpop.f32.mrf.mxu0
    %v2196 = vadd.f32 %v2083, %v2195
    %v2197 = vpop.f32.mrf.mxu0
    %v2198 = vadd.f32 %v2085, %v2197
    %v2199 = vpop.f32.mrf.mxu0
    %v2200 = vadd.f32 %v2087, %v2199
    %2201 = vmatprep.mubr.bf16.mxu0 %v213
    %2202 = vmatmul.mubr.bf16.gmra.mxu0 %v212
    %v2203 = vpop.f32.mrf.mxu0
    %v2204 = vadd.f32 %v2091, %v2203
    %v2205 = vpop.f32.mrf.mxu0
    %v2206 = vadd.f32 %v2093, %v2205
    %v2207 = vpop.f32.mrf.mxu0
    %v2208 = vadd.f32 %v2095, %v2207
    %v2209 = vpop.f32.mrf.mxu0
    %v2210 = vadd.f32 %v2097, %v2209
    %2211 = vmatprep.mubr.bf16.mxu0 %v221
    %2212 = vmatmul.mubr.bf16.gmra.mxu0 %v220
    %v2213 = vpop.f32.mrf.mxu0
    %v2214 = vadd.f32 %v2101, %v2213
    %v2215 = vpop.f32.mrf.mxu0
    %v2216 = vadd.f32 %v2103, %v2215
    %v2217 = vpop.f32.mrf.mxu0
    %v2218 = vadd.f32 %v2105, %v2217
    %v2219 = vpop.f32.mrf.mxu0
    %v2220 = vadd.f32 %v2107, %v2219
    %2221 = vmatprep.mubr.bf16.mxu0 %v229
    %2222 = vmatmul.mubr.bf16.gmra.mxu0 %v228
    %v2223 = vpop.f32.mrf.mxu0
    %v2224 = vadd.f32 %v2111, %v2223
    %v2225 = vpop.f32.mrf.mxu0
    %v2226 = vadd.f32 %v2113, %v2225
    %v2227 = vpop.f32.mrf.mxu0
    %v2228 = vadd.f32 %v2115, %v2227
    %v2229 = vpop.f32.mrf.mxu0
    %v2230 = vadd.f32 %v2117, %v2229
    %2231 = vmatprep.mubr.bf16.mxu0 %v237
    %2232 = vmatmul.mubr.bf16.gmra.mxu0 %v236
    %v2233 = vpop.f32.mrf.mxu0
    %v2234 = vadd.f32 %v2121, %v2233
    %v2235 = vpop.f32.mrf.mxu0
    %v2236 = vadd.f32 %v2123, %v2235
    %v2237 = vpop.f32.mrf.mxu0
    %v2238 = vadd.f32 %v2125, %v2237
    %v2239 = vpop.f32.mrf.mxu0
    %v2240 = vadd.f32 %v2127, %v2239
    %2241 = vmatprep.mubr.bf16.mxu0 %v245
    %2242 = vmatmul.mubr.bf16.gmra.mxu0 %v244
    %v2243 = vpop.f32.mrf.mxu0
    %v2244 = vadd.f32 %v2131, %v2243
    %v2245 = vpop.f32.mrf.mxu0
    %v2246 = vadd.f32 %v2133, %v2245
    %v2247 = vpop.f32.mrf.mxu0
    %v2248 = vadd.f32 %v2135, %v2247
    %v2249 = vpop.f32.mrf.mxu0
    %v2250 = vadd.f32 %v2137, %v2249
    %2251 = vmatprep.mubr.bf16.mxu0 %v253
    %2252 = vmatmul.mubr.bf16.gmra.mxu0 %v252
    %v2253 = vpop.f32.mrf.mxu0
    %v2254 = vadd.f32 %v2141, %v2253
    %v2255 = vpop.f32.mrf.mxu0
    %v2256 = vadd.f32 %v2143, %v2255
    %v2257 = vpop.f32.mrf.mxu0
    %v2258 = vadd.f32 %v2145, %v2257
    %v2259 = vpop.f32.mrf.mxu0
    %v2260 = vadd.f32 %v2147, %v2259
    %2261 = vmatprep.mubr.bf16.mxu0 %v261
    %2262 = vmatmul.mubr.bf16.gmra.mxu0 %v260
    %v2263 = vpop.f32.mrf.mxu0
    %v2264 = vadd.f32 %v2151, %v2263
    %v2265 = vpop.f32.mrf.mxu0
    %v2266 = vadd.f32 %v2153, %v2265
    %v2267 = vpop.f32.mrf.mxu0
    %v2268 = vadd.f32 %v2155, %v2267
    %v2269 = vpop.f32.mrf.mxu0
    %v2270 = vadd.f32 %v2157, %v2269
    %2271 = vdwg.mxu0
    %2272 = vmatprep.subr.bf16.mxu0 %v1339
    %2273 = vmatpush1.bf16.msra.mxu0 %v1338
    %2274 = vmatprep.subr.bf16.mxu0 %v1335
    %2275 = vmatpush1.bf16.msra.mxu0 %v1334
    %2276 = vmatprep.subr.bf16.mxu0 %v1331
    %2277 = vmatpush1.bf16.msra.mxu0 %v1330
    %2278 = vmatprep.subr.bf16.mxu0 %v1327
    %2279 = vmatpush1.bf16.msra.mxu0 %v1326
    %2280 = vmatprep.subr.bf16.mxu0 %v1323
    %2281 = vmatpush1.bf16.msra.mxu0 %v1322
    %2282 = vmatprep.subr.bf16.mxu0 %v1319
    %2283 = vmatpush1.bf16.msra.mxu0 %v1318
    %2284 = vmatprep.subr.bf16.mxu0 %v1315
    %2285 = vmatpush1.bf16.msra.mxu0 %v1314
    %2286 = vmatprep.subr.bf16.mxu0 %v1311
    %2287 = vmatpush1.bf16.msra.mxu0 %v1310
    %2288 = vmatprep.subr.bf16.mxu0 %v1371
    %2289 = vmatpush2.bf16.msra.mxu0 %v1370
    %2290 = vmatprep.subr.bf16.mxu0 %v1367
    %2291 = vmatpush2.bf16.msra.mxu0 %v1366
    %2292 = vmatprep.subr.bf16.mxu0 %v1363
    %2293 = vmatpush2.bf16.msra.mxu0 %v1362
    %2294 = vmatprep.subr.bf16.mxu0 %v1359
    %2295 = vmatpush2.bf16.msra.mxu0 %v1358
    %2296 = vmatprep.subr.bf16.mxu0 %v1355
    %2297 = vmatpush2.bf16.msra.mxu0 %v1354
    %2298 = vmatprep.subr.bf16.mxu0 %v1351
    %2299 = vmatpush2.bf16.msra.mxu0 %v1350
    %2300 = vmatprep.subr.bf16.mxu0 %v1347
    %2301 = vmatpush2.bf16.msra.mxu0 %v1346
    %2302 = vmatprep.subr.bf16.mxu0 %v1343
    %2303 = vmatpush2.bf16.msra.mxu0 %v1342
    %2304 = vmatprep.mubr.bf16.mxu0 %v199
    %2305 = vmatmul.mubr.bf16.gmra.mxu0 %v198
    %v2306 = vpop.f32.mrf.mxu0
    %v2307 = vadd.f32 %v531, %v2306
    %v2308 = vpop.f32.mrf.mxu0
    %v2309 = vadd.f32 %v535, %v2308
    %v2310 = vpop.f32.mrf.mxu0
    %v2311 = vadd.f32 %v531, %v2310
    %v2312 = vpop.f32.mrf.mxu0
    %v2313 = vadd.f32 %v535, %v2312
    %2314 = vmatprep.mubr.bf16.mxu0 %v207
    %2315 = vmatmul.mubr.bf16.gmra.mxu0 %v206
    %v2316 = vpop.f32.mrf.mxu0
    %v2317 = vadd.f32 %v531, %v2316
    %v2318 = vpop.f32.mrf.mxu0
    %v2319 = vadd.f32 %v535, %v2318
    %v2320 = vpop.f32.mrf.mxu0
    %v2321 = vadd.f32 %v531, %v2320
    %v2322 = vpop.f32.mrf.mxu0
    %v2323 = vadd.f32 %v535, %v2322
    %2324 = vmatprep.mubr.bf16.mxu0 %v215
    %2325 = vmatmul.mubr.bf16.gmra.mxu0 %v214
    %v2326 = vpop.f32.mrf.mxu0
    %v2327 = vadd.f32 %v531, %v2326
    %v2328 = vpop.f32.mrf.mxu0
    %v2329 = vadd.f32 %v535, %v2328
    %v2330 = vpop.f32.mrf.mxu0
    %v2331 = vadd.f32 %v531, %v2330
    %v2332 = vpop.f32.mrf.mxu0
    %v2333 = vadd.f32 %v535, %v2332
    %2334 = vmatprep.mubr.bf16.mxu0 %v223
    %2335 = vmatmul.mubr.bf16.gmra.mxu0 %v222
    %v2336 = vpop.f32.mrf.mxu0
    %v2337 = vadd.f32 %v531, %v2336
    %v2338 = vpop.f32.mrf.mxu0
    %v2339 = vadd.f32 %v535, %v2338
    %v2340 = vpop.f32.mrf.mxu0
    %v2341 = vadd.f32 %v531, %v2340
    %v2342 = vpop.f32.mrf.mxu0
    %v2343 = vadd.f32 %v535, %v2342
    %2344 = vmatprep.mubr.bf16.mxu0 %v231
    %2345 = vmatmul.mubr.bf16.gmra.mxu0 %v230
    %v2346 = vpop.f32.mrf.mxu0
    %v2347 = vadd.f32 %v531, %v2346
    %v2348 = vpop.f32.mrf.mxu0
    %v2349 = vadd.f32 %v535, %v2348
    %v2350 = vpop.f32.mrf.mxu0
    %v2351 = vadd.f32 %v531, %v2350
    %v2352 = vpop.f32.mrf.mxu0
    %v2353 = vadd.f32 %v535, %v2352
    %2354 = vmatprep.mubr.bf16.mxu0 %v239
    %2355 = vmatmul.mubr.bf16.gmra.mxu0 %v238
    %v2356 = vpop.f32.mrf.mxu0
    %v2357 = vadd.f32 %v531, %v2356
    %v2358 = vpop.f32.mrf.mxu0
    %v2359 = vadd.f32 %v535, %v2358
    %v2360 = vpop.f32.mrf.mxu0
    %v2361 = vadd.f32 %v531, %v2360
    %v2362 = vpop.f32.mrf.mxu0
    %v2363 = vadd.f32 %v535, %v2362
    %2364 = vmatprep.mubr.bf16.mxu0 %v247
    %2365 = vmatmul.mubr.bf16.gmra.mxu0 %v246
    %v2366 = vpop.f32.mrf.mxu0
    %v2367 = vadd.f32 %v531, %v2366
    %v2368 = vpop.f32.mrf.mxu0
    %v2369 = vadd.f32 %v535, %v2368
    %v2370 = vpop.f32.mrf.mxu0
    %v2371 = vadd.f32 %v531, %v2370
    %v2372 = vpop.f32.mrf.mxu0
    %v2373 = vadd.f32 %v535, %v2372
    %2374 = vmatprep.mubr.bf16.mxu0 %v255
    %2375 = vmatmul.mubr.bf16.gmra.mxu0 %v254
    %v2376 = vpop.f32.mrf.mxu0
    %v2377 = vadd.f32 %v531, %v2376
    %v2378 = vpop.f32.mrf.mxu0
    %v2379 = vadd.f32 %v535, %v2378
    %v2380 = vpop.f32.mrf.mxu0
    %v2381 = vadd.f32 %v531, %v2380
    %v2382 = vpop.f32.mrf.mxu0
    %v2383 = vadd.f32 %v535, %v2382
    %2384 = vdwg.mxu0
    %2385 = vmatprep.subr.bf16.mxu0 %v1403
    %2386 = vmatpush1.bf16.msra.mxu0 %v1402
    %2387 = vmatprep.subr.bf16.mxu0 %v1399
    %2388 = vmatpush1.bf16.msra.mxu0 %v1398
    %2389 = vmatprep.subr.bf16.mxu0 %v1395
    %2390 = vmatpush1.bf16.msra.mxu0 %v1394
    %2391 = vmatprep.subr.bf16.mxu0 %v1391
    %2392 = vmatpush1.bf16.msra.mxu0 %v1390
    %2393 = vmatprep.subr.bf16.mxu0 %v1387
    %2394 = vmatpush1.bf16.msra.mxu0 %v1386
    %2395 = vmatprep.subr.bf16.mxu0 %v1383
    %2396 = vmatpush1.bf16.msra.mxu0 %v1382
    %2397 = vmatprep.subr.bf16.mxu0 %v1379
    %2398 = vmatpush1.bf16.msra.mxu0 %v1378
    %2399 = vmatprep.subr.bf16.mxu0 %v1375
    %2400 = vmatpush1.bf16.msra.mxu0 %v1374
    %2401 = vmatprep.subr.bf16.mxu0 %v1435
    %2402 = vmatpush2.bf16.msra.mxu0 %v1434
    %2403 = vmatprep.subr.bf16.mxu0 %v1431
    %2404 = vmatpush2.bf16.msra.mxu0 %v1430
    %2405 = vmatprep.subr.bf16.mxu0 %v1427
    %2406 = vmatpush2.bf16.msra.mxu0 %v1426
    %2407 = vmatprep.subr.bf16.mxu0 %v1423
    %2408 = vmatpush2.bf16.msra.mxu0 %v1422
    %2409 = vmatprep.subr.bf16.mxu0 %v1419
    %2410 = vmatpush2.bf16.msra.mxu0 %v1418
    %2411 = vmatprep.subr.bf16.mxu0 %v1415
    %2412 = vmatpush2.bf16.msra.mxu0 %v1414
    %2413 = vmatprep.subr.bf16.mxu0 %v1411
    %2414 = vmatpush2.bf16.msra.mxu0 %v1410
    %2415 = vmatprep.subr.bf16.mxu0 %v1407
    %2416 = vmatpush2.bf16.msra.mxu0 %v1406
    %2417 = vmatprep.mubr.bf16.mxu0 %v201
    %2418 = vmatmul.mubr.bf16.gmra.mxu0 %v200
    %v2419 = vpop.f32.mrf.mxu0
    %v2420 = vadd.f32 %v2307, %v2419
    %v2421 = vpop.f32.mrf.mxu0
    %v2422 = vadd.f32 %v2309, %v2421
    %v2423 = vpop.f32.mrf.mxu0
    %v2424 = vadd.f32 %v2311, %v2423
    %v2425 = vpop.f32.mrf.mxu0
    %v2426 = vadd.f32 %v2313, %v2425
    %2427 = vmatprep.mubr.bf16.mxu0 %v209
    %2428 = vmatmul.mubr.bf16.gmra.mxu0 %v208
    %v2429 = vpop.f32.mrf.mxu0
    %v2430 = vadd.f32 %v2317, %v2429
    %v2431 = vpop.f32.mrf.mxu0
    %v2432 = vadd.f32 %v2319, %v2431
    %v2433 = vpop.f32.mrf.mxu0
    %v2434 = vadd.f32 %v2321, %v2433
    %v2435 = vpop.f32.mrf.mxu0
    %v2436 = vadd.f32 %v2323, %v2435
    %2437 = vmatprep.mubr.bf16.mxu0 %v217
    %2438 = vmatmul.mubr.bf16.gmra.mxu0 %v216
    %v2439 = vpop.f32.mrf.mxu0
    %v2440 = vadd.f32 %v2327, %v2439
    %v2441 = vpop.f32.mrf.mxu0
    %v2442 = vadd.f32 %v2329, %v2441
    %v2443 = vpop.f32.mrf.mxu0
    %v2444 = vadd.f32 %v2331, %v2443
    %v2445 = vpop.f32.mrf.mxu0
    %v2446 = vadd.f32 %v2333, %v2445
    %2447 = vmatprep.mubr.bf16.mxu0 %v225
    %2448 = vmatmul.mubr.bf16.gmra.mxu0 %v224
    %v2449 = vpop.f32.mrf.mxu0
    %v2450 = vadd.f32 %v2337, %v2449
    %v2451 = vpop.f32.mrf.mxu0
    %v2452 = vadd.f32 %v2339, %v2451
    %v2453 = vpop.f32.mrf.mxu0
    %v2454 = vadd.f32 %v2341, %v2453
    %v2455 = vpop.f32.mrf.mxu0
    %v2456 = vadd.f32 %v2343, %v2455
    %2457 = vmatprep.mubr.bf16.mxu0 %v233
    %2458 = vmatmul.mubr.bf16.gmra.mxu0 %v232
    %v2459 = vpop.f32.mrf.mxu0
    %v2460 = vadd.f32 %v2347, %v2459
    %v2461 = vpop.f32.mrf.mxu0
    %v2462 = vadd.f32 %v2349, %v2461
    %v2463 = vpop.f32.mrf.mxu0
    %v2464 = vadd.f32 %v2351, %v2463
    %v2465 = vpop.f32.mrf.mxu0
    %v2466 = vadd.f32 %v2353, %v2465
    %2467 = vmatprep.mubr.bf16.mxu0 %v241
    %2468 = vmatmul.mubr.bf16.gmra.mxu0 %v240
    %v2469 = vpop.f32.mrf.mxu0
    %v2470 = vadd.f32 %v2357, %v2469
    %v2471 = vpop.f32.mrf.mxu0
    %v2472 = vadd.f32 %v2359, %v2471
    %v2473 = vpop.f32.mrf.mxu0
    %v2474 = vadd.f32 %v2361, %v2473
    %v2475 = vpop.f32.mrf.mxu0
    %v2476 = vadd.f32 %v2363, %v2475
    %2477 = vmatprep.mubr.bf16.mxu0 %v249
    %2478 = vmatmul.mubr.bf16.gmra.mxu0 %v248
    %v2479 = vpop.f32.mrf.mxu0
    %v2480 = vadd.f32 %v2367, %v2479
    %v2481 = vpop.f32.mrf.mxu0
    %v2482 = vadd.f32 %v2369, %v2481
    %v2483 = vpop.f32.mrf.mxu0
    %v2484 = vadd.f32 %v2371, %v2483
    %v2485 = vpop.f32.mrf.mxu0
    %v2486 = vadd.f32 %v2373, %v2485
    %2487 = vmatprep.mubr.bf16.mxu0 %v257
    %2488 = vmatmul.mubr.bf16.gmra.mxu0 %v256
    %v2489 = vpop.f32.mrf.mxu0
    %v2490 = vadd.f32 %v2377, %v2489
    %v2491 = vpop.f32.mrf.mxu0
    %v2492 = vadd.f32 %v2379, %v2491
    %v2493 = vpop.f32.mrf.mxu0
    %v2494 = vadd.f32 %v2381, %v2493
    %v2495 = vpop.f32.mrf.mxu0
    %v2496 = vadd.f32 %v2383, %v2495
    %2497 = vdwg.mxu0
    %2498 = vmatprep.subr.bf16.mxu0 %v1467
    %2499 = vmatpush1.bf16.msra.mxu0 %v1466
    %2500 = vmatprep.subr.bf16.mxu0 %v1463
    %2501 = vmatpush1.bf16.msra.mxu0 %v1462
    %2502 = vmatprep.subr.bf16.mxu0 %v1459
    %2503 = vmatpush1.bf16.msra.mxu0 %v1458
    %2504 = vmatprep.subr.bf16.mxu0 %v1455
    %2505 = vmatpush1.bf16.msra.mxu0 %v1454
    %2506 = vmatprep.subr.bf16.mxu0 %v1451
    %2507 = vmatpush1.bf16.msra.mxu0 %v1450
    %2508 = vmatprep.subr.bf16.mxu0 %v1447
    %2509 = vmatpush1.bf16.msra.mxu0 %v1446
    %2510 = vmatprep.subr.bf16.mxu0 %v1443
    %2511 = vmatpush1.bf16.msra.mxu0 %v1442
    %2512 = vmatprep.subr.bf16.mxu0 %v1439
    %2513 = vmatpush1.bf16.msra.mxu0 %v1438
    %2514 = vmatprep.subr.bf16.mxu0 %v1499
    %2515 = vmatpush2.bf16.msra.mxu0 %v1498
    %2516 = vmatprep.subr.bf16.mxu0 %v1495
    %2517 = vmatpush2.bf16.msra.mxu0 %v1494
    %2518 = vmatprep.subr.bf16.mxu0 %v1491
    %2519 = vmatpush2.bf16.msra.mxu0 %v1490
    %2520 = vmatprep.subr.bf16.mxu0 %v1487
    %2521 = vmatpush2.bf16.msra.mxu0 %v1486
    %2522 = vmatprep.subr.bf16.mxu0 %v1483
    %2523 = vmatpush2.bf16.msra.mxu0 %v1482
    %2524 = vmatprep.subr.bf16.mxu0 %v1479
    %2525 = vmatpush2.bf16.msra.mxu0 %v1478
    %2526 = vmatprep.subr.bf16.mxu0 %v1475
    %2527 = vmatpush2.bf16.msra.mxu0 %v1474
    %2528 = vmatprep.subr.bf16.mxu0 %v1471
    %2529 = vmatpush2.bf16.msra.mxu0 %v1470
    %2530 = vmatprep.mubr.bf16.mxu0 %v203
    %2531 = vmatmul.mubr.bf16.gmra.mxu0 %v202
    %v2532 = vpop.f32.mrf.mxu0
    %v2533 = vadd.f32 %v2420, %v2532
    %v2534 = vpop.f32.mrf.mxu0
    %v2535 = vadd.f32 %v2422, %v2534
    %v2536 = vpop.f32.mrf.mxu0
    %v2537 = vadd.f32 %v2424, %v2536
    %v2538 = vpop.f32.mrf.mxu0
    %v2539 = vadd.f32 %v2426, %v2538
    %2540 = vmatprep.mubr.bf16.mxu0 %v211
    %2541 = vmatmul.mubr.bf16.gmra.mxu0 %v210
    %v2542 = vpop.f32.mrf.mxu0
    %v2543 = vadd.f32 %v2430, %v2542
    %v2544 = vpop.f32.mrf.mxu0
    %v2545 = vadd.f32 %v2432, %v2544
    %v2546 = vpop.f32.mrf.mxu0
    %v2547 = vadd.f32 %v2434, %v2546
    %v2548 = vpop.f32.mrf.mxu0
    %v2549 = vadd.f32 %v2436, %v2548
    %2550 = vmatprep.mubr.bf16.mxu0 %v219
    %2551 = vmatmul.mubr.bf16.gmra.mxu0 %v218
    %v2552 = vpop.f32.mrf.mxu0
    %v2553 = vadd.f32 %v2440, %v2552
    %v2554 = vpop.f32.mrf.mxu0
    %v2555 = vadd.f32 %v2442, %v2554
    %v2556 = vpop.f32.mrf.mxu0
    %v2557 = vadd.f32 %v2444, %v2556
    %v2558 = vpop.f32.mrf.mxu0
    %v2559 = vadd.f32 %v2446, %v2558
    %2560 = vmatprep.mubr.bf16.mxu0 %v227
    %2561 = vmatmul.mubr.bf16.gmra.mxu0 %v226
    %v2562 = vpop.f32.mrf.mxu0
    %v2563 = vadd.f32 %v2450, %v2562
    %v2564 = vpop.f32.mrf.mxu0
    %v2565 = vadd.f32 %v2452, %v2564
    %v2566 = vpop.f32.mrf.mxu0
    %v2567 = vadd.f32 %v2454, %v2566
    %v2568 = vpop.f32.mrf.mxu0
    %v2569 = vadd.f32 %v2456, %v2568
    %2570 = vmatprep.mubr.bf16.mxu0 %v235
    %2571 = vmatmul.mubr.bf16.gmra.mxu0 %v234
    %v2572 = vpop.f32.mrf.mxu0
    %v2573 = vadd.f32 %v2460, %v2572
    %v2574 = vpop.f32.mrf.mxu0
    %v2575 = vadd.f32 %v2462, %v2574
    %v2576 = vpop.f32.mrf.mxu0
    %v2577 = vadd.f32 %v2464, %v2576
    %v2578 = vpop.f32.mrf.mxu0
    %v2579 = vadd.f32 %v2466, %v2578
    %2580 = vmatprep.mubr.bf16.mxu0 %v243
    %2581 = vmatmul.mubr.bf16.gmra.mxu0 %v242
    %v2582 = vpop.f32.mrf.mxu0
    %v2583 = vadd.f32 %v2470, %v2582
    %v2584 = vpop.f32.mrf.mxu0
    %v2585 = vadd.f32 %v2472, %v2584
    %v2586 = vpop.f32.mrf.mxu0
    %v2587 = vadd.f32 %v2474, %v2586
    %v2588 = vpop.f32.mrf.mxu0
    %v2589 = vadd.f32 %v2476, %v2588
    %2590 = vmatprep.mubr.bf16.mxu0 %v251
    %2591 = vmatmul.mubr.bf16.gmra.mxu0 %v250
    %v2592 = vpop.f32.mrf.mxu0
    %v2593 = vadd.f32 %v2480, %v2592
    %v2594 = vpop.f32.mrf.mxu0
    %v2595 = vadd.f32 %v2482, %v2594
    %v2596 = vpop.f32.mrf.mxu0
    %v2597 = vadd.f32 %v2484, %v2596
    %v2598 = vpop.f32.mrf.mxu0
    %v2599 = vadd.f32 %v2486, %v2598
    %2600 = vmatprep.mubr.bf16.mxu0 %v259
    %2601 = vmatmul.mubr.bf16.gmra.mxu0 %v258
    %v2602 = vpop.f32.mrf.mxu0
    %v2603 = vadd.f32 %v2490, %v2602
    %v2604 = vpop.f32.mrf.mxu0
    %v2605 = vadd.f32 %v2492, %v2604
    %v2606 = vpop.f32.mrf.mxu0
    %v2607 = vadd.f32 %v2494, %v2606
    %v2608 = vpop.f32.mrf.mxu0
    %v2609 = vadd.f32 %v2496, %v2608
    %2610 = vdwg.mxu0
    %2611 = vmatprep.subr.bf16.mxu0 %v1531
    %2612 = vmatpush1.bf16.msra.mxu0 %v1530
    %2613 = vmatprep.subr.bf16.mxu0 %v1527
    %2614 = vmatpush1.bf16.msra.mxu0 %v1526
    %2615 = vmatprep.subr.bf16.mxu0 %v1523
    %2616 = vmatpush1.bf16.msra.mxu0 %v1522
    %2617 = vmatprep.subr.bf16.mxu0 %v1519
    %2618 = vmatpush1.bf16.msra.mxu0 %v1518
    %2619 = vmatprep.subr.bf16.mxu0 %v1515
    %2620 = vmatpush1.bf16.msra.mxu0 %v1514
    %2621 = vmatprep.subr.bf16.mxu0 %v1511
    %2622 = vmatpush1.bf16.msra.mxu0 %v1510
    %2623 = vmatprep.subr.bf16.mxu0 %v1507
    %2624 = vmatpush1.bf16.msra.mxu0 %v1506
    %2625 = vmatprep.subr.bf16.mxu0 %v1503
    %2626 = vmatpush1.bf16.msra.mxu0 %v1502
    %2627 = vmatprep.subr.bf16.mxu0 %v1563
    %2628 = vmatpush2.bf16.msra.mxu0 %v1562
    %2629 = vmatprep.subr.bf16.mxu0 %v1559
    %2630 = vmatpush2.bf16.msra.mxu0 %v1558
    %2631 = vmatprep.subr.bf16.mxu0 %v1555
    %2632 = vmatpush2.bf16.msra.mxu0 %v1554
    %2633 = vmatprep.subr.bf16.mxu0 %v1551
    %2634 = vmatpush2.bf16.msra.mxu0 %v1550
    %2635 = vmatprep.subr.bf16.mxu0 %v1547
    %2636 = vmatpush2.bf16.msra.mxu0 %v1546
    %2637 = vmatprep.subr.bf16.mxu0 %v1543
    %2638 = vmatpush2.bf16.msra.mxu0 %v1542
    %2639 = vmatprep.subr.bf16.mxu0 %v1539
    %2640 = vmatpush2.bf16.msra.mxu0 %v1538
    %2641 = vmatprep.subr.bf16.mxu0 %v1535
    %2642 = vmatpush2.bf16.msra.mxu0 %v1534
    %2643 = vmatprep.mubr.bf16.mxu0 %v205
    %2644 = vmatmul.mubr.bf16.gmra.mxu0 %v204
    %v2645 = vpop.f32.mrf.mxu0
    %v2646 = vadd.f32 %v2533, %v2645
    %v2647 = vpop.f32.mrf.mxu0
    %v2648 = vadd.f32 %v2535, %v2647
    %v2649 = vpop.f32.mrf.mxu0
    %v2650 = vadd.f32 %v2537, %v2649
    %v2651 = vpop.f32.mrf.mxu0
    %v2652 = vadd.f32 %v2539, %v2651
    %2653 = vmatprep.mubr.bf16.mxu0 %v213
    %2654 = vmatmul.mubr.bf16.gmra.mxu0 %v212
    %v2655 = vpop.f32.mrf.mxu0
    %v2656 = vadd.f32 %v2543, %v2655
    %v2657 = vpop.f32.mrf.mxu0
    %v2658 = vadd.f32 %v2545, %v2657
    %v2659 = vpop.f32.mrf.mxu0
    %v2660 = vadd.f32 %v2547, %v2659
    %v2661 = vpop.f32.mrf.mxu0
    %v2662 = vadd.f32 %v2549, %v2661
    %2663 = vmatprep.mubr.bf16.mxu0 %v221
    %2664 = vmatmul.mubr.bf16.gmra.mxu0 %v220
    %v2665 = vpop.f32.mrf.mxu0
    %v2666 = vadd.f32 %v2553, %v2665
    %v2667 = vpop.f32.mrf.mxu0
    %v2668 = vadd.f32 %v2555, %v2667
    %v2669 = vpop.f32.mrf.mxu0
    %v2670 = vadd.f32 %v2557, %v2669
    %v2671 = vpop.f32.mrf.mxu0
    %v2672 = vadd.f32 %v2559, %v2671
    %2673 = vmatprep.mubr.bf16.mxu0 %v229
    %2674 = vmatmul.mubr.bf16.gmra.mxu0 %v228
    %v2675 = vpop.f32.mrf.mxu0
    %v2676 = vadd.f32 %v2563, %v2675
    %v2677 = vpop.f32.mrf.mxu0
    %v2678 = vadd.f32 %v2565, %v2677
    %v2679 = vpop.f32.mrf.mxu0
    %v2680 = vadd.f32 %v2567, %v2679
    %v2681 = vpop.f32.mrf.mxu0
    %v2682 = vadd.f32 %v2569, %v2681
    %2683 = vmatprep.mubr.bf16.mxu0 %v237
    %2684 = vmatmul.mubr.bf16.gmra.mxu0 %v236
    %v2685 = vpop.f32.mrf.mxu0
    %v2686 = vadd.f32 %v2573, %v2685
    %v2687 = vpop.f32.mrf.mxu0
    %v2688 = vadd.f32 %v2575, %v2687
    %v2689 = vpop.f32.mrf.mxu0
    %v2690 = vadd.f32 %v2577, %v2689
    %v2691 = vpop.f32.mrf.mxu0
    %v2692 = vadd.f32 %v2579, %v2691
    %2693 = vmatprep.mubr.bf16.mxu0 %v245
    %2694 = vmatmul.mubr.bf16.gmra.mxu0 %v244
    %v2695 = vpop.f32.mrf.mxu0
    %v2696 = vadd.f32 %v2583, %v2695
    %v2697 = vpop.f32.mrf.mxu0
    %v2698 = vadd.f32 %v2585, %v2697
    %v2699 = vpop.f32.mrf.mxu0
    %v2700 = vadd.f32 %v2587, %v2699
    %v2701 = vpop.f32.mrf.mxu0
    %v2702 = vadd.f32 %v2589, %v2701
    %2703 = vmatprep.mubr.bf16.mxu0 %v253
    %2704 = vmatmul.mubr.bf16.gmra.mxu0 %v252
    %v2705 = vpop.f32.mrf.mxu0
    %v2706 = vadd.f32 %v2593, %v2705
    %v2707 = vpop.f32.mrf.mxu0
    %v2708 = vadd.f32 %v2595, %v2707
    %v2709 = vpop.f32.mrf.mxu0
    %v2710 = vadd.f32 %v2597, %v2709
    %v2711 = vpop.f32.mrf.mxu0
    %v2712 = vadd.f32 %v2599, %v2711
    %2713 = vmatprep.mubr.bf16.mxu0 %v261
    %2714 = vmatmul.mubr.bf16.gmra.mxu0 %v260
    %v2715 = vpop.f32.mrf.mxu0
    %v2716 = vadd.f32 %v2603, %v2715
    %v2717 = vpop.f32.mrf.mxu0
    %v2718 = vadd.f32 %v2605, %v2717
    %v2719 = vpop.f32.mrf.mxu0
    %v2720 = vadd.f32 %v2607, %v2719
    %v2721 = vpop.f32.mrf.mxu0
    %v2722 = vadd.f32 %v2609, %v2721
    %2723 = vdwg.mxu0
    %v2724 = vmul.f32 %v2194, 0.2
    %v2725 = vmul.f32 %v2196, 0.2
    %v2726 = vmul.f32 %v2646, 0.2
    %v2727 = vmul.f32 %v2648, 0.2
    %v2728 = vmul.f32 %v2198, 0.2
    %v2729 = vmul.f32 %v2200, 0.2
    %v2730 = vmul.f32 %v2650, 0.2
    %v2731 = vmul.f32 %v2652, 0.2
    %v2732 = vmul.f32 %v2204, 0.2
    %v2733 = vmul.f32 %v2206, 0.2
    %v2734 = vmul.f32 %v2656, 0.2
    %v2735 = vmul.f32 %v2658, 0.2
    %v2736 = vmul.f32 %v2208, 0.2
    %v2737 = vmul.f32 %v2210, 0.2
    %v2738 = vmul.f32 %v2660, 0.2
    %v2739 = vmul.f32 %v2662, 0.2
    %v2740 = vmul.f32 %v2214, 0.2
    %v2741 = vmul.f32 %v2216, 0.2
    %v2742 = vmul.f32 %v2666, 0.2
    %v2743 = vmul.f32 %v2668, 0.2
    %v2744 = vmul.f32 %v2218, 0.2
    %v2745 = vmul.f32 %v2220, 0.2
    %v2746 = vmul.f32 %v2670, 0.2
    %v2747 = vmul.f32 %v2672, 0.2
    %v2748 = vmul.f32 %v2224, 0.2
    %v2749 = vmul.f32 %v2226, 0.2
    %v2750 = vmul.f32 %v2676, 0.2
    %v2751 = vmul.f32 %v2678, 0.2
    %v2752 = vmul.f32 %v2228, 0.2
    %v2753 = vmul.f32 %v2230, 0.2
    %v2754 = vmul.f32 %v2680, 0.2
    %v2755 = vmul.f32 %v2682, 0.2
    %v2756 = vmul.f32 %v2234, 0.2
    %v2757 = vmul.f32 %v2236, 0.2
    %v2758 = vmul.f32 %v2686, 0.2
    %v2759 = vmul.f32 %v2688, 0.2
    %v2760 = vmul.f32 %v2238, 0.2
    %v2761 = vmul.f32 %v2240, 0.2
    %v2762 = vmul.f32 %v2690, 0.2
    %v2763 = vmul.f32 %v2692, 0.2
    %v2764 = vmul.f32 %v2244, 0.2
    %v2765 = vmul.f32 %v2246, 0.2
    %v2766 = vmul.f32 %v2696, 0.2
    %v2767 = vmul.f32 %v2698, 0.2
    %v2768 = vmul.f32 %v2248, 0.2
    %v2769 = vmul.f32 %v2250, 0.2
    %v2770 = vmul.f32 %v2700, 0.2
    %v2771 = vmul.f32 %v2702, 0.2
    %v2772 = vmul.f32 %v2254, 0.2
    %v2773 = vmul.f32 %v2256, 0.2
    %v2774 = vmul.f32 %v2706, 0.2
    %v2775 = vmul.f32 %v2708, 0.2
    %v2776 = vmul.f32 %v2258, 0.2
    %v2777 = vmul.f32 %v2260, 0.2
    %v2778 = vmul.f32 %v2710, 0.2
    %v2779 = vmul.f32 %v2712, 0.2
    %v2780 = vmul.f32 %v2264, 0.2
    %v2781 = vmul.f32 %v2266, 0.2
    %v2782 = vmul.f32 %v2716, 0.2
    %v2783 = vmul.f32 %v2718, 0.2
    %v2784 = vmul.f32 %v2268, 0.2
    %v2785 = vmul.f32 %v2270, 0.2
    %v2786 = vmul.f32 %v2720, 0.2
    %v2787 = vmul.f32 %v2722, 0.2
    %v2788 = vmax.f32 %v2194, %v2724
    %v2789 = vmax.f32 %v2196, %v2725
    %v2790 = vmax.f32 %v2646, %v2726
    %v2791 = vmax.f32 %v2648, %v2727
    %v2792 = vmax.f32 %v2198, %v2728
    %v2793 = vmax.f32 %v2200, %v2729
    %v2794 = vmax.f32 %v2650, %v2730
    %v2795 = vmax.f32 %v2652, %v2731
    %v2796 = vmax.f32 %v2204, %v2732
    %v2797 = vmax.f32 %v2206, %v2733
    %v2798 = vmax.f32 %v2656, %v2734
    %v2799 = vmax.f32 %v2658, %v2735
    %v2800 = vmax.f32 %v2208, %v2736
    %v2801 = vmax.f32 %v2210, %v2737
    %v2802 = vmax.f32 %v2660, %v2738
    %v2803 = vmax.f32 %v2662, %v2739
    %v2804 = vmax.f32 %v2214, %v2740
    %v2805 = vmax.f32 %v2216, %v2741
    %v2806 = vmax.f32 %v2666, %v2742
    %v2807 = vmax.f32 %v2668, %v2743
    %v2808 = vmax.f32 %v2218, %v2744
    %v2809 = vmax.f32 %v2220, %v2745
    %v2810 = vmax.f32 %v2670, %v2746
    %v2811 = vmax.f32 %v2672, %v2747
    %v2812 = vmax.f32 %v2224, %v2748
    %v2813 = vmax.f32 %v2226, %v2749
    %v2814 = vmax.f32 %v2676, %v2750
    %v2815 = vmax.f32 %v2678, %v2751
    %v2816 = vmax.f32 %v2228, %v2752
    %v2817 = vmax.f32 %v2230, %v2753
    %v2818 = vmax.f32 %v2680, %v2754
    %v2819 = vmax.f32 %v2682, %v2755
    %v2820 = vmax.f32 %v2234, %v2756
    %v2821 = vmax.f32 %v2236, %v2757
    %v2822 = vmax.f32 %v2686, %v2758
    %v2823 = vmax.f32 %v2688, %v2759
    %v2824 = vmax.f32 %v2238, %v2760
    %v2825 = vmax.f32 %v2240, %v2761
    %v2826 = vmax.f32 %v2690, %v2762
    %v2827 = vmax.f32 %v2692, %v2763
    %v2828 = vmax.f32 %v2244, %v2764
    %v2829 = vmax.f32 %v2246, %v2765
    %v2830 = vmax.f32 %v2696, %v2766
    %v2831 = vmax.f32 %v2698, %v2767
    %v2832 = vmax.f32 %v2248, %v2768
    %v2833 = vmax.f32 %v2250, %v2769
    %v2834 = vmax.f32 %v2700, %v2770
    %v2835 = vmax.f32 %v2702, %v2771
    %v2836 = vmax.f32 %v2254, %v2772
    %v2837 = vmax.f32 %v2256, %v2773
    %v2838 = vmax.f32 %v2706, %v2774
    %v2839 = vmax.f32 %v2708, %v2775
    %v2840 = vmax.f32 %v2258, %v2776
    %v2841 = vmax.f32 %v2260, %v2777
    %v2842 = vmax.f32 %v2710, %v2778
    %v2843 = vmax.f32 %v2712, %v2779
    %v2844 = vmax.f32 %v2264, %v2780
    %v2845 = vmax.f32 %v2266, %v2781
    %v2846 = vmax.f32 %v2716, %v2782
    %v2847 = vmax.f32 %v2718, %v2783
    %v2848 = vmax.f32 %v2268, %v2784
    %v2849 = vmax.f32 %v2270, %v2785
    %v2850 = vmax.f32 %v2720, %v2786
    %v2851 = vmax.f32 %v2722, %v2787
    %v2852 = vpack.c.bf16 %v2792, %v2788
    %v2853 = vpack.c.bf16 %v2793, %v2789
    %v2854 = vpack.c.bf16 %v2794, %v2790
    %v2855 = vpack.c.bf16 %v2795, %v2791
    %v2856 = vpack.c.bf16 %v2800, %v2796
    %v2857 = vpack.c.bf16 %v2801, %v2797
    %v2858 = vpack.c.bf16 %v2802, %v2798
    %v2859 = vpack.c.bf16 %v2803, %v2799
    %v2860 = vpack.c.bf16 %v2808, %v2804
    %v2861 = vpack.c.bf16 %v2809, %v2805
    %v2862 = vpack.c.bf16 %v2810, %v2806
    %v2863 = vpack.c.bf16 %v2811, %v2807
    %v2864 = vpack.c.bf16 %v2816, %v2812
    %v2865 = vpack.c.bf16 %v2817, %v2813
    %v2866 = vpack.c.bf16 %v2818, %v2814
    %v2867 = vpack.c.bf16 %v2819, %v2815
    %v2868 = vpack.c.bf16 %v2824, %v2820
    %v2869 = vpack.c.bf16 %v2825, %v2821
    %v2870 = vpack.c.bf16 %v2826, %v2822
    %v2871 = vpack.c.bf16 %v2827, %v2823
    %v2872 = vpack.c.bf16 %v2832, %v2828
    %v2873 = vpack.c.bf16 %v2833, %v2829
    %v2874 = vpack.c.bf16 %v2834, %v2830
    %v2875 = vpack.c.bf16 %v2835, %v2831
    %v2876 = vpack.c.bf16 %v2840, %v2836
    %v2877 = vpack.c.bf16 %v2841, %v2837
    %v2878 = vpack.c.bf16 %v2842, %v2838
    %v2879 = vpack.c.bf16 %v2843, %v2839
    %v2880 = vpack.c.bf16 %v2848, %v2844
    %v2881 = vpack.c.bf16 %v2849, %v2845
    %v2882 = vpack.c.bf16 %v2850, %v2846
    %v2883 = vpack.c.bf16 %v2851, %v2847
    %v2884 = vld [vmem:[#allocation8] sm:$0xff]
    %v2885 = vld [vmem:[#allocation8 + $0x8] sm:$0xff]
    %v2886 = vld [vmem:[#allocation8 + $0x10] sm:$0xff]
    %v2887 = vld [vmem:[#allocation8 + $0x18] sm:$0xff]
    %v2888 = vld [vmem:[#allocation8 + $0x20] sm:$0xff]
    %v2889 = vld [vmem:[#allocation8 + $0x28] sm:$0xff]
    %v2890 = vld [vmem:[#allocation8 + $0x30] sm:$0xff]
    %v2891 = vld [vmem:[#allocation8 + $0x38] sm:$0xff]
    %v2892 = vld [vmem:[#allocation8 + $0x40] sm:$0xff]
    %v2893 = vld [vmem:[#allocation8 + $0x48] sm:$0xff]
    %v2894 = vld [vmem:[#allocation8 + $0x50] sm:$0xff]
    %v2895 = vld [vmem:[#allocation8 + $0x58] sm:$0xff]
    %v2896 = vld [vmem:[#allocation8 + $0x60] sm:$0xff]
    %v2897 = vld [vmem:[#allocation8 + $0x68] sm:$0xff]
    %v2898 = vld [vmem:[#allocation8 + $0x70] sm:$0xff]
    %v2899 = vld [vmem:[#allocation8 + $0x78] sm:$0xff]
    %v2900 = vld [vmem:[#allocation8 + $0x80] sm:$0xff]
    %v2901 = vld [vmem:[#allocation8 + $0x88] sm:$0xff]
    %v2902 = vld [vmem:[#allocation8 + $0x90] sm:$0xff]
    %v2903 = vld [vmem:[#allocation8 + $0x98] sm:$0xff]
    %v2904 = vld [vmem:[#allocation8 + $0xa0] sm:$0xff]
    %v2905 = vld [vmem:[#allocation8 + $0xa8] sm:$0xff]
    %v2906 = vld [vmem:[#allocation8 + $0xb0] sm:$0xff]
    %v2907 = vld [vmem:[#allocation8 + $0xb8] sm:$0xff]
    %v2908 = vld [vmem:[#allocation8 + $0xc0] sm:$0xff]
    %v2909 = vld [vmem:[#allocation8 + $0xc8] sm:$0xff]
    %v2910 = vld [vmem:[#allocation8 + $0xd0] sm:$0xff]
    %v2911 = vld [vmem:[#allocation8 + $0xd8] sm:$0xff]
    %v2912 = vld [vmem:[#allocation8 + $0xe0] sm:$0xff]
    %v2913 = vld [vmem:[#allocation8 + $0xe8] sm:$0xff]
    %v2914 = vld [vmem:[#allocation8 + $0xf0] sm:$0xff]
    %v2915 = vld [vmem:[#allocation8 + $0xf8] sm:$0xff]
    %v2916 = vld [vmem:[#allocation8 + $0x100] sm:$0xff]
    %v2917 = vld [vmem:[#allocation8 + $0x108] sm:$0xff]
    %v2918 = vld [vmem:[#allocation8 + $0x110] sm:$0xff]
    %v2919 = vld [vmem:[#allocation8 + $0x118] sm:$0xff]
    %v2920 = vld [vmem:[#allocation8 + $0x120] sm:$0xff]
    %v2921 = vld [vmem:[#allocation8 + $0x128] sm:$0xff]
    %v2922 = vld [vmem:[#allocation8 + $0x130] sm:$0xff]
    %v2923 = vld [vmem:[#allocation8 + $0x138] sm:$0xff]
    %v2924 = vld [vmem:[#allocation8 + $0x140] sm:$0xff]
    %v2925 = vld [vmem:[#allocation8 + $0x148] sm:$0xff]
    %v2926 = vld [vmem:[#allocation8 + $0x150] sm:$0xff]
    %v2927 = vld [vmem:[#allocation8 + $0x158] sm:$0xff]
    %v2928 = vld [vmem:[#allocation8 + $0x160] sm:$0xff]
    %v2929 = vld [vmem:[#allocation8 + $0x168] sm:$0xff]
    %v2930 = vld [vmem:[#allocation8 + $0x170] sm:$0xff]
    %v2931 = vld [vmem:[#allocation8 + $0x178] sm:$0xff]
    %v2932 = vld [vmem:[#allocation8 + $0x180] sm:$0xff]
    %v2933 = vld [vmem:[#allocation8 + $0x188] sm:$0xff]
    %v2934 = vld [vmem:[#allocation8 + $0x190] sm:$0xff]
    %v2935 = vld [vmem:[#allocation8 + $0x198] sm:$0xff]
    %v2936 = vld [vmem:[#allocation8 + $0x1a0] sm:$0xff]
    %v2937 = vld [vmem:[#allocation8 + $0x1a8] sm:$0xff]
    %v2938 = vld [vmem:[#allocation8 + $0x1b0] sm:$0xff]
    %v2939 = vld [vmem:[#allocation8 + $0x1b8] sm:$0xff]
    %v2940 = vld [vmem:[#allocation8 + $0x1c0] sm:$0xff]
    %v2941 = vld [vmem:[#allocation8 + $0x1c8] sm:$0xff]
    %v2942 = vld [vmem:[#allocation8 + $0x1d0] sm:$0xff]
    %v2943 = vld [vmem:[#allocation8 + $0x1d8] sm:$0xff]
    %v2944 = vld [vmem:[#allocation8 + $0x1e0] sm:$0xff]
    %v2945 = vld [vmem:[#allocation8 + $0x1e8] sm:$0xff]
    %v2946 = vld [vmem:[#allocation8 + $0x1f0] sm:$0xff]
    %v2947 = vld [vmem:[#allocation8 + $0x1f8] sm:$0xff]
    %v2948 = vld [vmem:[%s4] sm:$0x3]
    %v2950 = vlaneseq
    %v2951 = vshrl.u32 %v2950, 7
    %v2952 = vsub.s32 0, %v2951
    %v2953 = vrot.slane %v2948, %v2952
    %v2954 = vlaneseq
    %v2955 = vshrl.u32 %v2954, 7
    %v2956 = vsub.s32 1, %v2955
    %v2957 = vrot.slane %v2948, %v2956
    %v3024 = vunpack.c.l.b16 %v2884
    %v3025 = vunpack.c.h.b16 %v2884
    %v3026 = vunpack.c.l.b16 %v2885
    %v3027 = vunpack.c.h.b16 %v2885
    %v3028 = vunpack.c.l.b16 %v2886
    %v3029 = vunpack.c.h.b16 %v2886
    %v3030 = vunpack.c.l.b16 %v2887
    %v3031 = vunpack.c.h.b16 %v2887
    %v3032 = vunpack.c.l.b16 %v2888
    %v3033 = vunpack.c.h.b16 %v2888
    %v3034 = vunpack.c.l.b16 %v2889
    %v3035 = vunpack.c.h.b16 %v2889
    %v3036 = vunpack.c.l.b16 %v2890
    %v3037 = vunpack.c.h.b16 %v2890
    %v3038 = vunpack.c.l.b16 %v2891
    %v3039 = vunpack.c.h.b16 %v2891
    %v3040 = vunpack.c.l.b16 %v2892
    %v3041 = vunpack.c.h.b16 %v2892
    %v3042 = vunpack.c.l.b16 %v2893
    %v3043 = vunpack.c.h.b16 %v2893
    %v3044 = vunpack.c.l.b16 %v2894
    %v3045 = vunpack.c.h.b16 %v2894
    %v3046 = vunpack.c.l.b16 %v2895
    %v3047 = vunpack.c.h.b16 %v2895
    %v3048 = vunpack.c.l.b16 %v2896
    %v3049 = vunpack.c.h.b16 %v2896
    %v3050 = vunpack.c.l.b16 %v2897
    %v3051 = vunpack.c.h.b16 %v2897
    %v3052 = vunpack.c.l.b16 %v2898
    %v3053 = vunpack.c.h.b16 %v2898
    %v3054 = vunpack.c.l.b16 %v2899
    %v3055 = vunpack.c.h.b16 %v2899
    %v3056 = vunpack.c.l.b16 %v2900
    %v3057 = vunpack.c.h.b16 %v2900
    %v3058 = vunpack.c.l.b16 %v2901
    %v3059 = vunpack.c.h.b16 %v2901
    %v3060 = vunpack.c.l.b16 %v2902
    %v3061 = vunpack.c.h.b16 %v2902
    %v3062 = vunpack.c.l.b16 %v2903
    %v3063 = vunpack.c.h.b16 %v2903
    %v3064 = vunpack.c.l.b16 %v2904
    %v3065 = vunpack.c.h.b16 %v2904
    %v3066 = vunpack.c.l.b16 %v2905
    %v3067 = vunpack.c.h.b16 %v2905
    %v3068 = vunpack.c.l.b16 %v2906
    %v3069 = vunpack.c.h.b16 %v2906
    %v3070 = vunpack.c.l.b16 %v2907
    %v3071 = vunpack.c.h.b16 %v2907
    %v3072 = vunpack.c.l.b16 %v2908
    %v3073 = vunpack.c.h.b16 %v2908
    %v3074 = vunpack.c.l.b16 %v2909
    %v3075 = vunpack.c.h.b16 %v2909
    %v3076 = vunpack.c.l.b16 %v2910
    %v3077 = vunpack.c.h.b16 %v2910
    %v3078 = vunpack.c.l.b16 %v2911
    %v3079 = vunpack.c.h.b16 %v2911
    %v3080 = vunpack.c.l.b16 %v2912
    %v3081 = vunpack.c.h.b16 %v2912
    %v3082 = vunpack.c.l.b16 %v2913
    %v3083 = vunpack.c.h.b16 %v2913
    %v3084 = vunpack.c.l.b16 %v2914
    %v3085 = vunpack.c.h.b16 %v2914
    %v3086 = vunpack.c.l.b16 %v2915
    %v3087 = vunpack.c.h.b16 %v2915
    %v3088 = vunpack.c.l.b16 %v2916
    %v3089 = vunpack.c.h.b16 %v2916
    %v3090 = vunpack.c.l.b16 %v2917
    %v3091 = vunpack.c.h.b16 %v2917
    %v3092 = vunpack.c.l.b16 %v2918
    %v3093 = vunpack.c.h.b16 %v2918
    %v3094 = vunpack.c.l.b16 %v2919
    %v3095 = vunpack.c.h.b16 %v2919
    %v3096 = vunpack.c.l.b16 %v2920
    %v3097 = vunpack.c.h.b16 %v2920
    %v3098 = vunpack.c.l.b16 %v2921
    %v3099 = vunpack.c.h.b16 %v2921
    %v3100 = vunpack.c.l.b16 %v2922
    %v3101 = vunpack.c.h.b16 %v2922
    %v3102 = vunpack.c.l.b16 %v2923
    %v3103 = vunpack.c.h.b16 %v2923
    %v3104 = vunpack.c.l.b16 %v2924
    %v3105 = vunpack.c.h.b16 %v2924
    %v3106 = vunpack.c.l.b16 %v2925
    %v3107 = vunpack.c.h.b16 %v2925
    %v3108 = vunpack.c.l.b16 %v2926
    %v3109 = vunpack.c.h.b16 %v2926
    %v3110 = vunpack.c.l.b16 %v2927
    %v3111 = vunpack.c.h.b16 %v2927
    %v3112 = vunpack.c.l.b16 %v2928
    %v3113 = vunpack.c.h.b16 %v2928
    %v3114 = vunpack.c.l.b16 %v2929
    %v3115 = vunpack.c.h.b16 %v2929
    %v3116 = vunpack.c.l.b16 %v2930
    %v3117 = vunpack.c.h.b16 %v2930
    %v3118 = vunpack.c.l.b16 %v2931
    %v3119 = vunpack.c.h.b16 %v2931
    %v3120 = vunpack.c.l.b16 %v2932
    %v3121 = vunpack.c.h.b16 %v2932
    %v3122 = vunpack.c.l.b16 %v2933
    %v3123 = vunpack.c.h.b16 %v2933
    %v3124 = vunpack.c.l.b16 %v2934
    %v3125 = vunpack.c.h.b16 %v2934
    %v3126 = vunpack.c.l.b16 %v2935
    %v3127 = vunpack.c.h.b16 %v2935
    %v3128 = vunpack.c.l.b16 %v2936
    %v3129 = vunpack.c.h.b16 %v2936
    %v3130 = vunpack.c.l.b16 %v2937
    %v3131 = vunpack.c.h.b16 %v2937
    %v3132 = vunpack.c.l.b16 %v2938
    %v3133 = vunpack.c.h.b16 %v2938
    %v3134 = vunpack.c.l.b16 %v2939
    %v3135 = vunpack.c.h.b16 %v2939
    %v3136 = vunpack.c.l.b16 %v2940
    %v3137 = vunpack.c.h.b16 %v2940
    %v3138 = vunpack.c.l.b16 %v2941
    %v3139 = vunpack.c.h.b16 %v2941
    %v3140 = vunpack.c.l.b16 %v2942
    %v3141 = vunpack.c.h.b16 %v2942
    %v3142 = vunpack.c.l.b16 %v2943
    %v3143 = vunpack.c.h.b16 %v2943
    %v3144 = vunpack.c.l.b16 %v2944
    %v3145 = vunpack.c.h.b16 %v2944
    %v3146 = vunpack.c.l.b16 %v2945
    %v3147 = vunpack.c.h.b16 %v2945
    %v3148 = vunpack.c.l.b16 %v2946
    %v3149 = vunpack.c.h.b16 %v2946
    %v3150 = vunpack.c.l.b16 %v2947
    %v3151 = vunpack.c.h.b16 %v2947
    %v3152 = vpack.c.b16 %v3026, %v3024
    %v3153 = vpack.c.b16 %v3027, %v3025
    %v3154 = vpack.c.b16 %v3030, %v3028
    %v3155 = vpack.c.b16 %v3031, %v3029
    %v3156 = vpack.c.b16 %v3034, %v3032
    %v3157 = vpack.c.b16 %v3035, %v3033
    %v3158 = vpack.c.b16 %v3038, %v3036
    %v3159 = vpack.c.b16 %v3039, %v3037
    %v3160 = vpack.c.b16 %v3042, %v3040
    %v3161 = vpack.c.b16 %v3043, %v3041
    %v3162 = vpack.c.b16 %v3046, %v3044
    %v3163 = vpack.c.b16 %v3047, %v3045
    %v3164 = vpack.c.b16 %v3050, %v3048
    %v3165 = vpack.c.b16 %v3051, %v3049
    %v3166 = vpack.c.b16 %v3054, %v3052
    %v3167 = vpack.c.b16 %v3055, %v3053
    %v3168 = vpack.c.b16 %v3058, %v3056
    %v3169 = vpack.c.b16 %v3059, %v3057
    %v3170 = vpack.c.b16 %v3062, %v3060
    %v3171 = vpack.c.b16 %v3063, %v3061
    %v3172 = vpack.c.b16 %v3066, %v3064
    %v3173 = vpack.c.b16 %v3067, %v3065
    %v3174 = vpack.c.b16 %v3070, %v3068
    %v3175 = vpack.c.b16 %v3071, %v3069
    %v3176 = vpack.c.b16 %v3074, %v3072
    %v3177 = vpack.c.b16 %v3075, %v3073
    %v3178 = vpack.c.b16 %v3078, %v3076
    %v3179 = vpack.c.b16 %v3079, %v3077
    %v3180 = vpack.c.b16 %v3082, %v3080
    %v3181 = vpack.c.b16 %v3083, %v3081
    %v3182 = vpack.c.b16 %v3086, %v3084
    %v3183 = vpack.c.b16 %v3087, %v3085
    %v3184 = vpack.c.b16 %v3090, %v3088
    %v3185 = vpack.c.b16 %v3091, %v3089
    %v3186 = vpack.c.b16 %v3094, %v3092
    %v3187 = vpack.c.b16 %v3095, %v3093
    %v3188 = vpack.c.b16 %v3098, %v3096
    %v3189 = vpack.c.b16 %v3099, %v3097
    %v3190 = vpack.c.b16 %v3102, %v3100
    %v3191 = vpack.c.b16 %v3103, %v3101
    %v3192 = vpack.c.b16 %v3106, %v3104
    %v3193 = vpack.c.b16 %v3107, %v3105
    %v3194 = vpack.c.b16 %v3110, %v3108
    %v3195 = vpack.c.b16 %v3111, %v3109
    %v3196 = vpack.c.b16 %v3114, %v3112
    %v3197 = vpack.c.b16 %v3115, %v3113
    %v3198 = vpack.c.b16 %v3118, %v3116
    %v3199 = vpack.c.b16 %v3119, %v3117
    %v3200 = vpack.c.b16 %v3122, %v3120
    %v3201 = vpack.c.b16 %v3123, %v3121
    %v3202 = vpack.c.b16 %v3126, %v3124
    %v3203 = vpack.c.b16 %v3127, %v3125
    %v3204 = vpack.c.b16 %v3130, %v3128
    %v3205 = vpack.c.b16 %v3131, %v3129
    %v3206 = vpack.c.b16 %v3134, %v3132
    %v3207 = vpack.c.b16 %v3135, %v3133
    %v3208 = vpack.c.b16 %v3138, %v3136
    %v3209 = vpack.c.b16 %v3139, %v3137
    %v3210 = vpack.c.b16 %v3142, %v3140
    %v3211 = vpack.c.b16 %v3143, %v3141
    %v3212 = vpack.c.b16 %v3146, %v3144
    %v3213 = vpack.c.b16 %v3147, %v3145
    %v3214 = vpack.c.b16 %v3150, %v3148
    %v3215 = vpack.c.b16 %v3151, %v3149
    %3280 = vmatprep.subr.bf16.mxu0 %v3167
    %3281 = vmatpush1.bf16.msra.mxu0 %v3166
    %3282 = vmatprep.subr.bf16.mxu0 %v3165
    %3283 = vmatpush1.bf16.msra.mxu0 %v3164
    %3284 = vmatprep.subr.bf16.mxu0 %v3163
    %3285 = vmatpush1.bf16.msra.mxu0 %v3162
    %3286 = vmatprep.subr.bf16.mxu0 %v3161
    %3287 = vmatpush1.bf16.msra.mxu0 %v3160
    %3288 = vmatprep.subr.bf16.mxu0 %v3159
    %3289 = vmatpush1.bf16.msra.mxu0 %v3158
    %3290 = vmatprep.subr.bf16.mxu0 %v3157
    %3291 = vmatpush1.bf16.msra.mxu0 %v3156
    %3292 = vmatprep.subr.bf16.mxu0 %v3155
    %3293 = vmatpush1.bf16.msra.mxu0 %v3154
    %3294 = vmatprep.subr.bf16.mxu0 %v3153
    %3295 = vmatpush1.bf16.msra.mxu0 %v3152
    %3296 = vmatprep.subr.bf16.mxu0 %v3183
    %3297 = vmatpush2.bf16.msra.mxu0 %v3182
    %3298 = vmatprep.subr.bf16.mxu0 %v3181
    %3299 = vmatpush2.bf16.msra.mxu0 %v3180
    %3300 = vmatprep.subr.bf16.mxu0 %v3179
    %3301 = vmatpush2.bf16.msra.mxu0 %v3178
    %3302 = vmatprep.subr.bf16.mxu0 %v3177
    %3303 = vmatpush2.bf16.msra.mxu0 %v3176
    %3304 = vmatprep.subr.bf16.mxu0 %v3175
    %3305 = vmatpush2.bf16.msra.mxu0 %v3174
    %3306 = vmatprep.subr.bf16.mxu0 %v3173
    %3307 = vmatpush2.bf16.msra.mxu0 %v3172
    %3308 = vmatprep.subr.bf16.mxu0 %v3171
    %3309 = vmatpush2.bf16.msra.mxu0 %v3170
    %3310 = vmatprep.subr.bf16.mxu0 %v3169
    %3311 = vmatpush2.bf16.msra.mxu0 %v3168
    %3312 = vmatprep.mubr.bf16.mxu0 %v2853
    %3313 = vmatmul.mubr.bf16.gmra.mxu0 %v2852
    %v3314 = vpop.f32.mrf.mxu0
    %v3315 = vadd.f32 %v2953, %v3314
    %v3316 = vpop.f32.mrf.mxu0
    %v3317 = vadd.f32 %v2957, %v3316
    %v3318 = vpop.f32.mrf.mxu0
    %v3319 = vadd.f32 %v2953, %v3318
    %v3320 = vpop.f32.mrf.mxu0
    %v3321 = vadd.f32 %v2957, %v3320
    %3322 = vmatprep.mubr.bf16.mxu0 %v2857
    %3323 = vmatmul.mubr.bf16.gmra.mxu0 %v2856
    %v3324 = vpop.f32.mrf.mxu0
    %v3325 = vadd.f32 %v2953, %v3324
    %v3326 = vpop.f32.mrf.mxu0
    %v3327 = vadd.f32 %v2957, %v3326
    %v3328 = vpop.f32.mrf.mxu0
    %v3329 = vadd.f32 %v2953, %v3328
    %v3330 = vpop.f32.mrf.mxu0
    %v3331 = vadd.f32 %v2957, %v3330
    %3332 = vmatprep.mubr.bf16.mxu0 %v2861
    %3333 = vmatmul.mubr.bf16.gmra.mxu0 %v2860
    %v3334 = vpop.f32.mrf.mxu0
    %v3335 = vadd.f32 %v2953, %v3334
    %v3336 = vpop.f32.mrf.mxu0
    %v3337 = vadd.f32 %v2957, %v3336
    %v3338 = vpop.f32.mrf.mxu0
    %v3339 = vadd.f32 %v2953, %v3338
    %v3340 = vpop.f32.mrf.mxu0
    %v3341 = vadd.f32 %v2957, %v3340
    %3342 = vmatprep.mubr.bf16.mxu0 %v2865
    %3343 = vmatmul.mubr.bf16.gmra.mxu0 %v2864
    %v3344 = vpop.f32.mrf.mxu0
    %v3345 = vadd.f32 %v2953, %v3344
    %v3346 = vpop.f32.mrf.mxu0
    %v3347 = vadd.f32 %v2957, %v3346
    %v3348 = vpop.f32.mrf.mxu0
    %v3349 = vadd.f32 %v2953, %v3348
    %v3350 = vpop.f32.mrf.mxu0
    %v3351 = vadd.f32 %v2957, %v3350
    %3352 = vmatprep.mubr.bf16.mxu0 %v2869
    %3353 = vmatmul.mubr.bf16.gmra.mxu0 %v2868
    %v3354 = vpop.f32.mrf.mxu0
    %v3355 = vadd.f32 %v2953, %v3354
    %v3356 = vpop.f32.mrf.mxu0
    %v3357 = vadd.f32 %v2957, %v3356
    %v3358 = vpop.f32.mrf.mxu0
    %v3359 = vadd.f32 %v2953, %v3358
    %v3360 = vpop.f32.mrf.mxu0
    %v3361 = vadd.f32 %v2957, %v3360
    %3362 = vmatprep.mubr.bf16.mxu0 %v2873
    %3363 = vmatmul.mubr.bf16.gmra.mxu0 %v2872
    %v3364 = vpop.f32.mrf.mxu0
    %v3365 = vadd.f32 %v2953, %v3364
    %v3366 = vpop.f32.mrf.mxu0
    %v3367 = vadd.f32 %v2957, %v3366
    %v3368 = vpop.f32.mrf.mxu0
    %v3369 = vadd.f32 %v2953, %v3368
    %v3370 = vpop.f32.mrf.mxu0
    %v3371 = vadd.f32 %v2957, %v3370
    %3372 = vmatprep.mubr.bf16.mxu0 %v2877
    %3373 = vmatmul.mubr.bf16.gmra.mxu0 %v2876
    %v3374 = vpop.f32.mrf.mxu0
    %v3375 = vadd.f32 %v2953, %v3374
    %v3376 = vpop.f32.mrf.mxu0
    %v3377 = vadd.f32 %v2957, %v3376
    %v3378 = vpop.f32.mrf.mxu0
    %v3379 = vadd.f32 %v2953, %v3378
    %v3380 = vpop.f32.mrf.mxu0
    %v3381 = vadd.f32 %v2957, %v3380
    %3382 = vmatprep.mubr.bf16.mxu0 %v2881
    %3383 = vmatmul.mubr.bf16.gmra.mxu0 %v2880
    %v3384 = vpop.f32.mrf.mxu0
    %v3385 = vadd.f32 %v2953, %v3384
    %v3386 = vpop.f32.mrf.mxu0
    %v3387 = vadd.f32 %v2957, %v3386
    %v3388 = vpop.f32.mrf.mxu0
    %v3389 = vadd.f32 %v2953, %v3388
    %v3390 = vpop.f32.mrf.mxu0
    %v3391 = vadd.f32 %v2957, %v3390
    %3392 = vdwg.mxu0
    %3393 = vmatprep.subr.bf16.mxu0 %v3199
    %3394 = vmatpush1.bf16.msra.mxu0 %v3198
    %3395 = vmatprep.subr.bf16.mxu0 %v3197
    %3396 = vmatpush1.bf16.msra.mxu0 %v3196
    %3397 = vmatprep.subr.bf16.mxu0 %v3195
    %3398 = vmatpush1.bf16.msra.mxu0 %v3194
    %3399 = vmatprep.subr.bf16.mxu0 %v3193
    %3400 = vmatpush1.bf16.msra.mxu0 %v3192
    %3401 = vmatprep.subr.bf16.mxu0 %v3191
    %3402 = vmatpush1.bf16.msra.mxu0 %v3190
    %3403 = vmatprep.subr.bf16.mxu0 %v3189
    %3404 = vmatpush1.bf16.msra.mxu0 %v3188
    %3405 = vmatprep.subr.bf16.mxu0 %v3187
    %3406 = vmatpush1.bf16.msra.mxu0 %v3186
    %3407 = vmatprep.subr.bf16.mxu0 %v3185
    %3408 = vmatpush1.bf16.msra.mxu0 %v3184
    %3409 = vmatprep.subr.bf16.mxu0 %v3215
    %3410 = vmatpush2.bf16.msra.mxu0 %v3214
    %3411 = vmatprep.subr.bf16.mxu0 %v3213
    %3412 = vmatpush2.bf16.msra.mxu0 %v3212
    %3413 = vmatprep.subr.bf16.mxu0 %v3211
    %3414 = vmatpush2.bf16.msra.mxu0 %v3210
    %3415 = vmatprep.subr.bf16.mxu0 %v3209
    %3416 = vmatpush2.bf16.msra.mxu0 %v3208
    %3417 = vmatprep.subr.bf16.mxu0 %v3207
    %3418 = vmatpush2.bf16.msra.mxu0 %v3206
    %3419 = vmatprep.subr.bf16.mxu0 %v3205
    %3420 = vmatpush2.bf16.msra.mxu0 %v3204
    %3421 = vmatprep.subr.bf16.mxu0 %v3203
    %3422 = vmatpush2.bf16.msra.mxu0 %v3202
    %3423 = vmatprep.subr.bf16.mxu0 %v3201
    %3424 = vmatpush2.bf16.msra.mxu0 %v3200
    %3425 = vmatprep.mubr.bf16.mxu0 %v2855
    %3426 = vmatmul.mubr.bf16.gmra.mxu0 %v2854
    %v3427 = vpop.f32.mrf.mxu0
    %v3428 = vadd.f32 %v3315, %v3427
    %v3429 = vpop.f32.mrf.mxu0
    %v3430 = vadd.f32 %v3317, %v3429
    %v3431 = vpop.f32.mrf.mxu0
    %v3432 = vadd.f32 %v3319, %v3431
    %v3433 = vpop.f32.mrf.mxu0
    %v3434 = vadd.f32 %v3321, %v3433
    %3435 = vmatprep.mubr.bf16.mxu0 %v2859
    %3436 = vmatmul.mubr.bf16.gmra.mxu0 %v2858
    %v3437 = vpop.f32.mrf.mxu0
    %v3438 = vadd.f32 %v3325, %v3437
    %v3439 = vpop.f32.mrf.mxu0
    %v3440 = vadd.f32 %v3327, %v3439
    %v3441 = vpop.f32.mrf.mxu0
    %v3442 = vadd.f32 %v3329, %v3441
    %v3443 = vpop.f32.mrf.mxu0
    %v3444 = vadd.f32 %v3331, %v3443
    %3445 = vmatprep.mubr.bf16.mxu0 %v2863
    %3446 = vmatmul.mubr.bf16.gmra.mxu0 %v2862
    %v3447 = vpop.f32.mrf.mxu0
    %v3448 = vadd.f32 %v3335, %v3447
    %v3449 = vpop.f32.mrf.mxu0
    %v3450 = vadd.f32 %v3337, %v3449
    %v3451 = vpop.f32.mrf.mxu0
    %v3452 = vadd.f32 %v3339, %v3451
    %v3453 = vpop.f32.mrf.mxu0
    %v3454 = vadd.f32 %v3341, %v3453
    %3455 = vmatprep.mubr.bf16.mxu0 %v2867
    %3456 = vmatmul.mubr.bf16.gmra.mxu0 %v2866
    %v3457 = vpop.f32.mrf.mxu0
    %v3458 = vadd.f32 %v3345, %v3457
    %v3459 = vpop.f32.mrf.mxu0
    %v3460 = vadd.f32 %v3347, %v3459
    %v3461 = vpop.f32.mrf.mxu0
    %v3462 = vadd.f32 %v3349, %v3461
    %v3463 = vpop.f32.mrf.mxu0
    %v3464 = vadd.f32 %v3351, %v3463
    %3465 = vmatprep.mubr.bf16.mxu0 %v2871
    %3466 = vmatmul.mubr.bf16.gmra.mxu0 %v2870
    %v3467 = vpop.f32.mrf.mxu0
    %v3468 = vadd.f32 %v3355, %v3467
    %v3469 = vpop.f32.mrf.mxu0
    %v3470 = vadd.f32 %v3357, %v3469
    %v3471 = vpop.f32.mrf.mxu0
    %v3472 = vadd.f32 %v3359, %v3471
    %v3473 = vpop.f32.mrf.mxu0
    %v3474 = vadd.f32 %v3361, %v3473
    %3475 = vmatprep.mubr.bf16.mxu0 %v2875
    %3476 = vmatmul.mubr.bf16.gmra.mxu0 %v2874
    %v3477 = vpop.f32.mrf.mxu0
    %v3478 = vadd.f32 %v3365, %v3477
    %v3479 = vpop.f32.mrf.mxu0
    %v3480 = vadd.f32 %v3367, %v3479
    %v3481 = vpop.f32.mrf.mxu0
    %v3482 = vadd.f32 %v3369, %v3481
    %v3483 = vpop.f32.mrf.mxu0
    %v3484 = vadd.f32 %v3371, %v3483
    %3485 = vmatprep.mubr.bf16.mxu0 %v2879
    %3486 = vmatmul.mubr.bf16.gmra.mxu0 %v2878
    %v3487 = vpop.f32.mrf.mxu0
    %v3488 = vadd.f32 %v3375, %v3487
    %v3489 = vpop.f32.mrf.mxu0
    %v3490 = vadd.f32 %v3377, %v3489
    %v3491 = vpop.f32.mrf.mxu0
    %v3492 = vadd.f32 %v3379, %v3491
    %v3493 = vpop.f32.mrf.mxu0
    %v3494 = vadd.f32 %v3381, %v3493
    %3495 = vmatprep.mubr.bf16.mxu0 %v2883
    %3496 = vmatmul.mubr.bf16.gmra.mxu0 %v2882
    %v3497 = vpop.f32.mrf.mxu0
    %v3498 = vadd.f32 %v3385, %v3497
    %v3499 = vpop.f32.mrf.mxu0
    %v3500 = vadd.f32 %v3387, %v3499
    %v3501 = vpop.f32.mrf.mxu0
    %v3502 = vadd.f32 %v3389, %v3501
    %v3503 = vpop.f32.mrf.mxu0
    %v3504 = vadd.f32 %v3391, %v3503
    %3505 = vdwg.mxu0
    %v3506 = vmul.f32 %v3428, 0.2
    %v3507 = vmul.f32 %v3430, 0.2
    %v3508 = vmul.f32 %v3432, 0.2
    %v3509 = vmul.f32 %v3434, 0.2
    %v3510 = vmul.f32 %v3438, 0.2
    %v3511 = vmul.f32 %v3440, 0.2
    %v3512 = vmul.f32 %v3442, 0.2
    %v3513 = vmul.f32 %v3444, 0.2
    %v3514 = vmul.f32 %v3448, 0.2
    %v3515 = vmul.f32 %v3450, 0.2
    %v3516 = vmul.f32 %v3452, 0.2
    %v3517 = vmul.f32 %v3454, 0.2
    %v3518 = vmul.f32 %v3458, 0.2
    %v3519 = vmul.f32 %v3460, 0.2
    %v3520 = vmul.f32 %v3462, 0.2
    %v3521 = vmul.f32 %v3464, 0.2
    %v3522 = vmul.f32 %v3468, 0.2
    %v3523 = vmul.f32 %v3470, 0.2
    %v3524 = vmul.f32 %v3472, 0.2
    %v3525 = vmul.f32 %v3474, 0.2
    %v3526 = vmul.f32 %v3478, 0.2
    %v3527 = vmul.f32 %v3480, 0.2
    %v3528 = vmul.f32 %v3482, 0.2
    %v3529 = vmul.f32 %v3484, 0.2
    %v3530 = vmul.f32 %v3488, 0.2
    %v3531 = vmul.f32 %v3490, 0.2
    %v3532 = vmul.f32 %v3492, 0.2
    %v3533 = vmul.f32 %v3494, 0.2
    %v3534 = vmul.f32 %v3498, 0.2
    %v3535 = vmul.f32 %v3500, 0.2
    %v3536 = vmul.f32 %v3502, 0.2
    %v3537 = vmul.f32 %v3504, 0.2
    %v3538 = vmax.f32 %v3428, %v3506
    %v3539 = vmax.f32 %v3430, %v3507
    %v3540 = vmax.f32 %v3432, %v3508
    %v3541 = vmax.f32 %v3434, %v3509
    %v3542 = vmax.f32 %v3438, %v3510
    %v3543 = vmax.f32 %v3440, %v3511
    %v3544 = vmax.f32 %v3442, %v3512
    %v3545 = vmax.f32 %v3444, %v3513
    %v3546 = vmax.f32 %v3448, %v3514
    %v3547 = vmax.f32 %v3450, %v3515
    %v3548 = vmax.f32 %v3452, %v3516
    %v3549 = vmax.f32 %v3454, %v3517
    %v3550 = vmax.f32 %v3458, %v3518
    %v3551 = vmax.f32 %v3460, %v3519
    %v3552 = vmax.f32 %v3462, %v3520
    %v3553 = vmax.f32 %v3464, %v3521
    %v3554 = vmax.f32 %v3468, %v3522
    %v3555 = vmax.f32 %v3470, %v3523
    %v3556 = vmax.f32 %v3472, %v3524
    %v3557 = vmax.f32 %v3474, %v3525
    %v3558 = vmax.f32 %v3478, %v3526
    %v3559 = vmax.f32 %v3480, %v3527
    %v3560 = vmax.f32 %v3482, %v3528
    %v3561 = vmax.f32 %v3484, %v3529
    %v3562 = vmax.f32 %v3488, %v3530
    %v3563 = vmax.f32 %v3490, %v3531
    %v3564 = vmax.f32 %v3492, %v3532
    %v3565 = vmax.f32 %v3494, %v3533
    %v3566 = vmax.f32 %v3498, %v3534
    %v3567 = vmax.f32 %v3500, %v3535
    %v3568 = vmax.f32 %v3502, %v3536
    %v3569 = vmax.f32 %v3504, %v3537
    %v3570 = vld [vmem:[%s5] sm:$0x3]
    %v3571 = vld [vmem:[#allocation2] sm:$0x1]
    %3573 = vset.pattern.permute.xlu0 0
    %3574 = vperm.xlu0 %3573, %v3571
    %v3575 = vpop.permute.xlu0 %3574
    %v3577 = vlaneseq
    %v3578 = vshrl.u32 %v3577, 7
    %v3579 = vsub.s32 0, %v3578
    %v3580 = vrot.slane %v3575, %v3579
    %v3582 = vlaneseq
    %v3583 = vshrl.u32 %v3582, 7
    %v3584 = vsub.s32 0, %v3583
    %v3585 = vrot.slane %v3570, %v3584
    %v3586 = vlaneseq
    %v3587 = vshrl.u32 %v3586, 7
    %v3588 = vsub.s32 1, %v3587
    %v3589 = vrot.slane %v3570, %v3588
    %3592 = vmatprep.subr.mxu0 %v3569
    %3593 = vmatpush1.xpose.msra.mxu0 %v3568
    %3594 = vmatprep.subr.mxu0 %v3567
    %3595 = vmatpush1.xpose.msra.mxu0 %v3566
    %3596 = vmatprep.subr.mxu0 %v3565
    %3597 = vmatpush1.xpose.msra.mxu0 %v3564
    %3598 = vmatprep.subr.mxu0 %v3563
    %3599 = vmatpush1.xpose.msra.mxu0 %v3562
    %3600 = vmatprep.subr.mxu0 %v3561
    %3601 = vmatpush1.xpose.msra.mxu0 %v3560
    %3602 = vmatprep.subr.mxu0 %v3559
    %3603 = vmatpush1.xpose.msra.mxu0 %v3558
    %3604 = vmatprep.subr.mxu0 %v3557
    %3605 = vmatpush1.xpose.msra.mxu0 %v3556
    %3606 = vmatprep.subr.mxu0 %v3555
    %3607 = vmatpush1.xpose.msra.mxu0 %v3554
    %3608 = vmatprep.subr.mxu0 %v3553
    %3609 = vmatpush1.xpose.msra.mxu0 %v3552
    %3610 = vmatprep.subr.mxu0 %v3551
    %3611 = vmatpush1.xpose.msra.mxu0 %v3550
    %3612 = vmatprep.subr.mxu0 %v3549
    %3613 = vmatpush1.xpose.msra.mxu0 %v3548
    %3614 = vmatprep.subr.mxu0 %v3547
    %3615 = vmatpush1.xpose.msra.mxu0 %v3546
    %3616 = vmatprep.subr.mxu0 %v3545
    %3617 = vmatpush1.xpose.msra.mxu0 %v3544
    %3618 = vmatprep.subr.mxu0 %v3543
    %3619 = vmatpush1.xpose.msra.mxu0 %v3542
    %3620 = vmatprep.subr.mxu0 %v3541
    %3621 = vmatpush1.xpose.msra.mxu0 %v3540
    %3622 = vmatprep.subr.mxu0 %v3539
    %3623 = vmatpush1.xpose.msra.mxu0 %v3538
    %3624 = vmatprep.subr.mxu0 0.0
    %3625 = vmatpush2.xpose.msra.mxu0 0.0
    %3626 = vmatprep.subr.mxu0 0.0
    %3627 = vmatpush2.xpose.msra.mxu0 0.0
    %3628 = vmatprep.subr.mxu0 0.0
    %3629 = vmatpush2.xpose.msra.mxu0 0.0
    %3630 = vmatprep.subr.mxu0 0.0
    %3631 = vmatpush2.xpose.msra.mxu0 0.0
    %3632 = vmatprep.subr.mxu0 0.0
    %3633 = vmatpush2.xpose.msra.mxu0 0.0
    %3634 = vmatprep.subr.mxu0 0.0
    %3635 = vmatpush2.xpose.msra.mxu0 0.0
    %3636 = vmatprep.subr.mxu0 0.0
    %3637 = vmatpush2.xpose.msra.mxu0 0.0
    %3638 = vmatprep.subr.mxu0 0.0
    %3639 = vmatpush2.xpose.msra.mxu0 0.0
    %3640 = vmatprep.subr.mxu0 0.0
    %3641 = vmatpush2.xpose.msra.mxu0 0.0
    %3642 = vmatprep.subr.mxu0 0.0
    %3643 = vmatpush2.xpose.msra.mxu0 0.0
    %3644 = vmatprep.subr.mxu0 0.0
    %3645 = vmatpush2.xpose.msra.mxu0 0.0
    %3646 = vmatprep.subr.mxu0 0.0
    %3647 = vmatpush2.xpose.msra.mxu0 0.0
    %3648 = vmatprep.subr.mxu0 0.0
    %3649 = vmatpush2.xpose.msra.mxu0 0.0
    %3650 = vmatprep.subr.mxu0 0.0
    %3651 = vmatpush2.xpose.msra.mxu0 0.0
    %3652 = vmatprep.subr.mxu0 0.0
    %3653 = vmatpush2.xpose.msra.mxu0 0.0
    %3654 = vmatprep.subr.mxu0 0.0
    %3655 = vmatpush2.xpose.msra.mxu0 0.0
    %3656 = vmatprep.mubr.f32.mxu0 %v3589
    %3657 = vmatmul.mubr.f32.gmra.mxu0 %v3585
    %v3658 = vpop.f32.mrf.mxu0
    %v3659 = vadd.f32 %v3580, %v3658
    %v3660 = vpop.f32.mrf.mxu0
    %3661 = vdwg.mxu0
    %v3662 = vmax.f32 %v3659, -30.0
    %v3663 = vmin.f32 %v3662, 30.0
    %v3664 = vsub.f32 0.0, %v3663
    %v3665 = vmul.f32 %v3664, 1.442695
    %v3666 = vpow.pop %v3665
    %v3667 = vadd.f32 %v3666, 1.0
    %v3668 = vrcp.pop %v3667
    %3669 = vst [vmem:[#allocation9] sm:$0x1] %v3668
    // Predicated region
    $region42: #{tpu_custom_call.1} parent=1 // pred_check
      _
    $region43: #{tpu_custom_call.1} parent=1 // pred_check_branch
      %3671 = sbr.rel (0) target = $region45
    $region44: #{tpu_custom_call.1} parent=1 // pred_region
      %s3673 = ssub.s32 16, 16
      %3674 = vsyncadd [#allocation5], %s3673
      %s3676 = sshll.u32 [#allocation9], 4
      %s3677 = int_to_ptr.vmem [resolvable:$true] %s3676
      %3679 = dma.vmem_to_hbm [thread:$0]  %s3677, 16, %s7, [#allocation5]
    $region45: #{tpu_custom_call.1} parent=1 // pred_fallthru
      _
    // Predicated region
    $region46: #{tpu_custom_call.1} parent=1 // pred_check
      _
    $region47: #{tpu_custom_call.1} parent=1 // pred_check_branch
      %3681 = sbr.rel (0) target = $region49
    $region48: #{tpu_custom_call.1} parent=1 // pred_region
      %3682 = dma.done [#allocation5], 16
    $region49: #{tpu_custom_call.1} parent=1 // pred_fallthru
      _
    %3683 = vsyncpa [#allocation4], 1
    %3684 = vsyncpa [#allocation7], 1
    %3685 = vsyncpa [#allocation5], 1

// kernel: tpu_custom_call.1
$region0: #{tpu_custom_call.1}
  #allocation0 [shape = 'u32[]', space=smem, size = 0x4, offset = 0x4, fixed_abs, tag = 'smem constant byte address 0x4 - core index']
  #allocation1 [shape = 'u32[144,128]{1,0:T(1,128)}', space=vmem, size = 0x12000, scoped, tag = 'internal scratch']
  #allocation2 [shape = 'f32[1,1]{1,0:T(1,128)S(1)}', space=vmem, size = 0x200, scoped, tag = 'scoped memory for tpu_custom_call.1']
  %s0 = inlined_call_operand.hbm [shape: f32[128,1024], index: 0, kind: input, shape index: {}]
  %s1 = inlined_call_operand.hbm [shape: bf16[1024,512], index: 1, kind: input, shape index: {}]
  %s2 = inlined_call_operand.vmem [shape: f32[1,512], index: 2, kind: input, shape index: {}]
  %s3 = inlined_call_operand.hbm [shape: bf16[512,256], index: 3, kind: input, shape index: {}]
  %s4 = inlined_call_operand.vmem [shape: f32[1,256], index: 4, kind: input, shape index: {}]
  %s5 = inlined_call_operand.vmem [shape: f32[1,256], index: 5, kind: input, shape index: {}]
  %s6 = inlined_call_operand.<no memory space> [shape: f32[1,1], index: 6, kind: input, shape index: {}]
  %s7 = inlined_call_operand.hbm [shape: f32[1,128], index: 7, kind: output, shape index: {}]
  %s8 = sld [smem:[#allocation0]]
  $region50: #{tpu_custom_call.1} parent=0
    _
  %s10 = ssub.s32 1, %s8
  %s11 = scalar_select 0, %s10, %s8
  %v12 = vstv %s6
  %13 = vst [vmem:[#allocation2] sm:$0x1] %v12
  $region1: #{tpu_custom_call.1} parent=0
    #allocation3 [shape = 'u8[524288]{0}', space=vmem, size = 0x80000, scoped, tag = 'input window, operand 0, single buffered']
    #allocation4 [shape = 's32[1]{0}', space=sflag, size = 0x4, scoped, tag = 'scoped memory for tpu_custom_call.1']
    #allocation5 [shape = 's32[1]{0}', space=sflag, size = 0x4, scoped, tag = 'scoped memory for tpu_custom_call.1']
    #allocation6 [shape = 'u8[1048576]{0}', space=vmem, size = 0x100000, scoped, tag = 'input window, operand 1, single buffered']
    #allocation7 [shape = 's32[1]{0}', space=sflag, size = 0x4, scoped, tag = 'scoped memory for tpu_custom_call.1']
    #allocation8 [shape = 'u8[262144]{0}', space=vmem, size = 0x40000, scoped, tag = 'input window, operand 3, single buffered']
    #allocation9 [shape = 'u8[512]{0}', space=vmem, size = 0x400, scoped, tag = 'output window, operand 0, single buffered']
    %14 = vsyncpa [#allocation4], 0
    %15 = vsyncpa [#allocation7], 0
    %16 = vsyncpa [#allocation5], 0
    // Predicated region
    $region2: #{tpu_custom_call.1} parent=1 // pred_check
      _
    $region3: #{tpu_custom_call.1} parent=1 // pred_check_branch
      %18 = sbr.rel (0) target = $region5
    $region4: #{tpu_custom_call.1} parent=1 // pred_region
      %s20 = ssub.s32 16384, 16384
      %21 = vsyncadd [#allocation4], %s20
      %s22 = sshll.u32 [#allocation3], 4
      %s23 = int_to_ptr.vmem [resolvable:$true] %s22
      %28 = dma.hbm_to_vmem [thread:$0]  %s0, 16384, %s23, [#allocation4], 1024, 1024, 64
    $region5: #{tpu_custom_call.1} parent=1 // pred_fallthru
      _
    // Predicated region
    $region6: #{tpu_custom_call.1} parent=1 // pred_check
      _
    $region7: #{tpu_custom_call.1} parent=1 // pred_check_branch
      %30 = sbr.rel (0) target = $region9
    $region8: #{tpu_custom_call.1} parent=1 // pred_region
      %s32 = ssub.s32 32768, 32768
      %33 = vsyncadd [#allocation7], %s32
      %s34 = sshll.u32 [#allocation6], 4
      %s35 = int_to_ptr.vmem [resolvable:$true] %s34
      %40 = dma.hbm_to_vmem [thread:$0]  %s1, 32768, %s35, [#allocation7], 256, 256, 16
    $region9: #{tpu_custom_call.1} parent=1 // pred_fallthru
      _
    // Predicated region
    $region10: #{tpu_custom_call.1} parent=1 // pred_check
      _
    $region11: #{tpu_custom_call.1} parent=1 // pred_check_branch
      %42 = sbr.rel (0) target = $region13
    $region12: #{tpu_custom_call.1} parent=1 // pred_region
      _
    $region13: #{tpu_custom_call.1} parent=1 // pred_fallthru
      _
    // Predicated region
    $region14: #{tpu_custom_call.1} parent=1 // pred_check
      _
    $region15: #{tpu_custom_call.1} parent=1 // pred_check_branch
      %44 = sbr.rel (0) target = $region17
    $region16: #{tpu_custom_call.1} parent=1 // pred_region
      %s46 = ssub.s32 8192, 8192
      %47 = vsyncadd [#allocation7], %s46
      %s48 = sshll.u32 [#allocation8], 4
      %s49 = int_to_ptr.vmem [resolvable:$true] %s48
      %54 = dma.hbm_to_vmem [thread:$0]  %s3, 8192, %s49, [#allocation7], 128, 128, 8
    $region17: #{tpu_custom_call.1} parent=1 // pred_fallthru
      _
    // Predicated region
    $region18: #{tpu_custom_call.1} parent=1 // pred_check
      _
    $region19: #{tpu_custom_call.1} parent=1 // pred_check_branch
      %56 = sbr.rel (0) target = $region21
    $region20: #{tpu_custom_call.1} parent=1 // pred_region
      _
    $region21: #{tpu_custom_call.1} parent=1 // pred_fallthru
      _
    // Predicated region
    $region22: #{tpu_custom_call.1} parent=1 // pred_check
      _
    $region23: #{tpu_custom_call.1} parent=1 // pred_check_branch
      %58 = sbr.rel (0) target = $region25
    $region24: #{tpu_custom_call.1} parent=1 // pred_region
      _
    $region25: #{tpu_custom_call.1} parent=1 // pred_fallthru
      _
    // Predicated region
    $region26: #{tpu_custom_call.1} parent=1 // pred_check
      _
    $region27: #{tpu_custom_call.1} parent=1 // pred_check_branch
      %60 = sbr.rel (0) target = $region29
    $region28: #{tpu_custom_call.1} parent=1 // pred_region
      _
    $region29: #{tpu_custom_call.1} parent=1 // pred_fallthru
      _
    // Predicated region
    $region30: #{tpu_custom_call.1} parent=1 // pred_check
      _
    $region31: #{tpu_custom_call.1} parent=1 // pred_check_branch
      %62 = sbr.rel (0) target = $region33
    $region32: #{tpu_custom_call.1} parent=1 // pred_region
      %63 = dma.done [#allocation4], 16384
    $region33: #{tpu_custom_call.1} parent=1 // pred_fallthru
      _
    // Predicated region
    $region34: #{tpu_custom_call.1} parent=1 // pred_check
      _
    $region35: #{tpu_custom_call.1} parent=1 // pred_check_branch
      %65 = sbr.rel (0) target = $region37
    $region36: #{tpu_custom_call.1} parent=1 // pred_region
      %66 = dma.done [#allocation7], 32768
    $region37: #{tpu_custom_call.1} parent=1 // pred_fallthru
      _
    // Predicated region
    $region38: #{tpu_custom_call.1} parent=1 // pred_check
      _
    $region39: #{tpu_custom_call.1} parent=1 // pred_check_branch
      %68 = sbr.rel (0) target = $region41
    $region40: #{tpu_custom_call.1} parent=1 // pred_region
      %69 = dma.done [#allocation7], 8192
    $region41: #{tpu_custom_call.1} parent=1 // pred_fallthru
      _
    %v70 = vld [vmem:[#allocation3] sm:$0xff]
    %v71 = vld [vmem:[#allocation3 + $0x8] sm:$0xff]
    %v72 = vld [vmem:[#allocation3 + $0x10] sm:$0xff]
    %v73 = vld [vmem:[#allocation3 + $0x18] sm:$0xff]
    %v74 = vld [vmem:[#allocation3 + $0x20] sm:$0xff]
    %v75 = vld [vmem:[#allocation3 + $0x28] sm:$0xff]
    %v76 = vld [vmem:[#allocation3 + $0x30] sm:$0xff]
    %v77 = vld [vmem:[#allocation3 + $0x38] sm:$0xff]
    %v78 = vld [vmem:[#allocation3 + $0x40] sm:$0xff]
    %v79 = vld [vmem:[#allocation3 + $0x48] sm:$0xff]
    %v80 = vld [vmem:[#allocation3 + $0x50] sm:$0xff]
    %v81 = vld [vmem:[#allocation3 + $0x58] sm:$0xff]
    %v82 = vld [vmem:[#allocation3 + $0x60] sm:$0xff]
    %v83 = vld [vmem:[#allocation3 + $0x68] sm:$0xff]
    %v84 = vld [vmem:[#allocation3 + $0x70] sm:$0xff]
    %v85 = vld [vmem:[#allocation3 + $0x78] sm:$0xff]
    %v86 = vld [vmem:[#allocation3 + $0x80] sm:$0xff]
    %v87 = vld [vmem:[#allocation3 + $0x88] sm:$0xff]
    %v88 = vld [vmem:[#allocation3 + $0x90] sm:$0xff]
    %v89 = vld [vmem:[#allocation3 + $0x98] sm:$0xff]
    %v90 = vld [vmem:[#allocation3 + $0xa0] sm:$0xff]
    %v91 = vld [vmem:[#allocation3 + $0xa8] sm:$0xff]
    %v92 = vld [vmem:[#allocation3 + $0xb0] sm:$0xff]
    %v93 = vld [vmem:[#allocation3 + $0xb8] sm:$0xff]
    %v94 = vld [vmem:[#allocation3 + $0xc0] sm:$0xff]
    %v95 = vld [vmem:[#allocation3 + $0xc8] sm:$0xff]
    %v96 = vld [vmem:[#allocation3 + $0xd0] sm:$0xff]
    %v97 = vld [vmem:[#allocation3 + $0xd8] sm:$0xff]
    %v98 = vld [vmem:[#allocation3 + $0xe0] sm:$0xff]
    %v99 = vld [vmem:[#allocation3 + $0xe8] sm:$0xff]
    %v100 = vld [vmem:[#allocation3 + $0xf0] sm:$0xff]
    %v101 = vld [vmem:[#allocation3 + $0xf8] sm:$0xff]
    %v102 = vld [vmem:[#allocation3 + $0x100] sm:$0xff]
    %v103 = vld [vmem:[#allocation3 + $0x108] sm:$0xff]
    %v104 = vld [vmem:[#allocation3 + $0x110] sm:$0xff]
    %v105 = vld [vmem:[#allocation3 + $0x118] sm:$0xff]
    %v106 = vld [vmem:[#allocation3 + $0x120] sm:$0xff]
    %v107 = vld [vmem:[#allocation3 + $0x128] sm:$0xff]
    %v108 = vld [vmem:[#allocation3 + $0x130] sm:$0xff]
    %v109 = vld [vmem:[#allocation3 + $0x138] sm:$0xff]
    %v110 = vld [vmem:[#allocation3 + $0x140] sm:$0xff]
    %v111 = vld [vmem:[#allocation3 + $0x148] sm:$0xff]
    %v112 = vld [vmem:[#allocation3 + $0x150] sm:$0xff]
    %v113 = vld [vmem:[#allocation3 + $0x158] sm:$0xff]
    %v114 = vld [vmem:[#allocation3 + $0x160] sm:$0xff]
    %v115 = vld [vmem:[#allocation3 + $0x168] sm:$0xff]
    %v116 = vld [vmem:[#allocation3 + $0x170] sm:$0xff]
    %v117 = vld [vmem:[#allocation3 + $0x178] sm:$0xff]
    %v118 = vld [vmem:[#allocation3 + $0x180] sm:$0xff]
    %v119 = vld [vmem:[#allocation3 + $0x188] sm:$0xff]
    %v120 = vld [vmem:[#allocation3 + $0x190] sm:$0xff]
    %v121 = vld [vmem:[#allocation3 + $0x198] sm:$0xff]
    %v122 = vld [vmem:[#allocation3 + $0x1a0] sm:$0xff]
    %v123 = vld [vmem:[#allocation3 + $0x1a8] sm:$0xff]
    %v124 = vld [vmem:[#allocation3 + $0x1b0] sm:$0xff]
    %v125 = vld [vmem:[#allocation3 + $0x1b8] sm:$0xff]
    %v126 = vld [vmem:[#allocation3 + $0x1c0] sm:$0xff]
    %v127 = vld [vmem:[#allocation3 + $0x1c8] sm:$0xff]
    %v128 = vld [vmem:[#allocation3 + $0x1d0] sm:$0xff]
    %v129 = vld [vmem:[#allocation3 + $0x1d8] sm:$0xff]
    %v130 = vld [vmem:[#allocation3 + $0x1e0] sm:$0xff]
    %v131 = vld [vmem:[#allocation3 + $0x1e8] sm:$0xff]
    %v132 = vld [vmem:[#allocation3 + $0x1f0] sm:$0xff]
    %v133 = vld [vmem:[#allocation3 + $0x1f8] sm:$0xff]
    %v134 = vld [vmem:[#allocation3 + $0x200] sm:$0xff]
    %v135 = vld [vmem:[#allocation3 + $0x208] sm:$0xff]
    %v136 = vld [vmem:[#allocation3 + $0x210] sm:$0xff]
    %v137 = vld [vmem:[#allocation3 + $0x218] sm:$0xff]
    %v138 = vld [vmem:[#allocation3 + $0x220] sm:$0xff]
    %v139 = vld [vmem:[#allocation3 + $0x228] sm:$0xff]
    %v140 = vld [vmem:[#allocation3 + $0x230] sm:$0xff]
    %v141 = vld [vmem:[#allocation3 + $0x238] sm:$0xff]
    %v142 = vld [vmem:[#allocation3 + $0x240] sm:$0xff]
    %v143 = vld [vmem:[#allocation3 + $0x248] sm:$0xff]
    %v144 = vld [vmem:[#allocation3 + $0x250] sm:$0xff]
    %v145 = vld [vmem:[#allocation3 + $0x258] sm:$0xff]
    %v146 = vld [vmem:[#allocation3 + $0x260] sm:$0xff]
    %v147 = vld [vmem:[#allocation3 + $0x268] sm:$0xff]
    %v148 = vld [vmem:[#allocation3 + $0x270] sm:$0xff]
    %v149 = vld [vmem:[#allocation3 + $0x278] sm:$0xff]
    %v150 = vld [vmem:[#allocation3 + $0x280] sm:$0xff]
    %v151 = vld [vmem:[#allocation3 + $0x288] sm:$0xff]
    %v152 = vld [vmem:[#allocation3 + $0x290] sm:$0xff]
    %v153 = vld [vmem:[#allocation3 + $0x298] sm:$0xff]
    %v154 = vld [vmem:[#allocation3 + $0x2a0] sm:$0xff]
    %v155 = vld [vmem:[#allocation3 + $0x2a8] sm:$0xff]
    %v156 = vld [vmem:[#allocation3 + $0x2b0] sm:$0xff]
    %v157 = vld [vmem:[#allocation3 + $0x2b8] sm:$0xff]
    %v158 = vld [vmem:[#allocation3 + $0x2c0] sm:$0xff]
    %v159 = vld [vmem:[#allocation3 + $0x2c8] sm:$0xff]
    %v160 = vld [vmem:[#allocation3 + $0x2d0] sm:$0xff]
    %v161 = vld [vmem:[#allocation3 + $0x2d8] sm:$0xff]
    %v162 = vld [vmem:[#allocation3 + $0x2e0] sm:$0xff]
    %v163 = vld [vmem:[#allocation3 + $0x2e8] sm:$0xff]
    %v164 = vld [vmem:[#allocation3 + $0x2f0] sm:$0xff]
    %v165 = vld [vmem:[#allocation3 + $0x2f8] sm:$0xff]
    %v166 = vld [vmem:[#allocation3 + $0x300] sm:$0xff]
    %v167 = vld [vmem:[#allocation3 + $0x308] sm:$0xff]
    %v168 = vld [vmem:[#allocation3 + $0x310] sm:$0xff]
    %v169 = vld [vmem:[#allocation3 + $0x318] sm:$0xff]
    %v170 = vld [vmem:[#allocation3 + $0x320] sm:$0xff]
    %v171 = vld [vmem:[#allocation3 + $0x328] sm:$0xff]
    %v172 = vld [vmem:[#allocation3 + $0x330] sm:$0xff]
    %v173 = vld [vmem:[#allocation3 + $0x338] sm:$0xff]
    %v174 = vld [vmem:[#allocation3 + $0x340] sm:$0xff]
    %v175 = vld [vmem:[#allocation3 + $0x348] sm:$0xff]
    %v176 = vld [vmem:[#allocation3 + $0x350] sm:$0xff]
    %v177 = vld [vmem:[#allocation3 + $0x358] sm:$0xff]
    %v178 = vld [vmem:[#allocation3 + $0x360] sm:$0xff]
    %v179 = vld [vmem:[#allocation3 + $0x368] sm:$0xff]
    %v180 = vld [vmem:[#allocation3 + $0x370] sm:$0xff]
    %v181 = vld [vmem:[#allocation3 + $0x378] sm:$0xff]
    %v182 = vld [vmem:[#allocation3 + $0x380] sm:$0xff]
    %v183 = vld [vmem:[#allocation3 + $0x388] sm:$0xff]
    %v184 = vld [vmem:[#allocation3 + $0x390] sm:$0xff]
    %v185 = vld [vmem:[#allocation3 + $0x398] sm:$0xff]
    %v186 = vld [vmem:[#allocation3 + $0x3a0] sm:$0xff]
    %v187 = vld [vmem:[#allocation3 + $0x3a8] sm:$0xff]
    %v188 = vld [vmem:[#allocation3 + $0x3b0] sm:$0xff]
    %v189 = vld [vmem:[#allocation3 + $0x3b8] sm:$0xff]
    %v190 = vld [vmem:[#allocation3 + $0x3c0] sm:$0xff]
    %v191 = vld [vmem:[#allocation3 + $0x3c8] sm:$0xff]
    %v192 = vld [vmem:[#allocation3 + $0x3d0] sm:$0xff]
    %v193 = vld [vmem:[#allocation3 + $0x3d8] sm:$0xff]
    %v194 = vld [vmem:[#allocation3 + $0x3e0] sm:$0xff]
    %v195 = vld [vmem:[#allocation3 + $0x3e8] sm:$0xff]
    %v196 = vld [vmem:[#allocation3 + $0x3f0] sm:$0xff]
    %v197 = vld [vmem:[#allocation3 + $0x3f8] sm:$0xff]
    %v198 = vpack.c.bf16 %v78, %v70
    %v199 = vpack.c.bf16 %v79, %v71
    %v200 = vpack.c.bf16 %v80, %v72
    %v201 = vpack.c.bf16 %v81, %v73
    %v202 = vpack.c.bf16 %v82, %v74
    %v203 = vpack.c.bf16 %v83, %v75
    %v204 = vpack.c.bf16 %v84, %v76
    %v205 = vpack.c.bf16 %v85, %v77
    %v206 = vpack.c.bf16 %v94, %v86
    %v207 = vpack.c.bf16 %v95, %v87
    %v208 = vpack.c.bf16 %v96, %v88
    %v209 = vpack.c.bf16 %v97, %v89
    %v210 = vpack.c.bf16 %v98, %v90
    %v211 = vpack.c.bf16 %v99, %v91
    %v212 = vpack.c.bf16 %v100, %v92
    %v213 = vpack.c.bf16 %v101, %v93
    %v214 = vpack.c.bf16 %v110, %v102
    %v215 = vpack.c.bf16 %v111, %v103
    %v216 = vpack.c.bf16 %v112, %v104
    %v217 = vpack.c.bf16 %v113, %v105
    %v218 = vpack.c.bf16 %v114, %v106
    %v219 = vpack.c.bf16 %v115, %v107
    %v220 = vpack.c.bf16 %v116, %v108
    %v221 = vpack.c.bf16 %v117, %v109
    %v222 = vpack.c.bf16 %v126, %v118
    %v223 = vpack.c.bf16 %v127, %v119
    %v224 = vpack.c.bf16 %v128, %v120
    %v225 = vpack.c.bf16 %v129, %v121
    %v226 = vpack.c.bf16 %v130, %v122
    %v227 = vpack.c.bf16 %v131, %v123
    %v228 = vpack.c.bf16 %v132, %v124
    %v229 = vpack.c.bf16 %v133, %v125
    %v230 = vpack.c.bf16 %v142, %v134
    %v231 = vpack.c.bf16 %v143, %v135
    %v232 = vpack.c.bf16 %v144, %v136
    %v233 = vpack.c.bf16 %v145, %v137
    %v234 = vpack.c.bf16 %v146, %v138
    %v235 = vpack.c.bf16 %v147, %v139
    %v236 = vpack.c.bf16 %v148, %v140
    %v237 = vpack.c.bf16 %v149, %v141
    %v238 = vpack.c.bf16 %v158, %v150
    %v239 = vpack.c.bf16 %v159, %v151
    %v240 = vpack.c.bf16 %v160, %v152
    %v241 = vpack.c.bf16 %v161, %v153
    %v242 = vpack.c.bf16 %v162, %v154
    %v243 = vpack.c.bf16 %v163, %v155
    %v244 = vpack.c.bf16 %v164, %v156
    %v245 = vpack.c.bf16 %v165, %v157
    %v246 = vpack.c.bf16 %v174, %v166
    %v247 = vpack.c.bf16 %v175, %v167
    %v248 = vpack.c.bf16 %v176, %v168
    %v249 = vpack.c.bf16 %v177, %v169
    %v250 = vpack.c.bf16 %v178, %v170
    %v251 = vpack.c.bf16 %v179, %v171
    %v252 = vpack.c.bf16 %v180, %v172
    %v253 = vpack.c.bf16 %v181, %v173
    %v254 = vpack.c.bf16 %v190, %v182
    %v255 = vpack.c.bf16 %v191, %v183
    %v256 = vpack.c.bf16 %v192, %v184
    %v257 = vpack.c.bf16 %v193, %v185
    %v258 = vpack.c.bf16 %v194, %v186
    %v259 = vpack.c.bf16 %v195, %v187
    %v260 = vpack.c.bf16 %v196, %v188
    %v261 = vpack.c.bf16 %v197, %v189
    %v262 = vld [vmem:[#allocation6] sm:$0xff]
    %v263 = vld [vmem:[#allocation6 + $0x8] sm:$0xff]
    %v264 = vld [vmem:[#allocation6 + $0x10] sm:$0xff]
    %v265 = vld [vmem:[#allocation6 + $0x18] sm:$0xff]
    %v266 = vld [vmem:[#allocation6 + $0x20] sm:$0xff]
    %v267 = vld [vmem:[#allocation6 + $0x28] sm:$0xff]
    %v268 = vld [vmem:[#allocation6 + $0x30] sm:$0xff]
    %v269 = vld [vmem:[#allocation6 + $0x38] sm:$0xff]
    %v270 = vld [vmem:[#allocation6 + $0x40] sm:$0xff]
    %v271 = vld [vmem:[#allocation6 + $0x48] sm:$0xff]
    %v272 = vld [vmem:[#allocation6 + $0x50] sm:$0xff]
    %v273 = vld [vmem:[#allocation6 + $0x58] sm:$0xff]
    %v274 = vld [vmem:[#allocation6 + $0x60] sm:$0xff]
    %v275 = vld [vmem:[#allocation6 + $0x68] sm:$0xff]
    %v276 = vld [vmem:[#allocation6 + $0x70] sm:$0xff]
    %v277 = vld [vmem:[#allocation6 + $0x78] sm:$0xff]
    %v278 = vld [vmem:[#allocation6 + $0x80] sm:$0xff]
    %v279 = vld [vmem:[#allocation6 + $0x88] sm:$0xff]
    %v280 = vld [vmem:[#allocation6 + $0x90] sm:$0xff]
    %v281 = vld [vmem:[#allocation6 + $0x98] sm:$0xff]
    %v282 = vld [vmem:[#allocation6 + $0xa0] sm:$0xff]
    %v283 = vld [vmem:[#allocation6 + $0xa8] sm:$0xff]
    %v284 = vld [vmem:[#allocation6 + $0xb0] sm:$0xff]
    %v285 = vld [vmem:[#allocation6 + $0xb8] sm:$0xff]
    %v286 = vld [vmem:[#allocation6 + $0xc0] sm:$0xff]
    %v287 = vld [vmem:[#allocation6 + $0xc8] sm:$0xff]
    %v288 = vld [vmem:[#allocation6 + $0xd0] sm:$0xff]
    %v289 = vld [vmem:[#allocation6 + $0xd8] sm:$0xff]
    %v290 = vld [vmem:[#allocation6 + $0xe0] sm:$0xff]
    %v291 = vld [vmem:[#allocation6 + $0xe8] sm:$0xff]
    %v292 = vld [vmem:[#allocation6 + $0xf0] sm:$0xff]
    %v293 = vld [vmem:[#allocation6 + $0xf8] sm:$0xff]
    %v294 = vld [vmem:[#allocation6 + $0x100] sm:$0xff]
    %v295 = vld [vmem:[#allocation6 + $0x108] sm:$0xff]
    %v296 = vld [vmem:[#allocation6 + $0x110] sm:$0xff]
    %v297 = vld [vmem:[#allocation6 + $0x118] sm:$0xff]
    %v298 = vld [vmem:[#allocation6 + $0x120] sm:$0xff]
    %v299 = vld [vmem:[#allocation6 + $0x128] sm:$0xff]
    %v300 = vld [vmem:[#allocation6 + $0x130] sm:$0xff]
    %v301 = vld [vmem:[#allocation6 + $0x138] sm:$0xff]
    %v302 = vld [vmem:[#allocation6 + $0x140] sm:$0xff]
    %v303 = vld [vmem:[#allocation6 + $0x148] sm:$0xff]
    %v304 = vld [vmem:[#allocation6 + $0x150] sm:$0xff]
    %v305 = vld [vmem:[#allocation6 + $0x158] sm:$0xff]
    %v306 = vld [vmem:[#allocation6 + $0x160] sm:$0xff]
    %v307 = vld [vmem:[#allocation6 + $0x168] sm:$0xff]
    %v308 = vld [vmem:[#allocation6 + $0x170] sm:$0xff]
    %v309 = vld [vmem:[#allocation6 + $0x178] sm:$0xff]
    %v310 = vld [vmem:[#allocation6 + $0x180] sm:$0xff]
    %v311 = vld [vmem:[#allocation6 + $0x188] sm:$0xff]
    %v312 = vld [vmem:[#allocation6 + $0x190] sm:$0xff]
    %v313 = vld [vmem:[#allocation6 + $0x198] sm:$0xff]
    %v314 = vld [vmem:[#allocation6 + $0x1a0] sm:$0xff]
    %v315 = vld [vmem:[#allocation6 + $0x1a8] sm:$0xff]
    %v316 = vld [vmem:[#allocation6 + $0x1b0] sm:$0xff]
    %v317 = vld [vmem:[#allocation6 + $0x1b8] sm:$0xff]
    %v318 = vld [vmem:[#allocation6 + $0x1c0] sm:$0xff]
    %v319 = vld [vmem:[#allocation6 + $0x1c8] sm:$0xff]
    %v320 = vld [vmem:[#allocation6 + $0x1d0] sm:$0xff]
    %v321 = vld [vmem:[#allocation6 + $0x1d8] sm:$0xff]
    %v322 = vld [vmem:[#allocation6 + $0x1e0] sm:$0xff]
    %v323 = vld [vmem:[#allocation6 + $0x1e8] sm:$0xff]
    %v324 = vld [vmem:[#allocation6 + $0x1f0] sm:$0xff]
    %v325 = vld [vmem:[#allocation6 + $0x1f8] sm:$0xff]
    %v326 = vld [vmem:[#allocation6 + $0x200] sm:$0xff]
    %v327 = vld [vmem:[#allocation6 + $0x208] sm:$0xff]
    %v328 = vld [vmem:[#allocation6 + $0x210] sm:$0xff]
    %v329 = vld [vmem:[#allocation6 + $0x218] sm:$0xff]
    %v330 = vld [vmem:[#allocation6 + $0x220] sm:$0xff]
    %v331 = vld [vmem:[#allocation6 + $0x228] sm:$0xff]
    %v332 = vld [vmem:[#allocation6 + $0x230] sm:$0xff]
    %v333 = vld [vmem:[#allocation6 + $0x238] sm:$0xff]
    %v334 = vld [vmem:[#allocation6 + $0x240] sm:$0xff]
    %v335 = vld [vmem:[#allocation6 + $0x248] sm:$0xff]
    %v336 = vld [vmem:[#allocation6 + $0x250] sm:$0xff]
    %v337 = vld [vmem:[#allocation6 + $0x258] sm:$0xff]
    %v338 = vld [vmem:[#allocation6 + $0x260] sm:$0xff]
    %v339 = vld [vmem:[#allocation6 + $0x268] sm:$0xff]
    %v340 = vld [vmem:[#allocation6 + $0x270] sm:$0xff]
    %v341 = vld [vmem:[#allocation6 + $0x278] sm:$0xff]
    %v342 = vld [vmem:[#allocation6 + $0x280] sm:$0xff]
    %v343 = vld [vmem:[#allocation6 + $0x288] sm:$0xff]
    %v344 = vld [vmem:[#allocation6 + $0x290] sm:$0xff]
    %v345 = vld [vmem:[#allocation6 + $0x298] sm:$0xff]
    %v346 = vld [vmem:[#allocation6 + $0x2a0] sm:$0xff]
    %v347 = vld [vmem:[#allocation6 + $0x2a8] sm:$0xff]
    %v348 = vld [vmem:[#allocation6 + $0x2b0] sm:$0xff]
    %v349 = vld [vmem:[#allocation6 + $0x2b8] sm:$0xff]
    %v350 = vld [vmem:[#allocation6 + $0x2c0] sm:$0xff]
    %v351 = vld [vmem:[#allocation6 + $0x2c8] sm:$0xff]
    %v352 = vld [vmem:[#allocation6 + $0x2d0] sm:$0xff]
    %v353 = vld [vmem:[#allocation6 + $0x2d8] sm:$0xff]
    %v354 = vld [vmem:[#allocation6 + $0x2e0] sm:$0xff]
    %v355 = vld [vmem:[#allocation6 + $0x2e8] sm:$0xff]
    %v356 = vld [vmem:[#allocation6 + $0x2f0] sm:$0xff]
    %v357 = vld [vmem:[#allocation6 + $0x2f8] sm:$0xff]
    %v358 = vld [vmem:[#allocation6 + $0x300] sm:$0xff]
    %v359 = vld [vmem:[#allocation6 + $0x308] sm:$0xff]
    %v360 = vld [vmem:[#allocation6 + $0x310] sm:$0xff]
    %v361 = vld [vmem:[#allocation6 + $0x318] sm:$0xff]
    %v362 = vld [vmem:[#allocation6 + $0x320] sm:$0xff]
    %v363 = vld [vmem:[#allocation6 + $0x328] sm:$0xff]
    %v364 = vld [vmem:[#allocation6 + $0x330] sm:$0xff]
    %v365 = vld [vmem:[#allocation6 + $0x338] sm:$0xff]
    %v366 = vld [vmem:[#allocation6 + $0x340] sm:$0xff]
    %v367 = vld [vmem:[#allocation6 + $0x348] sm:$0xff]
    %v368 = vld [vmem:[#allocation6 + $0x350] sm:$0xff]
    %v369 = vld [vmem:[#allocation6 + $0x358] sm:$0xff]
    %v370 = vld [vmem:[#allocation6 + $0x360] sm:$0xff]
    %v371 = vld [vmem:[#allocation6 + $0x368] sm:$0xff]
    %v372 = vld [vmem:[#allocation6 + $0x370] sm:$0xff]
    %v373 = vld [vmem:[#allocation6 + $0x378] sm:$0xff]
    %v374 = vld [vmem:[#allocation6 + $0x380] sm:$0xff]
    %v375 = vld [vmem:[#allocation6 + $0x388] sm:$0xff]
    %v376 = vld [vmem:[#allocation6 + $0x390] sm:$0xff]
    %v377 = vld [vmem:[#allocation6 + $0x398] sm:$0xff]
    %v378 = vld [vmem:[#allocation6 + $0x3a0] sm:$0xff]
    %v379 = vld [vmem:[#allocation6 + $0x3a8] sm:$0xff]
    %v380 = vld [vmem:[#allocation6 + $0x3b0] sm:$0xff]
    %v381 = vld [vmem:[#allocation6 + $0x3b8] sm:$0xff]
    %v382 = vld [vmem:[#allocation6 + $0x3c0] sm:$0xff]
    %v383 = vld [vmem:[#allocation6 + $0x3c8] sm:$0xff]
    %v384 = vld [vmem:[#allocation6 + $0x3d0] sm:$0xff]
    %v385 = vld [vmem:[#allocation6 + $0x3d8] sm:$0xff]
    %v386 = vld [vmem:[#allocation6 + $0x3e0] sm:$0xff]
    %v387 = vld [vmem:[#allocation6 + $0x3e8] sm:$0xff]
    %v388 = vld [vmem:[#allocation6 + $0x3f0] sm:$0xff]
    %v389 = vld [vmem:[#allocation6 + $0x3f8] sm:$0xff]
    %v390 = vld [vmem:[#allocation6 + $0x400] sm:$0xff]
    %v391 = vld [vmem:[#allocation6 + $0x408] sm:$0xff]
    %v392 = vld [vmem:[#allocation6 + $0x410] sm:$0xff]
    %v393 = vld [vmem:[#allocation6 + $0x418] sm:$0xff]
    %v394 = vld [vmem:[#allocation6 + $0x420] sm:$0xff]
    %v395 = vld [vmem:[#allocation6 + $0x428] sm:$0xff]
    %v396 = vld [vmem:[#allocation6 + $0x430] sm:$0xff]
    %v397 = vld [vmem:[#allocation6 + $0x438] sm:$0xff]
    %v398 = vld [vmem:[#allocation6 + $0x440] sm:$0xff]
    %v399 = vld [vmem:[#allocation6 + $0x448] sm:$0xff]
    %v400 = vld [vmem:[#allocation6 + $0x450] sm:$0xff]
    %v401 = vld [vmem:[#allocation6 + $0x458] sm:$0xff]
    %v402 = vld [vmem:[#allocation6 + $0x460] sm:$0xff]
    %v403 = vld [vmem:[#allocation6 + $0x468] sm:$0xff]
    %v404 = vld [vmem:[#allocation6 + $0x470] sm:$0xff]
    %v405 = vld [vmem:[#allocation6 + $0x478] sm:$0xff]
    %v406 = vld [vmem:[#allocation6 + $0x480] sm:$0xff]
    %v407 = vld [vmem:[#allocation6 + $0x488] sm:$0xff]
    %v408 = vld [vmem:[#allocation6 + $0x490] sm:$0xff]
    %v409 = vld [vmem:[#allocation6 + $0x498] sm:$0xff]
    %v410 = vld [vmem:[#allocation6 + $0x4a0] sm:$0xff]
    %v411 = vld [vmem:[#allocation6 + $0x4a8] sm:$0xff]
    %v412 = vld [vmem:[#allocation6 + $0x4b0] sm:$0xff]
    %v413 = vld [vmem:[#allocation6 + $0x4b8] sm:$0xff]
    %v414 = vld [vmem:[#allocation6 + $0x4c0] sm:$0xff]
    %v415 = vld [vmem:[#allocation6 + $0x4c8] sm:$0xff]
    %v416 = vld [vmem:[#allocation6 + $0x4d0] sm:$0xff]
    %v417 = vld [vmem:[#allocation6 + $0x4d8] sm:$0xff]
    %v418 = vld [vmem:[#allocation6 + $0x4e0] sm:$0xff]
    %v419 = vld [vmem:[#allocation6 + $0x4e8] sm:$0xff]
    %v420 = vld [vmem:[#allocation6 + $0x4f0] sm:$0xff]
    %v421 = vld [vmem:[#allocation6 + $0x4f8] sm:$0xff]
    %v422 = vld [vmem:[#allocation6 + $0x500] sm:$0xff]
    %v423 = vld [vmem:[#allocation6 + $0x508] sm:$0xff]
    %v424 = vld [vmem:[#allocation6 + $0x510] sm:$0xff]
    %v425 = vld [vmem:[#allocation6 + $0x518] sm:$0xff]
    %v426 = vld [vmem:[#allocation6 + $0x520] sm:$0xff]
    %v427 = vld [vmem:[#allocation6 + $0x528] sm:$0xff]
    %v428 = vld [vmem:[#allocation6 + $0x530] sm:$0xff]
    %v429 = vld [vmem:[#allocation6 + $0x538] sm:$0xff]
    %v430 = vld [vmem:[#allocation6 + $0x540] sm:$0xff]
    %v431 = vld [vmem:[#allocation6 + $0x548] sm:$0xff]
    %v432 = vld [vmem:[#allocation6 + $0x550] sm:$0xff]
    %v433 = vld [vmem:[#allocation6 + $0x558] sm:$0xff]
    %v434 = vld [vmem:[#allocation6 + $0x560] sm:$0xff]
    %v435 = vld [vmem:[#allocation6 + $0x568] sm:$0xff]
    %v436 = vld [vmem:[#allocation6 + $0x570] sm:$0xff]
    %v437 = vld [vmem:[#allocation6 + $0x578] sm:$0xff]
    %v438 = vld [vmem:[#allocation6 + $0x580] sm:$0xff]
    %v439 = vld [vmem:[#allocation6 + $0x588] sm:$0xff]
    %v440 = vld [vmem:[#allocation6 + $0x590] sm:$0xff]
    %v441 = vld [vmem:[#allocation6 + $0x598] sm:$0xff]
    %v442 = vld [vmem:[#allocation6 + $0x5a0] sm:$0xff]
    %v443 = vld [vmem:[#allocation6 + $0x5a8] sm:$0xff]
    %v444 = vld [vmem:[#allocation6 + $0x5b0] sm:$0xff]
    %v445 = vld [vmem:[#allocation6 + $0x5b8] sm:$0xff]
    %v446 = vld [vmem:[#allocation6 + $0x5c0] sm:$0xff]
    %v447 = vld [vmem:[#allocation6 + $0x5c8] sm:$0xff]
    %v448 = vld [vmem:[#allocation6 + $0x5d0] sm:$0xff]
    %v449 = vld [vmem:[#allocation6 + $0x5d8] sm:$0xff]
    %v450 = vld [vmem:[#allocation6 + $0x5e0] sm:$0xff]
    %v451 = vld [vmem:[#allocation6 + $0x5e8] sm:$0xff]
    %v452 = vld [vmem:[#allocation6 + $0x5f0] sm:$0xff]
    %v453 = vld [vmem:[#allocation6 + $0x5f8] sm:$0xff]
    %v454 = vld [vmem:[#allocation6 + $0x600] sm:$0xff]
    %v455 = vld [vmem:[#allocation6 + $0x608] sm:$0xff]
    %v456 = vld [vmem:[#allocation6 + $0x610] sm:$0xff]
    %v457 = vld [vmem:[#allocation6 + $0x618] sm:$0xff]
    %v458 = vld [vmem:[#allocation6 + $0x620] sm:$0xff]
    %v459 = vld [vmem:[#allocation6 + $0x628] sm:$0xff]
    %v460 = vld [vmem:[#allocation6 + $0x630] sm:$0xff]
    %v461 = vld [vmem:[#allocation6 + $0x638] sm:$0xff]
    %v462 = vld [vmem:[#allocation6 + $0x640] sm:$0xff]
    %v463 = vld [vmem:[#allocation6 + $0x648] sm:$0xff]
    %v464 = vld [vmem:[#allocation6 + $0x650] sm:$0xff]
    %v465 = vld [vmem:[#allocation6 + $0x658] sm:$0xff]
    %v466 = vld [vmem:[#allocation6 + $0x660] sm:$0xff]
    %v467 = vld [vmem:[#allocation6 + $0x668] sm:$0xff]
    %v468 = vld [vmem:[#allocation6 + $0x670] sm:$0xff]
    %v469 = vld [vmem:[#allocation6 + $0x678] sm:$0xff]
    %v470 = vld [vmem:[#allocation6 + $0x680] sm:$0xff]
    %v471 = vld [vmem:[#allocation6 + $0x688] sm:$0xff]
    %v472 = vld [vmem:[#allocation6 + $0x690] sm:$0xff]
    %v473 = vld [vmem:[#allocation6 + $0x698] sm:$0xff]
    %v474 = vld [vmem:[#allocation6 + $0x6a0] sm:$0xff]
    %v475 = vld [vmem:[#allocation6 + $0x6a8] sm:$0xff]
    %v476 = vld [vmem:[#allocation6 + $0x6b0] sm:$0xff]
    %v477 = vld [vmem:[#allocation6 + $0x6b8] sm:$0xff]
    %v478 = vld [vmem:[#allocation6 + $0x6c0] sm:$0xff]
    %v479 = vld [vmem:[#allocation6 + $0x6c8] sm:$0xff]
    %v480 = vld [vmem:[#allocation6 + $0x6d0] sm:$0xff]
    %v481 = vld [vmem:[#allocation6 + $0x6d8] sm:$0xff]
    %v482 = vld [vmem:[#allocation6 + $0x6e0] sm:$0xff]
    %v483 = vld [vmem:[#allocation6 + $0x6e8] sm:$0xff]
    %v484 = vld [vmem:[#allocation6 + $0x6f0] sm:$0xff]
    %v485 = vld [vmem:[#allocation6 + $0x6f8] sm:$0xff]
    %v486 = vld [vmem:[#allocation6 + $0x700] sm:$0xff]
    %v487 = vld [vmem:[#allocation6 + $0x708] sm:$0xff]
    %v488 = vld [vmem:[#allocation6 + $0x710] sm:$0xff]
    %v489 = vld [vmem:[#allocation6 + $0x718] sm:$0xff]
    %v490 = vld [vmem:[#allocation6 + $0x720] sm:$0xff]
    %v491 = vld [vmem:[#allocation6 + $0x728] sm:$0xff]
    %v492 = vld [vmem:[#allocation6 + $0x730] sm:$0xff]
    %v493 = vld [vmem:[#allocation6 + $0x738] sm:$0xff]
    %v494 = vld [vmem:[#allocation6 + $0x740] sm:$0xff]
    %v495 = vld [vmem:[#allocation6 + $0x748] sm:$0xff]
    %v496 = vld [vmem:[#allocation6 + $0x750] sm:$0xff]
    %v497 = vld [vmem:[#allocation6 + $0x758] sm:$0xff]
    %v498 = vld [vmem:[#allocation6 + $0x760] sm:$0xff]
    %v499 = vld [vmem:[#allocation6 + $0x768] sm:$0xff]
    %v500 = vld [vmem:[#allocation6 + $0x770] sm:$0xff]
    %v501 = vld [vmem:[#allocation6 + $0x778] sm:$0xff]
    %v502 = vld [vmem:[#allocation6 + $0x780] sm:$0xff]
    %v503 = vld [vmem:[#allocation6 + $0x788] sm:$0xff]
    %v504 = vld [vmem:[#allocation6 + $0x790] sm:$0xff]
    %v505 = vld [vmem:[#allocation6 + $0x798] sm:$0xff]
    %v506 = vld [vmem:[#allocation6 + $0x7a0] sm:$0xff]
    %v507 = vld [vmem:[#allocation6 + $0x7a8] sm:$0xff]
    %v508 = vld [vmem:[#allocation6 + $0x7b0] sm:$0xff]
    %v509 = vld [vmem:[#allocation6 + $0x7b8] sm:$0xff]
    %v510 = vld [vmem:[#allocation6 + $0x7c0] sm:$0xff]
    %v511 = vld [vmem:[#allocation6 + $0x7c8] sm:$0xff]
    %v512 = vld [vmem:[#allocation6 + $0x7d0] sm:$0xff]
    %v513 = vld [vmem:[#allocation6 + $0x7d8] sm:$0xff]
    %v514 = vld [vmem:[#allocation6 + $0x7e0] sm:$0xff]
    %v515 = vld [vmem:[#allocation6 + $0x7e8] sm:$0xff]
    %v516 = vld [vmem:[#allocation6 + $0x7f0] sm:$0xff]
    %v517 = vld [vmem:[#allocation6 + $0x7f8] sm:$0xff]
    %v518 = vld [vmem:[%s2] sm:$0xf]
    %v520 = vlaneseq
    %v521 = vshrl.u32 %v520, 7
    %v522 = vsub.s32 0, %v521
    %v523 = vrot.slane %v518, %v522
    %v524 = vlaneseq
    %v525 = vshrl.u32 %v524, 7
    %v526 = vsub.s32 1, %v525
    %v527 = vrot.slane %v518, %v526
    %v528 = vlaneseq
    %v529 = vshrl.u32 %v528, 7
    %v530 = vsub.s32 2, %v529
    %v531 = vrot.slane %v518, %v530
    %v532 = vlaneseq
    %v533 = vshrl.u32 %v532, 7
    %v534 = vsub.s32 3, %v533
    %v535 = vrot.slane %v518, %v534
    %v796 = vunpack.c.l.b16 %v262
    %v797 = vunpack.c.h.b16 %v262
    %v798 = vunpack.c.l.b16 %v263
    %v799 = vunpack.c.h.b16 %v263
    %v800 = vunpack.c.l.b16 %v264
    %v801 = vunpack.c.h.b16 %v264
    %v802 = vunpack.c.l.b16 %v265
    %v803 = vunpack.c.h.b16 %v265
    %v804 = vunpack.c.l.b16 %v266
    %v805 = vunpack.c.h.b16 %v266
    %v806 = vunpack.c.l.b16 %v267
    %v807 = vunpack.c.h.b16 %v267
    %v808 = vunpack.c.l.b16 %v268
    %v809 = vunpack.c.h.b16 %v268
    %v810 = vunpack.c.l.b16 %v269
    %v811 = vunpack.c.h.b16 %v269
    %v812 = vunpack.c.l.b16 %v270
    %v813 = vunpack.c.h.b16 %v270
    %v814 = vunpack.c.l.b16 %v271
    %v815 = vunpack.c.h.b16 %v271
    %v816 = vunpack.c.l.b16 %v272
    %v817 = vunpack.c.h.b16 %v272
    %v818 = vunpack.c.l.b16 %v273
    %v819 = vunpack.c.h.b16 %v273
    %v820 = vunpack.c.l.b16 %v274
    %v821 = vunpack.c.h.b16 %v274
    %v822 = vunpack.c.l.b16 %v275
    %v823 = vunpack.c.h.b16 %v275
    %v824 = vunpack.c.l.b16 %v276
    %v825 = vunpack.c.h.b16 %v276
    %v826 = vunpack.c.l.b16 %v277
    %v827 = vunpack.c.h.b16 %v277
    %v828 = vunpack.c.l.b16 %v278
    %v829 = vunpack.c.h.b16 %v278
    %v830 = vunpack.c.l.b16 %v279
    %v831 = vunpack.c.h.b16 %v279
    %v832 = vunpack.c.l.b16 %v280
    %v833 = vunpack.c.h.b16 %v280
    %v834 = vunpack.c.l.b16 %v281
    %v835 = vunpack.c.h.b16 %v281
    %v836 = vunpack.c.l.b16 %v282
    %v837 = vunpack.c.h.b16 %v282
    %v838 = vunpack.c.l.b16 %v283
    %v839 = vunpack.c.h.b16 %v283
    %v840 = vunpack.c.l.b16 %v284
    %v841 = vunpack.c.h.b16 %v284
    %v842 = vunpack.c.l.b16 %v285
    %v843 = vunpack.c.h.b16 %v285
    %v844 = vunpack.c.l.b16 %v286
    %v845 = vunpack.c.h.b16 %v286
    %v846 = vunpack.c.l.b16 %v287
    %v847 = vunpack.c.h.b16 %v287
    %v848 = vunpack.c.l.b16 %v288
    %v849 = vunpack.c.h.b16 %v288
    %v850 = vunpack.c.l.b16 %v289
    %v851 = vunpack.c.h.b16 %v289
    %v852 = vunpack.c.l.b16 %v290
    %v853 = vunpack.c.h.b16 %v290
    %v854 = vunpack.c.l.b16 %v291
    %v855 = vunpack.c.h.b16 %v291
    %v856 = vunpack.c.l.b16 %v292
    %v857 = vunpack.c.h.b16 %v292
    %v858 = vunpack.c.l.b16 %v293
    %v859 = vunpack.c.h.b16 %v293
    %v860 = vunpack.c.l.b16 %v294
    %v861 = vunpack.c.h.b16 %v294
    %v862 = vunpack.c.l.b16 %v295
    %v863 = vunpack.c.h.b16 %v295
    %v864 = vunpack.c.l.b16 %v296
    %v865 = vunpack.c.h.b16 %v296
    %v866 = vunpack.c.l.b16 %v297
    %v867 = vunpack.c.h.b16 %v297
    %v868 = vunpack.c.l.b16 %v298
    %v869 = vunpack.c.h.b16 %v298
    %v870 = vunpack.c.l.b16 %v299
    %v871 = vunpack.c.h.b16 %v299
    %v872 = vunpack.c.l.b16 %v300
    %v873 = vunpack.c.h.b16 %v300
    %v874 = vunpack.c.l.b16 %v301
    %v875 = vunpack.c.h.b16 %v301
    %v876 = vunpack.c.l.b16 %v302
    %v877 = vunpack.c.h.b16 %v302
    %v878 = vunpack.c.l.b16 %v303
    %v879 = vunpack.c.h.b16 %v303
    %v880 = vunpack.c.l.b16 %v304
    %v881 = vunpack.c.h.b16 %v304
    %v882 = vunpack.c.l.b16 %v305
    %v883 = vunpack.c.h.b16 %v305
    %v884 = vunpack.c.l.b16 %v306
    %v885 = vunpack.c.h.b16 %v306
    %v886 = vunpack.c.l.b16 %v307
    %v887 = vunpack.c.h.b16 %v307
    %v888 = vunpack.c.l.b16 %v308
    %v889 = vunpack.c.h.b16 %v308
    %v890 = vunpack.c.l.b16 %v309
    %v891 = vunpack.c.h.b16 %v309
    %v892 = vunpack.c.l.b16 %v310
    %v893 = vunpack.c.h.b16 %v310
    %v894 = vunpack.c.l.b16 %v311
    %v895 = vunpack.c.h.b16 %v311
    %v896 = vunpack.c.l.b16 %v312
    %v897 = vunpack.c.h.b16 %v312
    %v898 = vunpack.c.l.b16 %v313
    %v899 = vunpack.c.h.b16 %v313
    %v900 = vunpack.c.l.b16 %v314
    %v901 = vunpack.c.h.b16 %v314
    %v902 = vunpack.c.l.b16 %v315
    %v903 = vunpack.c.h.b16 %v315
    %v904 = vunpack.c.l.b16 %v316
    %v905 = vunpack.c.h.b16 %v316
    %v906 = vunpack.c.l.b16 %v317
    %v907 = vunpack.c.h.b16 %v317
    %v908 = vunpack.c.l.b16 %v318
    %v909 = vunpack.c.h.b16 %v318
    %v910 = vunpack.c.l.b16 %v319
    %v911 = vunpack.c.h.b16 %v319
    %v912 = vunpack.c.l.b16 %v320
    %v913 = vunpack.c.h.b16 %v320
    %v914 = vunpack.c.l.b16 %v321
    %v915 = vunpack.c.h.b16 %v321
    %v916 = vunpack.c.l.b16 %v322
    %v917 = vunpack.c.h.b16 %v322
    %v918 = vunpack.c.l.b16 %v323
    %v919 = vunpack.c.h.b16 %v323
    %v920 = vunpack.c.l.b16 %v324
    %v921 = vunpack.c.h.b16 %v324
    %v922 = vunpack.c.l.b16 %v325
    %v923 = vunpack.c.h.b16 %v325
    %v924 = vunpack.c.l.b16 %v326
    %v925 = vunpack.c.h.b16 %v326
    %v926 = vunpack.c.l.b16 %v327
    %v927 = vunpack.c.h.b16 %v327
    %v928 = vunpack.c.l.b16 %v328
    %v929 = vunpack.c.h.b16 %v328
    %v930 = vunpack.c.l.b16 %v329
    %v931 = vunpack.c.h.b16 %v329
    %v932 = vunpack.c.l.b16 %v330
    %v933 = vunpack.c.h.b16 %v330
    %v934 = vunpack.c.l.b16 %v331
    %v935 = vunpack.c.h.b16 %v331
    %v936 = vunpack.c.l.b16 %v332
    %v937 = vunpack.c.h.b16 %v332
    %v938 = vunpack.c.l.b16 %v333
    %v939 = vunpack.c.h.b16 %v333
    %v940 = vunpack.c.l.b16 %v334
    %v941 = vunpack.c.h.b16 %v334
    %v942 = vunpack.c.l.b16 %v335
    %v943 = vunpack.c.h.b16 %v335
    %v944 = vunpack.c.l.b16 %v336
    %v945 = vunpack.c.h.b16 %v336
    %v946 = vunpack.c.l.b16 %v337
    %v947 = vunpack.c.h.b16 %v337
    %v948 = vunpack.c.l.b16 %v338
    %v949 = vunpack.c.h.b16 %v338
    %v950 = vunpack.c.l.b16 %v339
    %v951 = vunpack.c.h.b16 %v339
    %v952 = vunpack.c.l.b16 %v340
    %v953 = vunpack.c.h.b16 %v340
    %v954 = vunpack.c.l.b16 %v341
    %v955 = vunpack.c.h.b16 %v341
    %v956 = vunpack.c.l.b16 %v342
    %v957 = vunpack.c.h.b16 %v342
    %v958 = vunpack.c.l.b16 %v343
    %v959 = vunpack.c.h.b16 %v343
    %v960 = vunpack.c.l.b16 %v344
    %v961 = vunpack.c.h.b16 %v344
    %v962 = vunpack.c.l.b16 %v345
    %v963 = vunpack.c.h.b16 %v345
    %v964 = vunpack.c.l.b16 %v346
    %v965 = vunpack.c.h.b16 %v346
    %v966 = vunpack.c.l.b16 %v347
    %v967 = vunpack.c.h.b16 %v347
    %v968 = vunpack.c.l.b16 %v348
    %v969 = vunpack.c.h.b16 %v348
    %v970 = vunpack.c.l.b16 %v349
    %v971 = vunpack.c.h.b16 %v349
    %v972 = vunpack.c.l.b16 %v350
    %v973 = vunpack.c.h.b16 %v350
    %v974 = vunpack.c.l.b16 %v351
    %v975 = vunpack.c.h.b16 %v351
    %v976 = vunpack.c.l.b16 %v352
    %v977 = vunpack.c.h.b16 %v352
    %v978 = vunpack.c.l.b16 %v353
    %v979 = vunpack.c.h.b16 %v353
    %v980 = vunpack.c.l.b16 %v354
    %v981 = vunpack.c.h.b16 %v354
    %v982 = vunpack.c.l.b16 %v355
    %v983 = vunpack.c.h.b16 %v355
    %v984 = vunpack.c.l.b16 %v356
    %v985 = vunpack.c.h.b16 %v356
    %v986 = vunpack.c.l.b16 %v357
    %v987 = vunpack.c.h.b16 %v357
    %v988 = vunpack.c.l.b16 %v358
    %v989 = vunpack.c.h.b16 %v358
    %v990 = vunpack.c.l.b16 %v359
    %v991 = vunpack.c.h.b16 %v359
    %v992 = vunpack.c.l.b16 %v360
    %v993 = vunpack.c.h.b16 %v360
    %v994 = vunpack.c.l.b16 %v361
    %v995 = vunpack.c.h.b16 %v361
    %v996 = vunpack.c.l.b16 %v362
    %v997 = vunpack.c.h.b16 %v362
    %v998 = vunpack.c.l.b16 %v363
    %v999 = vunpack.c.h.b16 %v363
    %v1000 = vunpack.c.l.b16 %v364
    %v1001 = vunpack.c.h.b16 %v364
    %v1002 = vunpack.c.l.b16 %v365
    %v1003 = vunpack.c.h.b16 %v365
    %v1004 = vunpack.c.l.b16 %v366
    %v1005 = vunpack.c.h.b16 %v366
    %v1006 = vunpack.c.l.b16 %v367
    %v1007 = vunpack.c.h.b16 %v367
    %v1008 = vunpack.c.l.b16 %v368
    %v1009 = vunpack.c.h.b16 %v368
    %v1010 = vunpack.c.l.b16 %v369
    %v1011 = vunpack.c.h.b16 %v369
    %v1012 = vunpack.c.l.b16 %v370
    %v1013 = vunpack.c.h.b16 %v370
    %v1014 = vunpack.c.l.b16 %v371
    %v1015 = vunpack.c.h.b16 %v371
    %v1016 = vunpack.c.l.b16 %v372
    %v1017 = vunpack.c.h.b16 %v372
    %v1018 = vunpack.c.l.b16 %v373
    %v1019 = vunpack.c.h.b16 %v373
    %v1020 = vunpack.c.l.b16 %v374
    %v1021 = vunpack.c.h.b16 %v374
    %v1022 = vunpack.c.l.b16 %v375
    %v1023 = vunpack.c.h.b16 %v375
    %v1024 = vunpack.c.l.b16 %v376
    %v1025 = vunpack.c.h.b16 %v376
    %v1026 = vunpack.c.l.b16 %v377
    %v1027 = vunpack.c.h.b16 %v377
    %v1028 = vunpack.c.l.b16 %v378
    %v1029 = vunpack.c.h.b16 %v378
    %v1030 = vunpack.c.l.b16 %v379
    %v1031 = vunpack.c.h.b16 %v379
    %v1032 = vunpack.c.l.b16 %v380
    %v1033 = vunpack.c.h.b16 %v380
    %v1034 = vunpack.c.l.b16 %v381
    %v1035 = vunpack.c.h.b16 %v381
    %v1036 = vunpack.c.l.b16 %v382
    %v1037 = vunpack.c.h.b16 %v382
    %v1038 = vunpack.c.l.b16 %v383
    %v1039 = vunpack.c.h.b16 %v383
    %v1040 = vunpack.c.l.b16 %v384
    %v1041 = vunpack.c.h.b16 %v384
    %v1042 = vunpack.c.l.b16 %v385
    %v1043 = vunpack.c.h.b16 %v385
    %v1044 = vunpack.c.l.b16 %v386
    %v1045 = vunpack.c.h.b16 %v386
    %v1046 = vunpack.c.l.b16 %v387
    %v1047 = vunpack.c.h.b16 %v387
    %v1048 = vunpack.c.l.b16 %v388
    %v1049 = vunpack.c.h.b16 %v388
    %v1050 = vunpack.c.l.b16 %v389
    %v1051 = vunpack.c.h.b16 %v389
    %v1052 = vunpack.c.l.b16 %v390
    %v1053 = vunpack.c.h.b16 %v390
    %v1054 = vunpack.c.l.b16 %v391
    %v1055 = vunpack.c.h.b16 %v391
    %v1056 = vunpack.c.l.b16 %v392
    %v1057 = vunpack.c.h.b16 %v392
    %v1058 = vunpack.c.l.b16 %v393
    %v1059 = vunpack.c.h.b16 %v393
    %v1060 = vunpack.c.l.b16 %v394
    %v1061 = vunpack.c.h.b16 %v394
    %v1062 = vunpack.c.l.b16 %v395
    %v1063 = vunpack.c.h.b16 %v395
    %v1064 = vunpack.c.l.b16 %v396
    %v1065 = vunpack.c.h.b16 %v396
    %v1066 = vunpack.c.l.b16 %v397
    %v1067 = vunpack.c.h.b16 %v397
    %v1068 = vunpack.c.l.b16 %v398
    %v1069 = vunpack.c.h.b16 %v398
    %v1070 = vunpack.c.l.b16 %v399
    %v1071 = vunpack.c.h.b16 %v399
    %v1072 = vunpack.c.l.b16 %v400
    %v1073 = vunpack.c.h.b16 %v400
    %v1074 = vunpack.c.l.b16 %v401
    %v1075 = vunpack.c.h.b16 %v401
    %v1076 = vunpack.c.l.b16 %v402
    %v1077 = vunpack.c.h.b16 %v402
    %v1078 = vunpack.c.l.b16 %v403
    %v1079 = vunpack.c.h.b16 %v403
    %v1080 = vunpack.c.l.b16 %v404
    %v1081 = vunpack.c.h.b16 %v404
    %v1082 = vunpack.c.l.b16 %v405
    %v1083 = vunpack.c.h.b16 %v405
    %v1084 = vunpack.c.l.b16 %v406
    %v1085 = vunpack.c.h.b16 %v406
    %v1086 = vunpack.c.l.b16 %v407
    %v1087 = vunpack.c.h.b16 %v407
    %v1088 = vunpack.c.l.b16 %v408
    %v1089 = vunpack.c.h.b16 %v408
    %v1090 = vunpack.c.l.b16 %v409
    %v1091 = vunpack.c.h.b16 %v409
    %v1092 = vunpack.c.l.b16 %v410
    %v1093 = vunpack.c.h.b16 %v410
    %v1094 = vunpack.c.l.b16 %v411
    %v1095 = vunpack.c.h.b16 %v411
    %v1096 = vunpack.c.l.b16 %v412
    %v1097 = vunpack.c.h.b16 %v412
    %v1098 = vunpack.c.l.b16 %v413
    %v1099 = vunpack.c.h.b16 %v413
    %v1100 = vunpack.c.l.b16 %v414
    %v1101 = vunpack.c.h.b16 %v414
    %v1102 = vunpack.c.l.b16 %v415
    %v1103 = vunpack.c.h.b16 %v415
    %v1104 = vunpack.c.l.b16 %v416
    %v1105 = vunpack.c.h.b16 %v416
    %v1106 = vunpack.c.l.b16 %v417
    %v1107 = vunpack.c.h.b16 %v417
    %v1108 = vunpack.c.l.b16 %v418
    %v1109 = vunpack.c.h.b16 %v418
    %v1110 = vunpack.c.l.b16 %v419
    %v1111 = vunpack.c.h.b16 %v419
    %v1112 = vunpack.c.l.b16 %v420
    %v1113 = vunpack.c.h.b16 %v420
    %v1114 = vunpack.c.l.b16 %v421
    %v1115 = vunpack.c.h.b16 %v421
    %v1116 = vunpack.c.l.b16 %v422
    %v1117 = vunpack.c.h.b16 %v422
    %v1118 = vunpack.c.l.b16 %v423
    %v1119 = vunpack.c.h.b16 %v423
    %v1120 = vunpack.c.l.b16 %v424
    %v1121 = vunpack.c.h.b16 %v424
    %v1122 = vunpack.c.l.b16 %v425
    %v1123 = vunpack.c.h.b16 %v425
    %v1124 = vunpack.c.l.b16 %v426
    %v1125 = vunpack.c.h.b16 %v426
    %v1126 = vunpack.c.l.b16 %v427
    %v1127 = vunpack.c.h.b16 %v427
    %v1128 = vunpack.c.l.b16 %v428
    %v1129 = vunpack.c.h.b16 %v428
    %v1130 = vunpack.c.l.b16 %v429
    %v1131 = vunpack.c.h.b16 %v429
    %v1132 = vunpack.c.l.b16 %v430
    %v1133 = vunpack.c.h.b16 %v430
    %v1134 = vunpack.c.l.b16 %v431
    %v1135 = vunpack.c.h.b16 %v431
    %v1136 = vunpack.c.l.b16 %v432
    %v1137 = vunpack.c.h.b16 %v432
    %v1138 = vunpack.c.l.b16 %v433
    %v1139 = vunpack.c.h.b16 %v433
    %v1140 = vunpack.c.l.b16 %v434
    %v1141 = vunpack.c.h.b16 %v434
    %v1142 = vunpack.c.l.b16 %v435
    %v1143 = vunpack.c.h.b16 %v435
    %v1144 = vunpack.c.l.b16 %v436
    %v1145 = vunpack.c.h.b16 %v436
    %v1146 = vunpack.c.l.b16 %v437
    %v1147 = vunpack.c.h.b16 %v437
    %v1148 = vunpack.c.l.b16 %v438
    %v1149 = vunpack.c.h.b16 %v438
    %v1150 = vunpack.c.l.b16 %v439
    %v1151 = vunpack.c.h.b16 %v439
    %v1152 = vunpack.c.l.b16 %v440
    %v1153 = vunpack.c.h.b16 %v440
    %v1154 = vunpack.c.l.b16 %v441
    %v1155 = vunpack.c.h.b16 %v441
    %v1156 = vunpack.c.l.b16 %v442
    %v1157 = vunpack.c.h.b16 %v442
    %v1158 = vunpack.c.l.b16 %v443
    %v1159 = vunpack.c.h.b16 %v443
    %v1160 = vunpack.c.l.b16 %v444
    %v1161 = vunpack.c.h.b16 %v444
    %v1162 = vunpack.c.l.b16 %v445
    %v1163 = vunpack.c.h.b16 %v445
    %v1164 = vunpack.c.l.b16 %v446
    %v1165 = vunpack.c.h.b16 %v446
    %v1166 = vunpack.c.l.b16 %v447
    %v1167 = vunpack.c.h.b16 %v447
    %v1168 = vunpack.c.l.b16 %v448
    %v1169 = vunpack.c.h.b16 %v448
    %v1170 = vunpack.c.l.b16 %v449
    %v1171 = vunpack.c.h.b16 %v449
    %v1172 = vunpack.c.l.b16 %v450
    %v1173 = vunpack.c.h.b16 %v450
    %v1174 = vunpack.c.l.b16 %v451
    %v1175 = vunpack.c.h.b16 %v451
    %v1176 = vunpack.c.l.b16 %v452
    %v1177 = vunpack.c.h.b16 %v452
    %v1178 = vunpack.c.l.b16 %v453
    %v1179 = vunpack.c.h.b16 %v453
    %v1180 = vunpack.c.l.b16 %v454
    %v1181 = vunpack.c.h.b16 %v454
    %v1182 = vunpack.c.l.b16 %v455
    %v1183 = vunpack.c.h.b16 %v455
    %v1184 = vunpack.c.l.b16 %v456
    %v1185 = vunpack.c.h.b16 %v456
    %v1186 = vunpack.c.l.b16 %v457
    %v1187 = vunpack.c.h.b16 %v457
    %v1188 = vunpack.c.l.b16 %v458
    %v1189 = vunpack.c.h.b16 %v458
    %v1190 = vunpack.c.l.b16 %v459
    %v1191 = vunpack.c.h.b16 %v459
    %v1192 = vunpack.c.l.b16 %v460
    %v1193 = vunpack.c.h.b16 %v460
    %v1194 = vunpack.c.l.b16 %v461
    %v1195 = vunpack.c.h.b16 %v461
    %v1196 = vunpack.c.l.b16 %v462
    %v1197 = vunpack.c.h.b16 %v462
    %v1198 = vunpack.c.l.b16 %v463
    %v1199 = vunpack.c.h.b16 %v463
    %v1200 = vunpack.c.l.b16 %v464
    %v1201 = vunpack.c.h.b16 %v464
    %v1202 = vunpack.c.l.b16 %v465
    %v1203 = vunpack.c.h.b16 %v465
    %v1204 = vunpack.c.l.b16 %v466
    %v1205 = vunpack.c.h.b16 %v466
    %v1206 = vunpack.c.l.b16 %v467
    %v1207 = vunpack.c.h.b16 %v467
    %v1208 = vunpack.c.l.b16 %v468
    %v1209 = vunpack.c.h.b16 %v468
    %v1210 = vunpack.c.l.b16 %v469
    %v1211 = vunpack.c.h.b16 %v469
    %v1212 = vunpack.c.l.b16 %v470
    %v1213 = vunpack.c.h.b16 %v470
    %v1214 = vunpack.c.l.b16 %v471
    %v1215 = vunpack.c.h.b16 %v471
    %v1216 = vunpack.c.l.b16 %v472
    %v1217 = vunpack.c.h.b16 %v472
    %v1218 = vunpack.c.l.b16 %v473
    %v1219 = vunpack.c.h.b16 %v473
    %v1220 = vunpack.c.l.b16 %v474
    %v1221 = vunpack.c.h.b16 %v474
    %v1222 = vunpack.c.l.b16 %v475
    %v1223 = vunpack.c.h.b16 %v475
    %v1224 = vunpack.c.l.b16 %v476
    %v1225 = vunpack.c.h.b16 %v476
    %v1226 = vunpack.c.l.b16 %v477
    %v1227 = vunpack.c.h.b16 %v477
    %v1228 = vunpack.c.l.b16 %v478
    %v1229 = vunpack.c.h.b16 %v478
    %v1230 = vunpack.c.l.b16 %v479
    %v1231 = vunpack.c.h.b16 %v479
    %v1232 = vunpack.c.l.b16 %v480
    %v1233 = vunpack.c.h.b16 %v480
    %v1234 = vunpack.c.l.b16 %v481
    %v1235 = vunpack.c.h.b16 %v481
    %v1236 = vunpack.c.l.b16 %v482
    %v1237 = vunpack.c.h.b16 %v482
    %v1238 = vunpack.c.l.b16 %v483
    %v1239 = vunpack.c.h.b16 %v483
    %v1240 = vunpack.c.l.b16 %v484
    %v1241 = vunpack.c.h.b16 %v484
    %v1242 = vunpack.c.l.b16 %v485
    %v1243 = vunpack.c.h.b16 %v485
    %v1244 = vunpack.c.l.b16 %v486
    %v1245 = vunpack.c.h.b16 %v486
    %v1246 = vunpack.c.l.b16 %v487
    %v1247 = vunpack.c.h.b16 %v487
    %v1248 = vunpack.c.l.b16 %v488
    %v1249 = vunpack.c.h.b16 %v488
    %v1250 = vunpack.c.l.b16 %v489
    %v1251 = vunpack.c.h.b16 %v489
    %v1252 = vunpack.c.l.b16 %v490
    %v1253 = vunpack.c.h.b16 %v490
    %v1254 = vunpack.c.l.b16 %v491
    %v1255 = vunpack.c.h.b16 %v491
    %v1256 = vunpack.c.l.b16 %v492
    %v1257 = vunpack.c.h.b16 %v492
    %v1258 = vunpack.c.l.b16 %v493
    %v1259 = vunpack.c.h.b16 %v493
    %v1260 = vunpack.c.l.b16 %v494
    %v1261 = vunpack.c.h.b16 %v494
    %v1262 = vunpack.c.l.b16 %v495
    %v1263 = vunpack.c.h.b16 %v495
    %v1264 = vunpack.c.l.b16 %v496
    %v1265 = vunpack.c.h.b16 %v496
    %v1266 = vunpack.c.l.b16 %v497
    %v1267 = vunpack.c.h.b16 %v497
    %v1268 = vunpack.c.l.b16 %v498
    %v1269 = vunpack.c.h.b16 %v498
    %v1270 = vunpack.c.l.b16 %v499
    %v1271 = vunpack.c.h.b16 %v499
    %v1272 = vunpack.c.l.b16 %v500
    %v1273 = vunpack.c.h.b16 %v500
    %v1274 = vunpack.c.l.b16 %v501
    %v1275 = vunpack.c.h.b16 %v501
    %v1276 = vunpack.c.l.b16 %v502
    %v1277 = vunpack.c.h.b16 %v502
    %v1278 = vunpack.c.l.b16 %v503
    %v1279 = vunpack.c.h.b16 %v503
    %v1280 = vunpack.c.l.b16 %v504
    %v1281 = vunpack.c.h.b16 %v504
    %v1282 = vunpack.c.l.b16 %v505
    %v1283 = vunpack.c.h.b16 %v505
    %v1284 = vunpack.c.l.b16 %v506
    %v1285 = vunpack.c.h.b16 %v506
    %v1286 = vunpack.c.l.b16 %v507
    %v1287 = vunpack.c.h.b16 %v507
    %v1288 = vunpack.c.l.b16 %v508
    %v1289 = vunpack.c.h.b16 %v508
    %v1290 = vunpack.c.l.b16 %v509
    %v1291 = vunpack.c.h.b16 %v509
    %v1292 = vunpack.c.l.b16 %v510
    %v1293 = vunpack.c.h.b16 %v510
    %v1294 = vunpack.c.l.b16 %v511
    %v1295 = vunpack.c.h.b16 %v511
    %v1296 = vunpack.c.l.b16 %v512
    %v1297 = vunpack.c.h.b16 %v512
    %v1298 = vunpack.c.l.b16 %v513
    %v1299 = vunpack.c.h.b16 %v513
    %v1300 = vunpack.c.l.b16 %v514
    %v1301 = vunpack.c.h.b16 %v514
    %v1302 = vunpack.c.l.b16 %v515
    %v1303 = vunpack.c.h.b16 %v515
    %v1304 = vunpack.c.l.b16 %v516
    %v1305 = vunpack.c.h.b16 %v516
    %v1306 = vunpack.c.l.b16 %v517
    %v1307 = vunpack.c.h.b16 %v517
    %v1308 = vpack.c.b16 %v800, %v796
    %v1309 = vpack.c.b16 %v801, %v797
    %v1310 = vpack.c.b16 %v802, %v798
    %v1311 = vpack.c.b16 %v803, %v799
    %v1312 = vpack.c.b16 %v808, %v804
    %v1313 = vpack.c.b16 %v809, %v805
    %v1314 = vpack.c.b16 %v810, %v806
    %v1315 = vpack.c.b16 %v811, %v807
    %v1316 = vpack.c.b16 %v816, %v812
    %v1317 = vpack.c.b16 %v817, %v813
    %v1318 = vpack.c.b16 %v818, %v814
    %v1319 = vpack.c.b16 %v819, %v815
    %v1320 = vpack.c.b16 %v824, %v820
    %v1321 = vpack.c.b16 %v825, %v821
    %v1322 = vpack.c.b16 %v826, %v822
    %v1323 = vpack.c.b16 %v827, %v823
    %v1324 = vpack.c.b16 %v832, %v828
    %v1325 = vpack.c.b16 %v833, %v829
    %v1326 = vpack.c.b16 %v834, %v830
    %v1327 = vpack.c.b16 %v835, %v831
    %v1328 = vpack.c.b16 %v840, %v836
    %v1329 = vpack.c.b16 %v841, %v837
    %v1330 = vpack.c.b16 %v842, %v838
    %v1331 = vpack.c.b16 %v843, %v839
    %v1332 = vpack.c.b16 %v848, %v844
    %v1333 = vpack.c.b16 %v849, %v845
    %v1334 = vpack.c.b16 %v850, %v846
    %v1335 = vpack.c.b16 %v851, %v847
    %v1336 = vpack.c.b16 %v856, %v852
    %v1337 = vpack.c.b16 %v857, %v853
    %v1338 = vpack.c.b16 %v858, %v854
    %v1339 = vpack.c.b16 %v859, %v855
    %v1340 = vpack.c.b16 %v864, %v860
    %v1341 = vpack.c.b16 %v865, %v861
    %v1342 = vpack.c.b16 %v866, %v862
    %v1343 = vpack.c.b16 %v867, %v863
    %v1344 = vpack.c.b16 %v872, %v868
    %v1345 = vpack.c.b16 %v873, %v869
    %v1346 = vpack.c.b16 %v874, %v870
    %v1347 = vpack.c.b16 %v875, %v871
    %v1348 = vpack.c.b16 %v880, %v876
    %v1349 = vpack.c.b16 %v881, %v877
    %v1350 = vpack.c.b16 %v882, %v878
    %v1351 = vpack.c.b16 %v883, %v879
    %v1352 = vpack.c.b16 %v888, %v884
    %v1353 = vpack.c.b16 %v889, %v885
    %v1354 = vpack.c.b16 %v890, %v886
    %v1355 = vpack.c.b16 %v891, %v887
    %v1356 = vpack.c.b16 %v896, %v892
    %v1357 = vpack.c.b16 %v897, %v893
    %v1358 = vpack.c.b16 %v898, %v894
    %v1359 = vpack.c.b16 %v899, %v895
    %v1360 = vpack.c.b16 %v904, %v900
    %v1361 = vpack.c.b16 %v905, %v901
    %v1362 = vpack.c.b16 %v906, %v902
    %v1363 = vpack.c.b16 %v907, %v903
    %v1364 = vpack.c.b16 %v912, %v908
    %v1365 = vpack.c.b16 %v913, %v909
    %v1366 = vpack.c.b16 %v914, %v910
    %v1367 = vpack.c.b16 %v915, %v911
    %v1368 = vpack.c.b16 %v920, %v916
    %v1369 = vpack.c.b16 %v921, %v917
    %v1370 = vpack.c.b16 %v922, %v918
    %v1371 = vpack.c.b16 %v923, %v919
    %v1372 = vpack.c.b16 %v928, %v924
    %v1373 = vpack.c.b16 %v929, %v925
    %v1374 = vpack.c.b16 %v930, %v926
    %v1375 = vpack.c.b16 %v931, %v927
    %v1376 = vpack.c.b16 %v936, %v932
    %v1377 = vpack.c.b16 %v937, %v933
    %v1378 = vpack.c.b16 %v938, %v934
    %v1379 = vpack.c.b16 %v939, %v935
    %v1380 = vpack.c.b16 %v944, %v940
    %v1381 = vpack.c.b16 %v945, %v941
    %v1382 = vpack.c.b16 %v946, %v942
    %v1383 = vpack.c.b16 %v947, %v943
    %v1384 = vpack.c.b16 %v952, %v948
    %v1385 = vpack.c.b16 %v953, %v949
    %v1386 = vpack.c.b16 %v954, %v950
    %v1387 = vpack.c.b16 %v955, %v951
    %v1388 = vpack.c.b16 %v960, %v956
    %v1389 = vpack.c.b16 %v961, %v957
    %v1390 = vpack.c.b16 %v962, %v958
    %v1391 = vpack.c.b16 %v963, %v959
    %v1392 = vpack.c.b16 %v968, %v964
    %v1393 = vpack.c.b16 %v969, %v965
    %v1394 = vpack.c.b16 %v970, %v966
    %v1395 = vpack.c.b16 %v971, %v967
    %v1396 = vpack.c.b16 %v976, %v972
    %v1397 = vpack.c.b16 %v977, %v973
    %v1398 = vpack.c.b16 %v978, %v974
    %v1399 = vpack.c.b16 %v979, %v975
    %v1400 = vpack.c.b16 %v984, %v980
    %v1401 = vpack.c.b16 %v985, %v981
    %v1402 = vpack.c.b16 %v986, %v982
    %v1403 = vpack.c.b16 %v987, %v983
    %v1404 = vpack.c.b16 %v992, %v988
    %v1405 = vpack.c.b16 %v993, %v989
    %v1406 = vpack.c.b16 %v994, %v990
    %v1407 = vpack.c.b16 %v995, %v991
    %v1408 = vpack.c.b16 %v1000, %v996
    %v1409 = vpack.c.b16 %v1001, %v997
    %v1410 = vpack.c.b16 %v1002, %v998
    %v1411 = vpack.c.b16 %v1003, %v999
    %v1412 = vpack.c.b16 %v1008, %v1004
    %v1413 = vpack.c.b16 %v1009, %v1005
    %v1414 = vpack.c.b16 %v1010, %v1006
    %v1415 = vpack.c.b16 %v1011, %v1007
    %v1416 = vpack.c.b16 %v1016, %v1012
    %v1417 = vpack.c.b16 %v1017, %v1013
    %v1418 = vpack.c.b16 %v1018, %v1014
    %v1419 = vpack.c.b16 %v1019, %v1015
    %v1420 = vpack.c.b16 %v1024, %v1020
    %v1421 = vpack.c.b16 %v1025, %v1021
    %v1422 = vpack.c.b16 %v1026, %v1022
    %v1423 = vpack.c.b16 %v1027, %v1023
    %v1424 = vpack.c.b16 %v1032, %v1028
    %v1425 = vpack.c.b16 %v1033, %v1029
    %v1426 = vpack.c.b16 %v1034, %v1030
    %v1427 = vpack.c.b16 %v1035, %v1031
    %v1428 = vpack.c.b16 %v1040, %v1036
    %v1429 = vpack.c.b16 %v1041, %v1037
    %v1430 = vpack.c.b16 %v1042, %v1038
    %v1431 = vpack.c.b16 %v1043, %v1039
    %v1432 = vpack.c.b16 %v1048, %v1044
    %v1433 = vpack.c.b16 %v1049, %v1045
    %v1434 = vpack.c.b16 %v1050, %v1046
    %v1435 = vpack.c.b16 %v1051, %v1047
    %v1436 = vpack.c.b16 %v1056, %v1052
    %v1437 = vpack.c.b16 %v1057, %v1053
    %v1438 = vpack.c.b16 %v1058, %v1054
    %v1439 = vpack.c.b16 %v1059, %v1055
    %v1440 = vpack.c.b16 %v1064, %v1060
    %v1441 = vpack.c.b16 %v1065, %v1061
    %v1442 = vpack.c.b16 %v1066, %v1062
    %v1443 = vpack.c.b16 %v1067, %v1063
    %v1444 = vpack.c.b16 %v1072, %v1068
    %v1445 = vpack.c.b16 %v1073, %v1069
    %v1446 = vpack.c.b16 %v1074, %v1070
    %v1447 = vpack.c.b16 %v1075, %v1071
    %v1448 = vpack.c.b16 %v1080, %v1076
    %v1449 = vpack.c.b16 %v1081, %v1077
    %v1450 = vpack.c.b16 %v1082, %v1078
    %v1451 = vpack.c.b16 %v1083, %v1079
    %v1452 = vpack.c.b16 %v1088, %v1084
    %v1453 = vpack.c.b16 %v1089, %v1085
    %v1454 = vpack.c.b16 %v1090, %v1086
    %v1455 = vpack.c.b16 %v1091, %v1087
    %v1456 = vpack.c.b16 %v1096, %v1092
    %v1457 = vpack.c.b16 %v1097, %v1093
    %v1458 = vpack.c.b16 %v1098, %v1094
    %v1459 = vpack.c.b16 %v1099, %v1095
    %v1460 = vpack.c.b16 %v1104, %v1100
    %v1461 = vpack.c.b16 %v1105, %v1101
    %v1462 = vpack.c.b16 %v1106, %v1102
    %v1463 = vpack.c.b16 %v1107, %v1103
    %v1464 = vpack.c.b16 %v1112, %v1108
    %v1465 = vpack.c.b16 %v1113, %v1109
    %v1466 = vpack.c.b16 %v1114, %v1110
    %v1467 = vpack.c.b16 %v1115, %v1111
    %v1468 = vpack.c.b16 %v1120, %v1116
    %v1469 = vpack.c.b16 %v1121, %v1117
    %v1470 = vpack.c.b16 %v1122, %v1118
    %v1471 = vpack.c.b16 %v1123, %v1119
    %v1472 = vpack.c.b16 %v1128, %v1124
    %v1473 = vpack.c.b16 %v1129, %v1125
    %v1474 = vpack.c.b16 %v1130, %v1126
    %v1475 = vpack.c.b16 %v1131, %v1127
    %v1476 = vpack.c.b16 %v1136, %v1132
    %v1477 = vpack.c.b16 %v1137, %v1133
    %v1478 = vpack.c.b16 %v1138, %v1134
    %v1479 = vpack.c.b16 %v1139, %v1135
    %v1480 = vpack.c.b16 %v1144, %v1140
    %v1481 = vpack.c.b16 %v1145, %v1141
    %v1482 = vpack.c.b16 %v1146, %v1142
    %v1483 = vpack.c.b16 %v1147, %v1143
    %v1484 = vpack.c.b16 %v1152, %v1148
    %v1485 = vpack.c.b16 %v1153, %v1149
    %v1486 = vpack.c.b16 %v1154, %v1150
    %v1487 = vpack.c.b16 %v1155, %v1151
    %v1488 = vpack.c.b16 %v1160, %v1156
    %v1489 = vpack.c.b16 %v1161, %v1157
    %v1490 = vpack.c.b16 %v1162, %v1158
    %v1491 = vpack.c.b16 %v1163, %v1159
    %v1492 = vpack.c.b16 %v1168, %v1164
    %v1493 = vpack.c.b16 %v1169, %v1165
    %v1494 = vpack.c.b16 %v1170, %v1166
    %v1495 = vpack.c.b16 %v1171, %v1167
    %v1496 = vpack.c.b16 %v1176, %v1172
    %v1497 = vpack.c.b16 %v1177, %v1173
    %v1498 = vpack.c.b16 %v1178, %v1174
    %v1499 = vpack.c.b16 %v1179, %v1175
    %v1500 = vpack.c.b16 %v1184, %v1180
    %v1501 = vpack.c.b16 %v1185, %v1181
    %v1502 = vpack.c.b16 %v1186, %v1182
    %v1503 = vpack.c.b16 %v1187, %v1183
    %v1504 = vpack.c.b16 %v1192, %v1188
    %v1505 = vpack.c.b16 %v1193, %v1189
    %v1506 = vpack.c.b16 %v1194, %v1190
    %v1507 = vpack.c.b16 %v1195, %v1191
    %v1508 = vpack.c.b16 %v1200, %v1196
    %v1509 = vpack.c.b16 %v1201, %v1197
    %v1510 = vpack.c.b16 %v1202, %v1198
    %v1511 = vpack.c.b16 %v1203, %v1199
    %v1512 = vpack.c.b16 %v1208, %v1204
    %v1513 = vpack.c.b16 %v1209, %v1205
    %v1514 = vpack.c.b16 %v1210, %v1206
    %v1515 = vpack.c.b16 %v1211, %v1207
    %v1516 = vpack.c.b16 %v1216, %v1212
    %v1517 = vpack.c.b16 %v1217, %v1213
    %v1518 = vpack.c.b16 %v1218, %v1214
    %v1519 = vpack.c.b16 %v1219, %v1215
    %v1520 = vpack.c.b16 %v1224, %v1220
    %v1521 = vpack.c.b16 %v1225, %v1221
    %v1522 = vpack.c.b16 %v1226, %v1222
    %v1523 = vpack.c.b16 %v1227, %v1223
    %v1524 = vpack.c.b16 %v1232, %v1228
    %v1525 = vpack.c.b16 %v1233, %v1229
    %v1526 = vpack.c.b16 %v1234, %v1230
    %v1527 = vpack.c.b16 %v1235, %v1231
    %v1528 = vpack.c.b16 %v1240, %v1236
    %v1529 = vpack.c.b16 %v1241, %v1237
    %v1530 = vpack.c.b16 %v1242, %v1238
    %v1531 = vpack.c.b16 %v1243, %v1239
    %v1532 = vpack.c.b16 %v1248, %v1244
    %v1533 = vpack.c.b16 %v1249, %v1245
    %v1534 = vpack.c.b16 %v1250, %v1246
    %v1535 = vpack.c.b16 %v1251, %v1247
    %v1536 = vpack.c.b16 %v1256, %v1252
    %v1537 = vpack.c.b16 %v1257, %v1253
    %v1538 = vpack.c.b16 %v1258, %v1254
    %v1539 = vpack.c.b16 %v1259, %v1255
    %v1540 = vpack.c.b16 %v1264, %v1260
    %v1541 = vpack.c.b16 %v1265, %v1261
    %v1542 = vpack.c.b16 %v1266, %v1262
    %v1543 = vpack.c.b16 %v1267, %v1263
    %v1544 = vpack.c.b16 %v1272, %v1268
    %v1545 = vpack.c.b16 %v1273, %v1269
    %v1546 = vpack.c.b16 %v1274, %v1270
    %v1547 = vpack.c.b16 %v1275, %v1271
    %v1548 = vpack.c.b16 %v1280, %v1276
    %v1549 = vpack.c.b16 %v1281, %v1277
    %v1550 = vpack.c.b16 %v1282, %v1278
    %v1551 = vpack.c.b16 %v1283, %v1279
    %v1552 = vpack.c.b16 %v1288, %v1284
    %v1553 = vpack.c.b16 %v1289, %v1285
    %v1554 = vpack.c.b16 %v1290, %v1286
    %v1555 = vpack.c.b16 %v1291, %v1287
    %v1556 = vpack.c.b16 %v1296, %v1292
    %v1557 = vpack.c.b16 %v1297, %v1293
    %v1558 = vpack.c.b16 %v1298, %v1294
    %v1559 = vpack.c.b16 %v1299, %v1295
    %v1560 = vpack.c.b16 %v1304, %v1300
    %v1561 = vpack.c.b16 %v1305, %v1301
    %v1562 = vpack.c.b16 %v1306, %v1302
    %v1563 = vpack.c.b16 %v1307, %v1303
    %1820 = vmatprep.subr.bf16.mxu0 %v1337
    %1821 = vmatpush1.bf16.msra.mxu0 %v1336
    %1822 = vmatprep.subr.bf16.mxu0 %v1333
    %1823 = vmatpush1.bf16.msra.mxu0 %v1332
    %1824 = vmatprep.subr.bf16.mxu0 %v1329
    %1825 = vmatpush1.bf16.msra.mxu0 %v1328
    %1826 = vmatprep.subr.bf16.mxu0 %v1325
    %1827 = vmatpush1.bf16.msra.mxu0 %v1324
    %1828 = vmatprep.subr.bf16.mxu0 %v1321
    %1829 = vmatpush1.bf16.msra.mxu0 %v1320
    %1830 = vmatprep.subr.bf16.mxu0 %v1317
    %1831 = vmatpush1.bf16.msra.mxu0 %v1316
    %1832 = vmatprep.subr.bf16.mxu0 %v1313
    %1833 = vmatpush1.bf16.msra.mxu0 %v1312
    %1834 = vmatprep.subr.bf16.mxu0 %v1309
    %1835 = vmatpush1.bf16.msra.mxu0 %v1308
    %1836 = vmatprep.subr.bf16.mxu0 %v1369
    %1837 = vmatpush2.bf16.msra.mxu0 %v1368
    %1838 = vmatprep.subr.bf16.mxu0 %v1365
    %1839 = vmatpush2.bf16.msra.mxu0 %v1364
    %1840 = vmatprep.subr.bf16.mxu0 %v1361
    %1841 = vmatpush2.bf16.msra.mxu0 %v1360
    %1842 = vmatprep.subr.bf16.mxu0 %v1357
    %1843 = vmatpush2.bf16.msra.mxu0 %v1356
    %1844 = vmatprep.subr.bf16.mxu0 %v1353
    %1845 = vmatpush2.bf16.msra.mxu0 %v1352
    %1846 = vmatprep.subr.bf16.mxu0 %v1349
    %1847 = vmatpush2.bf16.msra.mxu0 %v1348
    %1848 = vmatprep.subr.bf16.mxu0 %v1345
    %1849 = vmatpush2.bf16.msra.mxu0 %v1344
    %1850 = vmatprep.subr.bf16.mxu0 %v1341
    %1851 = vmatpush2.bf16.msra.mxu0 %v1340
    %1852 = vmatprep.mubr.bf16.mxu0 %v199
    %1853 = vmatmul.mubr.bf16.gmra.mxu0 %v198
    %v1854 = vpop.f32.mrf.mxu0
    %v1855 = vadd.f32 %v523, %v1854
    %v1856 = vpop.f32.mrf.mxu0
    %v1857 = vadd.f32 %v527, %v1856
    %v1858 = vpop.f32.mrf.mxu0
    %v1859 = vadd.f32 %v523, %v1858
    %v1860 = vpop.f32.mrf.mxu0
    %v1861 = vadd.f32 %v527, %v1860
    %1862 = vmatprep.mubr.bf16.mxu0 %v207
    %1863 = vmatmul.mubr.bf16.gmra.mxu0 %v206
    %v1864 = vpop.f32.mrf.mxu0
    %v1865 = vadd.f32 %v523, %v1864
    %v1866 = vpop.f32.mrf.mxu0
    %v1867 = vadd.f32 %v527, %v1866
    %v1868 = vpop.f32.mrf.mxu0
    %v1869 = vadd.f32 %v523, %v1868
    %v1870 = vpop.f32.mrf.mxu0
    %v1871 = vadd.f32 %v527, %v1870
    %1872 = vmatprep.mubr.bf16.mxu0 %v215
    %1873 = vmatmul.mubr.bf16.gmra.mxu0 %v214
    %v1874 = vpop.f32.mrf.mxu0
    %v1875 = vadd.f32 %v523, %v1874
    %v1876 = vpop.f32.mrf.mxu0
    %v1877 = vadd.f32 %v527, %v1876
    %v1878 = vpop.f32.mrf.mxu0
    %v1879 = vadd.f32 %v523, %v1878
    %v1880 = vpop.f32.mrf.mxu0
    %v1881 = vadd.f32 %v527, %v1880
    %1882 = vmatprep.mubr.bf16.mxu0 %v223
    %1883 = vmatmul.mubr.bf16.gmra.mxu0 %v222
    %v1884 = vpop.f32.mrf.mxu0
    %v1885 = vadd.f32 %v523, %v1884
    %v1886 = vpop.f32.mrf.mxu0
    %v1887 = vadd.f32 %v527, %v1886
    %v1888 = vpop.f32.mrf.mxu0
    %v1889 = vadd.f32 %v523, %v1888
    %v1890 = vpop.f32.mrf.mxu0
    %v1891 = vadd.f32 %v527, %v1890
    %1892 = vmatprep.mubr.bf16.mxu0 %v231
    %1893 = vmatmul.mubr.bf16.gmra.mxu0 %v230
    %v1894 = vpop.f32.mrf.mxu0
    %v1895 = vadd.f32 %v523, %v1894
    %v1896 = vpop.f32.mrf.mxu0
    %v1897 = vadd.f32 %v527, %v1896
    %v1898 = vpop.f32.mrf.mxu0
    %v1899 = vadd.f32 %v523, %v1898
    %v1900 = vpop.f32.mrf.mxu0
    %v1901 = vadd.f32 %v527, %v1900
    %1902 = vmatprep.mubr.bf16.mxu0 %v239
    %1903 = vmatmul.mubr.bf16.gmra.mxu0 %v238
    %v1904 = vpop.f32.mrf.mxu0
    %v1905 = vadd.f32 %v523, %v1904
    %v1906 = vpop.f32.mrf.mxu0
    %v1907 = vadd.f32 %v527, %v1906
    %v1908 = vpop.f32.mrf.mxu0
    %v1909 = vadd.f32 %v523, %v1908
    %v1910 = vpop.f32.mrf.mxu0
    %v1911 = vadd.f32 %v527, %v1910
    %1912 = vmatprep.mubr.bf16.mxu0 %v247
    %1913 = vmatmul.mubr.bf16.gmra.mxu0 %v246
    %v1914 = vpop.f32.mrf.mxu0
    %v1915 = vadd.f32 %v523, %v1914
    %v1916 = vpop.f32.mrf.mxu0
    %v1917 = vadd.f32 %v527, %v1916
    %v1918 = vpop.f32.mrf.mxu0
    %v1919 = vadd.f32 %v523, %v1918
    %v1920 = vpop.f32.mrf.mxu0
    %v1921 = vadd.f32 %v527, %v1920
    %1922 = vmatprep.mubr.bf16.mxu0 %v255
    %1923 = vmatmul.mubr.bf16.gmra.mxu0 %v254
    %v1924 = vpop.f32.mrf.mxu0
    %v1925 = vadd.f32 %v523, %v1924
    %v1926 = vpop.f32.mrf.mxu0
    %v1927 = vadd.f32 %v527, %v1926
    %v1928 = vpop.f32.mrf.mxu0
    %v1929 = vadd.f32 %v523, %v1928
    %v1930 = vpop.f32.mrf.mxu0
    %v1931 = vadd.f32 %v527, %v1930
    %1932 = vdwg.mxu0
    %1933 = vmatprep.subr.bf16.mxu0 %v1401
    %1934 = vmatpush1.bf16.msra.mxu0 %v1400
    %1935 = vmatprep.subr.bf16.mxu0 %v1397
    %1936 = vmatpush1.bf16.msra.mxu0 %v1396
    %1937 = vmatprep.subr.bf16.mxu0 %v1393
    %1938 = vmatpush1.bf16.msra.mxu0 %v1392
    %1939 = vmatprep.subr.bf16.mxu0 %v1389
    %1940 = vmatpush1.bf16.msra.mxu0 %v1388
    %1941 = vmatprep.subr.bf16.mxu0 %v1385
    %1942 = vmatpush1.bf16.msra.mxu0 %v1384
    %1943 = vmatprep.subr.bf16.mxu0 %v1381
    %1944 = vmatpush1.bf16.msra.mxu0 %v1380
    %1945 = vmatprep.subr.bf16.mxu0 %v1377
    %1946 = vmatpush1.bf16.msra.mxu0 %v1376
    %1947 = vmatprep.subr.bf16.mxu0 %v1373
    %1948 = vmatpush1.bf16.msra.mxu0 %v1372
    %1949 = vmatprep.subr.bf16.mxu0 %v1433
    %1950 = vmatpush2.bf16.msra.mxu0 %v1432
    %1951 = vmatprep.subr.bf16.mxu0 %v1429
    %1952 = vmatpush2.bf16.msra.mxu0 %v1428
    %1953 = vmatprep.subr.bf16.mxu0 %v1425
    %1954 = vmatpush2.bf16.msra.mxu0 %v1424
    %1955 = vmatprep.subr.bf16.mxu0 %v1421
    %1956 = vmatpush2.bf16.msra.mxu0 %v1420
    %1957 = vmatprep.subr.bf16.mxu0 %v1417
    %1958 = vmatpush2.bf16.msra.mxu0 %v1416
    %1959 = vmatprep.subr.bf16.mxu0 %v1413
    %1960 = vmatpush2.bf16.msra.mxu0 %v1412
    %1961 = vmatprep.subr.bf16.mxu0 %v1409
    %1962 = vmatpush2.bf16.msra.mxu0 %v1408
    %1963 = vmatprep.subr.bf16.mxu0 %v1405
    %1964 = vmatpush2.bf16.msra.mxu0 %v1404
    %1965 = vmatprep.mubr.bf16.mxu0 %v201
    %1966 = vmatmul.mubr.bf16.gmra.mxu0 %v200
    %v1967 = vpop.f32.mrf.mxu0
    %v1968 = vadd.f32 %v1855, %v1967
    %v1969 = vpop.f32.mrf.mxu0
    %v1970 = vadd.f32 %v1857, %v1969
    %v1971 = vpop.f32.mrf.mxu0
    %v1972 = vadd.f32 %v1859, %v1971
    %v1973 = vpop.f32.mrf.mxu0
    %v1974 = vadd.f32 %v1861, %v1973
    %1975 = vmatprep.mubr.bf16.mxu0 %v209
    %1976 = vmatmul.mubr.bf16.gmra.mxu0 %v208
    %v1977 = vpop.f32.mrf.mxu0
    %v1978 = vadd.f32 %v1865, %v1977
    %v1979 = vpop.f32.mrf.mxu0
    %v1980 = vadd.f32 %v1867, %v1979
    %v1981 = vpop.f32.mrf.mxu0
    %v1982 = vadd.f32 %v1869, %v1981
    %v1983 = vpop.f32.mrf.mxu0
    %v1984 = vadd.f32 %v1871, %v1983
    %1985 = vmatprep.mubr.bf16.mxu0 %v217
    %1986 = vmatmul.mubr.bf16.gmra.mxu0 %v216
    %v1987 = vpop.f32.mrf.mxu0
    %v1988 = vadd.f32 %v1875, %v1987
    %v1989 = vpop.f32.mrf.mxu0
    %v1990 = vadd.f32 %v1877, %v1989
    %v1991 = vpop.f32.mrf.mxu0
    %v1992 = vadd.f32 %v1879, %v1991
    %v1993 = vpop.f32.mrf.mxu0
    %v1994 = vadd.f32 %v1881, %v1993
    %1995 = vmatprep.mubr.bf16.mxu0 %v225
    %1996 = vmatmul.mubr.bf16.gmra.mxu0 %v224
    %v1997 = vpop.f32.mrf.mxu0
    %v1998 = vadd.f32 %v1885, %v1997
    %v1999 = vpop.f32.mrf.mxu0
    %v2000 = vadd.f32 %v1887, %v1999
    %v2001 = vpop.f32.mrf.mxu0
    %v2002 = vadd.f32 %v1889, %v2001
    %v2003 = vpop.f32.mrf.mxu0
    %v2004 = vadd.f32 %v1891, %v2003
    %2005 = vmatprep.mubr.bf16.mxu0 %v233
    %2006 = vmatmul.mubr.bf16.gmra.mxu0 %v232
    %v2007 = vpop.f32.mrf.mxu0
    %v2008 = vadd.f32 %v1895, %v2007
    %v2009 = vpop.f32.mrf.mxu0
    %v2010 = vadd.f32 %v1897, %v2009
    %v2011 = vpop.f32.mrf.mxu0
    %v2012 = vadd.f32 %v1899, %v2011
    %v2013 = vpop.f32.mrf.mxu0
    %v2014 = vadd.f32 %v1901, %v2013
    %2015 = vmatprep.mubr.bf16.mxu0 %v241
    %2016 = vmatmul.mubr.bf16.gmra.mxu0 %v240
    %v2017 = vpop.f32.mrf.mxu0
    %v2018 = vadd.f32 %v1905, %v2017
    %v2019 = vpop.f32.mrf.mxu0
    %v2020 = vadd.f32 %v1907, %v2019
    %v2021 = vpop.f32.mrf.mxu0
    %v2022 = vadd.f32 %v1909, %v2021
    %v2023 = vpop.f32.mrf.mxu0
    %v2024 = vadd.f32 %v1911, %v2023
    %2025 = vmatprep.mubr.bf16.mxu0 %v249
    %2026 = vmatmul.mubr.bf16.gmra.mxu0 %v248
    %v2027 = vpop.f32.mrf.mxu0
    %v2028 = vadd.f32 %v1915, %v2027
    %v2029 = vpop.f32.mrf.mxu0
    %v2030 = vadd.f32 %v1917, %v2029
    %v2031 = vpop.f32.mrf.mxu0
    %v2032 = vadd.f32 %v1919, %v2031
    %v2033 = vpop.f32.mrf.mxu0
    %v2034 = vadd.f32 %v1921, %v2033
    %2035 = vmatprep.mubr.bf16.mxu0 %v257
    %2036 = vmatmul.mubr.bf16.gmra.mxu0 %v256
    %v2037 = vpop.f32.mrf.mxu0
    %v2038 = vadd.f32 %v1925, %v2037
    %v2039 = vpop.f32.mrf.mxu0
    %v2040 = vadd.f32 %v1927, %v2039
    %v2041 = vpop.f32.mrf.mxu0
    %v2042 = vadd.f32 %v1929, %v2041
    %v2043 = vpop.f32.mrf.mxu0
    %v2044 = vadd.f32 %v1931, %v2043
    %2045 = vdwg.mxu0
    %2046 = vmatprep.subr.bf16.mxu0 %v1465
    %2047 = vmatpush1.bf16.msra.mxu0 %v1464
    %2048 = vmatprep.subr.bf16.mxu0 %v1461
    %2049 = vmatpush1.bf16.msra.mxu0 %v1460
    %2050 = vmatprep.subr.bf16.mxu0 %v1457
    %2051 = vmatpush1.bf16.msra.mxu0 %v1456
    %2052 = vmatprep.subr.bf16.mxu0 %v1453
    %2053 = vmatpush1.bf16.msra.mxu0 %v1452
    %2054 = vmatprep.subr.bf16.mxu0 %v1449
    %2055 = vmatpush1.bf16.msra.mxu0 %v1448
    %2056 = vmatprep.subr.bf16.mxu0 %v1445
    %2057 = vmatpush1.bf16.msra.mxu0 %v1444
    %2058 = vmatprep.subr.bf16.mxu0 %v1441
    %2059 = vmatpush1.bf16.msra.mxu0 %v1440
    %2060 = vmatprep.subr.bf16.mxu0 %v1437
    %2061 = vmatpush1.bf16.msra.mxu0 %v1436
    %2062 = vmatprep.subr.bf16.mxu0 %v1497
    %2063 = vmatpush2.bf16.msra.mxu0 %v1496
    %2064 = vmatprep.subr.bf16.mxu0 %v1493
    %2065 = vmatpush2.bf16.msra.mxu0 %v1492
    %2066 = vmatprep.subr.bf16.mxu0 %v1489
    %2067 = vmatpush2.bf16.msra.mxu0 %v1488
    %2068 = vmatprep.subr.bf16.mxu0 %v1485
    %2069 = vmatpush2.bf16.msra.mxu0 %v1484
    %2070 = vmatprep.subr.bf16.mxu0 %v1481
    %2071 = vmatpush2.bf16.msra.mxu0 %v1480
    %2072 = vmatprep.subr.bf16.mxu0 %v1477
    %2073 = vmatpush2.bf16.msra.mxu0 %v1476
    %2074 = vmatprep.subr.bf16.mxu0 %v1473
    %2075 = vmatpush2.bf16.msra.mxu0 %v1472
    %2076 = vmatprep.subr.bf16.mxu0 %v1469
    %2077 = vmatpush2.bf16.msra.mxu0 %v1468
    %2078 = vmatprep.mubr.bf16.mxu0 %v203
    %2079 = vmatmul.mubr.bf16.gmra.mxu0 %v202
    %v2080 = vpop.f32.mrf.mxu0
    %v2081 = vadd.f32 %v1968, %v2080
    %v2082 = vpop.f32.mrf.mxu0
    %v2083 = vadd.f32 %v1970, %v2082
    %v2084 = vpop.f32.mrf.mxu0
    %v2085 = vadd.f32 %v1972, %v2084
    %v2086 = vpop.f32.mrf.mxu0
    %v2087 = vadd.f32 %v1974, %v2086
    %2088 = vmatprep.mubr.bf16.mxu0 %v211
    %2089 = vmatmul.mubr.bf16.gmra.mxu0 %v210
    %v2090 = vpop.f32.mrf.mxu0
    %v2091 = vadd.f32 %v1978, %v2090
    %v2092 = vpop.f32.mrf.mxu0
    %v2093 = vadd.f32 %v1980, %v2092
    %v2094 = vpop.f32.mrf.mxu0
    %v2095 = vadd.f32 %v1982, %v2094
    %v2096 = vpop.f32.mrf.mxu0
    %v2097 = vadd.f32 %v1984, %v2096
    %2098 = vmatprep.mubr.bf16.mxu0 %v219
    %2099 = vmatmul.mubr.bf16.gmra.mxu0 %v218
    %v2100 = vpop.f32.mrf.mxu0
    %v2101 = vadd.f32 %v1988, %v2100
    %v2102 = vpop.f32.mrf.mxu0
    %v2103 = vadd.f32 %v1990, %v2102
    %v2104 = vpop.f32.mrf.mxu0
    %v2105 = vadd.f32 %v1992, %v2104
    %v2106 = vpop.f32.mrf.mxu0
    %v2107 = vadd.f32 %v1994, %v2106
    %2108 = vmatprep.mubr.bf16.mxu0 %v227
    %2109 = vmatmul.mubr.bf16.gmra.mxu0 %v226
    %v2110 = vpop.f32.mrf.mxu0
    %v2111 = vadd.f32 %v1998, %v2110
    %v2112 = vpop.f32.mrf.mxu0
    %v2113 = vadd.f32 %v2000, %v2112
    %v2114 = vpop.f32.mrf.mxu0
    %v2115 = vadd.f32 %v2002, %v2114
    %v2116 = vpop.f32.mrf.mxu0
    %v2117 = vadd.f32 %v2004, %v2116
    %2118 = vmatprep.mubr.bf16.mxu0 %v235
    %2119 = vmatmul.mubr.bf16.gmra.mxu0 %v234
    %v2120 = vpop.f32.mrf.mxu0
    %v2121 = vadd.f32 %v2008, %v2120
    %v2122 = vpop.f32.mrf.mxu0
    %v2123 = vadd.f32 %v2010, %v2122
    %v2124 = vpop.f32.mrf.mxu0
    %v2125 = vadd.f32 %v2012, %v2124
    %v2126 = vpop.f32.mrf.mxu0
    %v2127 = vadd.f32 %v2014, %v2126
    %2128 = vmatprep.mubr.bf16.mxu0 %v243
    %2129 = vmatmul.mubr.bf16.gmra.mxu0 %v242
    %v2130 = vpop.f32.mrf.mxu0
    %v2131 = vadd.f32 %v2018, %v2130
    %v2132 = vpop.f32.mrf.mxu0
    %v2133 = vadd.f32 %v2020, %v2132
    %v2134 = vpop.f32.mrf.mxu0
    %v2135 = vadd.f32 %v2022, %v2134
    %v2136 = vpop.f32.mrf.mxu0
    %v2137 = vadd.f32 %v2024, %v2136
    %2138 = vmatprep.mubr.bf16.mxu0 %v251
    %2139 = vmatmul.mubr.bf16.gmra.mxu0 %v250
    %v2140 = vpop.f32.mrf.mxu0
    %v2141 = vadd.f32 %v2028, %v2140
    %v2142 = vpop.f32.mrf.mxu0
    %v2143 = vadd.f32 %v2030, %v2142
    %v2144 = vpop.f32.mrf.mxu0
    %v2145 = vadd.f32 %v2032, %v2144
    %v2146 = vpop.f32.mrf.mxu0
    %v2147 = vadd.f32 %v2034, %v2146
    %2148 = vmatprep.mubr.bf16.mxu0 %v259
    %2149 = vmatmul.mubr.bf16.gmra.mxu0 %v258
    %v2150 = vpop.f32.mrf.mxu0
    %v2151 = vadd.f32 %v2038, %v2150
    %v2152 = vpop.f32.mrf.mxu0
    %v2153 = vadd.f32 %v2040, %v2152
    %v2154 = vpop.f32.mrf.mxu0
    %v2155 = vadd.f32 %v2042, %v2154
    %v2156 = vpop.f32.mrf.mxu0
    %v2157 = vadd.f32 %v2044, %v2156
    %2158 = vdwg.mxu0
    %2159 = vmatprep.subr.bf16.mxu0 %v1529
    %2160 = vmatpush1.bf16.msra.mxu0 %v1528
    %2161 = vmatprep.subr.bf16.mxu0 %v1525
    %2162 = vmatpush1.bf16.msra.mxu0 %v1524
    %2163 = vmatprep.subr.bf16.mxu0 %v1521
    %2164 = vmatpush1.bf16.msra.mxu0 %v1520
    %2165 = vmatprep.subr.bf16.mxu0 %v1517
    %2166 = vmatpush1.bf16.msra.mxu0 %v1516
    %2167 = vmatprep.subr.bf16.mxu0 %v1513
    %2168 = vmatpush1.bf16.msra.mxu0 %v1512
    %2169 = vmatprep.subr.bf16.mxu0 %v1509
    %2170 = vmatpush1.bf16.msra.mxu0 %v1508
    %2171 = vmatprep.subr.bf16.mxu0 %v1505
    %2172 = vmatpush1.bf16.msra.mxu0 %v1504
    %2173 = vmatprep.subr.bf16.mxu0 %v1501
    %2174 = vmatpush1.bf16.msra.mxu0 %v1500
    %2175 = vmatprep.subr.bf16.mxu0 %v1561
    %2176 = vmatpush2.bf16.msra.mxu0 %v1560
    %2177 = vmatprep.subr.bf16.mxu0 %v1557
    %2178 = vmatpush2.bf16.msra.mxu0 %v1556
    %2179 = vmatprep.subr.bf16.mxu0 %v1553
    %2180 = vmatpush2.bf16.msra.mxu0 %v1552
    %2181 = vmatprep.subr.bf16.mxu0 %v1549
    %2182 = vmatpush2.bf16.msra.mxu0 %v1548
    %2183 = vmatprep.subr.bf16.mxu0 %v1545
    %2184 = vmatpush2.bf16.msra.mxu0 %v1544
    %2185 = vmatprep.subr.bf16.mxu0 %v1541
    %2186 = vmatpush2.bf16.msra.mxu0 %v1540
    %2187 = vmatprep.subr.bf16.mxu0 %v1537
    %2188 = vmatpush2.bf16.msra.mxu0 %v1536
    %2189 = vmatprep.subr.bf16.mxu0 %v1533
    %2190 = vmatpush2.bf16.msra.mxu0 %v1532
    %2191 = vmatprep.mubr.bf16.mxu0 %v205
    %2192 = vmatmul.mubr.bf16.gmra.mxu0 %v204
    %v2193 = vpop.f32.mrf.mxu0
    %v2194 = vadd.f32 %v2081, %v2193
    %v2195 = vpop.f32.mrf.mxu0
    %v2196 = vadd.f32 %v2083, %v2195
    %v2197 = vpop.f32.mrf.mxu0
    %v2198 = vadd.f32 %v2085, %v2197
    %v2199 = vpop.f32.mrf.mxu0
    %v2200 = vadd.f32 %v2087, %v2199
    %2201 = vmatprep.mubr.bf16.mxu0 %v213
    %2202 = vmatmul.mubr.bf16.gmra.mxu0 %v212
    %v2203 = vpop.f32.mrf.mxu0
    %v2204 = vadd.f32 %v2091, %v2203
    %v2205 = vpop.f32.mrf.mxu0
    %v2206 = vadd.f32 %v2093, %v2205
    %v2207 = vpop.f32.mrf.mxu0
    %v2208 = vadd.f32 %v2095, %v2207
    %v2209 = vpop.f32.mrf.mxu0
    %v2210 = vadd.f32 %v2097, %v2209
    %2211 = vmatprep.mubr.bf16.mxu0 %v221
    %2212 = vmatmul.mubr.bf16.gmra.mxu0 %v220
    %v2213 = vpop.f32.mrf.mxu0
    %v2214 = vadd.f32 %v2101, %v2213
    %v2215 = vpop.f32.mrf.mxu0
    %v2216 = vadd.f32 %v2103, %v2215
    %v2217 = vpop.f32.mrf.mxu0
    %v2218 = vadd.f32 %v2105, %v2217
    %v2219 = vpop.f32.mrf.mxu0
    %v2220 = vadd.f32 %v2107, %v2219
    %2221 = vmatprep.mubr.bf16.mxu0 %v229
    %2222 = vmatmul.mubr.bf16.gmra.mxu0 %v228
    %v2223 = vpop.f32.mrf.mxu0
    %v2224 = vadd.f32 %v2111, %v2223
    %v2225 = vpop.f32.mrf.mxu0
    %v2226 = vadd.f32 %v2113, %v2225
    %v2227 = vpop.f32.mrf.mxu0
    %v2228 = vadd.f32 %v2115, %v2227
    %v2229 = vpop.f32.mrf.mxu0
    %v2230 = vadd.f32 %v2117, %v2229
    %2231 = vmatprep.mubr.bf16.mxu0 %v237
    %2232 = vmatmul.mubr.bf16.gmra.mxu0 %v236
    %v2233 = vpop.f32.mrf.mxu0
    %v2234 = vadd.f32 %v2121, %v2233
    %v2235 = vpop.f32.mrf.mxu0
    %v2236 = vadd.f32 %v2123, %v2235
    %v2237 = vpop.f32.mrf.mxu0
    %v2238 = vadd.f32 %v2125, %v2237
    %v2239 = vpop.f32.mrf.mxu0
    %v2240 = vadd.f32 %v2127, %v2239
    %2241 = vmatprep.mubr.bf16.mxu0 %v245
    %2242 = vmatmul.mubr.bf16.gmra.mxu0 %v244
    %v2243 = vpop.f32.mrf.mxu0
    %v2244 = vadd.f32 %v2131, %v2243
    %v2245 = vpop.f32.mrf.mxu0
    %v2246 = vadd.f32 %v2133, %v2245
    %v2247 = vpop.f32.mrf.mxu0
    %v2248 = vadd.f32 %v2135, %v2247
    %v2249 = vpop.f32.mrf.mxu0
    %v2250 = vadd.f32 %v2137, %v2249
    %2251 = vmatprep.mubr.bf16.mxu0 %v253
    %2252 = vmatmul.mubr.bf16.gmra.mxu0 %v252
    %v2253 = vpop.f32.mrf.mxu0
    %v2254 = vadd.f32 %v2141, %v2253
    %v2255 = vpop.f32.mrf.mxu0
    %v2256 = vadd.f32 %v2143, %v2255
    %v2257 = vpop.f32.mrf.mxu0
    %v2258 = vadd.f32 %v2145, %v2257
    %v2259 = vpop.f32.mrf.mxu0
    %v2260 = vadd.f32 %v2147, %v2259
    %2261 = vmatprep.mubr.bf16.mxu0 %v261
    %2262 = vmatmul.mubr.bf16.gmra.mxu0 %v260
    %v2263 = vpop.f32.mrf.mxu0
    %v2264 = vadd.f32 %v2151, %v2263
    %v2265 = vpop.f32.mrf.mxu0
    %v2266 = vadd.f32 %v2153, %v2265
    %v2267 = vpop.f32.mrf.mxu0
    %v2268 = vadd.f32 %v2155, %v2267
    %v2269 = vpop.f32.mrf.mxu0
    %v2270 = vadd.f32 %v2157, %v2269
    %2271 = vdwg.mxu0
    %2272 = vmatprep.subr.bf16.mxu0 %v1339
    %2273 = vmatpush1.bf16.msra.mxu0 %v1338
    %2274 = vmatprep.subr.bf16.mxu0 %v1335
    %2275 = vmatpush1.bf16.msra.mxu0 %v1334
    %2276 = vmatprep.subr.bf16.mxu0 %v1331
    %2277 = vmatpush1.bf16.msra.mxu0 %v1330
    %2278 = vmatprep.subr.bf16.mxu0 %v1327
    %2279 = vmatpush1.bf16.msra.mxu0 %v1326
    %2280 = vmatprep.subr.bf16.mxu0 %v1323
    %2281 = vmatpush1.bf16.msra.mxu0 %v1322
    %2282 = vmatprep.subr.bf16.mxu0 %v1319
    %2283 = vmatpush1.bf16.msra.mxu0 %v1318
    %2284 = vmatprep.subr.bf16.mxu0 %v1315
    %2285 = vmatpush1.bf16.msra.mxu0 %v1314
    %2286 = vmatprep.subr.bf16.mxu0 %v1311
    %2287 = vmatpush1.bf16.msra.mxu0 %v1310
    %2288 = vmatprep.subr.bf16.mxu0 %v1371
    %2289 = vmatpush2.bf16.msra.mxu0 %v1370
    %2290 = vmatprep.subr.bf16.mxu0 %v1367
    %2291 = vmatpush2.bf16.msra.mxu0 %v1366
    %2292 = vmatprep.subr.bf16.mxu0 %v1363
    %2293 = vmatpush2.bf16.msra.mxu0 %v1362
    %2294 = vmatprep.subr.bf16.mxu0 %v1359
    %2295 = vmatpush2.bf16.msra.mxu0 %v1358
    %2296 = vmatprep.subr.bf16.mxu0 %v1355
    %2297 = vmatpush2.bf16.msra.mxu0 %v1354
    %2298 = vmatprep.subr.bf16.mxu0 %v1351
    %2299 = vmatpush2.bf16.msra.mxu0 %v1350
    %2300 = vmatprep.subr.bf16.mxu0 %v1347
    %2301 = vmatpush2.bf16.msra.mxu0 %v1346
    %2302 = vmatprep.subr.bf16.mxu0 %v1343
    %2303 = vmatpush2.bf16.msra.mxu0 %v1342
    %2304 = vmatprep.mubr.bf16.mxu0 %v199
    %2305 = vmatmul.mubr.bf16.gmra.mxu0 %v198
    %v2306 = vpop.f32.mrf.mxu0
    %v2307 = vadd.f32 %v531, %v2306
    %v2308 = vpop.f32.mrf.mxu0
    %v2309 = vadd.f32 %v535, %v2308
    %v2310 = vpop.f32.mrf.mxu0
    %v2311 = vadd.f32 %v531, %v2310
    %v2312 = vpop.f32.mrf.mxu0
    %v2313 = vadd.f32 %v535, %v2312
    %2314 = vmatprep.mubr.bf16.mxu0 %v207
    %2315 = vmatmul.mubr.bf16.gmra.mxu0 %v206
    %v2316 = vpop.f32.mrf.mxu0
    %v2317 = vadd.f32 %v531, %v2316
    %v2318 = vpop.f32.mrf.mxu0
    %v2319 = vadd.f32 %v535, %v2318
    %v2320 = vpop.f32.mrf.mxu0
    %v2321 = vadd.f32 %v531, %v2320
    %v2322 = vpop.f32.mrf.mxu0
    %v2323 = vadd.f32 %v535, %v2322
    %2324 = vmatprep.mubr.bf16.mxu0 %v215
    %2325 = vmatmul.mubr.bf16.gmra.mxu0 %v214
    %v2326 = vpop.f32.mrf.mxu0
    %v2327 = vadd.f32 %v531, %v2326
    %v2328 = vpop.f32.mrf.mxu0
    %v2329 = vadd.f32 %v535, %v2328
    %v2330 = vpop.f32.mrf.mxu0
    %v2331 = vadd.f32 %v531, %v2330
    %v2332 = vpop.f32.mrf.mxu0
    %v2333 = vadd.f32 %v535, %v2332
    %2334 = vmatprep.mubr.bf16.mxu0 %v223
    %2335 = vmatmul.mubr.bf16.gmra.mxu0 %v222
    %v2336 = vpop.f32.mrf.mxu0
    %v2337 = vadd.f32 %v531, %v2336
    %v2338 = vpop.f32.mrf.mxu0
    %v2339 = vadd.f32 %v535, %v2338
    %v2340 = vpop.f32.mrf.mxu0
    %v2341 = vadd.f32 %v531, %v2340
    %v2342 = vpop.f32.mrf.mxu0
    %v2343 = vadd.f32 %v535, %v2342
    %2344 = vmatprep.mubr.bf16.mxu0 %v231
    %2345 = vmatmul.mubr.bf16.gmra.mxu0 %v230
    %v2346 = vpop.f32.mrf.mxu0
    %v2347 = vadd.f32 %v531, %v2346
    %v2348 = vpop.f32.mrf.mxu0
    %v2349 = vadd.f32 %v535, %v2348
    %v2350 = vpop.f32.mrf.mxu0
    %v2351 = vadd.f32 %v531, %v2350
    %v2352 = vpop.f32.mrf.mxu0
    %v2353 = vadd.f32 %v535, %v2352
    %2354 = vmatprep.mubr.bf16.mxu0 %v239
    %2355 = vmatmul.mubr.bf16.gmra.mxu0 %v238
    %v2356 = vpop.f32.mrf.mxu0
    %v2357 = vadd.f32 %v531, %v2356
    %v2358 = vpop.f32.mrf.mxu0
    %v2359 = vadd.f32 %v535, %v2358
    %v2360 = vpop.f32.mrf.mxu0
    %v2361 = vadd.f32 %v531, %v2360
    %v2362 = vpop.f32.mrf.mxu0
    %v2363 = vadd.f32 %v535, %v2362
    %2364 = vmatprep.mubr.bf16.mxu0 %v247
    %2365 = vmatmul.mubr.bf16.gmra.mxu0 %v246
    %v2366 = vpop.f32.mrf.mxu0
    %v2367 = vadd.f32 %v531, %v2366
    %v2368 = vpop.f32.mrf.mxu0
    %v2369 = vadd.f32 %v535, %v2368
    %v2370 = vpop.f32.mrf.mxu0
    %v2371 = vadd.f32 %v531, %v2370
    %v2372 = vpop.f32.mrf.mxu0
    %v2373 = vadd.f32 %v535, %v2372
    %2374 = vmatprep.mubr.bf16.mxu0 %v255
    %2375 = vmatmul.mubr.bf16.gmra.mxu0 %v254
    %v2376 = vpop.f32.mrf.mxu0
    %v2377 = vadd.f32 %v531, %v2376
    %v2378 = vpop.f32.mrf.mxu0
    %v2379 = vadd.f32 %v535, %v2378
    %v2380 = vpop.f32.mrf.mxu0
    %v2381 = vadd.f32 %v531, %v2380
    %v2382 = vpop.f32.mrf.mxu0
    %v2383 = vadd.f32 %v535, %v2382
    %2384 = vdwg.mxu0
    %2385 = vmatprep.subr.bf16.mxu0 %v1403
    %2386 = vmatpush1.bf16.msra.mxu0 %v1402
    %2387 = vmatprep.subr.bf16.mxu0 %v1399
    %2388 = vmatpush1.bf16.msra.mxu0 %v1398
    %2389 = vmatprep.subr.bf16.mxu0 %v1395
    %2390 = vmatpush1.bf16.msra.mxu0 %v1394
    %2391 = vmatprep.subr.bf16.mxu0 %v1391
    %2392 = vmatpush1.bf16.msra.mxu0 %v1390
    %2393 = vmatprep.subr.bf16.mxu0 %v1387
    %2394 = vmatpush1.bf16.msra.mxu0 %v1386
    %2395 = vmatprep.subr.bf16.mxu0 %v1383
    %2396 = vmatpush1.bf16.msra.mxu0 %v1382
    %2397 = vmatprep.subr.bf16.mxu0 %v1379
    %2398 = vmatpush1.bf16.msra.mxu0 %v1378
    %2399 = vmatprep.subr.bf16.mxu0 %v1375
    %2400 = vmatpush1.bf16.msra.mxu0 %v1374
    %2401 = vmatprep.subr.bf16.mxu0 %v1435
    %2402 = vmatpush2.bf16.msra.mxu0 %v1434
    %2403 = vmatprep.subr.bf16.mxu0 %v1431
    %2404 = vmatpush2.bf16.msra.mxu0 %v1430
    %2405 = vmatprep.subr.bf16.mxu0 %v1427
    %2406 = vmatpush2.bf16.msra.mxu0 %v1426
    %2407 = vmatprep.subr.bf16.mxu0 %v1423
    %2408 = vmatpush2.bf16.msra.mxu0 %v1422
    %2409 = vmatprep.subr.bf16.mxu0 %v1419
    %2410 = vmatpush2.bf16.msra.mxu0 %v1418
    %2411 = vmatprep.subr.bf16.mxu0 %v1415
    %2412 = vmatpush2.bf16.msra.mxu0 %v1414
    %2413 = vmatprep.subr.bf16.mxu0 %v1411
    %2414 = vmatpush2.bf16.msra.mxu0 %v1410
    %2415 = vmatprep.subr.bf16.mxu0 %v1407
    %2416 = vmatpush2.bf16.msra.mxu0 %v1406
    %2417 = vmatprep.mubr.bf16.mxu0 %v201
    %2418 = vmatmul.mubr.bf16.gmra.mxu0 %v200
    %v2419 = vpop.f32.mrf.mxu0
    %v2420 = vadd.f32 %v2307, %v2419
    %v2421 = vpop.f32.mrf.mxu0
    %v2422 = vadd.f32 %v2309, %v2421
    %v2423 = vpop.f32.mrf.mxu0
    %v2424 = vadd.f32 %v2311, %v2423
    %v2425 = vpop.f32.mrf.mxu0
    %v2426 = vadd.f32 %v2313, %v2425
    %2427 = vmatprep.mubr.bf16.mxu0 %v209
    %2428 = vmatmul.mubr.bf16.gmra.mxu0 %v208
    %v2429 = vpop.f32.mrf.mxu0
    %v2430 = vadd.f32 %v2317, %v2429
    %v2431 = vpop.f32.mrf.mxu0
    %v2432 = vadd.f32 %v2319, %v2431
    %v2433 = vpop.f32.mrf.mxu0
    %v2434 = vadd.f32 %v2321, %v2433
    %v2435 = vpop.f32.mrf.mxu0
    %v2436 = vadd.f32 %v2323, %v2435
    %2437 = vmatprep.mubr.bf16.mxu0 %v217
    %2438 = vmatmul.mubr.bf16.gmra.mxu0 %v216
    %v2439 = vpop.f32.mrf.mxu0
    %v2440 = vadd.f32 %v2327, %v2439
    %v2441 = vpop.f32.mrf.mxu0
    %v2442 = vadd.f32 %v2329, %v2441
    %v2443 = vpop.f32.mrf.mxu0
    %v2444 = vadd.f32 %v2331, %v2443
    %v2445 = vpop.f32.mrf.mxu0
    %v2446 = vadd.f32 %v2333, %v2445
    %2447 = vmatprep.mubr.bf16.mxu0 %v225
    %2448 = vmatmul.mubr.bf16.gmra.mxu0 %v224
    %v2449 = vpop.f32.mrf.mxu0
    %v2450 = vadd.f32 %v2337, %v2449
    %v2451 = vpop.f32.mrf.mxu0
    %v2452 = vadd.f32 %v2339, %v2451
    %v2453 = vpop.f32.mrf.mxu0
    %v2454 = vadd.f32 %v2341, %v2453
    %v2455 = vpop.f32.mrf.mxu0
    %v2456 = vadd.f32 %v2343, %v2455
    %2457 = vmatprep.mubr.bf16.mxu0 %v233
    %2458 = vmatmul.mubr.bf16.gmra.mxu0 %v232
    %v2459 = vpop.f32.mrf.mxu0
    %v2460 = vadd.f32 %v2347, %v2459
    %v2461 = vpop.f32.mrf.mxu0
    %v2462 = vadd.f32 %v2349, %v2461
    %v2463 = vpop.f32.mrf.mxu0
    %v2464 = vadd.f32 %v2351, %v2463
    %v2465 = vpop.f32.mrf.mxu0
    %v2466 = vadd.f32 %v2353, %v2465
    %2467 = vmatprep.mubr.bf16.mxu0 %v241
    %2468 = vmatmul.mubr.bf16.gmra.mxu0 %v240
    %v2469 = vpop.f32.mrf.mxu0
    %v2470 = vadd.f32 %v2357, %v2469
    %v2471 = vpop.f32.mrf.mxu0
    %v2472 = vadd.f32 %v2359, %v2471
    %v2473 = vpop.f32.mrf.mxu0
    %v2474 = vadd.f32 %v2361, %v2473
    %v2475 = vpop.f32.mrf.mxu0
    %v2476 = vadd.f32 %v2363, %v2475
    %2477 = vmatprep.mubr.bf16.mxu0 %v249
    %2478 = vmatmul.mubr.bf16.gmra.mxu0 %v248
    %v2479 = vpop.f32.mrf.mxu0
    %v2480 = vadd.f32 %v2367, %v2479
    %v2481 = vpop.f32.mrf.mxu0
    %v2482 = vadd.f32 %v2369, %v2481
    %v2483 = vpop.f32.mrf.mxu0
    %v2484 = vadd.f32 %v2371, %v2483
    %v2485 = vpop.f32.mrf.mxu0
    %v2486 = vadd.f32 %v2373, %v2485
    %2487 = vmatprep.mubr.bf16.mxu0 %v257
    %2488 = vmatmul.mubr.bf16.gmra.mxu0 %v256
    %v2489 = vpop.f32.mrf.mxu0
    %v2490 = vadd.f32 %v2377, %v2489
    %v2491 = vpop.f32.mrf.mxu0
    %v2492 = vadd.f32 %v2379, %v2491
    %v2493 = vpop.f32.mrf.mxu0
    %v2494 = vadd.f32 %v2381, %v2493
    %v2495 = vpop.f32.mrf.mxu0
    %v2496 = vadd.f32 %v2383, %v2495
    %2497 = vdwg.mxu0
    %2498 = vmatprep.subr.bf16.mxu0 %v1467
    %2499 = vmatpush1.bf16.msra.mxu0 %v1466
    %2500 = vmatprep.subr.bf16.mxu0 %v1463
    %2501 = vmatpush1.bf16.msra.mxu0 %v1462
    %2502 = vmatprep.subr.bf16.mxu0 %v1459
    %2503 = vmatpush1.bf16.msra.mxu0 %v1458
    %2504 = vmatprep.subr.bf16.mxu0 %v1455
    %2505 = vmatpush1.bf16.msra.mxu0 %v1454
    %2506 = vmatprep.subr.bf16.mxu0 %v1451
    %2507 = vmatpush1.bf16.msra.mxu0 %v1450
    %2508 = vmatprep.subr.bf16.mxu0 %v1447
    %2509 = vmatpush1.bf16.msra.mxu0 %v1446
    %2510 = vmatprep.subr.bf16.mxu0 %v1443
    %2511 = vmatpush1.bf16.msra.mxu0 %v1442
    %2512 = vmatprep.subr.bf16.mxu0 %v1439
    %2513 = vmatpush1.bf16.msra.mxu0 %v1438
    %2514 = vmatprep.subr.bf16.mxu0 %v1499
    %2515 = vmatpush2.bf16.msra.mxu0 %v1498
    %2516 = vmatprep.subr.bf16.mxu0 %v1495
    %2517 = vmatpush2.bf16.msra.mxu0 %v1494
    %2518 = vmatprep.subr.bf16.mxu0 %v1491
    %2519 = vmatpush2.bf16.msra.mxu0 %v1490
    %2520 = vmatprep.subr.bf16.mxu0 %v1487
    %2521 = vmatpush2.bf16.msra.mxu0 %v1486
    %2522 = vmatprep.subr.bf16.mxu0 %v1483
    %2523 = vmatpush2.bf16.msra.mxu0 %v1482
    %2524 = vmatprep.subr.bf16.mxu0 %v1479
    %2525 = vmatpush2.bf16.msra.mxu0 %v1478
    %2526 = vmatprep.subr.bf16.mxu0 %v1475
    %2527 = vmatpush2.bf16.msra.mxu0 %v1474
    %2528 = vmatprep.subr.bf16.mxu0 %v1471
    %2529 = vmatpush2.bf16.msra.mxu0 %v1470
    %2530 = vmatprep.mubr.bf16.mxu0 %v203
    %2531 = vmatmul.mubr.bf16.gmra.mxu0 %v202
    %v2532 = vpop.f32.mrf.mxu0
    %v2533 = vadd.f32 %v2420, %v2532
    %v2534 = vpop.f32.mrf.mxu0
    %v2535 = vadd.f32 %v2422, %v2534
    %v2536 = vpop.f32.mrf.mxu0
    %v2537 = vadd.f32 %v2424, %v2536
    %v2538 = vpop.f32.mrf.mxu0
    %v2539 = vadd.f32 %v2426, %v2538
    %2540 = vmatprep.mubr.bf16.mxu0 %v211
    %2541 = vmatmul.mubr.bf16.gmra.mxu0 %v210
    %v2542 = vpop.f32.mrf.mxu0
    %v2543 = vadd.f32 %v2430, %v2542
    %v2544 = vpop.f32.mrf.mxu0
    %v2545 = vadd.f32 %v2432, %v2544
    %v2546 = vpop.f32.mrf.mxu0
    %v2547 = vadd.f32 %v2434, %v2546
    %v2548 = vpop.f32.mrf.mxu0
    %v2549 = vadd.f32 %v2436, %v2548
    %2550 = vmatprep.mubr.bf16.mxu0 %v219
    %2551 = vmatmul.mubr.bf16.gmra.mxu0 %v218
    %v2552 = vpop.f32.mrf.mxu0
    %v2553 = vadd.f32 %v2440, %v2552
    %v2554 = vpop.f32.mrf.mxu0
    %v2555 = vadd.f32 %v2442, %v2554
    %v2556 = vpop.f32.mrf.mxu0
    %v2557 = vadd.f32 %v2444, %v2556
    %v2558 = vpop.f32.mrf.mxu0
    %v2559 = vadd.f32 %v2446, %v2558
    %2560 = vmatprep.mubr.bf16.mxu0 %v227
    %2561 = vmatmul.mubr.bf16.gmra.mxu0 %v226
    %v2562 = vpop.f32.mrf.mxu0
    %v2563 = vadd.f32 %v2450, %v2562
    %v2564 = vpop.f32.mrf.mxu0
    %v2565 = vadd.f32 %v2452, %v2564
    %v2566 = vpop.f32.mrf.mxu0
    %v2567 = vadd.f32 %v2454, %v2566
    %v2568 = vpop.f32.mrf.mxu0
    %v2569 = vadd.f32 %v2456, %v2568
    %2570 = vmatprep.mubr.bf16.mxu0 %v235
    %2571 = vmatmul.mubr.bf16.gmra.mxu0 %v234
    %v2572 = vpop.f32.mrf.mxu0
    %v2573 = vadd.f32 %v2460, %v2572
    %v2574 = vpop.f32.mrf.mxu0
    %v2575 = vadd.f32 %v2462, %v2574
    %v2576 = vpop.f32.mrf.mxu0
    %v2577 = vadd.f32 %v2464, %v2576
    %v2578 = vpop.f32.mrf.mxu0
    %v2579 = vadd.f32 %v2466, %v2578
    %2580 = vmatprep.mubr.bf16.mxu0 %v243
    %2581 = vmatmul.mubr.bf16.gmra.mxu0 %v242
    %v2582 = vpop.f32.mrf.mxu0
    %v2583 = vadd.f32 %v2470, %v2582
    %v2584 = vpop.f32.mrf.mxu0
    %v2585 = vadd.f32 %v2472, %v2584
    %v2586 = vpop.f32.mrf.mxu0
    %v2587 = vadd.f32 %v2474, %v2586
    %v2588 = vpop.f32.mrf.mxu0
    %v2589 = vadd.f32 %v2476, %v2588
    %2590 = vmatprep.mubr.bf16.mxu0 %v251
    %2591 = vmatmul.mubr.bf16.gmra.mxu0 %v250
    %v2592 = vpop.f32.mrf.mxu0
    %v2593 = vadd.f32 %v2480, %v2592
    %v2594 = vpop.f32.mrf.mxu0
    %v2595 = vadd.f32 %v2482, %v2594
    %v2596 = vpop.f32.mrf.mxu0
    %v2597 = vadd.f32 %v2484, %v2596
    %v2598 = vpop.f32.mrf.mxu0
    %v2599 = vadd.f32 %v2486, %v2598
    %2600 = vmatprep.mubr.bf16.mxu0 %v259
    %2601 = vmatmul.mubr.bf16.gmra.mxu0 %v258
    %v2602 = vpop.f32.mrf.mxu0
    %v2603 = vadd.f32 %v2490, %v2602
    %v2604 = vpop.f32.mrf.mxu0
    %v2605 = vadd.f32 %v2492, %v2604
    %v2606 = vpop.f32.mrf.mxu0
    %v2607 = vadd.f32 %v2494, %v2606
    %v2608 = vpop.f32.mrf.mxu0
    %v2609 = vadd.f32 %v2496, %v2608
    %2610 = vdwg.mxu0
    %2611 = vmatprep.subr.bf16.mxu0 %v1531
    %2612 = vmatpush1.bf16.msra.mxu0 %v1530
    %2613 = vmatprep.subr.bf16.mxu0 %v1527
    %2614 = vmatpush1.bf16.msra.mxu0 %v1526
    %2615 = vmatprep.subr.bf16.mxu0 %v1523
    %2616 = vmatpush1.bf16.msra.mxu0 %v1522
    %2617 = vmatprep.subr.bf16.mxu0 %v1519
    %2618 = vmatpush1.bf16.msra.mxu0 %v1518
    %2619 = vmatprep.subr.bf16.mxu0 %v1515
    %2620 = vmatpush1.bf16.msra.mxu0 %v1514
    %2621 = vmatprep.subr.bf16.mxu0 %v1511
    %2622 = vmatpush1.bf16.msra.mxu0 %v1510
    %2623 = vmatprep.subr.bf16.mxu0 %v1507
    %2624 = vmatpush1.bf16.msra.mxu0 %v1506
    %2625 = vmatprep.subr.bf16.mxu0 %v1503
    %2626 = vmatpush1.bf16.msra.mxu0 %v1502
    %2627 = vmatprep.subr.bf16.mxu0 %v1563
    %2628 = vmatpush2.bf16.msra.mxu0 %v1562
    %2629 = vmatprep.subr.bf16.mxu0 %v1559
    %2630 = vmatpush2.bf16.msra.mxu0 %v1558
    %2631 = vmatprep.subr.bf16.mxu0 %v1555
    %2632 = vmatpush2.bf16.msra.mxu0 %v1554
    %2633 = vmatprep.subr.bf16.mxu0 %v1551
    %2634 = vmatpush2.bf16.msra.mxu0 %v1550
    %2635 = vmatprep.subr.bf16.mxu0 %v1547
    %2636 = vmatpush2.bf16.msra.mxu0 %v1546
    %2637 = vmatprep.subr.bf16.mxu0 %v1543
    %2638 = vmatpush2.bf16.msra.mxu0 %v1542
    %2639 = vmatprep.subr.bf16.mxu0 %v1539
    %2640 = vmatpush2.bf16.msra.mxu0 %v1538
    %2641 = vmatprep.subr.bf16.mxu0 %v1535
    %2642 = vmatpush2.bf16.msra.mxu0 %v1534
    %2643 = vmatprep.mubr.bf16.mxu0 %v205
    %2644 = vmatmul.mubr.bf16.gmra.mxu0 %v204
    %v2645 = vpop.f32.mrf.mxu0
    %v2646 = vadd.f32 %v2533, %v2645
    %v2647 = vpop.f32.mrf.mxu0
    %v2648 = vadd.f32 %v2535, %v2647
    %v2649 = vpop.f32.mrf.mxu0
    %v2650 = vadd.f32 %v2537, %v2649
    %v2651 = vpop.f32.mrf.mxu0
    %v2652 = vadd.f32 %v2539, %v2651
    %2653 = vmatprep.mubr.bf16.mxu0 %v213
    %2654 = vmatmul.mubr.bf16.gmra.mxu0 %v212
    %v2655 = vpop.f32.mrf.mxu0
    %v2656 = vadd.f32 %v2543, %v2655
    %v2657 = vpop.f32.mrf.mxu0
    %v2658 = vadd.f32 %v2545, %v2657
    %v2659 = vpop.f32.mrf.mxu0
    %v2660 = vadd.f32 %v2547, %v2659
    %v2661 = vpop.f32.mrf.mxu0
    %v2662 = vadd.f32 %v2549, %v2661
    %2663 = vmatprep.mubr.bf16.mxu0 %v221
    %2664 = vmatmul.mubr.bf16.gmra.mxu0 %v220
    %v2665 = vpop.f32.mrf.mxu0
    %v2666 = vadd.f32 %v2553, %v2665
    %v2667 = vpop.f32.mrf.mxu0
    %v2668 = vadd.f32 %v2555, %v2667
    %v2669 = vpop.f32.mrf.mxu0
    %v2670 = vadd.f32 %v2557, %v2669
    %v2671 = vpop.f32.mrf.mxu0
    %v2672 = vadd.f32 %v2559, %v2671
    %2673 = vmatprep.mubr.bf16.mxu0 %v229
    %2674 = vmatmul.mubr.bf16.gmra.mxu0 %v228
    %v2675 = vpop.f32.mrf.mxu0
    %v2676 = vadd.f32 %v2563, %v2675
    %v2677 = vpop.f32.mrf.mxu0
    %v2678 = vadd.f32 %v2565, %v2677
    %v2679 = vpop.f32.mrf.mxu0
    %v2680 = vadd.f32 %v2567, %v2679
    %v2681 = vpop.f32.mrf.mxu0
    %v2682 = vadd.f32 %v2569, %v2681
    %2683 = vmatprep.mubr.bf16.mxu0 %v237
    %2684 = vmatmul.mubr.bf16.gmra.mxu0 %v236
    %v2685 = vpop.f32.mrf.mxu0
    %v2686 = vadd.f32 %v2573, %v2685
    %v2687 = vpop.f32.mrf.mxu0
    %v2688 = vadd.f32 %v2575, %v2687
    %v2689 = vpop.f32.mrf.mxu0
    %v2690 = vadd.f32 %v2577, %v2689
    %v2691 = vpop.f32.mrf.mxu0
    %v2692 = vadd.f32 %v2579, %v2691
    %2693 = vmatprep.mubr.bf16.mxu0 %v245
    %2694 = vmatmul.mubr.bf16.gmra.mxu0 %v244
    %v2695 = vpop.f32.mrf.mxu0
    %v2696 = vadd.f32 %v2583, %v2695
    %v2697 = vpop.f32.mrf.mxu0
    %v2698 = vadd.f32 %v2585, %v2697
    %v2699 = vpop.f32.mrf.mxu0
    %v2700 = vadd.f32 %v2587, %v2699
    %v2701 = vpop.f32.mrf.mxu0
    %v2702 = vadd.f32 %v2589, %v2701
    %2703 = vmatprep.mubr.bf16.mxu0 %v253
    %2704 = vmatmul.mubr.bf16.gmra.mxu0 %v252
    %v2705 = vpop.f32.mrf.mxu0
    %v2706 = vadd.f32 %v2593, %v2705
    %v2707 = vpop.f32.mrf.mxu0
    %v2708 = vadd.f32 %v2595, %v2707
    %v2709 = vpop.f32.mrf.mxu0
    %v2710 = vadd.f32 %v2597, %v2709
    %v2711 = vpop.f32.mrf.mxu0
    %v2712 = vadd.f32 %v2599, %v2711
    %2713 = vmatprep.mubr.bf16.mxu0 %v261
    %2714 = vmatmul.mubr.bf16.gmra.mxu0 %v260
    %v2715 = vpop.f32.mrf.mxu0
    %v2716 = vadd.f32 %v2603, %v2715
    %v2717 = vpop.f32.mrf.mxu0
    %v2718 = vadd.f32 %v2605, %v2717
    %v2719 = vpop.f32.mrf.mxu0
    %v2720 = vadd.f32 %v2607, %v2719
    %v2721 = vpop.f32.mrf.mxu0
    %v2722 = vadd.f32 %v2609, %v2721
    %2723 = vdwg.mxu0
    %v2724 = vmul.f32 %v2194, 0.2
    %v2725 = vmul.f32 %v2196, 0.2
    %v2726 = vmul.f32 %v2646, 0.2
    %v2727 = vmul.f32 %v2648, 0.2
    %v2728 = vmul.f32 %v2198, 0.2
    %v2729 = vmul.f32 %v2200, 0.2
    %v2730 = vmul.f32 %v2650, 0.2
    %v2731 = vmul.f32 %v2652, 0.2
    %v2732 = vmul.f32 %v2204, 0.2
    %v2733 = vmul.f32 %v2206, 0.2
    %v2734 = vmul.f32 %v2656, 0.2
    %v2735 = vmul.f32 %v2658, 0.2
    %v2736 = vmul.f32 %v2208, 0.2
    %v2737 = vmul.f32 %v2210, 0.2
    %v2738 = vmul.f32 %v2660, 0.2
    %v2739 = vmul.f32 %v2662, 0.2
    %v2740 = vmul.f32 %v2214, 0.2
    %v2741 = vmul.f32 %v2216, 0.2
    %v2742 = vmul.f32 %v2666, 0.2
    %v2743 = vmul.f32 %v2668, 0.2
    %v2744 = vmul.f32 %v2218, 0.2
    %v2745 = vmul.f32 %v2220, 0.2
    %v2746 = vmul.f32 %v2670, 0.2
    %v2747 = vmul.f32 %v2672, 0.2
    %v2748 = vmul.f32 %v2224, 0.2
    %v2749 = vmul.f32 %v2226, 0.2
    %v2750 = vmul.f32 %v2676, 0.2
    %v2751 = vmul.f32 %v2678, 0.2
    %v2752 = vmul.f32 %v2228, 0.2
    %v2753 = vmul.f32 %v2230, 0.2
    %v2754 = vmul.f32 %v2680, 0.2
    %v2755 = vmul.f32 %v2682, 0.2
    %v2756 = vmul.f32 %v2234, 0.2
    %v2757 = vmul.f32 %v2236, 0.2
    %v2758 = vmul.f32 %v2686, 0.2
    %v2759 = vmul.f32 %v2688, 0.2
    %v2760 = vmul.f32 %v2238, 0.2
    %v2761 = vmul.f32 %v2240, 0.2
    %v2762 = vmul.f32 %v2690, 0.2
    %v2763 = vmul.f32 %v2692, 0.2
    %v2764 = vmul.f32 %v2244, 0.2
    %v2765 = vmul.f32 %v2246, 0.2
    %v2766 = vmul.f32 %v2696, 0.2
    %v2767 = vmul.f32 %v2698, 0.2
    %v2768 = vmul.f32 %v2248, 0.2
    %v2769 = vmul.f32 %v2250, 0.2
    %v2770 = vmul.f32 %v2700, 0.2
    %v2771 = vmul.f32 %v2702, 0.2
    %v2772 = vmul.f32 %v2254, 0.2
    %v2773 = vmul.f32 %v2256, 0.2
    %v2774 = vmul.f32 %v2706, 0.2
    %v2775 = vmul.f32 %v2708, 0.2
    %v2776 = vmul.f32 %v2258, 0.2
    %v2777 = vmul.f32 %v2260, 0.2
    %v2778 = vmul.f32 %v2710, 0.2
    %v2779 = vmul.f32 %v2712, 0.2
    %v2780 = vmul.f32 %v2264, 0.2
    %v2781 = vmul.f32 %v2266, 0.2
    %v2782 = vmul.f32 %v2716, 0.2
    %v2783 = vmul.f32 %v2718, 0.2
    %v2784 = vmul.f32 %v2268, 0.2
    %v2785 = vmul.f32 %v2270, 0.2
    %v2786 = vmul.f32 %v2720, 0.2
    %v2787 = vmul.f32 %v2722, 0.2
    %v2788 = vmax.f32 %v2194, %v2724
    %v2789 = vmax.f32 %v2196, %v2725
    %v2790 = vmax.f32 %v2646, %v2726
    %v2791 = vmax.f32 %v2648, %v2727
    %v2792 = vmax.f32 %v2198, %v2728
    %v2793 = vmax.f32 %v2200, %v2729
    %v2794 = vmax.f32 %v2650, %v2730
    %v2795 = vmax.f32 %v2652, %v2731
    %v2796 = vmax.f32 %v2204, %v2732
    %v2797 = vmax.f32 %v2206, %v2733
    %v2798 = vmax.f32 %v2656, %v2734
    %v2799 = vmax.f32 %v2658, %v2735
    %v2800 = vmax.f32 %v2208, %v2736
    %v2801 = vmax.f32 %v2210, %v2737
    %v2802 = vmax.f32 %v2660, %v2738
    %v2803 = vmax.f32 %v2662, %v2739
    %v2804 = vmax.f32 %v2214, %v2740
    %v2805 = vmax.f32 %v2216, %v2741
    %v2806 = vmax.f32 %v2666, %v2742
    %v2807 = vmax.f32 %v2668, %v2743
    %v2808 = vmax.f32 %v2218, %v2744
    %v2809 = vmax.f32 %v2220, %v2745
    %v2810 = vmax.f32 %v2670, %v2746
    %v2811 = vmax.f32 %v2672, %v2747
    %v2812 = vmax.f32 %v2224, %v2748
    %v2813 = vmax.f32 %v2226, %v2749
    %v2814 = vmax.f32 %v2676, %v2750
    %v2815 = vmax.f32 %v2678, %v2751
    %v2816 = vmax.f32 %v2228, %v2752
    %v2817 = vmax.f32 %v2230, %v2753
    %v2818 = vmax.f32 %v2680, %v2754
    %v2819 = vmax.f32 %v2682, %v2755
    %v2820 = vmax.f32 %v2234, %v2756
    %v2821 = vmax.f32 %v2236, %v2757
    %v2822 = vmax.f32 %v2686, %v2758
    %v2823 = vmax.f32 %v2688, %v2759
    %v2824 = vmax.f32 %v2238, %v2760
    %v2825 = vmax.f32 %v2240, %v2761
    %v2826 = vmax.f32 %v2690, %v2762
    %v2827 = vmax.f32 %v2692, %v2763
    %v2828 = vmax.f32 %v2244, %v2764
    %v2829 = vmax.f32 %v2246, %v2765
    %v2830 = vmax.f32 %v2696, %v2766
    %v2831 = vmax.f32 %v2698, %v2767
    %v2832 = vmax.f32 %v2248, %v2768
    %v2833 = vmax.f32 %v2250, %v2769
    %v2834 = vmax.f32 %v2700, %v2770
    %v2835 = vmax.f32 %v2702, %v2771
    %v2836 = vmax.f32 %v2254, %v2772
    %v2837 = vmax.f32 %v2256, %v2773
    %v2838 = vmax.f32 %v2706, %v2774
    %v2839 = vmax.f32 %v2708, %v2775
    %v2840 = vmax.f32 %v2258, %v2776
    %v2841 = vmax.f32 %v2260, %v2777
    %v2842 = vmax.f32 %v2710, %v2778
    %v2843 = vmax.f32 %v2712, %v2779
    %v2844 = vmax.f32 %v2264, %v2780
    %v2845 = vmax.f32 %v2266, %v2781
    %v2846 = vmax.f32 %v2716, %v2782
    %v2847 = vmax.f32 %v2718, %v2783
    %v2848 = vmax.f32 %v2268, %v2784
    %v2849 = vmax.f32 %v2270, %v2785
    %v2850 = vmax.f32 %v2720, %v2786
    %v2851 = vmax.f32 %v2722, %v2787
    %v2852 = vpack.c.bf16 %v2792, %v2788
    %v2853 = vpack.c.bf16 %v2793, %v2789
    %v2854 = vpack.c.bf16 %v2794, %v2790
    %v2855 = vpack.c.bf16 %v2795, %v2791
    %v2856 = vpack.c.bf16 %v2800, %v2796
    %v2857 = vpack.c.bf16 %v2801, %v2797
    %v2858 = vpack.c.bf16 %v2802, %v2798
    %v2859 = vpack.c.bf16 %v2803, %v2799
    %v2860 = vpack.c.bf16 %v2808, %v2804
    %v2861 = vpack.c.bf16 %v2809, %v2805
    %v2862 = vpack.c.bf16 %v2810, %v2806
    %v2863 = vpack.c.bf16 %v2811, %v2807
    %v2864 = vpack.c.bf16 %v2816, %v2812
    %v2865 = vpack.c.bf16 %v2817, %v2813
    %v2866 = vpack.c.bf16 %v2818, %v2814
    %v2867 = vpack.c.bf16 %v2819, %v2815
    %v2868 = vpack.c.bf16 %v2824, %v2820
    %v2869 = vpack.c.bf16 %v2825, %v2821
    %v2870 = vpack.c.bf16 %v2826, %v2822
    %v2871 = vpack.c.bf16 %v2827, %v2823
    %v2872 = vpack.c.bf16 %v2832, %v2828
    %v2873 = vpack.c.bf16 %v2833, %v2829
    %v2874 = vpack.c.bf16 %v2834, %v2830
    %v2875 = vpack.c.bf16 %v2835, %v2831
    %v2876 = vpack.c.bf16 %v2840, %v2836
    %v2877 = vpack.c.bf16 %v2841, %v2837
    %v2878 = vpack.c.bf16 %v2842, %v2838
    %v2879 = vpack.c.bf16 %v2843, %v2839
    %v2880 = vpack.c.bf16 %v2848, %v2844
    %v2881 = vpack.c.bf16 %v2849, %v2845
    %v2882 = vpack.c.bf16 %v2850, %v2846
    %v2883 = vpack.c.bf16 %v2851, %v2847
    %v2884 = vld [vmem:[#allocation8] sm:$0xff]
    %v2885 = vld [vmem:[#allocation8 + $0x8] sm:$0xff]
    %v2886 = vld [vmem:[#allocation8 + $0x10] sm:$0xff]
    %v2887 = vld [vmem:[#allocation8 + $0x18] sm:$0xff]
    %v2888 = vld [vmem:[#allocation8 + $0x20] sm:$0xff]
    %v2889 = vld [vmem:[#allocation8 + $0x28] sm:$0xff]
    %v2890 = vld [vmem:[#allocation8 + $0x30] sm:$0xff]
    %v2891 = vld [vmem:[#allocation8 + $0x38] sm:$0xff]
    %v2892 = vld [vmem:[#allocation8 + $0x40] sm:$0xff]
    %v2893 = vld [vmem:[#allocation8 + $0x48] sm:$0xff]
    %v2894 = vld [vmem:[#allocation8 + $0x50] sm:$0xff]
    %v2895 = vld [vmem:[#allocation8 + $0x58] sm:$0xff]
    %v2896 = vld [vmem:[#allocation8 + $0x60] sm:$0xff]
    %v2897 = vld [vmem:[#allocation8 + $0x68] sm:$0xff]
    %v2898 = vld [vmem:[#allocation8 + $0x70] sm:$0xff]
    %v2899 = vld [vmem:[#allocation8 + $0x78] sm:$0xff]
    %v2900 = vld [vmem:[#allocation8 + $0x80] sm:$0xff]
    %v2901 = vld [vmem:[#allocation8 + $0x88] sm:$0xff]
    %v2902 = vld [vmem:[#allocation8 + $0x90] sm:$0xff]
    %v2903 = vld [vmem:[#allocation8 + $0x98] sm:$0xff]
    %v2904 = vld [vmem:[#allocation8 + $0xa0] sm:$0xff]
    %v2905 = vld [vmem:[#allocation8 + $0xa8] sm:$0xff]
    %v2906 = vld [vmem:[#allocation8 + $0xb0] sm:$0xff]
    %v2907 = vld [vmem:[#allocation8 + $0xb8] sm:$0xff]
    %v2908 = vld [vmem:[#allocation8 + $0xc0] sm:$0xff]
    %v2909 = vld [vmem:[#allocation8 + $0xc8] sm:$0xff]
    %v2910 = vld [vmem:[#allocation8 + $0xd0] sm:$0xff]
    %v2911 = vld [vmem:[#allocation8 + $0xd8] sm:$0xff]
    %v2912 = vld [vmem:[#allocation8 + $0xe0] sm:$0xff]
    %v2913 = vld [vmem:[#allocation8 + $0xe8] sm:$0xff]
    %v2914 = vld [vmem:[#allocation8 + $0xf0] sm:$0xff]
    %v2915 = vld [vmem:[#allocation8 + $0xf8] sm:$0xff]
    %v2916 = vld [vmem:[#allocation8 + $0x100] sm:$0xff]
    %v2917 = vld [vmem:[#allocation8 + $0x108] sm:$0xff]
    %v2918 = vld [vmem:[#allocation8 + $0x110] sm:$0xff]
    %v2919 = vld [vmem:[#allocation8 + $0x118] sm:$0xff]
    %v2920 = vld [vmem:[#allocation8 + $0x120] sm:$0xff]
    %v2921 = vld [vmem:[#allocation8 + $0x128] sm:$0xff]
    %v2922 = vld [vmem:[#allocation8 + $0x130] sm:$0xff]
    %v2923 = vld [vmem:[#allocation8 + $0x138] sm:$0xff]
    %v2924 = vld [vmem:[#allocation8 + $0x140] sm:$0xff]
    %v2925 = vld [vmem:[#allocation8 + $0x148] sm:$0xff]
    %v2926 = vld [vmem:[#allocation8 + $0x150] sm:$0xff]
    %v2927 = vld [vmem:[#allocation8 + $0x158] sm:$0xff]
    %v2928 = vld [vmem:[#allocation8 + $0x160] sm:$0xff]
    %v2929 = vld [vmem:[#allocation8 + $0x168] sm:$0xff]
    %v2930 = vld [vmem:[#allocation8 + $0x170] sm:$0xff]
    %v2931 = vld [vmem:[#allocation8 + $0x178] sm:$0xff]
    %v2932 = vld [vmem:[#allocation8 + $0x180] sm:$0xff]
    %v2933 = vld [vmem:[#allocation8 + $0x188] sm:$0xff]
    %v2934 = vld [vmem:[#allocation8 + $0x190] sm:$0xff]
    %v2935 = vld [vmem:[#allocation8 + $0x198] sm:$0xff]
    %v2936 = vld [vmem:[#allocation8 + $0x1a0] sm:$0xff]
    %v2937 = vld [vmem:[#allocation8 + $0x1a8] sm:$0xff]
    %v2938 = vld [vmem:[#allocation8 + $0x1b0] sm:$0xff]
    %v2939 = vld [vmem:[#allocation8 + $0x1b8] sm:$0xff]
    %v2940 = vld [vmem:[#allocation8 + $0x1c0] sm:$0xff]
    %v2941 = vld [vmem:[#allocation8 + $0x1c8] sm:$0xff]
    %v2942 = vld [vmem:[#allocation8 + $0x1d0] sm:$0xff]
    %v2943 = vld [vmem:[#allocation8 + $0x1d8] sm:$0xff]
    %v2944 = vld [vmem:[#allocation8 + $0x1e0] sm:$0xff]
    %v2945 = vld [vmem:[#allocation8 + $0x1e8] sm:$0xff]
    %v2946 = vld [vmem:[#allocation8 + $0x1f0] sm:$0xff]
    %v2947 = vld [vmem:[#allocation8 + $0x1f8] sm:$0xff]
    %v2948 = vld [vmem:[%s4] sm:$0x3]
    %v2950 = vlaneseq
    %v2951 = vshrl.u32 %v2950, 7
    %v2952 = vsub.s32 0, %v2951
    %v2953 = vrot.slane %v2948, %v2952
    %v2954 = vlaneseq
    %v2955 = vshrl.u32 %v2954, 7
    %v2956 = vsub.s32 1, %v2955
    %v2957 = vrot.slane %v2948, %v2956
    %v3024 = vunpack.c.l.b16 %v2884
    %v3025 = vunpack.c.h.b16 %v2884
    %v3026 = vunpack.c.l.b16 %v2885
    %v3027 = vunpack.c.h.b16 %v2885
    %v3028 = vunpack.c.l.b16 %v2886
    %v3029 = vunpack.c.h.b16 %v2886
    %v3030 = vunpack.c.l.b16 %v2887
    %v3031 = vunpack.c.h.b16 %v2887
    %v3032 = vunpack.c.l.b16 %v2888
    %v3033 = vunpack.c.h.b16 %v2888
    %v3034 = vunpack.c.l.b16 %v2889
    %v3035 = vunpack.c.h.b16 %v2889
    %v3036 = vunpack.c.l.b16 %v2890
    %v3037 = vunpack.c.h.b16 %v2890
    %v3038 = vunpack.c.l.b16 %v2891
    %v3039 = vunpack.c.h.b16 %v2891
    %v3040 = vunpack.c.l.b16 %v2892
    %v3041 = vunpack.c.h.b16 %v2892
    %v3042 = vunpack.c.l.b16 %v2893
    %v3043 = vunpack.c.h.b16 %v2893
    %v3044 = vunpack.c.l.b16 %v2894
    %v3045 = vunpack.c.h.b16 %v2894
    %v3046 = vunpack.c.l.b16 %v2895
    %v3047 = vunpack.c.h.b16 %v2895
    %v3048 = vunpack.c.l.b16 %v2896
    %v3049 = vunpack.c.h.b16 %v2896
    %v3050 = vunpack.c.l.b16 %v2897
    %v3051 = vunpack.c.h.b16 %v2897
    %v3052 = vunpack.c.l.b16 %v2898
    %v3053 = vunpack.c.h.b16 %v2898
    %v3054 = vunpack.c.l.b16 %v2899
    %v3055 = vunpack.c.h.b16 %v2899
    %v3056 = vunpack.c.l.b16 %v2900
    %v3057 = vunpack.c.h.b16 %v2900
    %v3058 = vunpack.c.l.b16 %v2901
    %v3059 = vunpack.c.h.b16 %v2901
    %v3060 = vunpack.c.l.b16 %v2902
    %v3061 = vunpack.c.h.b16 %v2902
    %v3062 = vunpack.c.l.b16 %v2903
    %v3063 = vunpack.c.h.b16 %v2903
    %v3064 = vunpack.c.l.b16 %v2904
    %v3065 = vunpack.c.h.b16 %v2904
    %v3066 = vunpack.c.l.b16 %v2905
    %v3067 = vunpack.c.h.b16 %v2905
    %v3068 = vunpack.c.l.b16 %v2906
    %v3069 = vunpack.c.h.b16 %v2906
    %v3070 = vunpack.c.l.b16 %v2907
    %v3071 = vunpack.c.h.b16 %v2907
    %v3072 = vunpack.c.l.b16 %v2908
    %v3073 = vunpack.c.h.b16 %v2908
    %v3074 = vunpack.c.l.b16 %v2909
    %v3075 = vunpack.c.h.b16 %v2909
    %v3076 = vunpack.c.l.b16 %v2910
    %v3077 = vunpack.c.h.b16 %v2910
    %v3078 = vunpack.c.l.b16 %v2911
    %v3079 = vunpack.c.h.b16 %v2911
    %v3080 = vunpack.c.l.b16 %v2912
    %v3081 = vunpack.c.h.b16 %v2912
    %v3082 = vunpack.c.l.b16 %v2913
    %v3083 = vunpack.c.h.b16 %v2913
    %v3084 = vunpack.c.l.b16 %v2914
    %v3085 = vunpack.c.h.b16 %v2914
    %v3086 = vunpack.c.l.b16 %v2915
    %v3087 = vunpack.c.h.b16 %v2915
    %v3088 = vunpack.c.l.b16 %v2916
    %v3089 = vunpack.c.h.b16 %v2916
    %v3090 = vunpack.c.l.b16 %v2917
    %v3091 = vunpack.c.h.b16 %v2917
    %v3092 = vunpack.c.l.b16 %v2918
    %v3093 = vunpack.c.h.b16 %v2918
    %v3094 = vunpack.c.l.b16 %v2919
    %v3095 = vunpack.c.h.b16 %v2919
    %v3096 = vunpack.c.l.b16 %v2920
    %v3097 = vunpack.c.h.b16 %v2920
    %v3098 = vunpack.c.l.b16 %v2921
    %v3099 = vunpack.c.h.b16 %v2921
    %v3100 = vunpack.c.l.b16 %v2922
    %v3101 = vunpack.c.h.b16 %v2922
    %v3102 = vunpack.c.l.b16 %v2923
    %v3103 = vunpack.c.h.b16 %v2923
    %v3104 = vunpack.c.l.b16 %v2924
    %v3105 = vunpack.c.h.b16 %v2924
    %v3106 = vunpack.c.l.b16 %v2925
    %v3107 = vunpack.c.h.b16 %v2925
    %v3108 = vunpack.c.l.b16 %v2926
    %v3109 = vunpack.c.h.b16 %v2926
    %v3110 = vunpack.c.l.b16 %v2927
    %v3111 = vunpack.c.h.b16 %v2927
    %v3112 = vunpack.c.l.b16 %v2928
    %v3113 = vunpack.c.h.b16 %v2928
    %v3114 = vunpack.c.l.b16 %v2929
    %v3115 = vunpack.c.h.b16 %v2929
    %v3116 = vunpack.c.l.b16 %v2930
    %v3117 = vunpack.c.h.b16 %v2930
    %v3118 = vunpack.c.l.b16 %v2931
    %v3119 = vunpack.c.h.b16 %v2931
    %v3120 = vunpack.c.l.b16 %v2932
    %v3121 = vunpack.c.h.b16 %v2932
    %v3122 = vunpack.c.l.b16 %v2933
    %v3123 = vunpack.c.h.b16 %v2933
    %v3124 = vunpack.c.l.b16 %v2934
    %v3125 = vunpack.c.h.b16 %v2934
    %v3126 = vunpack.c.l.b16 %v2935
    %v3127 = vunpack.c.h.b16 %v2935
    %v3128 = vunpack.c.l.b16 %v2936
    %v3129 = vunpack.c.h.b16 %v2936
    %v3130 = vunpack.c.l.b16 %v2937
    %v3131 = vunpack.c.h.b16 %v2937
    %v3132 = vunpack.c.l.b16 %v2938
    %v3133 = vunpack.c.h.b16 %v2938
    %v3134 = vunpack.c.l.b16 %v2939
    %v3135 = vunpack.c.h.b16 %v2939
    %v3136 = vunpack.c.l.b16 %v2940
    %v3137 = vunpack.c.h.b16 %v2940
    %v3138 = vunpack.c.l.b16 %v2941
    %v3139 = vunpack.c.h.b16 %v2941
    %v3140 = vunpack.c.l.b16 %v2942
    %v3141 = vunpack.c.h.b16 %v2942
    %v3142 = vunpack.c.l.b16 %v2943
    %v3143 = vunpack.c.h.b16 %v2943
    %v3144 = vunpack.c.l.b16 %v2944
    %v3145 = vunpack.c.h.b16 %v2944
    %v3146 = vunpack.c.l.b16 %v2945
    %v3147 = vunpack.c.h.b16 %v2945
    %v3148 = vunpack.c.l.b16 %v2946
    %v3149 = vunpack.c.h.b16 %v2946
    %v3150 = vunpack.c.l.b16 %v2947
    %v3151 = vunpack.c.h.b16 %v2947
    %v3152 = vpack.c.b16 %v3026, %v3024
    %v3153 = vpack.c.b16 %v3027, %v3025
    %v3154 = vpack.c.b16 %v3030, %v3028
    %v3155 = vpack.c.b16 %v3031, %v3029
    %v3156 = vpack.c.b16 %v3034, %v3032
    %v3157 = vpack.c.b16 %v3035, %v3033
    %v3158 = vpack.c.b16 %v3038, %v3036
    %v3159 = vpack.c.b16 %v3039, %v3037
    %v3160 = vpack.c.b16 %v3042, %v3040
    %v3161 = vpack.c.b16 %v3043, %v3041
    %v3162 = vpack.c.b16 %v3046, %v3044
    %v3163 = vpack.c.b16 %v3047, %v3045
    %v3164 = vpack.c.b16 %v3050, %v3048
    %v3165 = vpack.c.b16 %v3051, %v3049
    %v3166 = vpack.c.b16 %v3054, %v3052
    %v3167 = vpack.c.b16 %v3055, %v3053
    %v3168 = vpack.c.b16 %v3058, %v3056
    %v3169 = vpack.c.b16 %v3059, %v3057
    %v3170 = vpack.c.b16 %v3062, %v3060
    %v3171 = vpack.c.b16 %v3063, %v3061
    %v3172 = vpack.c.b16 %v3066, %v3064
    %v3173 = vpack.c.b16 %v3067, %v3065
    %v3174 = vpack.c.b16 %v3070, %v3068
    %v3175 = vpack.c.b16 %v3071, %v3069
    %v3176 = vpack.c.b16 %v3074, %v3072
    %v3177 = vpack.c.b16 %v3075, %v3073
    %v3178 = vpack.c.b16 %v3078, %v3076
    %v3179 = vpack.c.b16 %v3079, %v3077
    %v3180 = vpack.c.b16 %v3082, %v3080
    %v3181 = vpack.c.b16 %v3083, %v3081
    %v3182 = vpack.c.b16 %v3086, %v3084
    %v3183 = vpack.c.b16 %v3087, %v3085
    %v3184 = vpack.c.b16 %v3090, %v3088
    %v3185 = vpack.c.b16 %v3091, %v3089
    %v3186 = vpack.c.b16 %v3094, %v3092
    %v3187 = vpack.c.b16 %v3095, %v3093
    %v3188 = vpack.c.b16 %v3098, %v3096
    %v3189 = vpack.c.b16 %v3099, %v3097
    %v3190 = vpack.c.b16 %v3102, %v3100
    %v3191 = vpack.c.b16 %v3103, %v3101
    %v3192 = vpack.c.b16 %v3106, %v3104
    %v3193 = vpack.c.b16 %v3107, %v3105
    %v3194 = vpack.c.b16 %v3110, %v3108
    %v3195 = vpack.c.b16 %v3111, %v3109
    %v3196 = vpack.c.b16 %v3114, %v3112
    %v3197 = vpack.c.b16 %v3115, %v3113
    %v3198 = vpack.c.b16 %v3118, %v3116
    %v3199 = vpack.c.b16 %v3119, %v3117
    %v3200 = vpack.c.b16 %v3122, %v3120
    %v3201 = vpack.c.b16 %v3123, %v3121
    %v3202 = vpack.c.b16 %v3126, %v3124
    %v3203 = vpack.c.b16 %v3127, %v3125
    %v3204 = vpack.c.b16 %v3130, %v3128
    %v3205 = vpack.c.b16 %v3131, %v3129
    %v3206 = vpack.c.b16 %v3134, %v3132
    %v3207 = vpack.c.b16 %v3135, %v3133
    %v3208 = vpack.c.b16 %v3138, %v3136
    %v3209 = vpack.c.b16 %v3139, %v3137
    %v3210 = vpack.c.b16 %v3142, %v3140
    %v3211 = vpack.c.b16 %v3143, %v3141
    %v3212 = vpack.c.b16 %v3146, %v3144
    %v3213 = vpack.c.b16 %v3147, %v3145
    %v3214 = vpack.c.b16 %v3150, %v3148
    %v3215 = vpack.c.b16 %v3151, %v3149
    %3280 = vmatprep.subr.bf16.mxu0 %v3167
    %3281 = vmatpush1.bf16.msra.mxu0 %v3166
    %3282 = vmatprep.subr.bf16.mxu0 %v3165
    %3283 = vmatpush1.bf16.msra.mxu0 %v3164
    %3284 = vmatprep.subr.bf16.mxu0 %v3163
    %3285 = vmatpush1.bf16.msra.mxu0 %v3162
    %3286 = vmatprep.subr.bf16.mxu0 %v3161
    %3287 = vmatpush1.bf16.msra.mxu0 %v3160
    %3288 = vmatprep.subr.bf16.mxu0 %v3159
    %3289 = vmatpush1.bf16.msra.mxu0 %v3158
    %3290 = vmatprep.subr.bf16.mxu0 %v3157
    %3291 = vmatpush1.bf16.msra.mxu0 %v3156
    %3292 = vmatprep.subr.bf16.mxu0 %v3155
    %3293 = vmatpush1.bf16.msra.mxu0 %v3154
    %3294 = vmatprep.subr.bf16.mxu0 %v3153
    %3295 = vmatpush1.bf16.msra.mxu0 %v3152
    %3296 = vmatprep.subr.bf16.mxu0 %v3183
    %3297 = vmatpush2.bf16.msra.mxu0 %v3182
    %3298 = vmatprep.subr.bf16.mxu0 %v3181
    %3299 = vmatpush2.bf16.msra.mxu0 %v3180
    %3300 = vmatprep.subr.bf16.mxu0 %v3179
    %3301 = vmatpush2.bf16.msra.mxu0 %v3178
    %3302 = vmatprep.subr.bf16.mxu0 %v3177
    %3303 = vmatpush2.bf16.msra.mxu0 %v3176
    %3304 = vmatprep.subr.bf16.mxu0 %v3175
    %3305 = vmatpush2.bf16.msra.mxu0 %v3174
    %3306 = vmatprep.subr.bf16.mxu0 %v3173
    %3307 = vmatpush2.bf16.msra.mxu0 %v3172
    %3308 = vmatprep.subr.bf16.mxu0 %v3171
    %3309 = vmatpush2.bf16.msra.mxu0 %v3170
    %3310 = vmatprep.subr.bf16.mxu0 %v3169
    %3311 = vmatpush2.bf16.msra.mxu0 %v3168
    %3312 = vmatprep.mubr.bf16.mxu0 %v2853
    %3313 = vmatmul.mubr.bf16.gmra.mxu0 %v2852
    %v3314 = vpop.f32.mrf.mxu0
    %v3315 = vadd.f32 %v2953, %v3314
    %v3316 = vpop.f32.mrf.mxu0
    %v3317 = vadd.f32 %v2957, %v3316
    %v3318 = vpop.f32.mrf.mxu0
    %v3319 = vadd.f32 %v2953, %v3318
    %v3320 = vpop.f32.mrf.mxu0
    %v3321 = vadd.f32 %v2957, %v3320
    %3322 = vmatprep.mubr.bf16.mxu0 %v2857
    %3323 = vmatmul.mubr.bf16.gmra.mxu0 %v2856
    %v3324 = vpop.f32.mrf.mxu0
    %v3325 = vadd.f32 %v2953, %v3324
    %v3326 = vpop.f32.mrf.mxu0
    %v3327 = vadd.f32 %v2957, %v3326
    %v3328 = vpop.f32.mrf.mxu0
    %v3329 = vadd.f32 %v2953, %v3328
    %v3330 = vpop.f32.mrf.mxu0
    %v3331 = vadd.f32 %v2957, %v3330
    %3332 = vmatprep.mubr.bf16.mxu0 %v2861
    %3333 = vmatmul.mubr.bf16.gmra.mxu0 %v2860
    %v3334 = vpop.f32.mrf.mxu0
    %v3335 = vadd.f32 %v2953, %v3334
    %v3336 = vpop.f32.mrf.mxu0
    %v3337 = vadd.f32 %v2957, %v3336
    %v3338 = vpop.f32.mrf.mxu0
    %v3339 = vadd.f32 %v2953, %v3338
    %v3340 = vpop.f32.mrf.mxu0
    %v3341 = vadd.f32 %v2957, %v3340
    %3342 = vmatprep.mubr.bf16.mxu0 %v2865
    %3343 = vmatmul.mubr.bf16.gmra.mxu0 %v2864
    %v3344 = vpop.f32.mrf.mxu0
    %v3345 = vadd.f32 %v2953, %v3344
    %v3346 = vpop.f32.mrf.mxu0
    %v3347 = vadd.f32 %v2957, %v3346
    %v3348 = vpop.f32.mrf.mxu0
    %v3349 = vadd.f32 %v2953, %v3348
    %v3350 = vpop.f32.mrf.mxu0
    %v3351 = vadd.f32 %v2957, %v3350
    %3352 = vmatprep.mubr.bf16.mxu0 %v2869
    %3353 = vmatmul.mubr.bf16.gmra.mxu0 %v2868
    %v3354 = vpop.f32.mrf.mxu0
    %v3355 = vadd.f32 %v2953, %v3354
    %v3356 = vpop.f32.mrf.mxu0
    %v3357 = vadd.f32 %v2957, %v3356
    %v3358 = vpop.f32.mrf.mxu0
    %v3359 = vadd.f32 %v2953, %v3358
    %v3360 = vpop.f32.mrf.mxu0
    %v3361 = vadd.f32 %v2957, %v3360
    %3362 = vmatprep.mubr.bf16.mxu0 %v2873
    %3363 = vmatmul.mubr.bf16.gmra.mxu0 %v2872
    %v3364 = vpop.f32.mrf.mxu0
    %v3365 = vadd.f32 %v2953, %v3364
    %v3366 = vpop.f32.mrf.mxu0
    %v3367 = vadd.f32 %v2957, %v3366
    %v3368 = vpop.f32.mrf.mxu0
    %v3369 = vadd.f32 %v2953, %v3368
    %v3370 = vpop.f32.mrf.mxu0
    %v3371 = vadd.f32 %v2957, %v3370
    %3372 = vmatprep.mubr.bf16.mxu0 %v2877
    %3373 = vmatmul.mubr.bf16.gmra.mxu0 %v2876
    %v3374 = vpop.f32.mrf.mxu0
    %v3375 = vadd.f32 %v2953, %v3374
    %v3376 = vpop.f32.mrf.mxu0
    %v3377 = vadd.f32 %v2957, %v3376
    %v3378 = vpop.f32.mrf.mxu0
    %v3379 = vadd.f32 %v2953, %v3378
    %v3380 = vpop.f32.mrf.mxu0
    %v3381 = vadd.f32 %v2957, %v3380
    %3382 = vmatprep.mubr.bf16.mxu0 %v2881
    %3383 = vmatmul.mubr.bf16.gmra.mxu0 %v2880
    %v3384 = vpop.f32.mrf.mxu0
    %v3385 = vadd.f32 %v2953, %v3384
    %v3386 = vpop.f32.mrf.mxu0
    %v3387 = vadd.f32 %v2957, %v3386
    %v3388 = vpop.f32.mrf.mxu0
    %v3389 = vadd.f32 %v2953, %v3388
    %v3390 = vpop.f32.mrf.mxu0
    %v3391 = vadd.f32 %v2957, %v3390
    %3392 = vdwg.mxu0
    %3393 = vmatprep.subr.bf16.mxu0 %v3199
    %3394 = vmatpush1.bf16.msra.mxu0 %v3198
    %3395 = vmatprep.subr.bf16.mxu0 %v3197
    %3396 = vmatpush1.bf16.msra.mxu0 %v3196
    %3397 = vmatprep.subr.bf16.mxu0 %v3195
    %3398 = vmatpush1.bf16.msra.mxu0 %v3194
    %3399 = vmatprep.subr.bf16.mxu0 %v3193
    %3400 = vmatpush1.bf16.msra.mxu0 %v3192
    %3401 = vmatprep.subr.bf16.mxu0 %v3191
    %3402 = vmatpush1.bf16.msra.mxu0 %v3190
    %3403 = vmatprep.subr.bf16.mxu0 %v3189
    %3404 = vmatpush1.bf16.msra.mxu0 %v3188
    %3405 = vmatprep.subr.bf16.mxu0 %v3187
    %3406 = vmatpush1.bf16.msra.mxu0 %v3186
    %3407 = vmatprep.subr.bf16.mxu0 %v3185
    %3408 = vmatpush1.bf16.msra.mxu0 %v3184
    %3409 = vmatprep.subr.bf16.mxu0 %v3215
    %3410 = vmatpush2.bf16.msra.mxu0 %v3214
    %3411 = vmatprep.subr.bf16.mxu0 %v3213
    %3412 = vmatpush2.bf16.msra.mxu0 %v3212
    %3413 = vmatprep.subr.bf16.mxu0 %v3211
    %3414 = vmatpush2.bf16.msra.mxu0 %v3210
    %3415 = vmatprep.subr.bf16.mxu0 %v3209
    %3416 = vmatpush2.bf16.msra.mxu0 %v3208
    %3417 = vmatprep.subr.bf16.mxu0 %v3207
    %3418 = vmatpush2.bf16.msra.mxu0 %v3206
    %3419 = vmatprep.subr.bf16.mxu0 %v3205
    %3420 = vmatpush2.bf16.msra.mxu0 %v3204
    %3421 = vmatprep.subr.bf16.mxu0 %v3203
    %3422 = vmatpush2.bf16.msra.mxu0 %v3202
    %3423 = vmatprep.subr.bf16.mxu0 %v3201
    %3424 = vmatpush2.bf16.msra.mxu0 %v3200
    %3425 = vmatprep.mubr.bf16.mxu0 %v2855
    %3426 = vmatmul.mubr.bf16.gmra.mxu0 %v2854
    %v3427 = vpop.f32.mrf.mxu0
    %v3428 = vadd.f32 %v3315, %v3427
    %v3429 = vpop.f32.mrf.mxu0
    %v3430 = vadd.f32 %v3317, %v3429
    %v3431 = vpop.f32.mrf.mxu0
    %v3432 = vadd.f32 %v3319, %v3431
    %v3433 = vpop.f32.mrf.mxu0
    %v3434 = vadd.f32 %v3321, %v3433
    %3435 = vmatprep.mubr.bf16.mxu0 %v2859
    %3436 = vmatmul.mubr.bf16.gmra.mxu0 %v2858
    %v3437 = vpop.f32.mrf.mxu0
    %v3438 = vadd.f32 %v3325, %v3437
    %v3439 = vpop.f32.mrf.mxu0
    %v3440 = vadd.f32 %v3327, %v3439
    %v3441 = vpop.f32.mrf.mxu0
    %v3442 = vadd.f32 %v3329, %v3441
    %v3443 = vpop.f32.mrf.mxu0
    %v3444 = vadd.f32 %v3331, %v3443
    %3445 = vmatprep.mubr.bf16.mxu0 %v2863
    %3446 = vmatmul.mubr.bf16.gmra.mxu0 %v2862
    %v3447 = vpop.f32.mrf.mxu0
    %v3448 = vadd.f32 %v3335, %v3447
    %v3449 = vpop.f32.mrf.mxu0
    %v3450 = vadd.f32 %v3337, %v3449
    %v3451 = vpop.f32.mrf.mxu0
    %v3452 = vadd.f32 %v3339, %v3451
    %v3453 = vpop.f32.mrf.mxu0
    %v3454 = vadd.f32 %v3341, %v3453
    %3455 = vmatprep.mubr.bf16.mxu0 %v2867
    %3456 = vmatmul.mubr.bf16.gmra.mxu0 %v2866
    %v3457 = vpop.f32.mrf.mxu0
    %v3458 = vadd.f32 %v3345, %v3457
    %v3459 = vpop.f32.mrf.mxu0
    %v3460 = vadd.f32 %v3347, %v3459
    %v3461 = vpop.f32.mrf.mxu0
    %v3462 = vadd.f32 %v3349, %v3461
    %v3463 = vpop.f32.mrf.mxu0
    %v3464 = vadd.f32 %v3351, %v3463
    %3465 = vmatprep.mubr.bf16.mxu0 %v2871
    %3466 = vmatmul.mubr.bf16.gmra.mxu0 %v2870
    %v3467 = vpop.f32.mrf.mxu0
    %v3468 = vadd.f32 %v3355, %v3467
    %v3469 = vpop.f32.mrf.mxu0
    %v3470 = vadd.f32 %v3357, %v3469
    %v3471 = vpop.f32.mrf.mxu0
    %v3472 = vadd.f32 %v3359, %v3471
    %v3473 = vpop.f32.mrf.mxu0
    %v3474 = vadd.f32 %v3361, %v3473
    %3475 = vmatprep.mubr.bf16.mxu0 %v2875
    %3476 = vmatmul.mubr.bf16.gmra.mxu0 %v2874
    %v3477 = vpop.f32.mrf.mxu0
    %v3478 = vadd.f32 %v3365, %v3477
    %v3479 = vpop.f32.mrf.mxu0
    %v3480 = vadd.f32 %v3367, %v3479
    %v3481 = vpop.f32.mrf.mxu0
    %v3482 = vadd.f32 %v3369, %v3481
    %v3483 = vpop.f32.mrf.mxu0
    %v3484 = vadd.f32 %v3371, %v3483
    %3485 = vmatprep.mubr.bf16.mxu0 %v2879
    %3486 = vmatmul.mubr.bf16.gmra.mxu0 %v2878
    %v3487 = vpop.f32.mrf.mxu0
    %v3488 = vadd.f32 %v3375, %v3487
    %v3489 = vpop.f32.mrf.mxu0
    %v3490 = vadd.f32 %v3377, %v3489
    %v3491 = vpop.f32.mrf.mxu0
    %v3492 = vadd.f32 %v3379, %v3491
    %v3493 = vpop.f32.mrf.mxu0
    %v3494 = vadd.f32 %v3381, %v3493
    %3495 = vmatprep.mubr.bf16.mxu0 %v2883
    %3496 = vmatmul.mubr.bf16.gmra.mxu0 %v2882
    %v3497 = vpop.f32.mrf.mxu0
    %v3498 = vadd.f32 %v3385, %v3497
    %v3499 = vpop.f32.mrf.mxu0
    %v3500 = vadd.f32 %v3387, %v3499
    %v3501 = vpop.f32.mrf.mxu0
    %v3502 = vadd.f32 %v3389, %v3501
    %v3503 = vpop.f32.mrf.mxu0
    %v3504 = vadd.f32 %v3391, %v3503
    %3505 = vdwg.mxu0
    %v3506 = vmul.f32 %v3428, 0.2
    %v3507 = vmul.f32 %v3430, 0.2
    %v3508 = vmul.f32 %v3432, 0.2
    %v3509 = vmul.f32 %v3434, 0.2
    %v3510 = vmul.f32 %v3438, 0.2
    %v3511 = vmul.f32 %v3440, 0.2
    %v3512 = vmul.f32 %v3442, 0.2
    %v3513 = vmul.f32 %v3444, 0.2
    %v3514 = vmul.f32 %v3448, 0.2
    %v3515 = vmul.f32 %v3450, 0.2
    %v3516 = vmul.f32 %v3452, 0.2
    %v3517 = vmul.f32 %v3454, 0.2
    %v3518 = vmul.f32 %v3458, 0.2
    %v3519 = vmul.f32 %v3460, 0.2
    %v3520 = vmul.f32 %v3462, 0.2
    %v3521 = vmul.f32 %v3464, 0.2
    %v3522 = vmul.f32 %v3468, 0.2
    %v3523 = vmul.f32 %v3470, 0.2
    %v3524 = vmul.f32 %v3472, 0.2
    %v3525 = vmul.f32 %v3474, 0.2
    %v3526 = vmul.f32 %v3478, 0.2
    %v3527 = vmul.f32 %v3480, 0.2
    %v3528 = vmul.f32 %v3482, 0.2
    %v3529 = vmul.f32 %v3484, 0.2
    %v3530 = vmul.f32 %v3488, 0.2
    %v3531 = vmul.f32 %v3490, 0.2
    %v3532 = vmul.f32 %v3492, 0.2
    %v3533 = vmul.f32 %v3494, 0.2
    %v3534 = vmul.f32 %v3498, 0.2
    %v3535 = vmul.f32 %v3500, 0.2
    %v3536 = vmul.f32 %v3502, 0.2
    %v3537 = vmul.f32 %v3504, 0.2
    %v3538 = vmax.f32 %v3428, %v3506
    %v3539 = vmax.f32 %v3430, %v3507
    %v3540 = vmax.f32 %v3432, %v3508
    %v3541 = vmax.f32 %v3434, %v3509
    %v3542 = vmax.f32 %v3438, %v3510
    %v3543 = vmax.f32 %v3440, %v3511
    %v3544 = vmax.f32 %v3442, %v3512
    %v3545 = vmax.f32 %v3444, %v3513
    %v3546 = vmax.f32 %v3448, %v3514
    %v3547 = vmax.f32 %v3450, %v3515
    %v3548 = vmax.f32 %v3452, %v3516
    %v3549 = vmax.f32 %v3454, %v3517
    %v3550 = vmax.f32 %v3458, %v3518
    %v3551 = vmax.f32 %v3460, %v3519
    %v3552 = vmax.f32 %v3462, %v3520
    %v3553 = vmax.f32 %v3464, %v3521
    %v3554 = vmax.f32 %v3468, %v3522
    %v3555 = vmax.f32 %v3470, %v3523
    %v3556 = vmax.f32 %v3472, %v3524
    %v3557 = vmax.f32 %v3474, %v3525
    %v3558 = vmax.f32 %v3478, %v3526
    %v3559 = vmax.f32 %v3480, %v3527
    %v3560 = vmax.f32 %v3482, %v3528
    %v3561 = vmax.f32 %v3484, %v3529
    %v3562 = vmax.f32 %v3488, %v3530
    %v3563 = vmax.f32 %v3490, %v3531
    %v3564 = vmax.f32 %v3492, %v3532
    %v3565 = vmax.f32 %v3494, %v3533
    %v3566 = vmax.f32 %v3498, %v3534
    %v3567 = vmax.f32 %v3500, %v3535
    %v3568 = vmax.f32 %v3502, %v3536
    %v3569 = vmax.f32 %v3504, %v3537
    %v3570 = vld [vmem:[%s5] sm:$0x3]
    %v3571 = vld [vmem:[#allocation2] sm:$0x1]
    %3573 = vset.pattern.permute.xlu0 0
    %3574 = vperm.xlu0 %3573, %v3571
    %v3575 = vpop.permute.xlu0 %3574
    %v3577 = vlaneseq
    %v3578 = vshrl.u32 %v3577, 7
    %v3579 = vsub.s32 0, %v3578
    %v3580 = vrot.slane %v3575, %v3579
    %v3582 = vlaneseq
    %v3583 = vshrl.u32 %v3582, 7
    %v3584 = vsub.s32 0, %v3583
    %v3585 = vrot.slane %v3570, %v3584
    %v3586 = vlaneseq
    %v3587 = vshrl.u32 %v3586, 7
    %v3588 = vsub.s32 1, %v3587
    %v3589 = vrot.slane %v3570, %v3588
    %3592 = vmatprep.subr.mxu0 %v3569
    %3593 = vmatpush1.xpose.msra.mxu0 %v3568
    %3594 = vmatprep.subr.mxu0 %v3567
    %3595 = vmatpush1.xpose.msra.mxu0 %v3566
    %3596 = vmatprep.subr.mxu0 %v3565
    %3597 = vmatpush1.xpose.msra.mxu0 %v3564
    %3598 = vmatprep.subr.mxu0 %v3563
    %3599 = vmatpush1.xpose.msra.mxu0 %v3562
    %3600 = vmatprep.subr.mxu0 %v3561
    %3601 = vmatpush1.xpose.msra.mxu0 %v3560
    %3602 = vmatprep.subr.mxu0 %v3559
    %3603 = vmatpush1.xpose.msra.mxu0 %v3558
    %3604 = vmatprep.subr.mxu0 %v3557
    %3605 = vmatpush1.xpose.msra.mxu0 %v3556
    %3606 = vmatprep.subr.mxu0 %v3555
    %3607 = vmatpush1.xpose.msra.mxu0 %v3554
    %3608 = vmatprep.subr.mxu0 %v3553
    %3609 = vmatpush1.xpose.msra.mxu0 %v3552
    %3610 = vmatprep.subr.mxu0 %v3551
    %3611 = vmatpush1.xpose.msra.mxu0 %v3550
    %3612 = vmatprep.subr.mxu0 %v3549
    %3613 = vmatpush1.xpose.msra.mxu0 %v3548
    %3614 = vmatprep.subr.mxu0 %v3547
    %3615 = vmatpush1.xpose.msra.mxu0 %v3546
    %3616 = vmatprep.subr.mxu0 %v3545
    %3617 = vmatpush1.xpose.msra.mxu0 %v3544
    %3618 = vmatprep.subr.mxu0 %v3543
    %3619 = vmatpush1.xpose.msra.mxu0 %v3542
    %3620 = vmatprep.subr.mxu0 %v3541
    %3621 = vmatpush1.xpose.msra.mxu0 %v3540
    %3622 = vmatprep.subr.mxu0 %v3539
    %3623 = vmatpush1.xpose.msra.mxu0 %v3538
    %3624 = vmatprep.subr.mxu0 0.0
    %3625 = vmatpush2.xpose.msra.mxu0 0.0
    %3626 = vmatprep.subr.mxu0 0.0
    %3627 = vmatpush2.xpose.msra.mxu0 0.0
    %3628 = vmatprep.subr.mxu0 0.0
    %3629 = vmatpush2.xpose.msra.mxu0 0.0
    %3630 = vmatprep.subr.mxu0 0.0
    %3631 = vmatpush2.xpose.msra.mxu0 0.0
    %3632 = vmatprep.subr.mxu0 0.0
    %3633 = vmatpush2.xpose.msra.mxu0 0.0
    %3634 = vmatprep.subr.mxu0 0.0
    %3635 = vmatpush2.xpose.msra.mxu0 0.0
    %3636 = vmatprep.subr.mxu0 0.0
    %3637 = vmatpush2.xpose.msra.mxu0 0.0
    %3638 = vmatprep.subr.mxu0 0.0
    %3639 = vmatpush2.xpose.msra.mxu0 0.0
    %3640 = vmatprep.subr.mxu0 0.0
    %3641 = vmatpush2.xpose.msra.mxu0 0.0
    %3642 = vmatprep.subr.mxu0 0.0
    %3643 = vmatpush2.xpose.msra.mxu0 0.0
    %3644 = vmatprep.subr.mxu0 0.0
    %3645 = vmatpush2.xpose.msra.mxu0 0.0
    %3646 = vmatprep.subr.mxu0 0.0
    %3647 = vmatpush2.xpose.msra.mxu0 0.0
    %3648 = vmatprep.subr.mxu0 0.0
    %3649 = vmatpush2.xpose.msra.mxu0 0.0
    %3650 = vmatprep.subr.mxu0 0.0
    %3651 = vmatpush2.xpose.msra.mxu0 0.0
    %3652 = vmatprep.subr.mxu0 0.0
    %3653 = vmatpush2.xpose.msra.mxu0 0.0
    %3654 = vmatprep.subr.mxu0 0.0
    %3655 = vmatpush2.xpose.msra.mxu0 0.0
    %3656 = vmatprep.mubr.f32.mxu0 %v3589
    %3657 = vmatmul.mubr.f32.gmra.mxu0 %v3585
    %v3658 = vpop.f32.mrf.mxu0
    %v3659 = vadd.f32 %v3580, %v3658
    %v3660 = vpop.f32.mrf.mxu0
    %3661 = vdwg.mxu0
    %v3662 = vmax.f32 %v3659, -30.0
    %v3663 = vmin.f32 %v3662, 30.0
    %v3664 = vsub.f32 0.0, %v3663
    %v3665 = vmul.f32 %v3664, 1.442695
    %v3666 = vpow.pop %v3665
    %v3667 = vadd.f32 %v3666, 1.0
    %v3668 = vrcp.pop %v3667
    %3669 = vst [vmem:[#allocation9] sm:$0x1] %v3668
    // Predicated region
    $region42: #{tpu_custom_call.1} parent=1 // pred_check
      _
    $region43: #{tpu_custom_call.1} parent=1 // pred_check_branch
      %3671 = sbr.rel (0) target = $region45
    $region44: #{tpu_custom_call.1} parent=1 // pred_region
      %s3673 = ssub.s32 16, 16
      %3674 = vsyncadd [#allocation5], %s3673
      %s3676 = sshll.u32 [#allocation9], 4
      %s3677 = int_to_ptr.vmem [resolvable:$true] %s3676
      %3679 = dma.vmem_to_hbm [thread:$0]  %s3677, 16, %s7, [#allocation5]
    $region45: #{tpu_custom_call.1} parent=1 // pred_fallthru
      _
    // Predicated region
    $region46: #{tpu_custom_call.1} parent=1 // pred_check
      _
    $region47: #{tpu_custom_call.1} parent=1 // pred_check_branch
      %3681 = sbr.rel (0) target = $region49
    $region48: #{tpu_custom_call.1} parent=1 // pred_region
      %3682 = dma.done [#allocation5], 16
    $region49: #{tpu_custom_call.1} parent=1 // pred_fallthru
      _
    %3683 = vsyncpa [#allocation4], 1
    %3684 = vsyncpa [#allocation7], 1
    %3685 = vsyncpa [#allocation5], 1

</llo_original>
